<compile_context>
chip_gen: v5e
topology: v5e:2x2
jax: 0.10.0
libtpu: 0.0.40
codegen_flags: <defaults>
</compile_context>

<pallas_src>
import functools

import jax
import jax.numpy as jnp
from jax import lax
from jax.experimental import pallas as pl
from jax.experimental.pallas import tpu as pltpu


# ----------------------------------------------------------------------------
# The single fused kernel.
#   inputs : p1 (B*100, 256) bf16  conv1 im2col patches, rows ordered
#                                  (parity(ow), b, oh, ow//2)
#            w1 (256,128) w2 (2048,128) w3 (1152,128) l1w (512,2H) l2w (2H,8)  [bf16]
#            b1/b2/b3 (1,128)  l1b/slope (1,2H)  l2b (1,8)                      [f32]
#   output : (B, 8) f32   cols [0:A]=mu, col A=value, rest zero-padding
#   scratch: conv1 output split by w-parity + conv2 output (all f32, all in VMEM)
# ----------------------------------------------------------------------------
def _actor_critic_kernel(p1_ref, w1_ref, b1_ref, w2_ref, b2_ref, w3_ref, b3_ref,
                         l1w_ref, l1b_ref, slope_ref, l2w_ref, l2b_ref,
                         o_ref, a1e_ref, a1o_ref, a2_ref, *, B):
    f32 = jnp.float32
    bf16 = jnp.bfloat16
    NE = B * 10 * 5          # rows per w-parity half of conv1's output (b, h, w//2)

    # ---- conv1 (k=8, s=4, out 10x10x128): one matmul per parity half.  The
    #      activation is written straight to VMEM scratch and never leaves the chip.
    w1 = w1_ref[...]
    b1 = b1_ref[...]
    ye = jnp.dot(p1_ref[pl.ds(0, NE), :], w1, preferred_element_type=f32)
    a1e_ref[...] = jnp.maximum(ye + b1, 0.0)
    yo = jnp.dot(p1_ref[pl.ds(NE, NE), :], w1, preferred_element_type=f32)
    a1o_ref[...] = jnp.maximum(yo + b1, 0.0)

    # ---- conv2 (k=4, s=2, out 4x4x128): in-kernel im2col.  The stride-2 access was
    #      folded into the even/odd-w split, so every load below is a contiguous
    #      4-row slice; patch columns are assembled by lane-aligned concatenation.
    w2 = w2_ref[...]
    b2 = b2_ref[...]
    par = (a1e_ref, a1o_ref)
    for b in range(B):
        for oh in range(4):
            cols = []
            for dh in range(4):
                for dw in range(4):
                    # rows (h = 2*oh+dh, w = 2*ow+dw) for ow = 0..3 are contiguous
                    r0 = (b * 10 + 2 * oh + dh) * 5 + dw // 2
                    cols.append(par[dw % 2][pl.ds(r0, 4), :])        # (4, 128)
            lhs = jnp.concatenate(cols, axis=1).astype(bf16)         # (4, 2048)
            y = jnp.dot(lhs, w2, preferred_element_type=f32)
            a2_ref[b * 4 + oh] = jnp.maximum(y + b2, 0.0)            # (4, 128)

    # ---- conv3 (k=3, s=1, out 2x2x128) + flatten + fused actor/critic heads,
    #      one batch row at a time (M is tiny; everything stays in vregs).
    w3 = w3_ref[...]
    b3 = b3_ref[...]
    l1w = l1w_ref[...]
    l1b = l1b_ref[...]
    slope = slope_ref[...]
    l2w = l2w_ref[...]
    l2b = l2b_ref[...]
    for b in range(B):
        rows = []                                   # rows[p]: (1,128), p = oh*2 + ow
        for oh in range(2):
            cols = []
            for dh in range(3):
                for dw in range(3):
                    g = b * 4 + oh + dh             # conv2 output row (b, h = oh+dh)
                    cols.append(a2_ref[g, pl.ds(dw, 2), :])          # (2, 128)
            lhs = jnp.concatenate(cols, axis=1).astype(bf16)         # (2, 1152)
            y = jnp.dot(lhs, w3, preferred_element_type=f32)
            y = jnp.maximum(y + b3, 0.0)                             # (2, 128)
            rows.extend([y[0:1, :], y[1:2, :]])
        # torch's channel-major .view(B, -1) ordering is reproduced by the one-time
        # row permutation of l1_w in prepare_merged; here the flatten is a plain
        # lane-aligned (spatial-major, channel-minor) concatenation.
        xf = jnp.concatenate(rows, axis=1).astype(bf16)              # (1, 512)
        h = jnp.dot(xf, l1w, preferred_element_type=f32) + l1b       # (1, 2*hidden)
        h = jnp.where(h >= 0.0, h, slope * h)        # ReLU (actor) / LeakyReLU (critic)
        out = jnp.dot(h.astype(bf16), l2w, preferred_element_type=f32) + l2b
        o_ref[pl.ds(b, 1), :] = out.astype(o_ref.dtype)


def _fused_forward(p1, m, B):
    n_pad = m["l2_w"].shape[1]
    hidden2 = m["l1_w"].shape[1]
    args = (p1, m["w1"], m["b1"], m["w2"], m["b2"], m["w3"], m["b3"],
            m["l1_w"], m["l1_b"], m["slope"], m["l2_w"], m["l2_b"])
    cost = pl.CostEstimate(
        flops=2 * B * (100 * 256 * 128 + 16 * 2048 * 128 + 4 * 1152 * 128
                       + 512 * hidden2 + hidden2 * n_pad),
        transcendentals=0,
        bytes_accessed=int(sum(a.size * a.dtype.itemsize for a in args)) + B * n_pad * 4,
    )
    kern = functools.partial(_actor_critic_kernel, B=B)
    full2d = lambda a: pl.BlockSpec(a.shape, lambda i: (0, 0))
    return pl.pallas_call(
        kern,
        out_shape=jax.ShapeDtypeStruct((B, n_pad), jnp.float32),
        grid=(1,),
        in_specs=[full2d(a) for a in args],
        out_specs=pl.BlockSpec((B, n_pad), lambda i: (0, 0)),
        scratch_shapes=[
            pltpu.VMEM((B * 50, 128), jnp.float32),      # conv1 out, even-w columns
            pltpu.VMEM((B * 50, 128), jnp.float32),      # conv1 out, odd-w columns
            pltpu.VMEM((B * 4, 4, 128), jnp.float32),    # conv2 out (b*4+h, w, c)
        ],
        compiler_params=pltpu.CompilerParams(dimension_semantics=("arbitrary",)),
        cost_estimate=cost,
    )(*args)


# ----------------------------------------------------------------------------
# conv1 im2col in channels-last layout (wrapper-side, strided basic slices only).
# Patch feature order = (kd2, kd3, Cin), matching the flattened conv weights.
# ----------------------------------------------------------------------------
def _im2col_nhwc(x, k, s):
    B, H, W, C = x.shape
    Ho = (H - k) // s + 1
    Wo = (W - k) // s + 1
    cols = []
    for dh in range(k):
        for dw in range(k):
            cols.append(
                x[:, dh: dh + (Ho - 1) * s + 1: s, dw: dw + (Wo - 1) * s + 1: s, :]
            )  # (B, Ho, Wo, C)
    p = jnp.stack(cols, axis=3)                      # (B, Ho, Wo, k*k, C)
    return p.reshape(B, Ho, Wo, k * k * C), Ho, Wo


# ----------------------------------------------------------------------------
# Parameters (deterministic synthetic init; per-branch, PyTorch layouts)
# ----------------------------------------------------------------------------
def init_params(key, in_ch, num_actions, hidden):
    ks = jax.random.split(key, 20)

    def w(k, shape, scale=0.05):
        return (scale * jax.random.normal(k, shape)).astype(jnp.float32)

    z = lambda n: jnp.zeros((n,), jnp.float32)
    p = {}
    # --- actor: CNNActor(num_inputs[-1], num_actions, hidden_size) ---
    p["a_c1_w"] = w(ks[0], (32, in_ch, 8, 8)); p["a_c1_b"] = z(32)
    p["a_c2_w"] = w(ks[1], (64, 32, 4, 4));    p["a_c2_b"] = z(64)
    p["a_c3_w"] = w(ks[2], (64, 64, 3, 3));    p["a_c3_b"] = z(64)
    p["a_l1_w"] = w(ks[3], (64 * 2 * 2, hidden));   p["a_l1_b"] = z(hidden)
    p["a_l2_w"] = w(ks[4], (hidden, num_actions));  p["a_l2_b"] = z(num_actions)
    # --- critic: CNNValueNetwork(num_inputs[-1], hidden_size) ---
    p["c_c1_w"] = w(ks[5], (32, in_ch, 8, 8)); p["c_c1_b"] = z(32)
    p["c_c2_w"] = w(ks[6], (64, 32, 4, 4));    p["c_c2_b"] = z(64)
    p["c_c3_w"] = w(ks[7], (64, 64, 3, 3));    p["c_c3_b"] = z(64)
    p["c_l1_w"] = w(ks[8], (64 * 2 * 2, hidden));   p["c_l1_b"] = z(hidden)
    p["c_l2_w"] = w(ks[9], (hidden, 1));            p["c_l2_b"] = z(1)
    # --- log_std: AddBias(torch.zeros(num_outputs)) -> std = exp(0) = 1 ---
    p["log_std"] = z(num_actions)
    return p


# ----------------------------------------------------------------------------
# One-time weight prep (outside the kernel): merge actor + critic, flatten conv
# weights to matmul form, pad to lane-dense widths, permute l1 rows, cast to bf16.
# ----------------------------------------------------------------------------
def _flatten_conv_w(w):
    # torch OIHW (Cout, Cin, kd2, kd3) -> (kd2*kd3*Cin, Cout), matching the
    # (kd2, kd3, Cin) patch ordering used by both im2col paths.
    Co, Ci, k, _ = w.shape
    return jnp.transpose(w, (2, 3, 1, 0)).reshape(k * k * Ci, Co)


def prepare_merged(params):
    hidden = params["a_l1_w"].shape[1]
    num_actions = params["a_l2_w"].shape[1]
    m = {}

    # conv1: Cout = [actor 32 | critic 32 | zero pad 64]  (lane-dense 128)
    w1 = _flatten_conv_w(jnp.concatenate([params["a_c1_w"], params["c_c1_w"]], axis=0))
    m["w1"] = jnp.pad(w1, ((0, 0), (0, 128 - w1.shape[1]))).astype(jnp.bfloat16)
    m["b1"] = jnp.pad(jnp.concatenate([params["a_c1_b"], params["c_c1_b"]]),
                      (0, 64)).reshape(1, 128).astype(jnp.float32)

    # conv2: Cin layout [actor 32 | critic 32 | dead 64], Cout [actor 64 | critic 64]
    W2 = jnp.zeros((128, 128, 4, 4), jnp.float32)
    W2 = W2.at[:64, :32].set(params["a_c2_w"]).at[64:, 32:64].set(params["c_c2_w"])
    m["w2"] = _flatten_conv_w(W2).astype(jnp.bfloat16)              # (2048, 128)
    m["b2"] = jnp.concatenate([params["a_c2_b"], params["c_c2_b"]]).reshape(1, 128)

    # conv3: block-diagonal 64/64
    W3 = jnp.zeros((128, 128, 3, 3), jnp.float32)
    W3 = W3.at[:64, :64].set(params["a_c3_w"]).at[64:, 64:].set(params["c_c3_w"])
    m["w3"] = _flatten_conv_w(W3).astype(jnp.bfloat16)              # (1152, 128)
    m["b3"] = jnp.concatenate([params["a_c3_b"], params["c_c3_b"]]).reshape(1, 128)

    # linear1: torch flatten index is c*4 + d2*2 + d3 (channel-major); the kernel's
    # flatten index is (d2*2+d3)*128 + c_merged.  Permute the weight rows ONCE here.
    def perm_l1(w):  # (64*2*2, hidden) indexed (c, d2, d3) -> (p = d2*2+d3, c, hidden)
        return jnp.transpose(w.reshape(64, 2, 2, hidden), (1, 2, 0, 3)).reshape(4, 64, hidden)

    a_p, c_p = perm_l1(params["a_l1_w"]), perm_l1(params["c_l1_w"])
    z = jnp.zeros_like(a_p)
    m["l1_w"] = jnp.concatenate(
        [jnp.concatenate([a_p, z], axis=-1), jnp.concatenate([z, c_p], axis=-1)], axis=1
    ).reshape(4 * 128, 2 * hidden).astype(jnp.bfloat16)
    m["l1_b"] = jnp.concatenate([params["a_l1_b"], params["c_l1_b"]]).reshape(1, 2 * hidden)

    # activation-slope row: ReLU (slope 0.0) on actor cols, LeakyReLU(0.01) on critic cols
    m["slope"] = jnp.concatenate(
        [jnp.zeros((hidden,), jnp.float32), jnp.full((hidden,), 0.01, jnp.float32)]
    ).reshape(1, 2 * hidden)

    # heads: (2*hidden, pad8(A+1)); cols [0:A] = mu, col A = value, rest zero
    n_out = num_actions + 1
    n_pad = ((n_out + 7) // 8) * 8
    l2 = jnp.zeros((2 * hidden, n_pad), jnp.float32)
    l2 = l2.at[:hidden, :num_actions].set(params["a_l2_w"])
    l2 = l2.at[hidden:, num_actions:num_actions + 1].set(params["c_l2_w"])
    m["l2_w"] = l2.astype(jnp.bfloat16)
    b2h = jnp.zeros((n_pad,), jnp.float32)
    b2h = b2h.at[:num_actions].set(params["a_l2_b"])
    b2h = b2h.at[num_actions:num_actions + 1].set(params["c_l2_b"])
    m["l2_b"] = b2h.reshape(1, n_pad)

    m["log_std"] = params["log_std"]
    return m


# ----------------------------------------------------------------------------
# ActorCritic.forward (use_batch_actor=False): returns (mu, std, value)
# ----------------------------------------------------------------------------
def actor_critic_forward(merged, x):
    B = x.shape[0]
    num_actions = merged["log_std"].shape[0]
    # torch: inputs.transpose(1, 3) / 255.0 : (B, H, W, C) -> (B, C, W, H).
    # We stay channels-last and only swap the two spatial dims once on the raw input.
    xt = jnp.transpose(x, (0, 2, 1, 3)) * (1.0 / 255.0)             # (B, d2, d3, C)

    patches, Ho, Wo = _im2col_nhwc(xt, 8, 4)                        # (B, 10, 10, 256)
    assert Ho == 10 and Wo == 10, "64*2*2 Flatten in the module implies 44x44 inputs"
    # split conv1-output rows by output-w parity so the in-kernel stride-2 conv2
    # im2col only ever needs contiguous row slices of the VMEM scratch.
    pe = patches[:, :, 0::2, :].reshape(B * Ho * (Wo // 2), -1)
    po = patches[:, :, 1::2, :].reshape(B * Ho * (Wo // 2), -1)
    p1 = jnp.concatenate([pe, po], axis=0).astype(jnp.bfloat16)     # (B*100, 256)

    out = _fused_forward(p1, merged, B)                             # (B, 8)
    mu = out[:, :num_actions]
    value = out[:, num_actions:num_actions + 1]

    # std = log_std(zeros).exp()  (AddBias broadcast + exp; trivial elementwise)
    std = jnp.exp(jnp.broadcast_to(merged["log_std"], mu.shape))
    return mu, std, value


# ----------------------------------------------------------------------------
# Pure-JAX reference (full f32 HIGHEST precision) for correctness checking
# ----------------------------------------------------------------------------
def reference_forward(params, x):
    xt = jnp.transpose(x, (0, 3, 2, 1)) / 255.0

    def conv(h, w, b, s):
        y = lax.conv_general_dilated(
            h, w, (s, s), "VALID",
            dimension_numbers=("NCHW", "OIHW", "NCHW"),
            precision=lax.Precision.HIGHEST,
        )
        return jnp.maximum(y + b[None, :, None, None], 0.0)

    def trunk(prefix):
        h = conv(xt, params[prefix + "_c1_w"], params[prefix + "_c1_b"], 4)
        h = conv(h, params[prefix + "_c2_w"], params[prefix + "_c2_b"], 2)
        h = conv(h, params[prefix + "_c3_w"], params[prefix + "_c3_b"], 1)
        return h.reshape(h.shape[0], -1)

    mm = lambda a, b: jnp.matmul(a, b, precision=lax.Precision.HIGHEST)

    hc = trunk("c")
    hc1 = mm(hc, params["c_l1_w"]) + params["c_l1_b"]
    hc1 = jnp.where(hc1 >= 0.0, hc1, 0.01 * hc1)
    value = mm(hc1, params["c_l2_w"]) + params["c_l2_b"]

    ha = trunk("a")
    ha1 = jnp.maximum(mm(ha, params["a_l1_w"]) + params["a_l1_b"], 0.0)
    mu = mm(ha1, params["a_l2_w"]) + params["a_l2_b"]

    std = jnp.exp(jnp.broadcast_to(params["log_std"], mu.shape))
    return mu, std, value


if __name__ == "__main__":
    # The 64*2*2 Flatten in the module implies 44x44 spatial inputs:
    # 44 -(k8,s4)-> 10 -(k4,s2)-> 4 -(k3,s1)-> 2.
    B, H, W, C = 2, 44, 44, 4
    num_actions, hidden = 6, 128

    key = jax.random.PRNGKey(0)
    kx, kp = jax.random.split(key)
    x = jax.random.uniform(kx, (B, H, W, C), dtype=jnp.float32, minval=0.0, maxval=255.0)
    params = init_params(kp, C, num_actions, hidden)
    merged = prepare_merged(params)   # one-time weight merge / permutation / bf16 cast

    fwd = jax.jit(actor_critic_forward)
    mu, std, value = jax.block_until_ready(fwd(merged, x))
    mu_r, std_r, value_r = jax.block_until_ready(jax.jit(reference_forward)(params, x))

    assert mu.shape == (B, num_actions) and std.shape == (B, num_actions) and value.shape == (B, 1)
    assert jnp.all(jnp.isfinite(mu)) and jnp.all(jnp.isfinite(std)) and jnp.all(jnp.isfinite(value))
    # Tolerances loosened vs the f32-HIGHEST reference: all matmuls are bf16 x bf16 on
    # the MXU (f32 accumulation), matching the performance-review recommendation.
    assert jnp.allclose(mu, mu_r, rtol=5e-2, atol=5e-2)
    assert jnp.allclose(std, std_r, rtol=5e-2, atol=5e-2)
    assert jnp.allclose(value, value_r, rtol=5e-2, atol=5e-2)

    # TODO(synk): the torch.distributions.Normal object (rsample/log_prob) and the
    # torch.isnan asserts are host-side glue; the kernel returns (mu, std, value).
    print("KERNEL_OK")
</pallas_src>

<mosaic_0001>
module attributes {stable_mosaic.version = 11 : i64} {
  func.func @_actor_critic_kernel(%arg0: i32, %arg1: memref<200x256xbf16, #tpu.memory_space<vmem>>, %arg2: memref<256x128xbf16, #tpu.memory_space<vmem>>, %arg3: memref<1x128xf32, #tpu.memory_space<vmem>>, %arg4: memref<2048x128xbf16, #tpu.memory_space<vmem>>, %arg5: memref<1x128xf32, #tpu.memory_space<vmem>>, %arg6: memref<1152x128xbf16, #tpu.memory_space<vmem>>, %arg7: memref<1x128xf32, #tpu.memory_space<vmem>>, %arg8: memref<512x256xbf16, #tpu.memory_space<vmem>>, %arg9: memref<1x256xf32, #tpu.memory_space<vmem>>, %arg10: memref<1x256xf32, #tpu.memory_space<vmem>>, %arg11: memref<256x8xbf16, #tpu.memory_space<vmem>>, %arg12: memref<1x8xf32, #tpu.memory_space<vmem>>, %arg13: memref<2x8xf32, #tpu.memory_space<vmem>>, %arg14: memref<100x128xf32, #tpu.memory_space<vmem>>, %arg15: memref<100x128xf32, #tpu.memory_space<vmem>>, %arg16: memref<8x4x128xf32, #tpu.memory_space<vmem>>) attributes {dimension_semantics = [#tpu.dimension_semantics<arbitrary>], iteration_bounds = array<i64: 1>, scalar_prefetch = 0 : i64, scratch_operands = 3 : i64, tpu.core_type = #tpu.core_type<tc>, window_params = [{pipeline_mode = #tpu.pipeline_mode<synchronous>, transform_indices = @transform_0, window_bounds = array<i64: 200, 256>}, {pipeline_mode = #tpu.pipeline_mode<synchronous>, transform_indices = @transform_1, window_bounds = array<i64: 256, 128>}, {pipeline_mode = #tpu.pipeline_mode<synchronous>, transform_indices = @transform_2, window_bounds = array<i64: 1, 128>}, {pipeline_mode = #tpu.pipeline_mode<synchronous>, transform_indices = @transform_3, window_bounds = array<i64: 2048, 128>}, {pipeline_mode = #tpu.pipeline_mode<synchronous>, transform_indices = @transform_4, window_bounds = array<i64: 1, 128>}, {pipeline_mode = #tpu.pipeline_mode<synchronous>, transform_indices = @transform_5, window_bounds = array<i64: 1152, 128>}, {pipeline_mode = #tpu.pipeline_mode<synchronous>, transform_indices = @transform_6, window_bounds = array<i64: 1, 128>}, {pipeline_mode = #tpu.pipeline_mode<synchronous>, transform_indices = @transform_7, window_bounds = array<i64: 512, 256>}, {pipeline_mode = #tpu.pipeline_mode<synchronous>, transform_indices = @transform_8, window_bounds = array<i64: 1, 256>}, {pipeline_mode = #tpu.pipeline_mode<synchronous>, transform_indices = @transform_9, window_bounds = array<i64: 1, 256>}, {pipeline_mode = #tpu.pipeline_mode<synchronous>, transform_indices = @transform_10, window_bounds = array<i64: 256, 8>}, {pipeline_mode = #tpu.pipeline_mode<synchronous>, transform_indices = @transform_11, window_bounds = array<i64: 1, 8>}, {pipeline_mode = #tpu.pipeline_mode<synchronous>, transform_indices = @transform_12, window_bounds = array<i64: 2, 8>}]} {
    %c0 = arith.constant 0 : index
    %c0_0 = arith.constant 0 : index
    %0 = vector.load %arg2[%c0, %c0_0] : memref<256x128xbf16, #tpu.memory_space<vmem>>, vector<256x128xbf16>
    %c0_1 = arith.constant 0 : index
    %c0_2 = arith.constant 0 : index
    %1 = vector.load %arg3[%c0_1, %c0_2] : memref<1x128xf32, #tpu.memory_space<vmem>>, vector<1x128xf32>
    %c0_3 = arith.constant 0 : index
    %c0_4 = arith.constant 0 : index
    %2 = vector.load %arg1[%c0_3, %c0_4] : memref<200x256xbf16, #tpu.memory_space<vmem>>, vector<100x256xbf16>
    %cst = arith.constant dense<0.000000e+00> : vector<100x128xf32>
    %3 = tpu.matmul %2, %0, %cst {dimension_numbers = #tpu.dot_dimension_numbers<[1], [0], [0], [1], [0, 0, 1, 1], [], []>} : vector<100x256xbf16>, vector<256x128xbf16>, vector<100x128xf32> -> vector<100x128xf32>
    %4 = vector.broadcast %1 : vector<1x128xf32> to vector<100x128xf32>
    %5 = arith.addf %3, %4 : vector<100x128xf32>
    %cst_5 = arith.constant 0.000000e+00 : f32
    %6 = vector.broadcast %cst_5 : f32 to vector<100x128xf32>
    %7 = arith.maximumf %5, %6 : vector<100x128xf32>
    %c0_6 = arith.constant 0 : index
    %c0_7 = arith.constant 0 : index
    %8 = vector.load %arg14[%c0_6, %c0_7] : memref<100x128xf32, #tpu.memory_space<vmem>>, vector<100x128xf32>
    tpu.vector_store %arg14[%c0_6, %c0_7], %7 {strides = array<i32>} : memref<100x128xf32, #tpu.memory_space<vmem>>, vector<100x128xf32>,
    %c100 = arith.constant 100 : index
    %c0_8 = arith.constant 0 : index
    %9 = vector.load %arg1[%c100, %c0_8] : memref<200x256xbf16, #tpu.memory_space<vmem>>, vector<100x256xbf16>
    %cst_9 = arith.constant dense<0.000000e+00> : vector<100x128xf32>
    %10 = tpu.matmul %9, %0, %cst_9 {dimension_numbers = #tpu.dot_dimension_numbers<[1], [0], [0], [1], [0, 0, 1, 1], [], []>} : vector<100x256xbf16>, vector<256x128xbf16>, vector<100x128xf32> -> vector<100x128xf32>
    %11 = vector.broadcast %1 : vector<1x128xf32> to vector<100x128xf32>
    %12 = arith.addf %10, %11 : vector<100x128xf32>
    %cst_10 = arith.constant 0.000000e+00 : f32
    %13 = vector.broadcast %cst_10 : f32 to vector<100x128xf32>
    %14 = arith.maximumf %12, %13 : vector<100x128xf32>
    %c0_11 = arith.constant 0 : index
    %c0_12 = arith.constant 0 : index
    %15 = vector.load %arg15[%c0_11, %c0_12] : memref<100x128xf32, #tpu.memory_space<vmem>>, vector<100x128xf32>
    tpu.vector_store %arg15[%c0_11, %c0_12], %14 {strides = array<i32>} : memref<100x128xf32, #tpu.memory_space<vmem>>, vector<100x128xf32>,
    %c0_13 = arith.constant 0 : index
    %c0_14 = arith.constant 0 : index
    %16 = vector.load %arg4[%c0_13, %c0_14] : memref<2048x128xbf16, #tpu.memory_space<vmem>>, vector<2048x128xbf16>
    %c0_15 = arith.constant 0 : index
    %c0_16 = arith.constant 0 : index
    %17 = vector.load %arg5[%c0_15, %c0_16] : memref<1x128xf32, #tpu.memory_space<vmem>>, vector<1x128xf32>
    %c0_17 = arith.constant 0 : index
    %c0_18 = arith.constant 0 : index
    %18 = vector.load %arg14[%c0_17, %c0_18] : memref<100x128xf32, #tpu.memory_space<vmem>>, vector<4x128xf32>
    %c0_19 = arith.constant 0 : index
    %c0_20 = arith.constant 0 : index
    %19 = vector.load %arg15[%c0_19, %c0_20] : memref<100x128xf32, #tpu.memory_space<vmem>>, vector<4x128xf32>
    %c1 = arith.constant 1 : index
    %c0_21 = arith.constant 0 : index
    %20 = vector.load %arg14[%c1, %c0_21] : memref<100x128xf32, #tpu.memory_space<vmem>>, vector<4x128xf32>
    %c1_22 = arith.constant 1 : index
    %c0_23 = arith.constant 0 : index
    %21 = vector.load %arg15[%c1_22, %c0_23] : memref<100x128xf32, #tpu.memory_space<vmem>>, vector<4x128xf32>
    %c5 = arith.constant 5 : index
    %c0_24 = arith.constant 0 : index
    %22 = vector.load %arg14[%c5, %c0_24] : memref<100x128xf32, #tpu.memory_space<vmem>>, vector<4x128xf32>
    %c5_25 = arith.constant 5 : index
    %c0_26 = arith.constant 0 : index
    %23 = vector.load %arg15[%c5_25, %c0_26] : memref<100x128xf32, #tpu.memory_space<vmem>>, vector<4x128xf32>
    %c6 = arith.constant 6 : index
    %c0_27 = arith.constant 0 : index
    %24 = vector.load %arg14[%c6, %c0_27] : memref<100x128xf32, #tpu.memory_space<vmem>>, vector<4x128xf32>
    %c6_28 = arith.constant 6 : index
    %c0_29 = arith.constant 0 : index
    %25 = vector.load %arg15[%c6_28, %c0_29] : memref<100x128xf32, #tpu.memory_space<vmem>>, vector<4x128xf32>
    %c10 = arith.constant 10 : index
    %c0_30 = arith.constant 0 : index
    %26 = vector.load %arg14[%c10, %c0_30] : memref<100x128xf32, #tpu.memory_space<vmem>>, vector<4x128xf32>
    %c10_31 = arith.constant 10 : index
    %c0_32 = arith.constant 0 : index
    %27 = vector.load %arg15[%c10_31, %c0_32] : memref<100x128xf32, #tpu.memory_space<vmem>>, vector<4x128xf32>
    %c11 = arith.constant 11 : index
    %c0_33 = arith.constant 0 : index
    %28 = vector.load %arg14[%c11, %c0_33] : memref<100x128xf32, #tpu.memory_space<vmem>>, vector<4x128xf32>
    %c11_34 = arith.constant 11 : index
    %c0_35 = arith.constant 0 : index
    %29 = vector.load %arg15[%c11_34, %c0_35] : memref<100x128xf32, #tpu.memory_space<vmem>>, vector<4x128xf32>
    %c15 = arith.constant 15 : index
    %c0_36 = arith.constant 0 : index
    %30 = vector.load %arg14[%c15, %c0_36] : memref<100x128xf32, #tpu.memory_space<vmem>>, vector<4x128xf32>
    %c15_37 = arith.constant 15 : index
    %c0_38 = arith.constant 0 : index
    %31 = vector.load %arg15[%c15_37, %c0_38] : memref<100x128xf32, #tpu.memory_space<vmem>>, vector<4x128xf32>
    %c16 = arith.constant 16 : index
    %c0_39 = arith.constant 0 : index
    %32 = vector.load %arg14[%c16, %c0_39] : memref<100x128xf32, #tpu.memory_space<vmem>>, vector<4x128xf32>
    %c16_40 = arith.constant 16 : index
    %c0_41 = arith.constant 0 : index
    %33 = vector.load %arg15[%c16_40, %c0_41] : memref<100x128xf32, #tpu.memory_space<vmem>>, vector<4x128xf32>
    %34 = tpu.concatenate %18, %19, %20, %21, %22, %23, %24, %25, %26, %27, %28, %29, %30, %31, %32, %33 in 1 : vector<4x128xf32>, vector<4x128xf32>, vector<4x128xf32>, vector<4x128xf32>, vector<4x128xf32>, vector<4x128xf32>, vector<4x128xf32>, vector<4x128xf32>, vector<4x128xf32>, vector<4x128xf32>, vector<4x128xf32>, vector<4x128xf32>, vector<4x128xf32>, vector<4x128xf32>, vector<4x128xf32>, vector<4x128xf32> -> vector<4x2048xf32>
    %35 = arith.truncf %34 : vector<4x2048xf32> to vector<4x2048xbf16>
    %cst_42 = arith.constant dense<0.000000e+00> : vector<4x128xf32>
    %36 = tpu.matmul %35, %16, %cst_42 {dimension_numbers = #tpu.dot_dimension_numbers<[1], [0], [0], [1], [0, 0, 1, 1], [], []>} : vector<4x2048xbf16>, vector<2048x128xbf16>, vector<4x128xf32> -> vector<4x128xf32>
    %37 = vector.broadcast %17 : vector<1x128xf32> to vector<4x128xf32>
    %38 = arith.addf %36, %37 : vector<4x128xf32>
    %cst_43 = arith.constant 0.000000e+00 : f32
    %39 = vector.broadcast %cst_43 : f32 to vector<4x128xf32>
    %40 = arith.maximumf %38, %39 : vector<4x128xf32>
    %c0_44 = arith.constant 0 : index
    %c0_45 = arith.constant 0 : index
    %c0_46 = arith.constant 0 : index
    %41 = vector.load %arg16[%c0_44, %c0_45, %c0_46] : memref<8x4x128xf32, #tpu.memory_space<vmem>>, vector<1x4x128xf32>
    %42 = vector.shape_cast %41 : vector<1x4x128xf32> to vector<4x128xf32>
    %43 = vector.shape_cast %40 : vector<4x128xf32> to vector<1x4x128xf32>
    tpu.vector_store %arg16[%c0_44, %c0_45, %c0_46], %43 {strides = array<i32>} : memref<8x4x128xf32, #tpu.memory_space<vmem>>, vector<1x4x128xf32>,
    %c10_47 = arith.constant 10 : index
    %c0_48 = arith.constant 0 : index
    %44 = vector.load %arg14[%c10_47, %c0_48] : memref<100x128xf32, #tpu.memory_space<vmem>>, vector<4x128xf32>
    %c10_49 = arith.constant 10 : index
    %c0_50 = arith.constant 0 : index
    %45 = vector.load %arg15[%c10_49, %c0_50] : memref<100x128xf32, #tpu.memory_space<vmem>>, vector<4x128xf32>
    %c11_51 = arith.constant 11 : index
    %c0_52 = arith.constant 0 : index
    %46 = vector.load %arg14[%c11_51, %c0_52] : memref<100x128xf32, #tpu.memory_space<vmem>>, vector<4x128xf32>
    %c11_53 = arith.constant 11 : index
    %c0_54 = arith.constant 0 : index
    %47 = vector.load %arg15[%c11_53, %c0_54] : memref<100x128xf32, #tpu.memory_space<vmem>>, vector<4x128xf32>
    %c15_55 = arith.constant 15 : index
    %c0_56 = arith.constant 0 : index
    %48 = vector.load %arg14[%c15_55, %c0_56] : memref<100x128xf32, #tpu.memory_space<vmem>>, vector<4x128xf32>
    %c15_57 = arith.constant 15 : index
    %c0_58 = arith.constant 0 : index
    %49 = vector.load %arg15[%c15_57, %c0_58] : memref<100x128xf32, #tpu.memory_space<vmem>>, vector<4x128xf32>
    %c16_59 = arith.constant 16 : index
    %c0_60 = arith.constant 0 : index
    %50 = vector.load %arg14[%c16_59, %c0_60] : memref<100x128xf32, #tpu.memory_space<vmem>>, vector<4x128xf32>
    %c16_61 = arith.constant 16 : index
    %c0_62 = arith.constant 0 : index
    %51 = vector.load %arg15[%c16_61, %c0_62] : memref<100x128xf32, #tpu.memory_space<vmem>>, vector<4x128xf32>
    %c20 = arith.constant 20 : index
    %c0_63 = arith.constant 0 : index
    %52 = vector.load %arg14[%c20, %c0_63] : memref<100x128xf32, #tpu.memory_space<vmem>>, vector<4x128xf32>
    %c20_64 = arith.constant 20 : index
    %c0_65 = arith.constant 0 : index
    %53 = vector.load %arg15[%c20_64, %c0_65] : memref<100x128xf32, #tpu.memory_space<vmem>>, vector<4x128xf32>
    %c21 = arith.constant 21 : index
    %c0_66 = arith.constant 0 : index
    %54 = vector.load %arg14[%c21, %c0_66] : memref<100x128xf32, #tpu.memory_space<vmem>>, vector<4x128xf32>
    %c21_67 = arith.constant 21 : index
    %c0_68 = arith.constant 0 : index
    %55 = vector.load %arg15[%c21_67, %c0_68] : memref<100x128xf32, #tpu.memory_space<vmem>>, vector<4x128xf32>
    %c25 = arith.constant 25 : index
    %c0_69 = arith.constant 0 : index
    %56 = vector.load %arg14[%c25, %c0_69] : memref<100x128xf32, #tpu.memory_space<vmem>>, vector<4x128xf32>
    %c25_70 = arith.constant 25 : index
    %c0_71 = arith.constant 0 : index
    %57 = vector.load %arg15[%c25_70, %c0_71] : memref<100x128xf32, #tpu.memory_space<vmem>>, vector<4x128xf32>
    %c26 = arith.constant 26 : index
    %c0_72 = arith.constant 0 : index
    %58 = vector.load %arg14[%c26, %c0_72] : memref<100x128xf32, #tpu.memory_space<vmem>>, vector<4x128xf32>
    %c26_73 = arith.constant 26 : index
    %c0_74 = arith.constant 0 : index
    %59 = vector.load %arg15[%c26_73, %c0_74] : memref<100x128xf32, #tpu.memory_space<vmem>>, vector<4x128xf32>
    %60 = tpu.concatenate %44, %45, %46, %47, %48, %49, %50, %51, %52, %53, %54, %55, %56, %57, %58, %59 in 1 : vector<4x128xf32>, vector<4x128xf32>, vector<4x128xf32>, vector<4x128xf32>, vector<4x128xf32>, vector<4x128xf32>, vector<4x128xf32>, vector<4x128xf32>, vector<4x128xf32>, vector<4x128xf32>, vector<4x128xf32>, vector<4x128xf32>, vector<4x128xf32>, vector<4x128xf32>, vector<4x128xf32>, vector<4x128xf32> -> vector<4x2048xf32>
    %61 = arith.truncf %60 : vector<4x2048xf32> to vector<4x2048xbf16>
    %cst_75 = arith.constant dense<0.000000e+00> : vector<4x128xf32>
    %62 = tpu.matmul %61, %16, %cst_75 {dimension_numbers = #tpu.dot_dimension_numbers<[1], [0], [0], [1], [0, 0, 1, 1], [], []>} : vector<4x2048xbf16>, vector<2048x128xbf16>, vector<4x128xf32> -> vector<4x128xf32>
    %63 = vector.broadcast %17 : vector<1x128xf32> to vector<4x128xf32>
    %64 = arith.addf %62, %63 : vector<4x128xf32>
    %cst_76 = arith.constant 0.000000e+00 : f32
    %65 = vector.broadcast %cst_76 : f32 to vector<4x128xf32>
    %66 = arith.maximumf %64, %65 : vector<4x128xf32>
    %c1_77 = arith.constant 1 : index
    %c0_78 = arith.constant 0 : index
    %c0_79 = arith.constant 0 : index
    %67 = vector.load %arg16[%c1_77, %c0_78, %c0_79] : memref<8x4x128xf32, #tpu.memory_space<vmem>>, vector<1x4x128xf32>
    %68 = vector.shape_cast %67 : vector<1x4x128xf32> to vector<4x128xf32>
    %69 = vector.shape_cast %66 : vector<4x128xf32> to vector<1x4x128xf32>
    tpu.vector_store %arg16[%c1_77, %c0_78, %c0_79], %69 {strides = array<i32>} : memref<8x4x128xf32, #tpu.memory_space<vmem>>, vector<1x4x128xf32>,
    %c20_80 = arith.constant 20 : index
    %c0_81 = arith.constant 0 : index
    %70 = vector.load %arg14[%c20_80, %c0_81] : memref<100x128xf32, #tpu.memory_space<vmem>>, vector<4x128xf32>
    %c20_82 = arith.constant 20 : index
    %c0_83 = arith.constant 0 : index
    %71 = vector.load %arg15[%c20_82, %c0_83] : memref<100x128xf32, #tpu.memory_space<vmem>>, vector<4x128xf32>
    %c21_84 = arith.constant 21 : index
    %c0_85 = arith.constant 0 : index
    %72 = vector.load %arg14[%c21_84, %c0_85] : memref<100x128xf32, #tpu.memory_space<vmem>>, vector<4x128xf32>
    %c21_86 = arith.constant 21 : index
    %c0_87 = arith.constant 0 : index
    %73 = vector.load %arg15[%c21_86, %c0_87] : memref<100x128xf32, #tpu.memory_space<vmem>>, vector<4x128xf32>
    %c25_88 = arith.constant 25 : index
    %c0_89 = arith.constant 0 : index
    %74 = vector.load %arg14[%c25_88, %c0_89] : memref<100x128xf32, #tpu.memory_space<vmem>>, vector<4x128xf32>
    %c25_90 = arith.constant 25 : index
    %c0_91 = arith.constant 0 : index
    %75 = vector.load %arg15[%c25_90, %c0_91] : memref<100x128xf32, #tpu.memory_space<vmem>>, vector<4x128xf32>
    %c26_92 = arith.constant 26 : index
    %c0_93 = arith.constant 0 : index
    %76 = vector.load %arg14[%c26_92, %c0_93] : memref<100x128xf32, #tpu.memory_space<vmem>>, vector<4x128xf32>
    %c26_94 = arith.constant 26 : index
    %c0_95 = arith.constant 0 : index
    %77 = vector.load %arg15[%c26_94, %c0_95] : memref<100x128xf32, #tpu.memory_space<vmem>>, vector<4x128xf32>
    %c30 = arith.constant 30 : index
    %c0_96 = arith.constant 0 : index
    %78 = vector.load %arg14[%c30, %c0_96] : memref<100x128xf32, #tpu.memory_space<vmem>>, vector<4x128xf32>
    %c30_97 = arith.constant 30 : index
    %c0_98 = arith.constant 0 : index
    %79 = vector.load %arg15[%c30_97, %c0_98] : memref<100x128xf32, #tpu.memory_space<vmem>>, vector<4x128xf32>
    %c31 = arith.constant 31 : index
    %c0_99 = arith.constant 0 : index
    %80 = vector.load %arg14[%c31, %c0_99] : memref<100x128xf32, #tpu.memory_space<vmem>>, vector<4x128xf32>
    %c31_100 = arith.constant 31 : index
    %c0_101 = arith.constant 0 : index
    %81 = vector.load %arg15[%c31_100, %c0_101] : memref<100x128xf32, #tpu.memory_space<vmem>>, vector<4x128xf32>
    %c35 = arith.constant 35 : index
    %c0_102 = arith.constant 0 : index
    %82 = vector.load %arg14[%c35, %c0_102] : memref<100x128xf32, #tpu.memory_space<vmem>>, vector<4x128xf32>
    %c35_103 = arith.constant 35 : index
    %c0_104 = arith.constant 0 : index
    %83 = vector.load %arg15[%c35_103, %c0_104] : memref<100x128xf32, #tpu.memory_space<vmem>>, vector<4x128xf32>
    %c36 = arith.constant 36 : index
    %c0_105 = arith.constant 0 : index
    %84 = vector.load %arg14[%c36, %c0_105] : memref<100x128xf32, #tpu.memory_space<vmem>>, vector<4x128xf32>
    %c36_106 = arith.constant 36 : index
    %c0_107 = arith.constant 0 : index
    %85 = vector.load %arg15[%c36_106, %c0_107] : memref<100x128xf32, #tpu.memory_space<vmem>>, vector<4x128xf32>
    %86 = tpu.concatenate %70, %71, %72, %73, %74, %75, %76, %77, %78, %79, %80, %81, %82, %83, %84, %85 in 1 : vector<4x128xf32>, vector<4x128xf32>, vector<4x128xf32>, vector<4x128xf32>, vector<4x128xf32>, vector<4x128xf32>, vector<4x128xf32>, vector<4x128xf32>, vector<4x128xf32>, vector<4x128xf32>, vector<4x128xf32>, vector<4x128xf32>, vector<4x128xf32>, vector<4x128xf32>, vector<4x128xf32>, vector<4x128xf32> -> vector<4x2048xf32>
    %87 = arith.truncf %86 : vector<4x2048xf32> to vector<4x2048xbf16>
    %cst_108 = arith.constant dense<0.000000e+00> : vector<4x128xf32>
    %88 = tpu.matmul %87, %16, %cst_108 {dimension_numbers = #tpu.dot_dimension_numbers<[1], [0], [0], [1], [0, 0, 1, 1], [], []>} : vector<4x2048xbf16>, vector<2048x128xbf16>, vector<4x128xf32> -> vector<4x128xf32>
    %89 = vector.broadcast %17 : vector<1x128xf32> to vector<4x128xf32>
    %90 = arith.addf %88, %89 : vector<4x128xf32>
    %cst_109 = arith.constant 0.000000e+00 : f32
    %91 = vector.broadcast %cst_109 : f32 to vector<4x128xf32>
    %92 = arith.maximumf %90, %91 : vector<4x128xf32>
    %c2 = arith.constant 2 : index
    %c0_110 = arith.constant 0 : index
    %c0_111 = arith.constant 0 : index
    %93 = vector.load %arg16[%c2, %c0_110, %c0_111] : memref<8x4x128xf32, #tpu.memory_space<vmem>>, vector<1x4x128xf32>
    %94 = vector.shape_cast %93 : vector<1x4x128xf32> to vector<4x128xf32>
    %95 = vector.shape_cast %92 : vector<4x128xf32> to vector<1x4x128xf32>
    tpu.vector_store %arg16[%c2, %c0_110, %c0_111], %95 {strides = array<i32>} : memref<8x4x128xf32, #tpu.memory_space<vmem>>, vector<1x4x128xf32>,
    %c30_112 = arith.constant 30 : index
    %c0_113 = arith.constant 0 : index
    %96 = vector.load %arg14[%c30_112, %c0_113] : memref<100x128xf32, #tpu.memory_space<vmem>>, vector<4x128xf32>
    %c30_114 = arith.constant 30 : index
    %c0_115 = arith.constant 0 : index
    %97 = vector.load %arg15[%c30_114, %c0_115] : memref<100x128xf32, #tpu.memory_space<vmem>>, vector<4x128xf32>
    %c31_116 = arith.constant 31 : index
    %c0_117 = arith.constant 0 : index
    %98 = vector.load %arg14[%c31_116, %c0_117] : memref<100x128xf32, #tpu.memory_space<vmem>>, vector<4x128xf32>
    %c31_118 = arith.constant 31 : index
    %c0_119 = arith.constant 0 : index
    %99 = vector.load %arg15[%c31_118, %c0_119] : memref<100x128xf32, #tpu.memory_space<vmem>>, vector<4x128xf32>
    %c35_120 = arith.constant 35 : index
    %c0_121 = arith.constant 0 : index
    %100 = vector.load %arg14[%c35_120, %c0_121] : memref<100x128xf32, #tpu.memory_space<vmem>>, vector<4x128xf32>
    %c35_122 = arith.constant 35 : index
    %c0_123 = arith.constant 0 : index
    %101 = vector.load %arg15[%c35_122, %c0_123] : memref<100x128xf32, #tpu.memory_space<vmem>>, vector<4x128xf32>
    %c36_124 = arith.constant 36 : index
    %c0_125 = arith.constant 0 : index
    %102 = vector.load %arg14[%c36_124, %c0_125] : memref<100x128xf32, #tpu.memory_space<vmem>>, vector<4x128xf32>
    %c36_126 = arith.constant 36 : index
    %c0_127 = arith.constant 0 : index
    %103 = vector.load %arg15[%c36_126, %c0_127] : memref<100x128xf32, #tpu.memory_space<vmem>>, vector<4x128xf32>
    %c40 = arith.constant 40 : index
    %c0_128 = arith.constant 0 : index
    %104 = vector.load %arg14[%c40, %c0_128] : memref<100x128xf32, #tpu.memory_space<vmem>>, vector<4x128xf32>
    %c40_129 = arith.constant 40 : index
    %c0_130 = arith.constant 0 : index
    %105 = vector.load %arg15[%c40_129, %c0_130] : memref<100x128xf32, #tpu.memory_space<vmem>>, vector<4x128xf32>
    %c41 = arith.constant 41 : index
    %c0_131 = arith.constant 0 : index
    %106 = vector.load %arg14[%c41, %c0_131] : memref<100x128xf32, #tpu.memory_space<vmem>>, vector<4x128xf32>
    %c41_132 = arith.constant 41 : index
    %c0_133 = arith.constant 0 : index
    %107 = vector.load %arg15[%c41_132, %c0_133] : memref<100x128xf32, #tpu.memory_space<vmem>>, vector<4x128xf32>
    %c45 = arith.constant 45 : index
    %c0_134 = arith.constant 0 : index
    %108 = vector.load %arg14[%c45, %c0_134] : memref<100x128xf32, #tpu.memory_space<vmem>>, vector<4x128xf32>
    %c45_135 = arith.constant 45 : index
    %c0_136 = arith.constant 0 : index
    %109 = vector.load %arg15[%c45_135, %c0_136] : memref<100x128xf32, #tpu.memory_space<vmem>>, vector<4x128xf32>
    %c46 = arith.constant 46 : index
    %c0_137 = arith.constant 0 : index
    %110 = vector.load %arg14[%c46, %c0_137] : memref<100x128xf32, #tpu.memory_space<vmem>>, vector<4x128xf32>
    %c46_138 = arith.constant 46 : index
    %c0_139 = arith.constant 0 : index
    %111 = vector.load %arg15[%c46_138, %c0_139] : memref<100x128xf32, #tpu.memory_space<vmem>>, vector<4x128xf32>
    %112 = tpu.concatenate %96, %97, %98, %99, %100, %101, %102, %103, %104, %105, %106, %107, %108, %109, %110, %111 in 1 : vector<4x128xf32>, vector<4x128xf32>, vector<4x128xf32>, vector<4x128xf32>, vector<4x128xf32>, vector<4x128xf32>, vector<4x128xf32>, vector<4x128xf32>, vector<4x128xf32>, vector<4x128xf32>, vector<4x128xf32>, vector<4x128xf32>, vector<4x128xf32>, vector<4x128xf32>, vector<4x128xf32>, vector<4x128xf32> -> vector<4x2048xf32>
    %113 = arith.truncf %112 : vector<4x2048xf32> to vector<4x2048xbf16>
    %cst_140 = arith.constant dense<0.000000e+00> : vector<4x128xf32>
    %114 = tpu.matmul %113, %16, %cst_140 {dimension_numbers = #tpu.dot_dimension_numbers<[1], [0], [0], [1], [0, 0, 1, 1], [], []>} : vector<4x2048xbf16>, vector<2048x128xbf16>, vector<4x128xf32> -> vector<4x128xf32>
    %115 = vector.broadcast %17 : vector<1x128xf32> to vector<4x128xf32>
    %116 = arith.addf %114, %115 : vector<4x128xf32>
    %cst_141 = arith.constant 0.000000e+00 : f32
    %117 = vector.broadcast %cst_141 : f32 to vector<4x128xf32>
    %118 = arith.maximumf %116, %117 : vector<4x128xf32>
    %c3 = arith.constant 3 : index
    %c0_142 = arith.constant 0 : index
    %c0_143 = arith.constant 0 : index
    %119 = vector.load %arg16[%c3, %c0_142, %c0_143] : memref<8x4x128xf32, #tpu.memory_space<vmem>>, vector<1x4x128xf32>
    %120 = vector.shape_cast %119 : vector<1x4x128xf32> to vector<4x128xf32>
    %121 = vector.shape_cast %118 : vector<4x128xf32> to vector<1x4x128xf32>
    tpu.vector_store %arg16[%c3, %c0_142, %c0_143], %121 {strides = array<i32>} : memref<8x4x128xf32, #tpu.memory_space<vmem>>, vector<1x4x128xf32>,
    %c50 = arith.constant 50 : index
    %c0_144 = arith.constant 0 : index
    %122 = vector.load %arg14[%c50, %c0_144] : memref<100x128xf32, #tpu.memory_space<vmem>>, vector<4x128xf32>
    %c50_145 = arith.constant 50 : index
    %c0_146 = arith.constant 0 : index
    %123 = vector.load %arg15[%c50_145, %c0_146] : memref<100x128xf32, #tpu.memory_space<vmem>>, vector<4x128xf32>
    %c51 = arith.constant 51 : index
    %c0_147 = arith.constant 0 : index
    %124 = vector.load %arg14[%c51, %c0_147] : memref<100x128xf32, #tpu.memory_space<vmem>>, vector<4x128xf32>
    %c51_148 = arith.constant 51 : index
    %c0_149 = arith.constant 0 : index
    %125 = vector.load %arg15[%c51_148, %c0_149] : memref<100x128xf32, #tpu.memory_space<vmem>>, vector<4x128xf32>
    %c55 = arith.constant 55 : index
    %c0_150 = arith.constant 0 : index
    %126 = vector.load %arg14[%c55, %c0_150] : memref<100x128xf32, #tpu.memory_space<vmem>>, vector<4x128xf32>
    %c55_151 = arith.constant 55 : index
    %c0_152 = arith.constant 0 : index
    %127 = vector.load %arg15[%c55_151, %c0_152] : memref<100x128xf32, #tpu.memory_space<vmem>>, vector<4x128xf32>
    %c56 = arith.constant 56 : index
    %c0_153 = arith.constant 0 : index
    %128 = vector.load %arg14[%c56, %c0_153] : memref<100x128xf32, #tpu.memory_space<vmem>>, vector<4x128xf32>
    %c56_154 = arith.constant 56 : index
    %c0_155 = arith.constant 0 : index
    %129 = vector.load %arg15[%c56_154, %c0_155] : memref<100x128xf32, #tpu.memory_space<vmem>>, vector<4x128xf32>
    %c60 = arith.constant 60 : index
    %c0_156 = arith.constant 0 : index
    %130 = vector.load %arg14[%c60, %c0_156] : memref<100x128xf32, #tpu.memory_space<vmem>>, vector<4x128xf32>
    %c60_157 = arith.constant 60 : index
    %c0_158 = arith.constant 0 : index
    %131 = vector.load %arg15[%c60_157, %c0_158] : memref<100x128xf32, #tpu.memory_space<vmem>>, vector<4x128xf32>
    %c61 = arith.constant 61 : index
    %c0_159 = arith.constant 0 : index
    %132 = vector.load %arg14[%c61, %c0_159] : memref<100x128xf32, #tpu.memory_space<vmem>>, vector<4x128xf32>
    %c61_160 = arith.constant 61 : index
    %c0_161 = arith.constant 0 : index
    %133 = vector.load %arg15[%c61_160, %c0_161] : memref<100x128xf32, #tpu.memory_space<vmem>>, vector<4x128xf32>
    %c65 = arith.constant 65 : index
    %c0_162 = arith.constant 0 : index
    %134 = vector.load %arg14[%c65, %c0_162] : memref<100x128xf32, #tpu.memory_space<vmem>>, vector<4x128xf32>
    %c65_163 = arith.constant 65 : index
    %c0_164 = arith.constant 0 : index
    %135 = vector.load %arg15[%c65_163, %c0_164] : memref<100x128xf32, #tpu.memory_space<vmem>>, vector<4x128xf32>
    %c66 = arith.constant 66 : index
    %c0_165 = arith.constant 0 : index
    %136 = vector.load %arg14[%c66, %c0_165] : memref<100x128xf32, #tpu.memory_space<vmem>>, vector<4x128xf32>
    %c66_166 = arith.constant 66 : index
    %c0_167 = arith.constant 0 : index
    %137 = vector.load %arg15[%c66_166, %c0_167] : memref<100x128xf32, #tpu.memory_space<vmem>>, vector<4x128xf32>
    %138 = tpu.concatenate %122, %123, %124, %125, %126, %127, %128, %129, %130, %131, %132, %133, %134, %135, %136, %137 in 1 : vector<4x128xf32>, vector<4x128xf32>, vector<4x128xf32>, vector<4x128xf32>, vector<4x128xf32>, vector<4x128xf32>, vector<4x128xf32>, vector<4x128xf32>, vector<4x128xf32>, vector<4x128xf32>, vector<4x128xf32>, vector<4x128xf32>, vector<4x128xf32>, vector<4x128xf32>, vector<4x128xf32>, vector<4x128xf32> -> vector<4x2048xf32>
    %139 = arith.truncf %138 : vector<4x2048xf32> to vector<4x2048xbf16>
    %cst_168 = arith.constant dense<0.000000e+00> : vector<4x128xf32>
    %140 = tpu.matmul %139, %16, %cst_168 {dimension_numbers = #tpu.dot_dimension_numbers<[1], [0], [0], [1], [0, 0, 1, 1], [], []>} : vector<4x2048xbf16>, vector<2048x128xbf16>, vector<4x128xf32> -> vector<4x128xf32>
    %141 = vector.broadcast %17 : vector<1x128xf32> to vector<4x128xf32>
    %142 = arith.addf %140, %141 : vector<4x128xf32>
    %cst_169 = arith.constant 0.000000e+00 : f32
    %143 = vector.broadcast %cst_169 : f32 to vector<4x128xf32>
    %144 = arith.maximumf %142, %143 : vector<4x128xf32>
    %c4 = arith.constant 4 : index
    %c0_170 = arith.constant 0 : index
    %c0_171 = arith.constant 0 : index
    %145 = vector.load %arg16[%c4, %c0_170, %c0_171] : memref<8x4x128xf32, #tpu.memory_space<vmem>>, vector<1x4x128xf32>
    %146 = vector.shape_cast %145 : vector<1x4x128xf32> to vector<4x128xf32>
    %147 = vector.shape_cast %144 : vector<4x128xf32> to vector<1x4x128xf32>
    tpu.vector_store %arg16[%c4, %c0_170, %c0_171], %147 {strides = array<i32>} : memref<8x4x128xf32, #tpu.memory_space<vmem>>, vector<1x4x128xf32>,
    %c60_172 = arith.constant 60 : index
    %c0_173 = arith.constant 0 : index
    %148 = vector.load %arg14[%c60_172, %c0_173] : memref<100x128xf32, #tpu.memory_space<vmem>>, vector<4x128xf32>
    %c60_174 = arith.constant 60 : index
    %c0_175 = arith.constant 0 : index
    %149 = vector.load %arg15[%c60_174, %c0_175] : memref<100x128xf32, #tpu.memory_space<vmem>>, vector<4x128xf32>
    %c61_176 = arith.constant 61 : index
    %c0_177 = arith.constant 0 : index
    %150 = vector.load %arg14[%c61_176, %c0_177] : memref<100x128xf32, #tpu.memory_space<vmem>>, vector<4x128xf32>
    %c61_178 = arith.constant 61 : index
    %c0_179 = arith.constant 0 : index
    %151 = vector.load %arg15[%c61_178, %c0_179] : memref<100x128xf32, #tpu.memory_space<vmem>>, vector<4x128xf32>
    %c65_180 = arith.constant 65 : index
    %c0_181 = arith.constant 0 : index
    %152 = vector.load %arg14[%c65_180, %c0_181] : memref<100x128xf32, #tpu.memory_space<vmem>>, vector<4x128xf32>
    %c65_182 = arith.constant 65 : index
    %c0_183 = arith.constant 0 : index
    %153 = vector.load %arg15[%c65_182, %c0_183] : memref<100x128xf32, #tpu.memory_space<vmem>>, vector<4x128xf32>
    %c66_184 = arith.constant 66 : index
    %c0_185 = arith.constant 0 : index
    %154 = vector.load %arg14[%c66_184, %c0_185] : memref<100x128xf32, #tpu.memory_space<vmem>>, vector<4x128xf32>
    %c66_186 = arith.constant 66 : index
    %c0_187 = arith.constant 0 : index
    %155 = vector.load %arg15[%c66_186, %c0_187] : memref<100x128xf32, #tpu.memory_space<vmem>>, vector<4x128xf32>
    %c70 = arith.constant 70 : index
    %c0_188 = arith.constant 0 : index
    %156 = vector.load %arg14[%c70, %c0_188] : memref<100x128xf32, #tpu.memory_space<vmem>>, vector<4x128xf32>
    %c70_189 = arith.constant 70 : index
    %c0_190 = arith.constant 0 : index
    %157 = vector.load %arg15[%c70_189, %c0_190] : memref<100x128xf32, #tpu.memory_space<vmem>>, vector<4x128xf32>
    %c71 = arith.constant 71 : index
    %c0_191 = arith.constant 0 : index
    %158 = vector.load %arg14[%c71, %c0_191] : memref<100x128xf32, #tpu.memory_space<vmem>>, vector<4x128xf32>
    %c71_192 = arith.constant 71 : index
    %c0_193 = arith.constant 0 : index
    %159 = vector.load %arg15[%c71_192, %c0_193] : memref<100x128xf32, #tpu.memory_space<vmem>>, vector<4x128xf32>
    %c75 = arith.constant 75 : index
    %c0_194 = arith.constant 0 : index
    %160 = vector.load %arg14[%c75, %c0_194] : memref<100x128xf32, #tpu.memory_space<vmem>>, vector<4x128xf32>
    %c75_195 = arith.constant 75 : index
    %c0_196 = arith.constant 0 : index
    %161 = vector.load %arg15[%c75_195, %c0_196] : memref<100x128xf32, #tpu.memory_space<vmem>>, vector<4x128xf32>
    %c76 = arith.constant 76 : index
    %c0_197 = arith.constant 0 : index
    %162 = vector.load %arg14[%c76, %c0_197] : memref<100x128xf32, #tpu.memory_space<vmem>>, vector<4x128xf32>
    %c76_198 = arith.constant 76 : index
    %c0_199 = arith.constant 0 : index
    %163 = vector.load %arg15[%c76_198, %c0_199] : memref<100x128xf32, #tpu.memory_space<vmem>>, vector<4x128xf32>
    %164 = tpu.concatenate %148, %149, %150, %151, %152, %153, %154, %155, %156, %157, %158, %159, %160, %161, %162, %163 in 1 : vector<4x128xf32>, vector<4x128xf32>, vector<4x128xf32>, vector<4x128xf32>, vector<4x128xf32>, vector<4x128xf32>, vector<4x128xf32>, vector<4x128xf32>, vector<4x128xf32>, vector<4x128xf32>, vector<4x128xf32>, vector<4x128xf32>, vector<4x128xf32>, vector<4x128xf32>, vector<4x128xf32>, vector<4x128xf32> -> vector<4x2048xf32>
    %165 = arith.truncf %164 : vector<4x2048xf32> to vector<4x2048xbf16>
    %cst_200 = arith.constant dense<0.000000e+00> : vector<4x128xf32>
    %166 = tpu.matmul %165, %16, %cst_200 {dimension_numbers = #tpu.dot_dimension_numbers<[1], [0], [0], [1], [0, 0, 1, 1], [], []>} : vector<4x2048xbf16>, vector<2048x128xbf16>, vector<4x128xf32> -> vector<4x128xf32>
    %167 = vector.broadcast %17 : vector<1x128xf32> to vector<4x128xf32>
    %168 = arith.addf %166, %167 : vector<4x128xf32>
    %cst_201 = arith.constant 0.000000e+00 : f32
    %169 = vector.broadcast %cst_201 : f32 to vector<4x128xf32>
    %170 = arith.maximumf %168, %169 : vector<4x128xf32>
    %c5_202 = arith.constant 5 : index
    %c0_203 = arith.constant 0 : index
    %c0_204 = arith.constant 0 : index
    %171 = vector.load %arg16[%c5_202, %c0_203, %c0_204] : memref<8x4x128xf32, #tpu.memory_space<vmem>>, vector<1x4x128xf32>
    %172 = vector.shape_cast %171 : vector<1x4x128xf32> to vector<4x128xf32>
    %173 = vector.shape_cast %170 : vector<4x128xf32> to vector<1x4x128xf32>
    tpu.vector_store %arg16[%c5_202, %c0_203, %c0_204], %173 {strides = array<i32>} : memref<8x4x128xf32, #tpu.memory_space<vmem>>, vector<1x4x128xf32>,
    %c70_205 = arith.constant 70 : index
    %c0_206 = arith.constant 0 : index
    %174 = vector.load %arg14[%c70_205, %c0_206] : memref<100x128xf32, #tpu.memory_space<vmem>>, vector<4x128xf32>
    %c70_207 = arith.constant 70 : index
    %c0_208 = arith.constant 0 : index
    %175 = vector.load %arg15[%c70_207, %c0_208] : memref<100x128xf32, #tpu.memory_space<vmem>>, vector<4x128xf32>
    %c71_209 = arith.constant 71 : index
    %c0_210 = arith.constant 0 : index
    %176 = vector.load %arg14[%c71_209, %c0_210] : memref<100x128xf32, #tpu.memory_space<vmem>>, vector<4x128xf32>
    %c71_211 = arith.constant 71 : index
    %c0_212 = arith.constant 0 : index
    %177 = vector.load %arg15[%c71_211, %c0_212] : memref<100x128xf32, #tpu.memory_space<vmem>>, vector<4x128xf32>
    %c75_213 = arith.constant 75 : index
    %c0_214 = arith.constant 0 : index
    %178 = vector.load %arg14[%c75_213, %c0_214] : memref<100x128xf32, #tpu.memory_space<vmem>>, vector<4x128xf32>
    %c75_215 = arith.constant 75 : index
    %c0_216 = arith.constant 0 : index
    %179 = vector.load %arg15[%c75_215, %c0_216] : memref<100x128xf32, #tpu.memory_space<vmem>>, vector<4x128xf32>
    %c76_217 = arith.constant 76 : index
    %c0_218 = arith.constant 0 : index
    %180 = vector.load %arg14[%c76_217, %c0_218] : memref<100x128xf32, #tpu.memory_space<vmem>>, vector<4x128xf32>
    %c76_219 = arith.constant 76 : index
    %c0_220 = arith.constant 0 : index
    %181 = vector.load %arg15[%c76_219, %c0_220] : memref<100x128xf32, #tpu.memory_space<vmem>>, vector<4x128xf32>
    %c80 = arith.constant 80 : index
    %c0_221 = arith.constant 0 : index
    %182 = vector.load %arg14[%c80, %c0_221] : memref<100x128xf32, #tpu.memory_space<vmem>>, vector<4x128xf32>
    %c80_222 = arith.constant 80 : index
    %c0_223 = arith.constant 0 : index
    %183 = vector.load %arg15[%c80_222, %c0_223] : memref<100x128xf32, #tpu.memory_space<vmem>>, vector<4x128xf32>
    %c81 = arith.constant 81 : index
    %c0_224 = arith.constant 0 : index
    %184 = vector.load %arg14[%c81, %c0_224] : memref<100x128xf32, #tpu.memory_space<vmem>>, vector<4x128xf32>
    %c81_225 = arith.constant 81 : index
    %c0_226 = arith.constant 0 : index
    %185 = vector.load %arg15[%c81_225, %c0_226] : memref<100x128xf32, #tpu.memory_space<vmem>>, vector<4x128xf32>
    %c85 = arith.constant 85 : index
    %c0_227 = arith.constant 0 : index
    %186 = vector.load %arg14[%c85, %c0_227] : memref<100x128xf32, #tpu.memory_space<vmem>>, vector<4x128xf32>
    %c85_228 = arith.constant 85 : index
    %c0_229 = arith.constant 0 : index
    %187 = vector.load %arg15[%c85_228, %c0_229] : memref<100x128xf32, #tpu.memory_space<vmem>>, vector<4x128xf32>
    %c86 = arith.constant 86 : index
    %c0_230 = arith.constant 0 : index
    %188 = vector.load %arg14[%c86, %c0_230] : memref<100x128xf32, #tpu.memory_space<vmem>>, vector<4x128xf32>
    %c86_231 = arith.constant 86 : index
    %c0_232 = arith.constant 0 : index
    %189 = vector.load %arg15[%c86_231, %c0_232] : memref<100x128xf32, #tpu.memory_space<vmem>>, vector<4x128xf32>
    %190 = tpu.concatenate %174, %175, %176, %177, %178, %179, %180, %181, %182, %183, %184, %185, %186, %187, %188, %189 in 1 : vector<4x128xf32>, vector<4x128xf32>, vector<4x128xf32>, vector<4x128xf32>, vector<4x128xf32>, vector<4x128xf32>, vector<4x128xf32>, vector<4x128xf32>, vector<4x128xf32>, vector<4x128xf32>, vector<4x128xf32>, vector<4x128xf32>, vector<4x128xf32>, vector<4x128xf32>, vector<4x128xf32>, vector<4x128xf32> -> vector<4x2048xf32>
    %191 = arith.truncf %190 : vector<4x2048xf32> to vector<4x2048xbf16>
    %cst_233 = arith.constant dense<0.000000e+00> : vector<4x128xf32>
    %192 = tpu.matmul %191, %16, %cst_233 {dimension_numbers = #tpu.dot_dimension_numbers<[1], [0], [0], [1], [0, 0, 1, 1], [], []>} : vector<4x2048xbf16>, vector<2048x128xbf16>, vector<4x128xf32> -> vector<4x128xf32>
    %193 = vector.broadcast %17 : vector<1x128xf32> to vector<4x128xf32>
    %194 = arith.addf %192, %193 : vector<4x128xf32>
    %cst_234 = arith.constant 0.000000e+00 : f32
    %195 = vector.broadcast %cst_234 : f32 to vector<4x128xf32>
    %196 = arith.maximumf %194, %195 : vector<4x128xf32>
    %c6_235 = arith.constant 6 : index
    %c0_236 = arith.constant 0 : index
    %c0_237 = arith.constant 0 : index
    %197 = vector.load %arg16[%c6_235, %c0_236, %c0_237] : memref<8x4x128xf32, #tpu.memory_space<vmem>>, vector<1x4x128xf32>
    %198 = vector.shape_cast %197 : vector<1x4x128xf32> to vector<4x128xf32>
    %199 = vector.shape_cast %196 : vector<4x128xf32> to vector<1x4x128xf32>
    tpu.vector_store %arg16[%c6_235, %c0_236, %c0_237], %199 {strides = array<i32>} : memref<8x4x128xf32, #tpu.memory_space<vmem>>, vector<1x4x128xf32>,
    %c80_238 = arith.constant 80 : index
    %c0_239 = arith.constant 0 : index
    %200 = vector.load %arg14[%c80_238, %c0_239] : memref<100x128xf32, #tpu.memory_space<vmem>>, vector<4x128xf32>
    %c80_240 = arith.constant 80 : index
    %c0_241 = arith.constant 0 : index
    %201 = vector.load %arg15[%c80_240, %c0_241] : memref<100x128xf32, #tpu.memory_space<vmem>>, vector<4x128xf32>
    %c81_242 = arith.constant 81 : index
    %c0_243 = arith.constant 0 : index
    %202 = vector.load %arg14[%c81_242, %c0_243] : memref<100x128xf32, #tpu.memory_space<vmem>>, vector<4x128xf32>
    %c81_244 = arith.constant 81 : index
    %c0_245 = arith.constant 0 : index
    %203 = vector.load %arg15[%c81_244, %c0_245] : memref<100x128xf32, #tpu.memory_space<vmem>>, vector<4x128xf32>
    %c85_246 = arith.constant 85 : index
    %c0_247 = arith.constant 0 : index
    %204 = vector.load %arg14[%c85_246, %c0_247] : memref<100x128xf32, #tpu.memory_space<vmem>>, vector<4x128xf32>
    %c85_248 = arith.constant 85 : index
    %c0_249 = arith.constant 0 : index
    %205 = vector.load %arg15[%c85_248, %c0_249] : memref<100x128xf32, #tpu.memory_space<vmem>>, vector<4x128xf32>
    %c86_250 = arith.constant 86 : index
    %c0_251 = arith.constant 0 : index
    %206 = vector.load %arg14[%c86_250, %c0_251] : memref<100x128xf32, #tpu.memory_space<vmem>>, vector<4x128xf32>
    %c86_252 = arith.constant 86 : index
    %c0_253 = arith.constant 0 : index
    %207 = vector.load %arg15[%c86_252, %c0_253] : memref<100x128xf32, #tpu.memory_space<vmem>>, vector<4x128xf32>
    %c90 = arith.constant 90 : index
    %c0_254 = arith.constant 0 : index
    %208 = vector.load %arg14[%c90, %c0_254] : memref<100x128xf32, #tpu.memory_space<vmem>>, vector<4x128xf32>
    %c90_255 = arith.constant 90 : index
    %c0_256 = arith.constant 0 : index
    %209 = vector.load %arg15[%c90_255, %c0_256] : memref<100x128xf32, #tpu.memory_space<vmem>>, vector<4x128xf32>
    %c91 = arith.constant 91 : index
    %c0_257 = arith.constant 0 : index
    %210 = vector.load %arg14[%c91, %c0_257] : memref<100x128xf32, #tpu.memory_space<vmem>>, vector<4x128xf32>
    %c91_258 = arith.constant 91 : index
    %c0_259 = arith.constant 0 : index
    %211 = vector.load %arg15[%c91_258, %c0_259] : memref<100x128xf32, #tpu.memory_space<vmem>>, vector<4x128xf32>
    %c95 = arith.constant 95 : index
    %c0_260 = arith.constant 0 : index
    %212 = vector.load %arg14[%c95, %c0_260] : memref<100x128xf32, #tpu.memory_space<vmem>>, vector<4x128xf32>
    %c95_261 = arith.constant 95 : index
    %c0_262 = arith.constant 0 : index
    %213 = vector.load %arg15[%c95_261, %c0_262] : memref<100x128xf32, #tpu.memory_space<vmem>>, vector<4x128xf32>
    %c96 = arith.constant 96 : index
    %c0_263 = arith.constant 0 : index
    %214 = vector.load %arg14[%c96, %c0_263] : memref<100x128xf32, #tpu.memory_space<vmem>>, vector<4x128xf32>
    %c96_264 = arith.constant 96 : index
    %c0_265 = arith.constant 0 : index
    %215 = vector.load %arg15[%c96_264, %c0_265] : memref<100x128xf32, #tpu.memory_space<vmem>>, vector<4x128xf32>
    %216 = tpu.concatenate %200, %201, %202, %203, %204, %205, %206, %207, %208, %209, %210, %211, %212, %213, %214, %215 in 1 : vector<4x128xf32>, vector<4x128xf32>, vector<4x128xf32>, vector<4x128xf32>, vector<4x128xf32>, vector<4x128xf32>, vector<4x128xf32>, vector<4x128xf32>, vector<4x128xf32>, vector<4x128xf32>, vector<4x128xf32>, vector<4x128xf32>, vector<4x128xf32>, vector<4x128xf32>, vector<4x128xf32>, vector<4x128xf32> -> vector<4x2048xf32>
    %217 = arith.truncf %216 : vector<4x2048xf32> to vector<4x2048xbf16>
    %cst_266 = arith.constant dense<0.000000e+00> : vector<4x128xf32>
    %218 = tpu.matmul %217, %16, %cst_266 {dimension_numbers = #tpu.dot_dimension_numbers<[1], [0], [0], [1], [0, 0, 1, 1], [], []>} : vector<4x2048xbf16>, vector<2048x128xbf16>, vector<4x128xf32> -> vector<4x128xf32>
    %219 = vector.broadcast %17 : vector<1x128xf32> to vector<4x128xf32>
    %220 = arith.addf %218, %219 : vector<4x128xf32>
    %cst_267 = arith.constant 0.000000e+00 : f32
    %221 = vector.broadcast %cst_267 : f32 to vector<4x128xf32>
    %222 = arith.maximumf %220, %221 : vector<4x128xf32>
    %c7 = arith.constant 7 : index
    %c0_268 = arith.constant 0 : index
    %c0_269 = arith.constant 0 : index
    %223 = vector.load %arg16[%c7, %c0_268, %c0_269] : memref<8x4x128xf32, #tpu.memory_space<vmem>>, vector<1x4x128xf32>
    %224 = vector.shape_cast %223 : vector<1x4x128xf32> to vector<4x128xf32>
    %225 = vector.shape_cast %222 : vector<4x128xf32> to vector<1x4x128xf32>
    tpu.vector_store %arg16[%c7, %c0_268, %c0_269], %225 {strides = array<i32>} : memref<8x4x128xf32, #tpu.memory_space<vmem>>, vector<1x4x128xf32>,
    %c0_270 = arith.constant 0 : index
    %c0_271 = arith.constant 0 : index
    %226 = vector.load %arg6[%c0_270, %c0_271] : memref<1152x128xbf16, #tpu.memory_space<vmem>>, vector<1152x128xbf16>
    %c0_272 = arith.constant 0 : index
    %c0_273 = arith.constant 0 : index
    %227 = vector.load %arg7[%c0_272, %c0_273] : memref<1x128xf32, #tpu.memory_space<vmem>>, vector<1x128xf32>
    %c0_274 = arith.constant 0 : index
    %c0_275 = arith.constant 0 : index
    %228 = vector.load %arg8[%c0_274, %c0_275] : memref<512x256xbf16, #tpu.memory_space<vmem>>, vector<512x256xbf16>
    %c0_276 = arith.constant 0 : index
    %c0_277 = arith.constant 0 : index
    %229 = vector.load %arg9[%c0_276, %c0_277] : memref<1x256xf32, #tpu.memory_space<vmem>>, vector<1x256xf32>
    %c0_278 = arith.constant 0 : index
    %c0_279 = arith.constant 0 : index
    %230 = vector.load %arg10[%c0_278, %c0_279] : memref<1x256xf32, #tpu.memory_space<vmem>>, vector<1x256xf32>
    %c0_280 = arith.constant 0 : index
    %c0_281 = arith.constant 0 : index
    %231 = vector.load %arg11[%c0_280, %c0_281] : memref<256x8xbf16, #tpu.memory_space<vmem>>, vector<256x8xbf16>
    %c0_282 = arith.constant 0 : index
    %c0_283 = arith.constant 0 : index
    %232 = vector.load %arg12[%c0_282, %c0_283] : memref<1x8xf32, #tpu.memory_space<vmem>>, vector<1x8xf32>
    %c0_284 = arith.constant 0 : index
    %c0_285 = arith.constant 0 : index
    %c0_286 = arith.constant 0 : index
    %233 = vector.load %arg16[%c0_284, %c0_285, %c0_286] : memref<8x4x128xf32, #tpu.memory_space<vmem>>, vector<1x2x128xf32>
    %234 = vector.shape_cast %233 : vector<1x2x128xf32> to vector<2x128xf32>
    %c0_287 = arith.constant 0 : index
    %c1_288 = arith.constant 1 : index
    %c0_289 = arith.constant 0 : index
    %235 = vector.load %arg16[%c0_287, %c1_288, %c0_289] : memref<8x4x128xf32, #tpu.memory_space<vmem>>, vector<1x2x128xf32>
    %236 = vector.shape_cast %235 : vector<1x2x128xf32> to vector<2x128xf32>
    %c0_290 = arith.constant 0 : index
    %c2_291 = arith.constant 2 : index
    %c0_292 = arith.constant 0 : index
    %237 = vector.load %arg16[%c0_290, %c2_291, %c0_292] : memref<8x4x128xf32, #tpu.memory_space<vmem>>, vector<1x2x128xf32>
    %238 = vector.shape_cast %237 : vector<1x2x128xf32> to vector<2x128xf32>
    %c1_293 = arith.constant 1 : index
    %c0_294 = arith.constant 0 : index
    %c0_295 = arith.constant 0 : index
    %239 = vector.load %arg16[%c1_293, %c0_294, %c0_295] : memref<8x4x128xf32, #tpu.memory_space<vmem>>, vector<1x2x128xf32>
    %240 = vector.shape_cast %239 : vector<1x2x128xf32> to vector<2x128xf32>
    %c1_296 = arith.constant 1 : index
    %c1_297 = arith.constant 1 : index
    %c0_298 = arith.constant 0 : index
    %241 = vector.load %arg16[%c1_296, %c1_297, %c0_298] : memref<8x4x128xf32, #tpu.memory_space<vmem>>, vector<1x2x128xf32>
    %242 = vector.shape_cast %241 : vector<1x2x128xf32> to vector<2x128xf32>
    %c1_299 = arith.constant 1 : index
    %c2_300 = arith.constant 2 : index
    %c0_301 = arith.constant 0 : index
    %243 = vector.load %arg16[%c1_299, %c2_300, %c0_301] : memref<8x4x128xf32, #tpu.memory_space<vmem>>, vector<1x2x128xf32>
    %244 = vector.shape_cast %243 : vector<1x2x128xf32> to vector<2x128xf32>
    %c2_302 = arith.constant 2 : index
    %c0_303 = arith.constant 0 : index
    %c0_304 = arith.constant 0 : index
    %245 = vector.load %arg16[%c2_302, %c0_303, %c0_304] : memref<8x4x128xf32, #tpu.memory_space<vmem>>, vector<1x2x128xf32>
    %246 = vector.shape_cast %245 : vector<1x2x128xf32> to vector<2x128xf32>
    %c2_305 = arith.constant 2 : index
    %c1_306 = arith.constant 1 : index
    %c0_307 = arith.constant 0 : index
    %247 = vector.load %arg16[%c2_305, %c1_306, %c0_307] : memref<8x4x128xf32, #tpu.memory_space<vmem>>, vector<1x2x128xf32>
    %248 = vector.shape_cast %247 : vector<1x2x128xf32> to vector<2x128xf32>
    %c2_308 = arith.constant 2 : index
    %c2_309 = arith.constant 2 : index
    %c0_310 = arith.constant 0 : index
    %249 = vector.load %arg16[%c2_308, %c2_309, %c0_310] : memref<8x4x128xf32, #tpu.memory_space<vmem>>, vector<1x2x128xf32>
    %250 = vector.shape_cast %249 : vector<1x2x128xf32> to vector<2x128xf32>
    %251 = tpu.concatenate %234, %236, %238, %240, %242, %244, %246, %248, %250 in 1 : vector<2x128xf32>, vector<2x128xf32>, vector<2x128xf32>, vector<2x128xf32>, vector<2x128xf32>, vector<2x128xf32>, vector<2x128xf32>, vector<2x128xf32>, vector<2x128xf32> -> vector<2x1152xf32>
    %252 = arith.truncf %251 : vector<2x1152xf32> to vector<2x1152xbf16>
    %cst_311 = arith.constant dense<0.000000e+00> : vector<2x128xf32>
    %253 = tpu.matmul %252, %226, %cst_311 {dimension_numbers = #tpu.dot_dimension_numbers<[1], [0], [0], [1], [0, 0, 1, 1], [], []>} : vector<2x1152xbf16>, vector<1152x128xbf16>, vector<2x128xf32> -> vector<2x128xf32>
    %254 = vector.broadcast %227 : vector<1x128xf32> to vector<2x128xf32>
    %255 = arith.addf %253, %254 : vector<2x128xf32>
    %cst_312 = arith.constant 0.000000e+00 : f32
    %256 = vector.broadcast %cst_312 : f32 to vector<2x128xf32>
    %257 = arith.maximumf %255, %256 : vector<2x128xf32>
    %258 = vector.extract_strided_slice %257 {offsets = [0, 0], sizes = [1, 128], strides = [1, 1]} : vector<2x128xf32> to vector<1x128xf32>
    %259 = vector.extract_strided_slice %257 {offsets = [1, 0], sizes = [1, 128], strides = [1, 1]} : vector<2x128xf32> to vector<1x128xf32>
    %c1_313 = arith.constant 1 : index
    %c0_314 = arith.constant 0 : index
    %c0_315 = arith.constant 0 : index
    %260 = vector.load %arg16[%c1_313, %c0_314, %c0_315] : memref<8x4x128xf32, #tpu.memory_space<vmem>>, vector<1x2x128xf32>
    %261 = vector.shape_cast %260 : vector<1x2x128xf32> to vector<2x128xf32>
    %c1_316 = arith.constant 1 : index
    %c1_317 = arith.constant 1 : index
    %c0_318 = arith.constant 0 : index
    %262 = vector.load %arg16[%c1_316, %c1_317, %c0_318] : memref<8x4x128xf32, #tpu.memory_space<vmem>>, vector<1x2x128xf32>
    %263 = vector.shape_cast %262 : vector<1x2x128xf32> to vector<2x128xf32>
    %c1_319 = arith.constant 1 : index
    %c2_320 = arith.constant 2 : index
    %c0_321 = arith.constant 0 : index
    %264 = vector.load %arg16[%c1_319, %c2_320, %c0_321] : memref<8x4x128xf32, #tpu.memory_space<vmem>>, vector<1x2x128xf32>
    %265 = vector.shape_cast %264 : vector<1x2x128xf32> to vector<2x128xf32>
    %c2_322 = arith.constant 2 : index
    %c0_323 = arith.constant 0 : index
    %c0_324 = arith.constant 0 : index
    %266 = vector.load %arg16[%c2_322, %c0_323, %c0_324] : memref<8x4x128xf32, #tpu.memory_space<vmem>>, vector<1x2x128xf32>
    %267 = vector.shape_cast %266 : vector<1x2x128xf32> to vector<2x128xf32>
    %c2_325 = arith.constant 2 : index
    %c1_326 = arith.constant 1 : index
    %c0_327 = arith.constant 0 : index
    %268 = vector.load %arg16[%c2_325, %c1_326, %c0_327] : memref<8x4x128xf32, #tpu.memory_space<vmem>>, vector<1x2x128xf32>
    %269 = vector.shape_cast %268 : vector<1x2x128xf32> to vector<2x128xf32>
    %c2_328 = arith.constant 2 : index
    %c2_329 = arith.constant 2 : index
    %c0_330 = arith.constant 0 : index
    %270 = vector.load %arg16[%c2_328, %c2_329, %c0_330] : memref<8x4x128xf32, #tpu.memory_space<vmem>>, vector<1x2x128xf32>
    %271 = vector.shape_cast %270 : vector<1x2x128xf32> to vector<2x128xf32>
    %c3_331 = arith.constant 3 : index
    %c0_332 = arith.constant 0 : index
    %c0_333 = arith.constant 0 : index
    %272 = vector.load %arg16[%c3_331, %c0_332, %c0_333] : memref<8x4x128xf32, #tpu.memory_space<vmem>>, vector<1x2x128xf32>
    %273 = vector.shape_cast %272 : vector<1x2x128xf32> to vector<2x128xf32>
    %c3_334 = arith.constant 3 : index
    %c1_335 = arith.constant 1 : index
    %c0_336 = arith.constant 0 : index
    %274 = vector.load %arg16[%c3_334, %c1_335, %c0_336] : memref<8x4x128xf32, #tpu.memory_space<vmem>>, vector<1x2x128xf32>
    %275 = vector.shape_cast %274 : vector<1x2x128xf32> to vector<2x128xf32>
    %c3_337 = arith.constant 3 : index
    %c2_338 = arith.constant 2 : index
    %c0_339 = arith.constant 0 : index
    %276 = vector.load %arg16[%c3_337, %c2_338, %c0_339] : memref<8x4x128xf32, #tpu.memory_space<vmem>>, vector<1x2x128xf32>
    %277 = vector.shape_cast %276 : vector<1x2x128xf32> to vector<2x128xf32>
    %278 = tpu.concatenate %261, %263, %265, %267, %269, %271, %273, %275, %277 in 1 : vector<2x128xf32>, vector<2x128xf32>, vector<2x128xf32>, vector<2x128xf32>, vector<2x128xf32>, vector<2x128xf32>, vector<2x128xf32>, vector<2x128xf32>, vector<2x128xf32> -> vector<2x1152xf32>
    %279 = arith.truncf %278 : vector<2x1152xf32> to vector<2x1152xbf16>
    %cst_340 = arith.constant dense<0.000000e+00> : vector<2x128xf32>
    %280 = tpu.matmul %279, %226, %cst_340 {dimension_numbers = #tpu.dot_dimension_numbers<[1], [0], [0], [1], [0, 0, 1, 1], [], []>} : vector<2x1152xbf16>, vector<1152x128xbf16>, vector<2x128xf32> -> vector<2x128xf32>
    %281 = vector.broadcast %227 : vector<1x128xf32> to vector<2x128xf32>
    %282 = arith.addf %280, %281 : vector<2x128xf32>
    %cst_341 = arith.constant 0.000000e+00 : f32
    %283 = vector.broadcast %cst_341 : f32 to vector<2x128xf32>
    %284 = arith.maximumf %282, %283 : vector<2x128xf32>
    %285 = vector.extract_strided_slice %284 {offsets = [0, 0], sizes = [1, 128], strides = [1, 1]} : vector<2x128xf32> to vector<1x128xf32>
    %286 = vector.extract_strided_slice %284 {offsets = [1, 0], sizes = [1, 128], strides = [1, 1]} : vector<2x128xf32> to vector<1x128xf32>
    %287 = tpu.concatenate %258, %259, %285, %286 in 1 : vector<1x128xf32>, vector<1x128xf32>, vector<1x128xf32>, vector<1x128xf32> -> vector<1x512xf32>
    %288 = arith.truncf %287 : vector<1x512xf32> to vector<1x512xbf16>
    %cst_342 = arith.constant dense<0.000000e+00> : vector<1x256xf32>
    %289 = tpu.matmul %288, %228, %cst_342 {dimension_numbers = #tpu.dot_dimension_numbers<[1], [0], [0], [1], [0, 0, 1, 1], [], []>} : vector<1x512xbf16>, vector<512x256xbf16>, vector<1x256xf32> -> vector<1x256xf32>
    %290 = arith.addf %289, %229 : vector<1x256xf32>
    %cst_343 = arith.constant 0.000000e+00 : f32
    %291 = vector.broadcast %cst_343 : f32 to vector<1x256xf32>
    %292 = arith.cmpf oge, %290, %291 : vector<1x256xf32>
    %293 = arith.mulf %230, %290 : vector<1x256xf32>
    %294 = arith.select %292, %290, %293 : vector<1x256xi1>, vector<1x256xf32>
    %295 = arith.truncf %294 : vector<1x256xf32> to vector<1x256xbf16>
    %cst_344 = arith.constant dense<0.000000e+00> : vector<1x8xf32>
    %296 = tpu.matmul %295, %231, %cst_344 {dimension_numbers = #tpu.dot_dimension_numbers<[1], [0], [0], [1], [0, 0, 1, 1], [], []>} : vector<1x256xbf16>, vector<256x8xbf16>, vector<1x8xf32> -> vector<1x8xf32>
    %297 = arith.addf %296, %232 : vector<1x8xf32>
    %c0_345 = arith.constant 0 : index
    %c0_346 = arith.constant 0 : index
    %298 = vector.load %arg13[%c0_345, %c0_346] : memref<2x8xf32, #tpu.memory_space<vmem>>, vector<1x8xf32>
    tpu.vector_store %arg13[%c0_345, %c0_346], %297 {strides = array<i32>} : memref<2x8xf32, #tpu.memory_space<vmem>>, vector<1x8xf32>,
    %c4_347 = arith.constant 4 : index
    %c0_348 = arith.constant 0 : index
    %c0_349 = arith.constant 0 : index
    %299 = vector.load %arg16[%c4_347, %c0_348, %c0_349] : memref<8x4x128xf32, #tpu.memory_space<vmem>>, vector<1x2x128xf32>
    %300 = vector.shape_cast %299 : vector<1x2x128xf32> to vector<2x128xf32>
    %c4_350 = arith.constant 4 : index
    %c1_351 = arith.constant 1 : index
    %c0_352 = arith.constant 0 : index
    %301 = vector.load %arg16[%c4_350, %c1_351, %c0_352] : memref<8x4x128xf32, #tpu.memory_space<vmem>>, vector<1x2x128xf32>
    %302 = vector.shape_cast %301 : vector<1x2x128xf32> to vector<2x128xf32>
    %c4_353 = arith.constant 4 : index
    %c2_354 = arith.constant 2 : index
    %c0_355 = arith.constant 0 : index
    %303 = vector.load %arg16[%c4_353, %c2_354, %c0_355] : memref<8x4x128xf32, #tpu.memory_space<vmem>>, vector<1x2x128xf32>
    %304 = vector.shape_cast %303 : vector<1x2x128xf32> to vector<2x128xf32>
    %c5_356 = arith.constant 5 : index
    %c0_357 = arith.constant 0 : index
    %c0_358 = arith.constant 0 : index
    %305 = vector.load %arg16[%c5_356, %c0_357, %c0_358] : memref<8x4x128xf32, #tpu.memory_space<vmem>>, vector<1x2x128xf32>
    %306 = vector.shape_cast %305 : vector<1x2x128xf32> to vector<2x128xf32>
    %c5_359 = arith.constant 5 : index
    %c1_360 = arith.constant 1 : index
    %c0_361 = arith.constant 0 : index
    %307 = vector.load %arg16[%c5_359, %c1_360, %c0_361] : memref<8x4x128xf32, #tpu.memory_space<vmem>>, vector<1x2x128xf32>
    %308 = vector.shape_cast %307 : vector<1x2x128xf32> to vector<2x128xf32>
    %c5_362 = arith.constant 5 : index
    %c2_363 = arith.constant 2 : index
    %c0_364 = arith.constant 0 : index
    %309 = vector.load %arg16[%c5_362, %c2_363, %c0_364] : memref<8x4x128xf32, #tpu.memory_space<vmem>>, vector<1x2x128xf32>
    %310 = vector.shape_cast %309 : vector<1x2x128xf32> to vector<2x128xf32>
    %c6_365 = arith.constant 6 : index
    %c0_366 = arith.constant 0 : index
    %c0_367 = arith.constant 0 : index
    %311 = vector.load %arg16[%c6_365, %c0_366, %c0_367] : memref<8x4x128xf32, #tpu.memory_space<vmem>>, vector<1x2x128xf32>
    %312 = vector.shape_cast %311 : vector<1x2x128xf32> to vector<2x128xf32>
    %c6_368 = arith.constant 6 : index
    %c1_369 = arith.constant 1 : index
    %c0_370 = arith.constant 0 : index
    %313 = vector.load %arg16[%c6_368, %c1_369, %c0_370] : memref<8x4x128xf32, #tpu.memory_space<vmem>>, vector<1x2x128xf32>
    %314 = vector.shape_cast %313 : vector<1x2x128xf32> to vector<2x128xf32>
    %c6_371 = arith.constant 6 : index
    %c2_372 = arith.constant 2 : index
    %c0_373 = arith.constant 0 : index
    %315 = vector.load %arg16[%c6_371, %c2_372, %c0_373] : memref<8x4x128xf32, #tpu.memory_space<vmem>>, vector<1x2x128xf32>
    %316 = vector.shape_cast %315 : vector<1x2x128xf32> to vector<2x128xf32>
    %317 = tpu.concatenate %300, %302, %304, %306, %308, %310, %312, %314, %316 in 1 : vector<2x128xf32>, vector<2x128xf32>, vector<2x128xf32>, vector<2x128xf32>, vector<2x128xf32>, vector<2x128xf32>, vector<2x128xf32>, vector<2x128xf32>, vector<2x128xf32> -> vector<2x1152xf32>
    %318 = arith.truncf %317 : vector<2x1152xf32> to vector<2x1152xbf16>
    %cst_374 = arith.constant dense<0.000000e+00> : vector<2x128xf32>
    %319 = tpu.matmul %318, %226, %cst_374 {dimension_numbers = #tpu.dot_dimension_numbers<[1], [0], [0], [1], [0, 0, 1, 1], [], []>} : vector<2x1152xbf16>, vector<1152x128xbf16>, vector<2x128xf32> -> vector<2x128xf32>
    %320 = vector.broadcast %227 : vector<1x128xf32> to vector<2x128xf32>
    %321 = arith.addf %319, %320 : vector<2x128xf32>
    %cst_375 = arith.constant 0.000000e+00 : f32
    %322 = vector.broadcast %cst_375 : f32 to vector<2x128xf32>
    %323 = arith.maximumf %321, %322 : vector<2x128xf32>
    %324 = vector.extract_strided_slice %323 {offsets = [0, 0], sizes = [1, 128], strides = [1, 1]} : vector<2x128xf32> to vector<1x128xf32>
    %325 = vector.extract_strided_slice %323 {offsets = [1, 0], sizes = [1, 128], strides = [1, 1]} : vector<2x128xf32> to vector<1x128xf32>
    %c5_376 = arith.constant 5 : index
    %c0_377 = arith.constant 0 : index
    %c0_378 = arith.constant 0 : index
    %326 = vector.load %arg16[%c5_376, %c0_377, %c0_378] : memref<8x4x128xf32, #tpu.memory_space<vmem>>, vector<1x2x128xf32>
    %327 = vector.shape_cast %326 : vector<1x2x128xf32> to vector<2x128xf32>
    %c5_379 = arith.constant 5 : index
    %c1_380 = arith.constant 1 : index
    %c0_381 = arith.constant 0 : index
    %328 = vector.load %arg16[%c5_379, %c1_380, %c0_381] : memref<8x4x128xf32, #tpu.memory_space<vmem>>, vector<1x2x128xf32>
    %329 = vector.shape_cast %328 : vector<1x2x128xf32> to vector<2x128xf32>
    %c5_382 = arith.constant 5 : index
    %c2_383 = arith.constant 2 : index
    %c0_384 = arith.constant 0 : index
    %330 = vector.load %arg16[%c5_382, %c2_383, %c0_384] : memref<8x4x128xf32, #tpu.memory_space<vmem>>, vector<1x2x128xf32>
    %331 = vector.shape_cast %330 : vector<1x2x128xf32> to vector<2x128xf32>
    %c6_385 = arith.constant 6 : index
    %c0_386 = arith.constant 0 : index
    %c0_387 = arith.constant 0 : index
    %332 = vector.load %arg16[%c6_385, %c0_386, %c0_387] : memref<8x4x128xf32, #tpu.memory_space<vmem>>, vector<1x2x128xf32>
    %333 = vector.shape_cast %332 : vector<1x2x128xf32> to vector<2x128xf32>
    %c6_388 = arith.constant 6 : index
    %c1_389 = arith.constant 1 : index
    %c0_390 = arith.constant 0 : index
    %334 = vector.load %arg16[%c6_388, %c1_389, %c0_390] : memref<8x4x128xf32, #tpu.memory_space<vmem>>, vector<1x2x128xf32>
    %335 = vector.shape_cast %334 : vector<1x2x128xf32> to vector<2x128xf32>
    %c6_391 = arith.constant 6 : index
    %c2_392 = arith.constant 2 : index
    %c0_393 = arith.constant 0 : index
    %336 = vector.load %arg16[%c6_391, %c2_392, %c0_393] : memref<8x4x128xf32, #tpu.memory_space<vmem>>, vector<1x2x128xf32>
    %337 = vector.shape_cast %336 : vector<1x2x128xf32> to vector<2x128xf32>
    %c7_394 = arith.constant 7 : index
    %c0_395 = arith.constant 0 : index
    %c0_396 = arith.constant 0 : index
    %338 = vector.load %arg16[%c7_394, %c0_395, %c0_396] : memref<8x4x128xf32, #tpu.memory_space<vmem>>, vector<1x2x128xf32>
    %339 = vector.shape_cast %338 : vector<1x2x128xf32> to vector<2x128xf32>
    %c7_397 = arith.constant 7 : index
    %c1_398 = arith.constant 1 : index
    %c0_399 = arith.constant 0 : index
    %340 = vector.load %arg16[%c7_397, %c1_398, %c0_399] : memref<8x4x128xf32, #tpu.memory_space<vmem>>, vector<1x2x128xf32>
    %341 = vector.shape_cast %340 : vector<1x2x128xf32> to vector<2x128xf32>
    %c7_400 = arith.constant 7 : index
    %c2_401 = arith.constant 2 : index
    %c0_402 = arith.constant 0 : index
    %342 = vector.load %arg16[%c7_400, %c2_401, %c0_402] : memref<8x4x128xf32, #tpu.memory_space<vmem>>, vector<1x2x128xf32>
    %343 = vector.shape_cast %342 : vector<1x2x128xf32> to vector<2x128xf32>
    %344 = tpu.concatenate %327, %329, %331, %333, %335, %337, %339, %341, %343 in 1 : vector<2x128xf32>, vector<2x128xf32>, vector<2x128xf32>, vector<2x128xf32>, vector<2x128xf32>, vector<2x128xf32>, vector<2x128xf32>, vector<2x128xf32>, vector<2x128xf32> -> vector<2x1152xf32>
    %345 = arith.truncf %344 : vector<2x1152xf32> to vector<2x1152xbf16>
    %cst_403 = arith.constant dense<0.000000e+00> : vector<2x128xf32>
    %346 = tpu.matmul %345, %226, %cst_403 {dimension_numbers = #tpu.dot_dimension_numbers<[1], [0], [0], [1], [0, 0, 1, 1], [], []>} : vector<2x1152xbf16>, vector<1152x128xbf16>, vector<2x128xf32> -> vector<2x128xf32>
    %347 = vector.broadcast %227 : vector<1x128xf32> to vector<2x128xf32>
    %348 = arith.addf %346, %347 : vector<2x128xf32>
    %cst_404 = arith.constant 0.000000e+00 : f32
    %349 = vector.broadcast %cst_404 : f32 to vector<2x128xf32>
    %350 = arith.maximumf %348, %349 : vector<2x128xf32>
    %351 = vector.extract_strided_slice %350 {offsets = [0, 0], sizes = [1, 128], strides = [1, 1]} : vector<2x128xf32> to vector<1x128xf32>
    %352 = vector.extract_strided_slice %350 {offsets = [1, 0], sizes = [1, 128], strides = [1, 1]} : vector<2x128xf32> to vector<1x128xf32>
    %353 = tpu.concatenate %324, %325, %351, %352 in 1 : vector<1x128xf32>, vector<1x128xf32>, vector<1x128xf32>, vector<1x128xf32> -> vector<1x512xf32>
    %354 = arith.truncf %353 : vector<1x512xf32> to vector<1x512xbf16>
    %cst_405 = arith.constant dense<0.000000e+00> : vector<1x256xf32>
    %355 = tpu.matmul %354, %228, %cst_405 {dimension_numbers = #tpu.dot_dimension_numbers<[1], [0], [0], [1], [0, 0, 1, 1], [], []>} : vector<1x512xbf16>, vector<512x256xbf16>, vector<1x256xf32> -> vector<1x256xf32>
    %356 = arith.addf %355, %229 : vector<1x256xf32>
    %cst_406 = arith.constant 0.000000e+00 : f32
    %357 = vector.broadcast %cst_406 : f32 to vector<1x256xf32>
    %358 = arith.cmpf oge, %356, %357 : vector<1x256xf32>
    %359 = arith.mulf %230, %356 : vector<1x256xf32>
    %360 = arith.select %358, %356, %359 : vector<1x256xi1>, vector<1x256xf32>
    %361 = arith.truncf %360 : vector<1x256xf32> to vector<1x256xbf16>
    %cst_407 = arith.constant dense<0.000000e+00> : vector<1x8xf32>
    %362 = tpu.matmul %361, %231, %cst_407 {dimension_numbers = #tpu.dot_dimension_numbers<[1], [0], [0], [1], [0, 0, 1, 1], [], []>} : vector<1x256xbf16>, vector<256x8xbf16>, vector<1x8xf32> -> vector<1x8xf32>
    %363 = arith.addf %362, %232 : vector<1x8xf32>
    %c1_408 = arith.constant 1 : index
    %c0_409 = arith.constant 0 : index
    %364 = vector.load %arg13[%c1_408, %c0_409] : memref<2x8xf32, #tpu.memory_space<vmem>>, vector<1x8xf32>
    tpu.vector_store %arg13[%c1_408, %c0_409], %363 {strides = array<i32>} : memref<2x8xf32, #tpu.memory_space<vmem>>, vector<1x8xf32>,
    return
  }
  func.func @transform_0(%arg0: i32) -> (i32, i32) {
    %c0_i32 = arith.constant 0 : i32
    %c0_i32_0 = arith.constant 0 : i32
    %c0_i32_1 = arith.constant 0 : i32
    return %c0_i32, %c0_i32_0 : i32, i32
  }
  func.func @transform_1(%arg0: i32) -> (i32, i32) {
    %c0_i32 = arith.constant 0 : i32
    %c0_i32_0 = arith.constant 0 : i32
    %c0_i32_1 = arith.constant 0 : i32
    return %c0_i32, %c0_i32_0 : i32, i32
  }
  func.func @transform_2(%arg0: i32) -> (i32, i32) {
    %c0_i32 = arith.constant 0 : i32
    %c0_i32_0 = arith.constant 0 : i32
    %c0_i32_1 = arith.constant 0 : i32
    return %c0_i32, %c0_i32_0 : i32, i32
  }
  func.func @transform_3(%arg0: i32) -> (i32, i32) {
    %c0_i32 = arith.constant 0 : i32
    %c0_i32_0 = arith.constant 0 : i32
    %c0_i32_1 = arith.constant 0 : i32
    return %c0_i32, %c0_i32_0 : i32, i32
  }
  func.func @transform_4(%arg0: i32) -> (i32, i32) {
    %c0_i32 = arith.constant 0 : i32
    %c0_i32_0 = arith.constant 0 : i32
    %c0_i32_1 = arith.constant 0 : i32
    return %c0_i32, %c0_i32_0 : i32, i32
  }
  func.func @transform_5(%arg0: i32) -> (i32, i32) {
    %c0_i32 = arith.constant 0 : i32
    %c0_i32_0 = arith.constant 0 : i32
    %c0_i32_1 = arith.constant 0 : i32
    return %c0_i32, %c0_i32_0 : i32, i32
  }
  func.func @transform_6(%arg0: i32) -> (i32, i32) {
    %c0_i32 = arith.constant 0 : i32
    %c0_i32_0 = arith.constant 0 : i32
    %c0_i32_1 = arith.constant 0 : i32
    return %c0_i32, %c0_i32_0 : i32, i32
  }
  func.func @transform_7(%arg0: i32) -> (i32, i32) {
    %c0_i32 = arith.constant 0 : i32
    %c0_i32_0 = arith.constant 0 : i32
    %c0_i32_1 = arith.constant 0 : i32
    return %c0_i32, %c0_i32_0 : i32, i32
  }
  func.func @transform_8(%arg0: i32) -> (i32, i32) {
    %c0_i32 = arith.constant 0 : i32
    %c0_i32_0 = arith.constant 0 : i32
    %c0_i32_1 = arith.constant 0 : i32
    return %c0_i32, %c0_i32_0 : i32, i32
  }
  func.func @transform_9(%arg0: i32) -> (i32, i32) {
    %c0_i32 = arith.constant 0 : i32
    %c0_i32_0 = arith.constant 0 : i32
    %c0_i32_1 = arith.constant 0 : i32
    return %c0_i32, %c0_i32_0 : i32, i32
  }
  func.func @transform_10(%arg0: i32) -> (i32, i32) {
    %c0_i32 = arith.constant 0 : i32
    %c0_i32_0 = arith.constant 0 : i32
    %c0_i32_1 = arith.constant 0 : i32
    return %c0_i32, %c0_i32_0 : i32, i32
  }
  func.func @transform_11(%arg0: i32) -> (i32, i32) {
    %c0_i32 = arith.constant 0 : i32
    %c0_i32_0 = arith.constant 0 : i32
    %c0_i32_1 = arith.constant 0 : i32
    return %c0_i32, %c0_i32_0 : i32, i32
  }
  func.func @transform_12(%arg0: i32) -> (i32, i32) {
    %c0_i32 = arith.constant 0 : i32
    %c0_i32_0 = arith.constant 0 : i32
    %c0_i32_1 = arith.constant 0 : i32
    return %c0_i32, %c0_i32_0 : i32, i32
  }
}

</mosaic_0001>

<llo_original>
// kernel: actor_critic_forward.1
$region0: #{actor_critic_forward.1}
  #allocation0 [shape = 'u32[]', space=smem, size = 0x4, offset = 0x4, fixed_abs, tag = 'smem constant byte address 0x4 - core index']
  #allocation1 [shape = 'u32[72,128]{1,0:T(1,128)}', space=vmem, size = 0x9000, scoped, tag = 'internal scratch']
  #allocation2 [shape = 'f32[100,128]{1,0:T(8,128)}', space=vmem, size = 0xd000, scoped, tag = 'scratch operand']
  #allocation3 [shape = 'f32[100,128]{1,0:T(8,128)}', space=vmem, size = 0xd000, scoped, tag = 'scratch operand']
  #allocation4 [shape = 'f32[8,4,128]{2,1,0:T(4,128)}', space=vmem, size = 0x4000, scoped, tag = 'scratch operand']
  %s0 = inlined_call_operand.vmem [shape: bf16[200,256], index: 0, kind: input, shape index: {}]
  %s1 = inlined_call_operand.vmem [shape: bf16[256,128], index: 1, kind: input, shape index: {}]
  %s2 = inlined_call_operand.vmem [shape: f32[1,128], index: 2, kind: input, shape index: {}]
  %s3 = inlined_call_operand.vmem [shape: bf16[2048,128], index: 3, kind: input, shape index: {}]
  %s4 = inlined_call_operand.vmem [shape: f32[1,128], index: 4, kind: input, shape index: {}]
  %s5 = inlined_call_operand.vmem [shape: bf16[1152,128], index: 5, kind: input, shape index: {}]
  %s6 = inlined_call_operand.vmem [shape: f32[1,128], index: 6, kind: input, shape index: {}]
  %s7 = inlined_call_operand.vmem [shape: bf16[512,256], index: 7, kind: input, shape index: {}]
  %s8 = inlined_call_operand.vmem [shape: f32[1,256], index: 8, kind: input, shape index: {}]
  %s9 = inlined_call_operand.vmem [shape: f32[1,256], index: 9, kind: input, shape index: {}]
  %s10 = inlined_call_operand.vmem [shape: bf16[256,8], index: 10, kind: input, shape index: {}]
  %s11 = inlined_call_operand.vmem [shape: f32[1,8], index: 11, kind: input, shape index: {}]
  %s12 = inlined_call_operand.vmem [shape: f32[2,8], index: 12, kind: output, shape index: {}]
  %s13 = sld [smem:[#allocation0]]
  $region58: #{actor_critic_forward.1} parent=0
    _
  %s15 = ssub.s32 1, %s13
  %s16 = scalar_select 0, %s15, %s13
  // Predicated region
  $region2: #{actor_critic_forward.1} parent=0 // pred_check
    _
  $region3: #{actor_critic_forward.1} parent=0 // pred_check_branch
    %18 = sbr.rel (0) target = $region5
  $region4: #{actor_critic_forward.1} parent=0 // pred_region
    _
  $region5: #{actor_critic_forward.1} parent=0 // pred_fallthru
    _
  // Predicated region
  $region6: #{actor_critic_forward.1} parent=0 // pred_check
    _
  $region7: #{actor_critic_forward.1} parent=0 // pred_check_branch
    %20 = sbr.rel (0) target = $region9
  $region8: #{actor_critic_forward.1} parent=0 // pred_region
    _
  $region9: #{actor_critic_forward.1} parent=0 // pred_fallthru
    _
  // Predicated region
  $region10: #{actor_critic_forward.1} parent=0 // pred_check
    _
  $region11: #{actor_critic_forward.1} parent=0 // pred_check_branch
    %22 = sbr.rel (0) target = $region13
  $region12: #{actor_critic_forward.1} parent=0 // pred_region
    _
  $region13: #{actor_critic_forward.1} parent=0 // pred_fallthru
    _
  // Predicated region
  $region14: #{actor_critic_forward.1} parent=0 // pred_check
    _
  $region15: #{actor_critic_forward.1} parent=0 // pred_check_branch
    %24 = sbr.rel (0) target = $region17
  $region16: #{actor_critic_forward.1} parent=0 // pred_region
    _
  $region17: #{actor_critic_forward.1} parent=0 // pred_fallthru
    _
  // Predicated region
  $region18: #{actor_critic_forward.1} parent=0 // pred_check
    _
  $region19: #{actor_critic_forward.1} parent=0 // pred_check_branch
    %26 = sbr.rel (0) target = $region21
  $region20: #{actor_critic_forward.1} parent=0 // pred_region
    _
  $region21: #{actor_critic_forward.1} parent=0 // pred_fallthru
    _
  // Predicated region
  $region22: #{actor_critic_forward.1} parent=0 // pred_check
    _
  $region23: #{actor_critic_forward.1} parent=0 // pred_check_branch
    %28 = sbr.rel (0) target = $region25
  $region24: #{actor_critic_forward.1} parent=0 // pred_region
    _
  $region25: #{actor_critic_forward.1} parent=0 // pred_fallthru
    _
  // Predicated region
  $region26: #{actor_critic_forward.1} parent=0 // pred_check
    _
  $region27: #{actor_critic_forward.1} parent=0 // pred_check_branch
    %30 = sbr.rel (0) target = $region29
  $region28: #{actor_critic_forward.1} parent=0 // pred_region
    _
  $region29: #{actor_critic_forward.1} parent=0 // pred_fallthru
    _
  // Predicated region
  $region30: #{actor_critic_forward.1} parent=0 // pred_check
    _
  $region31: #{actor_critic_forward.1} parent=0 // pred_check_branch
    %32 = sbr.rel (0) target = $region33
  $region32: #{actor_critic_forward.1} parent=0 // pred_region
    _
  $region33: #{actor_critic_forward.1} parent=0 // pred_fallthru
    _
  // Predicated region
  $region34: #{actor_critic_forward.1} parent=0 // pred_check
    _
  $region35: #{actor_critic_forward.1} parent=0 // pred_check_branch
    %34 = sbr.rel (0) target = $region37
  $region36: #{actor_critic_forward.1} parent=0 // pred_region
    _
  $region37: #{actor_critic_forward.1} parent=0 // pred_fallthru
    _
  // Predicated region
  $region38: #{actor_critic_forward.1} parent=0 // pred_check
    _
  $region39: #{actor_critic_forward.1} parent=0 // pred_check_branch
    %36 = sbr.rel (0) target = $region41
  $region40: #{actor_critic_forward.1} parent=0 // pred_region
    _
  $region41: #{actor_critic_forward.1} parent=0 // pred_fallthru
    _
  // Predicated region
  $region42: #{actor_critic_forward.1} parent=0 // pred_check
    _
  $region43: #{actor_critic_forward.1} parent=0 // pred_check_branch
    %38 = sbr.rel (0) target = $region45
  $region44: #{actor_critic_forward.1} parent=0 // pred_region
    _
  $region45: #{actor_critic_forward.1} parent=0 // pred_fallthru
    _
  // Predicated region
  $region46: #{actor_critic_forward.1} parent=0 // pred_check
    _
  $region47: #{actor_critic_forward.1} parent=0 // pred_check_branch
    %40 = sbr.rel (0) target = $region49
  $region48: #{actor_critic_forward.1} parent=0 // pred_region
    _
  $region49: #{actor_critic_forward.1} parent=0 // pred_fallthru
    _
  %v41 = vld [vmem:[%s1] sm:$0xf]
  %v42 = vld [vmem:[%s1 + $0x4] sm:$0xf]
  %v43 = vld [vmem:[%s1 + $0x8] sm:$0xf]
  %v44 = vld [vmem:[%s1 + $0xc] sm:$0xf]
  %v45 = vld [vmem:[%s1 + $0x10] sm:$0xf]
  %v46 = vld [vmem:[%s1 + $0x14] sm:$0xf]
  %v47 = vld [vmem:[%s1 + $0x18] sm:$0xf]
  %v48 = vld [vmem:[%s1 + $0x1c] sm:$0xf]
  %v49 = vld [vmem:[%s1 + $0x20] sm:$0xf]
  %v50 = vld [vmem:[%s1 + $0x24] sm:$0xf]
  %v51 = vld [vmem:[%s1 + $0x28] sm:$0xf]
  %v52 = vld [vmem:[%s1 + $0x2c] sm:$0xf]
  %v53 = vld [vmem:[%s1 + $0x30] sm:$0xf]
  %v54 = vld [vmem:[%s1 + $0x34] sm:$0xf]
  %v55 = vld [vmem:[%s1 + $0x38] sm:$0xf]
  %v56 = vld [vmem:[%s1 + $0x3c] sm:$0xf]
  %v57 = vld [vmem:[%s1 + $0x40] sm:$0xf]
  %v58 = vld [vmem:[%s1 + $0x44] sm:$0xf]
  %v59 = vld [vmem:[%s1 + $0x48] sm:$0xf]
  %v60 = vld [vmem:[%s1 + $0x4c] sm:$0xf]
  %v61 = vld [vmem:[%s1 + $0x50] sm:$0xf]
  %v62 = vld [vmem:[%s1 + $0x54] sm:$0xf]
  %v63 = vld [vmem:[%s1 + $0x58] sm:$0xf]
  %v64 = vld [vmem:[%s1 + $0x5c] sm:$0xf]
  %v65 = vld [vmem:[%s1 + $0x60] sm:$0xf]
  %v66 = vld [vmem:[%s1 + $0x64] sm:$0xf]
  %v67 = vld [vmem:[%s1 + $0x68] sm:$0xf]
  %v68 = vld [vmem:[%s1 + $0x6c] sm:$0xf]
  %v69 = vld [vmem:[%s1 + $0x70] sm:$0xf]
  %v70 = vld [vmem:[%s1 + $0x74] sm:$0xf]
  %v71 = vld [vmem:[%s1 + $0x78] sm:$0xf]
  %v72 = vld [vmem:[%s1 + $0x7c] sm:$0xf]
  %v73 = vld [vmem:[%s2] sm:$0x1]
  %v74 = vld [vmem:[%s0] sm:$0xff]
  %v75 = vld [vmem:[%s0 + $0x8] sm:$0xff]
  %v76 = vld [vmem:[%s0 + $0x10] sm:$0xff]
  %v77 = vld [vmem:[%s0 + $0x18] sm:$0xff]
  %v78 = vld [vmem:[%s0 + $0x20] sm:$0xff]
  %v79 = vld [vmem:[%s0 + $0x28] sm:$0xff]
  %v80 = vld [vmem:[%s0 + $0x30] sm:$0xff]
  %v81 = vld [vmem:[%s0 + $0x38] sm:$0xff]
  %v82 = vld [vmem:[%s0 + $0x40] sm:$0xff]
  %v83 = vld [vmem:[%s0 + $0x48] sm:$0xff]
  %v84 = vld [vmem:[%s0 + $0x50] sm:$0xff]
  %v85 = vld [vmem:[%s0 + $0x58] sm:$0xff]
  %v86 = vld [vmem:[%s0 + $0x60] sm:$0x33]
  %v88 = vperm.slane %v73, 0
  %v103 = vunpack.c.l.b16 %v74
  %v104 = vunpack.c.h.b16 %v74
  %v105 = vunpack.c.l.b16 %v75
  %v106 = vunpack.c.h.b16 %v75
  %v107 = vunpack.c.l.b16 %v76
  %v108 = vunpack.c.h.b16 %v76
  %v109 = vunpack.c.l.b16 %v77
  %v110 = vunpack.c.h.b16 %v77
  %v111 = vunpack.c.l.b16 %v78
  %v112 = vunpack.c.h.b16 %v78
  %v113 = vunpack.c.l.b16 %v79
  %v114 = vunpack.c.h.b16 %v79
  %v115 = vunpack.c.l.b16 %v80
  %v116 = vunpack.c.h.b16 %v80
  %v117 = vunpack.c.l.b16 %v81
  %v118 = vunpack.c.h.b16 %v81
  %v119 = vunpack.c.l.b16 %v82
  %v120 = vunpack.c.h.b16 %v82
  %v121 = vunpack.c.l.b16 %v83
  %v122 = vunpack.c.h.b16 %v83
  %v123 = vunpack.c.l.b16 %v84
  %v124 = vunpack.c.h.b16 %v84
  %v125 = vunpack.c.l.b16 %v85
  %v126 = vunpack.c.h.b16 %v85
  %v127 = vunpack.c.l.b16 %v86
  %v128 = vunpack.c.h.b16 %v86
  %v129 = vpack.c.b16 %v105, %v103
  %v130 = vpack.c.b16 %v106, %v104
  %v131 = vpack.c.b16 %v109, %v107
  %v132 = vpack.c.b16 %v110, %v108
  %v133 = vpack.c.b16 %v113, %v111
  %v134 = vpack.c.b16 %v114, %v112
  %v135 = vpack.c.b16 %v117, %v115
  %v136 = vpack.c.b16 %v118, %v116
  %v137 = vpack.c.b16 %v121, %v119
  %v138 = vpack.c.b16 %v122, %v120
  %v139 = vpack.c.b16 %v125, %v123
  %v140 = vpack.c.b16 %v126, %v124
  %v141 = vpack.c.b16 %v127, %v127
  %v142 = vpack.c.b16 %v128, %v128
  %v189 = vunpack.c.l.b16 %v41
  %v190 = vunpack.c.l.b16 %v42
  %v191 = vunpack.c.l.b16 %v43
  %v192 = vunpack.c.l.b16 %v44
  %v193 = vunpack.c.l.b16 %v45
  %v194 = vunpack.c.l.b16 %v46
  %v195 = vunpack.c.l.b16 %v47
  %v196 = vunpack.c.l.b16 %v48
  %v197 = vunpack.c.l.b16 %v49
  %v198 = vunpack.c.l.b16 %v50
  %v199 = vunpack.c.l.b16 %v51
  %v200 = vunpack.c.l.b16 %v52
  %v201 = vunpack.c.l.b16 %v53
  %v202 = vunpack.c.l.b16 %v54
  %v203 = vunpack.c.l.b16 %v55
  %v204 = vunpack.c.l.b16 %v56
  %v205 = vunpack.c.l.b16 %v57
  %v206 = vunpack.c.l.b16 %v58
  %v207 = vunpack.c.l.b16 %v59
  %v208 = vunpack.c.l.b16 %v60
  %v209 = vunpack.c.l.b16 %v61
  %v210 = vunpack.c.l.b16 %v62
  %v211 = vunpack.c.l.b16 %v63
  %v212 = vunpack.c.l.b16 %v64
  %v213 = vunpack.c.l.b16 %v65
  %v214 = vunpack.c.l.b16 %v66
  %v215 = vunpack.c.l.b16 %v67
  %v216 = vunpack.c.l.b16 %v68
  %v217 = vunpack.c.l.b16 %v69
  %v218 = vunpack.c.l.b16 %v70
  %v219 = vunpack.c.l.b16 %v71
  %v220 = vunpack.c.l.b16 %v72
  %v221 = vpack.c.b16 %v190, %v189
  %v222 = vpack.c.b16 %v192, %v191
  %v223 = vpack.c.b16 %v194, %v193
  %v224 = vpack.c.b16 %v196, %v195
  %v225 = vpack.c.b16 %v198, %v197
  %v226 = vpack.c.b16 %v200, %v199
  %v227 = vpack.c.b16 %v202, %v201
  %v228 = vpack.c.b16 %v204, %v203
  %v229 = vpack.c.b16 %v206, %v205
  %v230 = vpack.c.b16 %v208, %v207
  %v231 = vpack.c.b16 %v210, %v209
  %v232 = vpack.c.b16 %v212, %v211
  %v233 = vpack.c.b16 %v214, %v213
  %v234 = vpack.c.b16 %v216, %v215
  %v235 = vpack.c.b16 %v218, %v217
  %v236 = vpack.c.b16 %v220, %v219
  %253 = vmatpush.bf16.msra.mxu0 %v228
  %254 = vmatpush.bf16.msra.mxu0 %v227
  %255 = vmatpush.bf16.msra.mxu0 %v226
  %256 = vmatpush.bf16.msra.mxu0 %v225
  %257 = vmatpush.bf16.msra.mxu0 %v224
  %258 = vmatpush.bf16.msra.mxu0 %v223
  %259 = vmatpush.bf16.msra.mxu0 %v222
  %260 = vmatpush.bf16.msra.mxu0 %v221
  %261 = vmatmul.bf16.gmra.mxu0 %v129
  %v262 = vpop.f32.mrf.mxu0
  %v263 = vadd.f32 %v88, %v262
  %v264 = vpop.f32.mrf.mxu0
  %v265 = vadd.f32 %v88, %v264
  %266 = vmatmul.bf16.gmra.mxu0 %v131
  %v267 = vpop.f32.mrf.mxu0
  %v268 = vadd.f32 %v88, %v267
  %v269 = vpop.f32.mrf.mxu0
  %v270 = vadd.f32 %v88, %v269
  %271 = vmatmul.bf16.gmra.mxu0 %v133
  %v272 = vpop.f32.mrf.mxu0
  %v273 = vadd.f32 %v88, %v272
  %v274 = vpop.f32.mrf.mxu0
  %v275 = vadd.f32 %v88, %v274
  %276 = vmatmul.bf16.gmra.mxu0 %v135
  %v277 = vpop.f32.mrf.mxu0
  %v278 = vadd.f32 %v88, %v277
  %v279 = vpop.f32.mrf.mxu0
  %v280 = vadd.f32 %v88, %v279
  %281 = vmatmul.bf16.gmra.mxu0 %v137
  %v282 = vpop.f32.mrf.mxu0
  %v283 = vadd.f32 %v88, %v282
  %v284 = vpop.f32.mrf.mxu0
  %v285 = vadd.f32 %v88, %v284
  %286 = vmatmul.bf16.gmra.mxu0 %v139
  %v287 = vpop.f32.mrf.mxu0
  %v288 = vadd.f32 %v88, %v287
  %v289 = vpop.f32.mrf.mxu0
  %v290 = vadd.f32 %v88, %v289
  %291 = vmatmul.bf16.gmra.mxu0 %v141
  %v292 = vpop.f32.mrf.mxu0
  %v293 = vadd.f32 %v88, %v292
  %v294 = vpop.f32.mrf.mxu0
  %295 = vdwg.mxu0
  %296 = vmatpush.bf16.msra.mxu0 %v236
  %297 = vmatpush.bf16.msra.mxu0 %v235
  %298 = vmatpush.bf16.msra.mxu0 %v234
  %299 = vmatpush.bf16.msra.mxu0 %v233
  %300 = vmatpush.bf16.msra.mxu0 %v232
  %301 = vmatpush.bf16.msra.mxu0 %v231
  %302 = vmatpush.bf16.msra.mxu0 %v230
  %303 = vmatpush.bf16.msra.mxu0 %v229
  %304 = vmatmul.bf16.gmra.mxu0 %v130
  %v305 = vpop.f32.mrf.mxu0
  %v306 = vadd.f32 %v263, %v305
  %v307 = vpop.f32.mrf.mxu0
  %v308 = vadd.f32 %v265, %v307
  %309 = vmatmul.bf16.gmra.mxu0 %v132
  %v310 = vpop.f32.mrf.mxu0
  %v311 = vadd.f32 %v268, %v310
  %v312 = vpop.f32.mrf.mxu0
  %v313 = vadd.f32 %v270, %v312
  %314 = vmatmul.bf16.gmra.mxu0 %v134
  %v315 = vpop.f32.mrf.mxu0
  %v316 = vadd.f32 %v273, %v315
  %v317 = vpop.f32.mrf.mxu0
  %v318 = vadd.f32 %v275, %v317
  %319 = vmatmul.bf16.gmra.mxu0 %v136
  %v320 = vpop.f32.mrf.mxu0
  %v321 = vadd.f32 %v278, %v320
  %v322 = vpop.f32.mrf.mxu0
  %v323 = vadd.f32 %v280, %v322
  %324 = vmatmul.bf16.gmra.mxu0 %v138
  %v325 = vpop.f32.mrf.mxu0
  %v326 = vadd.f32 %v283, %v325
  %v327 = vpop.f32.mrf.mxu0
  %v328 = vadd.f32 %v285, %v327
  %329 = vmatmul.bf16.gmra.mxu0 %v140
  %v330 = vpop.f32.mrf.mxu0
  %v331 = vadd.f32 %v288, %v330
  %v332 = vpop.f32.mrf.mxu0
  %v333 = vadd.f32 %v290, %v332
  %334 = vmatmul.bf16.gmra.mxu0 %v142
  %v335 = vpop.f32.mrf.mxu0
  %v336 = vadd.f32 %v293, %v335
  %v337 = vpop.f32.mrf.mxu0
  %338 = vdwg.mxu0
  %v339 = vmax.f32 %v306, 0.0
  %v340 = vmax.f32 %v308, 0.0
  %v341 = vmax.f32 %v311, 0.0
  %v342 = vmax.f32 %v313, 0.0
  %v343 = vmax.f32 %v316, 0.0
  %v344 = vmax.f32 %v318, 0.0
  %v345 = vmax.f32 %v321, 0.0
  %v346 = vmax.f32 %v323, 0.0
  %v347 = vmax.f32 %v326, 0.0
  %v348 = vmax.f32 %v328, 0.0
  %v349 = vmax.f32 %v331, 0.0
  %v350 = vmax.f32 %v333, 0.0
  %v351 = vmax.f32 %v336, 0.0
  %352 = vst [vmem:[#allocation2] sm:$0xff] %v339
  %353 = vst [vmem:[#allocation2 + $0x8] sm:$0xff] %v340
  %354 = vst [vmem:[#allocation2 + $0x10] sm:$0xff] %v341
  %355 = vst [vmem:[#allocation2 + $0x18] sm:$0xff] %v342
  %356 = vst [vmem:[#allocation2 + $0x20] sm:$0xff] %v343
  %357 = vst [vmem:[#allocation2 + $0x28] sm:$0xff] %v344
  %358 = vst [vmem:[#allocation2 + $0x30] sm:$0xff] %v345
  %359 = vst [vmem:[#allocation2 + $0x38] sm:$0xff] %v346
  %360 = vst [vmem:[#allocation2 + $0x40] sm:$0xff] %v347
  %361 = vst [vmem:[#allocation2 + $0x48] sm:$0xff] %v348
  %362 = vst [vmem:[#allocation2 + $0x50] sm:$0xff] %v349
  %363 = vst [vmem:[#allocation2 + $0x58] sm:$0xff] %v350
  %364 = vst [vmem:[#allocation2 + $0x60] sm:$0xf] %v351
  %v365 = vld [vmem:[%s0 + $0x60] sm:$0xcc]
  %v366 = vld [vmem:[%s0 + $0x68] sm:$0xff]
  %v367 = vld [vmem:[%s0 + $0x70] sm:$0xff]
  %v368 = vld [vmem:[%s0 + $0x78] sm:$0xff]
  %v369 = vld [vmem:[%s0 + $0x80] sm:$0xff]
  %v370 = vld [vmem:[%s0 + $0x88] sm:$0xff]
  %v371 = vld [vmem:[%s0 + $0x90] sm:$0xff]
  %v372 = vld [vmem:[%s0 + $0x98] sm:$0xff]
  %v373 = vld [vmem:[%s0 + $0xa0] sm:$0xff]
  %v374 = vld [vmem:[%s0 + $0xa8] sm:$0xff]
  %v375 = vld [vmem:[%s0 + $0xb0] sm:$0xff]
  %v376 = vld [vmem:[%s0 + $0xb8] sm:$0xff]
  %v377 = vld [vmem:[%s0 + $0xc0] sm:$0xff]
  %v391 = vunpack.c.l.b16 %v365
  %v392 = vunpack.c.h.b16 %v365
  %v393 = vunpack.c.l.b16 %v366
  %v394 = vunpack.c.h.b16 %v366
  %v395 = vunpack.c.l.b16 %v367
  %v396 = vunpack.c.h.b16 %v367
  %v397 = vunpack.c.l.b16 %v368
  %v398 = vunpack.c.h.b16 %v368
  %v399 = vunpack.c.l.b16 %v369
  %v400 = vunpack.c.h.b16 %v369
  %v401 = vunpack.c.l.b16 %v370
  %v402 = vunpack.c.h.b16 %v370
  %v403 = vunpack.c.l.b16 %v371
  %v404 = vunpack.c.h.b16 %v371
  %v405 = vunpack.c.l.b16 %v372
  %v406 = vunpack.c.h.b16 %v372
  %v407 = vunpack.c.l.b16 %v373
  %v408 = vunpack.c.h.b16 %v373
  %v409 = vunpack.c.l.b16 %v374
  %v410 = vunpack.c.h.b16 %v374
  %v411 = vunpack.c.l.b16 %v375
  %v412 = vunpack.c.h.b16 %v375
  %v413 = vunpack.c.l.b16 %v376
  %v414 = vunpack.c.h.b16 %v376
  %v415 = vunpack.c.l.b16 %v377
  %v416 = vunpack.c.h.b16 %v377
  %v417 = vpack.c.b16 %v393, %v391
  %v418 = vpack.c.b16 %v394, %v392
  %v419 = vpack.c.b16 %v397, %v395
  %v420 = vpack.c.b16 %v398, %v396
  %v421 = vpack.c.b16 %v401, %v399
  %v422 = vpack.c.b16 %v402, %v400
  %v423 = vpack.c.b16 %v405, %v403
  %v424 = vpack.c.b16 %v406, %v404
  %v425 = vpack.c.b16 %v409, %v407
  %v426 = vpack.c.b16 %v410, %v408
  %v427 = vpack.c.b16 %v413, %v411
  %v428 = vpack.c.b16 %v414, %v412
  %v429 = vpack.c.b16 %v415, %v415
  %v430 = vpack.c.b16 %v416, %v416
  %vm431 = vcmask 1045504
  %v432 = vrot.slane %v417, 2
  %v433 = vrot.slane %v419, 2
  %v434 = vsel %vm431, %v432, %v433
  %v435 = vrot.slane %v418, 2
  %v436 = vrot.slane %v420, 2
  %v437 = vsel %vm431, %v435, %v436
  %v438 = vrot.slane %v421, 2
  %v439 = vsel %vm431, %v433, %v438
  %v440 = vrot.slane %v422, 2
  %v441 = vsel %vm431, %v436, %v440
  %v442 = vrot.slane %v423, 2
  %v443 = vsel %vm431, %v438, %v442
  %v444 = vrot.slane %v424, 2
  %v445 = vsel %vm431, %v440, %v444
  %v446 = vrot.slane %v425, 2
  %v447 = vsel %vm431, %v442, %v446
  %v448 = vrot.slane %v426, 2
  %v449 = vsel %vm431, %v444, %v448
  %v450 = vrot.slane %v427, 2
  %v451 = vsel %vm431, %v446, %v450
  %v452 = vrot.slane %v428, 2
  %v453 = vsel %vm431, %v448, %v452
  %v454 = vrot.slane %v429, 2
  %v455 = vsel %vm431, %v450, %v454
  %v456 = vrot.slane %v430, 2
  %v457 = vsel %vm431, %v452, %v456
  %472 = vmatpush.bf16.msra.mxu0 %v228
  %473 = vmatpush.bf16.msra.mxu0 %v227
  %474 = vmatpush.bf16.msra.mxu0 %v226
  %475 = vmatpush.bf16.msra.mxu0 %v225
  %476 = vmatpush.bf16.msra.mxu0 %v224
  %477 = vmatpush.bf16.msra.mxu0 %v223
  %478 = vmatpush.bf16.msra.mxu0 %v222
  %479 = vmatpush.bf16.msra.mxu0 %v221
  %480 = vmatmul.bf16.gmra.mxu0 %v434
  %v481 = vpop.f32.mrf.mxu0
  %v482 = vadd.f32 %v88, %v481
  %v483 = vpop.f32.mrf.mxu0
  %v484 = vadd.f32 %v88, %v483
  %485 = vmatmul.bf16.gmra.mxu0 %v439
  %v486 = vpop.f32.mrf.mxu0
  %v487 = vadd.f32 %v88, %v486
  %v488 = vpop.f32.mrf.mxu0
  %v489 = vadd.f32 %v88, %v488
  %490 = vmatmul.bf16.gmra.mxu0 %v443
  %v491 = vpop.f32.mrf.mxu0
  %v492 = vadd.f32 %v88, %v491
  %v493 = vpop.f32.mrf.mxu0
  %v494 = vadd.f32 %v88, %v493
  %495 = vmatmul.bf16.gmra.mxu0 %v447
  %v496 = vpop.f32.mrf.mxu0
  %v497 = vadd.f32 %v88, %v496
  %v498 = vpop.f32.mrf.mxu0
  %v499 = vadd.f32 %v88, %v498
  %500 = vmatmul.bf16.gmra.mxu0 %v451
  %v501 = vpop.f32.mrf.mxu0
  %v502 = vadd.f32 %v88, %v501
  %v503 = vpop.f32.mrf.mxu0
  %v504 = vadd.f32 %v88, %v503
  %505 = vmatmul.bf16.gmra.mxu0 %v455
  %v506 = vpop.f32.mrf.mxu0
  %v507 = vadd.f32 %v88, %v506
  %v508 = vpop.f32.mrf.mxu0
  %v509 = vadd.f32 %v88, %v508
  %510 = vmatmul.bf16.gmra.mxu0 %v454
  %v511 = vpop.f32.mrf.mxu0
  %v512 = vadd.f32 %v88, %v511
  %v513 = vpop.f32.mrf.mxu0
  %514 = vdwg.mxu0
  %515 = vmatpush.bf16.msra.mxu0 %v236
  %516 = vmatpush.bf16.msra.mxu0 %v235
  %517 = vmatpush.bf16.msra.mxu0 %v234
  %518 = vmatpush.bf16.msra.mxu0 %v233
  %519 = vmatpush.bf16.msra.mxu0 %v232
  %520 = vmatpush.bf16.msra.mxu0 %v231
  %521 = vmatpush.bf16.msra.mxu0 %v230
  %522 = vmatpush.bf16.msra.mxu0 %v229
  %523 = vmatmul.bf16.gmra.mxu0 %v437
  %v524 = vpop.f32.mrf.mxu0
  %v525 = vadd.f32 %v482, %v524
  %v526 = vpop.f32.mrf.mxu0
  %v527 = vadd.f32 %v484, %v526
  %528 = vmatmul.bf16.gmra.mxu0 %v441
  %v529 = vpop.f32.mrf.mxu0
  %v530 = vadd.f32 %v487, %v529
  %v531 = vpop.f32.mrf.mxu0
  %v532 = vadd.f32 %v489, %v531
  %533 = vmatmul.bf16.gmra.mxu0 %v445
  %v534 = vpop.f32.mrf.mxu0
  %v535 = vadd.f32 %v492, %v534
  %v536 = vpop.f32.mrf.mxu0
  %v537 = vadd.f32 %v494, %v536
  %538 = vmatmul.bf16.gmra.mxu0 %v449
  %v539 = vpop.f32.mrf.mxu0
  %v540 = vadd.f32 %v497, %v539
  %v541 = vpop.f32.mrf.mxu0
  %v542 = vadd.f32 %v499, %v541
  %543 = vmatmul.bf16.gmra.mxu0 %v453
  %v544 = vpop.f32.mrf.mxu0
  %v545 = vadd.f32 %v502, %v544
  %v546 = vpop.f32.mrf.mxu0
  %v547 = vadd.f32 %v504, %v546
  %548 = vmatmul.bf16.gmra.mxu0 %v457
  %v549 = vpop.f32.mrf.mxu0
  %v550 = vadd.f32 %v507, %v549
  %v551 = vpop.f32.mrf.mxu0
  %v552 = vadd.f32 %v509, %v551
  %553 = vmatmul.bf16.gmra.mxu0 %v456
  %v554 = vpop.f32.mrf.mxu0
  %v555 = vadd.f32 %v512, %v554
  %v556 = vpop.f32.mrf.mxu0
  %557 = vdwg.mxu0
  %v558 = vmax.f32 %v525, 0.0
  %v559 = vmax.f32 %v527, 0.0
  %v560 = vmax.f32 %v530, 0.0
  %v561 = vmax.f32 %v532, 0.0
  %v562 = vmax.f32 %v535, 0.0
  %v563 = vmax.f32 %v537, 0.0
  %v564 = vmax.f32 %v540, 0.0
  %v565 = vmax.f32 %v542, 0.0
  %v566 = vmax.f32 %v545, 0.0
  %v567 = vmax.f32 %v547, 0.0
  %v568 = vmax.f32 %v550, 0.0
  %v569 = vmax.f32 %v552, 0.0
  %v570 = vmax.f32 %v555, 0.0
  %571 = vst [vmem:[#allocation3] sm:$0xff] %v558
  %572 = vst [vmem:[#allocation3 + $0x8] sm:$0xff] %v559
  %573 = vst [vmem:[#allocation3 + $0x10] sm:$0xff] %v560
  %574 = vst [vmem:[#allocation3 + $0x18] sm:$0xff] %v561
  %575 = vst [vmem:[#allocation3 + $0x20] sm:$0xff] %v562
  %576 = vst [vmem:[#allocation3 + $0x28] sm:$0xff] %v563
  %577 = vst [vmem:[#allocation3 + $0x30] sm:$0xff] %v564
  %578 = vst [vmem:[#allocation3 + $0x38] sm:$0xff] %v565
  %579 = vst [vmem:[#allocation3 + $0x40] sm:$0xff] %v566
  %580 = vst [vmem:[#allocation3 + $0x48] sm:$0xff] %v567
  %581 = vst [vmem:[#allocation3 + $0x50] sm:$0xff] %v568
  %582 = vst [vmem:[#allocation3 + $0x58] sm:$0xff] %v569
  %583 = vst [vmem:[#allocation3 + $0x60] sm:$0xf] %v570
  %v584 = vld [vmem:[%s3] sm:$0xf]
  %v585 = vld [vmem:[%s3 + $0x4] sm:$0xf]
  %v586 = vld [vmem:[%s3 + $0x8] sm:$0xf]
  %v587 = vld [vmem:[%s3 + $0xc] sm:$0xf]
  %v588 = vld [vmem:[%s3 + $0x10] sm:$0xf]
  %v589 = vld [vmem:[%s3 + $0x14] sm:$0xf]
  %v590 = vld [vmem:[%s3 + $0x18] sm:$0xf]
  %v591 = vld [vmem:[%s3 + $0x1c] sm:$0xf]
  %v592 = vld [vmem:[%s3 + $0x20] sm:$0xf]
  %v593 = vld [vmem:[%s3 + $0x24] sm:$0xf]
  %v594 = vld [vmem:[%s3 + $0x28] sm:$0xf]
  %v595 = vld [vmem:[%s3 + $0x2c] sm:$0xf]
  %v596 = vld [vmem:[%s3 + $0x30] sm:$0xf]
  %v597 = vld [vmem:[%s3 + $0x34] sm:$0xf]
  %v598 = vld [vmem:[%s3 + $0x38] sm:$0xf]
  %v599 = vld [vmem:[%s3 + $0x3c] sm:$0xf]
  %v600 = vld [vmem:[%s3 + $0x40] sm:$0xf]
  %v601 = vld [vmem:[%s3 + $0x44] sm:$0xf]
  %v602 = vld [vmem:[%s3 + $0x48] sm:$0xf]
  %v603 = vld [vmem:[%s3 + $0x4c] sm:$0xf]
  %v604 = vld [vmem:[%s3 + $0x50] sm:$0xf]
  %v605 = vld [vmem:[%s3 + $0x54] sm:$0xf]
  %v606 = vld [vmem:[%s3 + $0x58] sm:$0xf]
  %v607 = vld [vmem:[%s3 + $0x5c] sm:$0xf]
  %v608 = vld [vmem:[%s3 + $0x60] sm:$0xf]
  %v609 = vld [vmem:[%s3 + $0x64] sm:$0xf]
  %v610 = vld [vmem:[%s3 + $0x68] sm:$0xf]
  %v611 = vld [vmem:[%s3 + $0x6c] sm:$0xf]
  %v612 = vld [vmem:[%s3 + $0x70] sm:$0xf]
  %v613 = vld [vmem:[%s3 + $0x74] sm:$0xf]
  %v614 = vld [vmem:[%s3 + $0x78] sm:$0xf]
  %v615 = vld [vmem:[%s3 + $0x7c] sm:$0xf]
  %v616 = vld [vmem:[%s3 + $0x80] sm:$0xf]
  %v617 = vld [vmem:[%s3 + $0x84] sm:$0xf]
  %v618 = vld [vmem:[%s3 + $0x88] sm:$0xf]
  %v619 = vld [vmem:[%s3 + $0x8c] sm:$0xf]
  %v620 = vld [vmem:[%s3 + $0x90] sm:$0xf]
  %v621 = vld [vmem:[%s3 + $0x94] sm:$0xf]
  %v622 = vld [vmem:[%s3 + $0x98] sm:$0xf]
  %v623 = vld [vmem:[%s3 + $0x9c] sm:$0xf]
  %v624 = vld [vmem:[%s3 + $0xa0] sm:$0xf]
  %v625 = vld [vmem:[%s3 + $0xa4] sm:$0xf]
  %v626 = vld [vmem:[%s3 + $0xa8] sm:$0xf]
  %v627 = vld [vmem:[%s3 + $0xac] sm:$0xf]
  %v628 = vld [vmem:[%s3 + $0xb0] sm:$0xf]
  %v629 = vld [vmem:[%s3 + $0xb4] sm:$0xf]
  %v630 = vld [vmem:[%s3 + $0xb8] sm:$0xf]
  %v631 = vld [vmem:[%s3 + $0xbc] sm:$0xf]
  %v632 = vld [vmem:[%s3 + $0xc0] sm:$0xf]
  %v633 = vld [vmem:[%s3 + $0xc4] sm:$0xf]
  %v634 = vld [vmem:[%s3 + $0xc8] sm:$0xf]
  %v635 = vld [vmem:[%s3 + $0xcc] sm:$0xf]
  %v636 = vld [vmem:[%s3 + $0xd0] sm:$0xf]
  %v637 = vld [vmem:[%s3 + $0xd4] sm:$0xf]
  %v638 = vld [vmem:[%s3 + $0xd8] sm:$0xf]
  %v639 = vld [vmem:[%s3 + $0xdc] sm:$0xf]
  %v640 = vld [vmem:[%s3 + $0xe0] sm:$0xf]
  %v641 = vld [vmem:[%s3 + $0xe4] sm:$0xf]
  %v642 = vld [vmem:[%s3 + $0xe8] sm:$0xf]
  %v643 = vld [vmem:[%s3 + $0xec] sm:$0xf]
  %v644 = vld [vmem:[%s3 + $0xf0] sm:$0xf]
  %v645 = vld [vmem:[%s3 + $0xf4] sm:$0xf]
  %v646 = vld [vmem:[%s3 + $0xf8] sm:$0xf]
  %v647 = vld [vmem:[%s3 + $0xfc] sm:$0xf]
  %v648 = vld [vmem:[%s3 + $0x100] sm:$0xf]
  %v649 = vld [vmem:[%s3 + $0x104] sm:$0xf]
  %v650 = vld [vmem:[%s3 + $0x108] sm:$0xf]
  %v651 = vld [vmem:[%s3 + $0x10c] sm:$0xf]
  %v652 = vld [vmem:[%s3 + $0x110] sm:$0xf]
  %v653 = vld [vmem:[%s3 + $0x114] sm:$0xf]
  %v654 = vld [vmem:[%s3 + $0x118] sm:$0xf]
  %v655 = vld [vmem:[%s3 + $0x11c] sm:$0xf]
  %v656 = vld [vmem:[%s3 + $0x120] sm:$0xf]
  %v657 = vld [vmem:[%s3 + $0x124] sm:$0xf]
  %v658 = vld [vmem:[%s3 + $0x128] sm:$0xf]
  %v659 = vld [vmem:[%s3 + $0x12c] sm:$0xf]
  %v660 = vld [vmem:[%s3 + $0x130] sm:$0xf]
  %v661 = vld [vmem:[%s3 + $0x134] sm:$0xf]
  %v662 = vld [vmem:[%s3 + $0x138] sm:$0xf]
  %v663 = vld [vmem:[%s3 + $0x13c] sm:$0xf]
  %v664 = vld [vmem:[%s3 + $0x140] sm:$0xf]
  %v665 = vld [vmem:[%s3 + $0x144] sm:$0xf]
  %v666 = vld [vmem:[%s3 + $0x148] sm:$0xf]
  %v667 = vld [vmem:[%s3 + $0x14c] sm:$0xf]
  %v668 = vld [vmem:[%s3 + $0x150] sm:$0xf]
  %v669 = vld [vmem:[%s3 + $0x154] sm:$0xf]
  %v670 = vld [vmem:[%s3 + $0x158] sm:$0xf]
  %v671 = vld [vmem:[%s3 + $0x15c] sm:$0xf]
  %v672 = vld [vmem:[%s3 + $0x160] sm:$0xf]
  %v673 = vld [vmem:[%s3 + $0x164] sm:$0xf]
  %v674 = vld [vmem:[%s3 + $0x168] sm:$0xf]
  %v675 = vld [vmem:[%s3 + $0x16c] sm:$0xf]
  %v676 = vld [vmem:[%s3 + $0x170] sm:$0xf]
  %v677 = vld [vmem:[%s3 + $0x174] sm:$0xf]
  %v678 = vld [vmem:[%s3 + $0x178] sm:$0xf]
  %v679 = vld [vmem:[%s3 + $0x17c] sm:$0xf]
  %v680 = vld [vmem:[%s3 + $0x180] sm:$0xf]
  %v681 = vld [vmem:[%s3 + $0x184] sm:$0xf]
  %v682 = vld [vmem:[%s3 + $0x188] sm:$0xf]
  %v683 = vld [vmem:[%s3 + $0x18c] sm:$0xf]
  %v684 = vld [vmem:[%s3 + $0x190] sm:$0xf]
  %v685 = vld [vmem:[%s3 + $0x194] sm:$0xf]
  %v686 = vld [vmem:[%s3 + $0x198] sm:$0xf]
  %v687 = vld [vmem:[%s3 + $0x19c] sm:$0xf]
  %v688 = vld [vmem:[%s3 + $0x1a0] sm:$0xf]
  %v689 = vld [vmem:[%s3 + $0x1a4] sm:$0xf]
  %v690 = vld [vmem:[%s3 + $0x1a8] sm:$0xf]
  %v691 = vld [vmem:[%s3 + $0x1ac] sm:$0xf]
  %v692 = vld [vmem:[%s3 + $0x1b0] sm:$0xf]
  %v693 = vld [vmem:[%s3 + $0x1b4] sm:$0xf]
  %v694 = vld [vmem:[%s3 + $0x1b8] sm:$0xf]
  %v695 = vld [vmem:[%s3 + $0x1bc] sm:$0xf]
  %v696 = vld [vmem:[%s3 + $0x1c0] sm:$0xf]
  %v697 = vld [vmem:[%s3 + $0x1c4] sm:$0xf]
  %v698 = vld [vmem:[%s3 + $0x1c8] sm:$0xf]
  %v699 = vld [vmem:[%s3 + $0x1cc] sm:$0xf]
  %v700 = vld [vmem:[%s3 + $0x1d0] sm:$0xf]
  %v701 = vld [vmem:[%s3 + $0x1d4] sm:$0xf]
  %v702 = vld [vmem:[%s3 + $0x1d8] sm:$0xf]
  %v703 = vld [vmem:[%s3 + $0x1dc] sm:$0xf]
  %v704 = vld [vmem:[%s3 + $0x1e0] sm:$0xf]
  %v705 = vld [vmem:[%s3 + $0x1e4] sm:$0xf]
  %v706 = vld [vmem:[%s3 + $0x1e8] sm:$0xf]
  %v707 = vld [vmem:[%s3 + $0x1ec] sm:$0xf]
  %v708 = vld [vmem:[%s3 + $0x1f0] sm:$0xf]
  %v709 = vld [vmem:[%s3 + $0x1f4] sm:$0xf]
  %v710 = vld [vmem:[%s3 + $0x1f8] sm:$0xf]
  %v711 = vld [vmem:[%s3 + $0x1fc] sm:$0xf]
  %v712 = vld [vmem:[%s3 + $0x200] sm:$0xf]
  %v713 = vld [vmem:[%s3 + $0x204] sm:$0xf]
  %v714 = vld [vmem:[%s3 + $0x208] sm:$0xf]
  %v715 = vld [vmem:[%s3 + $0x20c] sm:$0xf]
  %v716 = vld [vmem:[%s3 + $0x210] sm:$0xf]
  %v717 = vld [vmem:[%s3 + $0x214] sm:$0xf]
  %v718 = vld [vmem:[%s3 + $0x218] sm:$0xf]
  %v719 = vld [vmem:[%s3 + $0x21c] sm:$0xf]
  %v720 = vld [vmem:[%s3 + $0x220] sm:$0xf]
  %v721 = vld [vmem:[%s3 + $0x224] sm:$0xf]
  %v722 = vld [vmem:[%s3 + $0x228] sm:$0xf]
  %v723 = vld [vmem:[%s3 + $0x22c] sm:$0xf]
  %v724 = vld [vmem:[%s3 + $0x230] sm:$0xf]
  %v725 = vld [vmem:[%s3 + $0x234] sm:$0xf]
  %v726 = vld [vmem:[%s3 + $0x238] sm:$0xf]
  %v727 = vld [vmem:[%s3 + $0x23c] sm:$0xf]
  %v728 = vld [vmem:[%s3 + $0x240] sm:$0xf]
  %v729 = vld [vmem:[%s3 + $0x244] sm:$0xf]
  %v730 = vld [vmem:[%s3 + $0x248] sm:$0xf]
  %v731 = vld [vmem:[%s3 + $0x24c] sm:$0xf]
  %v732 = vld [vmem:[%s3 + $0x250] sm:$0xf]
  %v733 = vld [vmem:[%s3 + $0x254] sm:$0xf]
  %v734 = vld [vmem:[%s3 + $0x258] sm:$0xf]
  %v735 = vld [vmem:[%s3 + $0x25c] sm:$0xf]
  %v736 = vld [vmem:[%s3 + $0x260] sm:$0xf]
  %v737 = vld [vmem:[%s3 + $0x264] sm:$0xf]
  %v738 = vld [vmem:[%s3 + $0x268] sm:$0xf]
  %v739 = vld [vmem:[%s3 + $0x26c] sm:$0xf]
  %v740 = vld [vmem:[%s3 + $0x270] sm:$0xf]
  %v741 = vld [vmem:[%s3 + $0x274] sm:$0xf]
  %v742 = vld [vmem:[%s3 + $0x278] sm:$0xf]
  %v743 = vld [vmem:[%s3 + $0x27c] sm:$0xf]
  %v744 = vld [vmem:[%s3 + $0x280] sm:$0xf]
  %v745 = vld [vmem:[%s3 + $0x284] sm:$0xf]
  %v746 = vld [vmem:[%s3 + $0x288] sm:$0xf]
  %v747 = vld [vmem:[%s3 + $0x28c] sm:$0xf]
  %v748 = vld [vmem:[%s3 + $0x290] sm:$0xf]
  %v749 = vld [vmem:[%s3 + $0x294] sm:$0xf]
  %v750 = vld [vmem:[%s3 + $0x298] sm:$0xf]
  %v751 = vld [vmem:[%s3 + $0x29c] sm:$0xf]
  %v752 = vld [vmem:[%s3 + $0x2a0] sm:$0xf]
  %v753 = vld [vmem:[%s3 + $0x2a4] sm:$0xf]
  %v754 = vld [vmem:[%s3 + $0x2a8] sm:$0xf]
  %v755 = vld [vmem:[%s3 + $0x2ac] sm:$0xf]
  %v756 = vld [vmem:[%s3 + $0x2b0] sm:$0xf]
  %v757 = vld [vmem:[%s3 + $0x2b4] sm:$0xf]
  %v758 = vld [vmem:[%s3 + $0x2b8] sm:$0xf]
  %v759 = vld [vmem:[%s3 + $0x2bc] sm:$0xf]
  %v760 = vld [vmem:[%s3 + $0x2c0] sm:$0xf]
  %v761 = vld [vmem:[%s3 + $0x2c4] sm:$0xf]
  %v762 = vld [vmem:[%s3 + $0x2c8] sm:$0xf]
  %v763 = vld [vmem:[%s3 + $0x2cc] sm:$0xf]
  %v764 = vld [vmem:[%s3 + $0x2d0] sm:$0xf]
  %v765 = vld [vmem:[%s3 + $0x2d4] sm:$0xf]
  %v766 = vld [vmem:[%s3 + $0x2d8] sm:$0xf]
  %v767 = vld [vmem:[%s3 + $0x2dc] sm:$0xf]
  %v768 = vld [vmem:[%s3 + $0x2e0] sm:$0xf]
  %v769 = vld [vmem:[%s3 + $0x2e4] sm:$0xf]
  %v770 = vld [vmem:[%s3 + $0x2e8] sm:$0xf]
  %v771 = vld [vmem:[%s3 + $0x2ec] sm:$0xf]
  %v772 = vld [vmem:[%s3 + $0x2f0] sm:$0xf]
  %v773 = vld [vmem:[%s3 + $0x2f4] sm:$0xf]
  %v774 = vld [vmem:[%s3 + $0x2f8] sm:$0xf]
  %v775 = vld [vmem:[%s3 + $0x2fc] sm:$0xf]
  %v776 = vld [vmem:[%s3 + $0x300] sm:$0xf]
  %v777 = vld [vmem:[%s3 + $0x304] sm:$0xf]
  %v778 = vld [vmem:[%s3 + $0x308] sm:$0xf]
  %v779 = vld [vmem:[%s3 + $0x30c] sm:$0xf]
  %v780 = vld [vmem:[%s3 + $0x310] sm:$0xf]
  %v781 = vld [vmem:[%s3 + $0x314] sm:$0xf]
  %v782 = vld [vmem:[%s3 + $0x318] sm:$0xf]
  %v783 = vld [vmem:[%s3 + $0x31c] sm:$0xf]
  %v784 = vld [vmem:[%s3 + $0x320] sm:$0xf]
  %v785 = vld [vmem:[%s3 + $0x324] sm:$0xf]
  %v786 = vld [vmem:[%s3 + $0x328] sm:$0xf]
  %v787 = vld [vmem:[%s3 + $0x32c] sm:$0xf]
  %v788 = vld [vmem:[%s3 + $0x330] sm:$0xf]
  %v789 = vld [vmem:[%s3 + $0x334] sm:$0xf]
  %v790 = vld [vmem:[%s3 + $0x338] sm:$0xf]
  %v791 = vld [vmem:[%s3 + $0x33c] sm:$0xf]
  %v792 = vld [vmem:[%s3 + $0x340] sm:$0xf]
  %v793 = vld [vmem:[%s3 + $0x344] sm:$0xf]
  %v794 = vld [vmem:[%s3 + $0x348] sm:$0xf]
  %v795 = vld [vmem:[%s3 + $0x34c] sm:$0xf]
  %v796 = vld [vmem:[%s3 + $0x350] sm:$0xf]
  %v797 = vld [vmem:[%s3 + $0x354] sm:$0xf]
  %v798 = vld [vmem:[%s3 + $0x358] sm:$0xf]
  %v799 = vld [vmem:[%s3 + $0x35c] sm:$0xf]
  %v800 = vld [vmem:[%s3 + $0x360] sm:$0xf]
  %v801 = vld [vmem:[%s3 + $0x364] sm:$0xf]
  %v802 = vld [vmem:[%s3 + $0x368] sm:$0xf]
  %v803 = vld [vmem:[%s3 + $0x36c] sm:$0xf]
  %v804 = vld [vmem:[%s3 + $0x370] sm:$0xf]
  %v805 = vld [vmem:[%s3 + $0x374] sm:$0xf]
  %v806 = vld [vmem:[%s3 + $0x378] sm:$0xf]
  %v807 = vld [vmem:[%s3 + $0x37c] sm:$0xf]
  %v808 = vld [vmem:[%s3 + $0x380] sm:$0xf]
  %v809 = vld [vmem:[%s3 + $0x384] sm:$0xf]
  %v810 = vld [vmem:[%s3 + $0x388] sm:$0xf]
  %v811 = vld [vmem:[%s3 + $0x38c] sm:$0xf]
  %v812 = vld [vmem:[%s3 + $0x390] sm:$0xf]
  %v813 = vld [vmem:[%s3 + $0x394] sm:$0xf]
  %v814 = vld [vmem:[%s3 + $0x398] sm:$0xf]
  %v815 = vld [vmem:[%s3 + $0x39c] sm:$0xf]
  %v816 = vld [vmem:[%s3 + $0x3a0] sm:$0xf]
  %v817 = vld [vmem:[%s3 + $0x3a4] sm:$0xf]
  %v818 = vld [vmem:[%s3 + $0x3a8] sm:$0xf]
  %v819 = vld [vmem:[%s3 + $0x3ac] sm:$0xf]
  %v820 = vld [vmem:[%s3 + $0x3b0] sm:$0xf]
  %v821 = vld [vmem:[%s3 + $0x3b4] sm:$0xf]
  %v822 = vld [vmem:[%s3 + $0x3b8] sm:$0xf]
  %v823 = vld [vmem:[%s3 + $0x3bc] sm:$0xf]
  %v824 = vld [vmem:[%s3 + $0x3c0] sm:$0xf]
  %v825 = vld [vmem:[%s3 + $0x3c4] sm:$0xf]
  %v826 = vld [vmem:[%s3 + $0x3c8] sm:$0xf]
  %v827 = vld [vmem:[%s3 + $0x3cc] sm:$0xf]
  %v828 = vld [vmem:[%s3 + $0x3d0] sm:$0xf]
  %v829 = vld [vmem:[%s3 + $0x3d4] sm:$0xf]
  %v830 = vld [vmem:[%s3 + $0x3d8] sm:$0xf]
  %v831 = vld [vmem:[%s3 + $0x3dc] sm:$0xf]
  %v832 = vld [vmem:[%s3 + $0x3e0] sm:$0xf]
  %v833 = vld [vmem:[%s3 + $0x3e4] sm:$0xf]
  %v834 = vld [vmem:[%s3 + $0x3e8] sm:$0xf]
  %v835 = vld [vmem:[%s3 + $0x3ec] sm:$0xf]
  %v836 = vld [vmem:[%s3 + $0x3f0] sm:$0xf]
  %v837 = vld [vmem:[%s3 + $0x3f4] sm:$0xf]
  %v838 = vld [vmem:[%s3 + $0x3f8] sm:$0xf]
  %v839 = vld [vmem:[%s3 + $0x3fc] sm:$0xf]
  %v840 = vld [vmem:[%s4] sm:$0x1]
  %v841 = vld [vmem:[#allocation2] sm:$0xf]
  %v842 = vld [vmem:[#allocation3] sm:$0xf]
  %v843 = vld [vmem:[#allocation2 + $0x1] sm:$0xf]
  %v844 = vld [vmem:[#allocation3 + $0x1] sm:$0xf]
  %v845 = vld [vmem:[#allocation2 + $0x5] sm:$0xf]
  %v846 = vld [vmem:[#allocation3 + $0x5] sm:$0xf]
  %v847 = vld [vmem:[#allocation2 + $0x6] sm:$0xf]
  %v848 = vld [vmem:[#allocation3 + $0x6] sm:$0xf]
  %v849 = vld [vmem:[#allocation2 + $0xa] sm:$0xf]
  %v850 = vld [vmem:[#allocation3 + $0xa] sm:$0xf]
  %v851 = vld [vmem:[#allocation2 + $0xb] sm:$0xf]
  %v852 = vld [vmem:[#allocation3 + $0xb] sm:$0xf]
  %v853 = vld [vmem:[#allocation2 + $0xf] sm:$0xf]
  %v854 = vld [vmem:[#allocation3 + $0xf] sm:$0xf]
  %v855 = vld [vmem:[#allocation2 + $0x10] sm:$0xf]
  %v856 = vld [vmem:[#allocation3 + $0x10] sm:$0xf]
  %v857 = vpack.c.bf16 %v841, %v841
  %v858 = vpack.c.bf16 %v842, %v842
  %v859 = vpack.c.bf16 %v843, %v843
  %v860 = vpack.c.bf16 %v844, %v844
  %v861 = vpack.c.bf16 %v845, %v845
  %v862 = vpack.c.bf16 %v846, %v846
  %v863 = vpack.c.bf16 %v847, %v847
  %v864 = vpack.c.bf16 %v848, %v848
  %v865 = vpack.c.bf16 %v849, %v849
  %v866 = vpack.c.bf16 %v850, %v850
  %v867 = vpack.c.bf16 %v851, %v851
  %v868 = vpack.c.bf16 %v852, %v852
  %v869 = vpack.c.bf16 %v853, %v853
  %v870 = vpack.c.bf16 %v854, %v854
  %v871 = vpack.c.bf16 %v855, %v855
  %v872 = vpack.c.bf16 %v856, %v856
  %v874 = vperm.slane %v840, 0
  %v1132 = vunpack.c.l.b16 %v584
  %v1133 = vunpack.c.l.b16 %v585
  %v1134 = vunpack.c.l.b16 %v586
  %v1135 = vunpack.c.l.b16 %v587
  %v1136 = vunpack.c.l.b16 %v588
  %v1137 = vunpack.c.l.b16 %v589
  %v1138 = vunpack.c.l.b16 %v590
  %v1139 = vunpack.c.l.b16 %v591
  %v1140 = vunpack.c.l.b16 %v592
  %v1141 = vunpack.c.l.b16 %v593
  %v1142 = vunpack.c.l.b16 %v594
  %v1143 = vunpack.c.l.b16 %v595
  %v1144 = vunpack.c.l.b16 %v596
  %v1145 = vunpack.c.l.b16 %v597
  %v1146 = vunpack.c.l.b16 %v598
  %v1147 = vunpack.c.l.b16 %v599
  %v1148 = vunpack.c.l.b16 %v600
  %v1149 = vunpack.c.l.b16 %v601
  %v1150 = vunpack.c.l.b16 %v602
  %v1151 = vunpack.c.l.b16 %v603
  %v1152 = vunpack.c.l.b16 %v604
  %v1153 = vunpack.c.l.b16 %v605
  %v1154 = vunpack.c.l.b16 %v606
  %v1155 = vunpack.c.l.b16 %v607
  %v1156 = vunpack.c.l.b16 %v608
  %v1157 = vunpack.c.l.b16 %v609
  %v1158 = vunpack.c.l.b16 %v610
  %v1159 = vunpack.c.l.b16 %v611
  %v1160 = vunpack.c.l.b16 %v612
  %v1161 = vunpack.c.l.b16 %v613
  %v1162 = vunpack.c.l.b16 %v614
  %v1163 = vunpack.c.l.b16 %v615
  %v1164 = vunpack.c.l.b16 %v616
  %v1165 = vunpack.c.l.b16 %v617
  %v1166 = vunpack.c.l.b16 %v618
  %v1167 = vunpack.c.l.b16 %v619
  %v1168 = vunpack.c.l.b16 %v620
  %v1169 = vunpack.c.l.b16 %v621
  %v1170 = vunpack.c.l.b16 %v622
  %v1171 = vunpack.c.l.b16 %v623
  %v1172 = vunpack.c.l.b16 %v624
  %v1173 = vunpack.c.l.b16 %v625
  %v1174 = vunpack.c.l.b16 %v626
  %v1175 = vunpack.c.l.b16 %v627
  %v1176 = vunpack.c.l.b16 %v628
  %v1177 = vunpack.c.l.b16 %v629
  %v1178 = vunpack.c.l.b16 %v630
  %v1179 = vunpack.c.l.b16 %v631
  %v1180 = vunpack.c.l.b16 %v632
  %v1181 = vunpack.c.l.b16 %v633
  %v1182 = vunpack.c.l.b16 %v634
  %v1183 = vunpack.c.l.b16 %v635
  %v1184 = vunpack.c.l.b16 %v636
  %v1185 = vunpack.c.l.b16 %v637
  %v1186 = vunpack.c.l.b16 %v638
  %v1187 = vunpack.c.l.b16 %v639
  %v1188 = vunpack.c.l.b16 %v640
  %v1189 = vunpack.c.l.b16 %v641
  %v1190 = vunpack.c.l.b16 %v642
  %v1191 = vunpack.c.l.b16 %v643
  %v1192 = vunpack.c.l.b16 %v644
  %v1193 = vunpack.c.l.b16 %v645
  %v1194 = vunpack.c.l.b16 %v646
  %v1195 = vunpack.c.l.b16 %v647
  %v1196 = vunpack.c.l.b16 %v648
  %v1197 = vunpack.c.l.b16 %v649
  %v1198 = vunpack.c.l.b16 %v650
  %v1199 = vunpack.c.l.b16 %v651
  %v1200 = vunpack.c.l.b16 %v652
  %v1201 = vunpack.c.l.b16 %v653
  %v1202 = vunpack.c.l.b16 %v654
  %v1203 = vunpack.c.l.b16 %v655
  %v1204 = vunpack.c.l.b16 %v656
  %v1205 = vunpack.c.l.b16 %v657
  %v1206 = vunpack.c.l.b16 %v658
  %v1207 = vunpack.c.l.b16 %v659
  %v1208 = vunpack.c.l.b16 %v660
  %v1209 = vunpack.c.l.b16 %v661
  %v1210 = vunpack.c.l.b16 %v662
  %v1211 = vunpack.c.l.b16 %v663
  %v1212 = vunpack.c.l.b16 %v664
  %v1213 = vunpack.c.l.b16 %v665
  %v1214 = vunpack.c.l.b16 %v666
  %v1215 = vunpack.c.l.b16 %v667
  %v1216 = vunpack.c.l.b16 %v668
  %v1217 = vunpack.c.l.b16 %v669
  %v1218 = vunpack.c.l.b16 %v670
  %v1219 = vunpack.c.l.b16 %v671
  %v1220 = vunpack.c.l.b16 %v672
  %v1221 = vunpack.c.l.b16 %v673
  %v1222 = vunpack.c.l.b16 %v674
  %v1223 = vunpack.c.l.b16 %v675
  %v1224 = vunpack.c.l.b16 %v676
  %v1225 = vunpack.c.l.b16 %v677
  %v1226 = vunpack.c.l.b16 %v678
  %v1227 = vunpack.c.l.b16 %v679
  %v1228 = vunpack.c.l.b16 %v680
  %v1229 = vunpack.c.l.b16 %v681
  %v1230 = vunpack.c.l.b16 %v682
  %v1231 = vunpack.c.l.b16 %v683
  %v1232 = vunpack.c.l.b16 %v684
  %v1233 = vunpack.c.l.b16 %v685
  %v1234 = vunpack.c.l.b16 %v686
  %v1235 = vunpack.c.l.b16 %v687
  %v1236 = vunpack.c.l.b16 %v688
  %v1237 = vunpack.c.l.b16 %v689
  %v1238 = vunpack.c.l.b16 %v690
  %v1239 = vunpack.c.l.b16 %v691
  %v1240 = vunpack.c.l.b16 %v692
  %v1241 = vunpack.c.l.b16 %v693
  %v1242 = vunpack.c.l.b16 %v694
  %v1243 = vunpack.c.l.b16 %v695
  %v1244 = vunpack.c.l.b16 %v696
  %v1245 = vunpack.c.l.b16 %v697
  %v1246 = vunpack.c.l.b16 %v698
  %v1247 = vunpack.c.l.b16 %v699
  %v1248 = vunpack.c.l.b16 %v700
  %v1249 = vunpack.c.l.b16 %v701
  %v1250 = vunpack.c.l.b16 %v702
  %v1251 = vunpack.c.l.b16 %v703
  %v1252 = vunpack.c.l.b16 %v704
  %v1253 = vunpack.c.l.b16 %v705
  %v1254 = vunpack.c.l.b16 %v706
  %v1255 = vunpack.c.l.b16 %v707
  %v1256 = vunpack.c.l.b16 %v708
  %v1257 = vunpack.c.l.b16 %v709
  %v1258 = vunpack.c.l.b16 %v710
  %v1259 = vunpack.c.l.b16 %v711
  %v1260 = vunpack.c.l.b16 %v712
  %v1261 = vunpack.c.l.b16 %v713
  %v1262 = vunpack.c.l.b16 %v714
  %v1263 = vunpack.c.l.b16 %v715
  %v1264 = vunpack.c.l.b16 %v716
  %v1265 = vunpack.c.l.b16 %v717
  %v1266 = vunpack.c.l.b16 %v718
  %v1267 = vunpack.c.l.b16 %v719
  %v1268 = vunpack.c.l.b16 %v720
  %v1269 = vunpack.c.l.b16 %v721
  %v1270 = vunpack.c.l.b16 %v722
  %v1271 = vunpack.c.l.b16 %v723
  %v1272 = vunpack.c.l.b16 %v724
  %v1273 = vunpack.c.l.b16 %v725
  %v1274 = vunpack.c.l.b16 %v726
  %v1275 = vunpack.c.l.b16 %v727
  %v1276 = vunpack.c.l.b16 %v728
  %v1277 = vunpack.c.l.b16 %v729
  %v1278 = vunpack.c.l.b16 %v730
  %v1279 = vunpack.c.l.b16 %v731
  %v1280 = vunpack.c.l.b16 %v732
  %v1281 = vunpack.c.l.b16 %v733
  %v1282 = vunpack.c.l.b16 %v734
  %v1283 = vunpack.c.l.b16 %v735
  %v1284 = vunpack.c.l.b16 %v736
  %v1285 = vunpack.c.l.b16 %v737
  %v1286 = vunpack.c.l.b16 %v738
  %v1287 = vunpack.c.l.b16 %v739
  %v1288 = vunpack.c.l.b16 %v740
  %v1289 = vunpack.c.l.b16 %v741
  %v1290 = vunpack.c.l.b16 %v742
  %v1291 = vunpack.c.l.b16 %v743
  %v1292 = vunpack.c.l.b16 %v744
  %v1293 = vunpack.c.l.b16 %v745
  %v1294 = vunpack.c.l.b16 %v746
  %v1295 = vunpack.c.l.b16 %v747
  %v1296 = vunpack.c.l.b16 %v748
  %v1297 = vunpack.c.l.b16 %v749
  %v1298 = vunpack.c.l.b16 %v750
  %v1299 = vunpack.c.l.b16 %v751
  %v1300 = vunpack.c.l.b16 %v752
  %v1301 = vunpack.c.l.b16 %v753
  %v1302 = vunpack.c.l.b16 %v754
  %v1303 = vunpack.c.l.b16 %v755
  %v1304 = vunpack.c.l.b16 %v756
  %v1305 = vunpack.c.l.b16 %v757
  %v1306 = vunpack.c.l.b16 %v758
  %v1307 = vunpack.c.l.b16 %v759
  %v1308 = vunpack.c.l.b16 %v760
  %v1309 = vunpack.c.l.b16 %v761
  %v1310 = vunpack.c.l.b16 %v762
  %v1311 = vunpack.c.l.b16 %v763
  %v1312 = vunpack.c.l.b16 %v764
  %v1313 = vunpack.c.l.b16 %v765
  %v1314 = vunpack.c.l.b16 %v766
  %v1315 = vunpack.c.l.b16 %v767
  %v1316 = vunpack.c.l.b16 %v768
  %v1317 = vunpack.c.l.b16 %v769
  %v1318 = vunpack.c.l.b16 %v770
  %v1319 = vunpack.c.l.b16 %v771
  %v1320 = vunpack.c.l.b16 %v772
  %v1321 = vunpack.c.l.b16 %v773
  %v1322 = vunpack.c.l.b16 %v774
  %v1323 = vunpack.c.l.b16 %v775
  %v1324 = vunpack.c.l.b16 %v776
  %v1325 = vunpack.c.l.b16 %v777
  %v1326 = vunpack.c.l.b16 %v778
  %v1327 = vunpack.c.l.b16 %v779
  %v1328 = vunpack.c.l.b16 %v780
  %v1329 = vunpack.c.l.b16 %v781
  %v1330 = vunpack.c.l.b16 %v782
  %v1331 = vunpack.c.l.b16 %v783
  %v1332 = vunpack.c.l.b16 %v784
  %v1333 = vunpack.c.l.b16 %v785
  %v1334 = vunpack.c.l.b16 %v786
  %v1335 = vunpack.c.l.b16 %v787
  %v1336 = vunpack.c.l.b16 %v788
  %v1337 = vunpack.c.l.b16 %v789
  %v1338 = vunpack.c.l.b16 %v790
  %v1339 = vunpack.c.l.b16 %v791
  %v1340 = vunpack.c.l.b16 %v792
  %v1341 = vunpack.c.l.b16 %v793
  %v1342 = vunpack.c.l.b16 %v794
  %v1343 = vunpack.c.l.b16 %v795
  %v1344 = vunpack.c.l.b16 %v796
  %v1345 = vunpack.c.l.b16 %v797
  %v1346 = vunpack.c.l.b16 %v798
  %v1347 = vunpack.c.l.b16 %v799
  %v1348 = vunpack.c.l.b16 %v800
  %v1349 = vunpack.c.l.b16 %v801
  %v1350 = vunpack.c.l.b16 %v802
  %v1351 = vunpack.c.l.b16 %v803
  %v1352 = vunpack.c.l.b16 %v804
  %v1353 = vunpack.c.l.b16 %v805
  %v1354 = vunpack.c.l.b16 %v806
  %v1355 = vunpack.c.l.b16 %v807
  %v1356 = vunpack.c.l.b16 %v808
  %v1357 = vunpack.c.l.b16 %v809
  %v1358 = vunpack.c.l.b16 %v810
  %v1359 = vunpack.c.l.b16 %v811
  %v1360 = vunpack.c.l.b16 %v812
  %v1361 = vunpack.c.l.b16 %v813
  %v1362 = vunpack.c.l.b16 %v814
  %v1363 = vunpack.c.l.b16 %v815
  %v1364 = vunpack.c.l.b16 %v816
  %v1365 = vunpack.c.l.b16 %v817
  %v1366 = vunpack.c.l.b16 %v818
  %v1367 = vunpack.c.l.b16 %v819
  %v1368 = vunpack.c.l.b16 %v820
  %v1369 = vunpack.c.l.b16 %v821
  %v1370 = vunpack.c.l.b16 %v822
  %v1371 = vunpack.c.l.b16 %v823
  %v1372 = vunpack.c.l.b16 %v824
  %v1373 = vunpack.c.l.b16 %v825
  %v1374 = vunpack.c.l.b16 %v826
  %v1375 = vunpack.c.l.b16 %v827
  %v1376 = vunpack.c.l.b16 %v828
  %v1377 = vunpack.c.l.b16 %v829
  %v1378 = vunpack.c.l.b16 %v830
  %v1379 = vunpack.c.l.b16 %v831
  %v1380 = vunpack.c.l.b16 %v832
  %v1381 = vunpack.c.l.b16 %v833
  %v1382 = vunpack.c.l.b16 %v834
  %v1383 = vunpack.c.l.b16 %v835
  %v1384 = vunpack.c.l.b16 %v836
  %v1385 = vunpack.c.l.b16 %v837
  %v1386 = vunpack.c.l.b16 %v838
  %v1387 = vunpack.c.l.b16 %v839
  %v1388 = vpack.c.b16 %v1133, %v1132
  %v1389 = vpack.c.b16 %v1135, %v1134
  %v1390 = vpack.c.b16 %v1137, %v1136
  %v1391 = vpack.c.b16 %v1139, %v1138
  %v1392 = vpack.c.b16 %v1141, %v1140
  %v1393 = vpack.c.b16 %v1143, %v1142
  %v1394 = vpack.c.b16 %v1145, %v1144
  %v1395 = vpack.c.b16 %v1147, %v1146
  %v1396 = vpack.c.b16 %v1149, %v1148
  %v1397 = vpack.c.b16 %v1151, %v1150
  %v1398 = vpack.c.b16 %v1153, %v1152
  %v1399 = vpack.c.b16 %v1155, %v1154
  %v1400 = vpack.c.b16 %v1157, %v1156
  %v1401 = vpack.c.b16 %v1159, %v1158
  %v1402 = vpack.c.b16 %v1161, %v1160
  %v1403 = vpack.c.b16 %v1163, %v1162
  %v1404 = vpack.c.b16 %v1165, %v1164
  %v1405 = vpack.c.b16 %v1167, %v1166
  %v1406 = vpack.c.b16 %v1169, %v1168
  %v1407 = vpack.c.b16 %v1171, %v1170
  %v1408 = vpack.c.b16 %v1173, %v1172
  %v1409 = vpack.c.b16 %v1175, %v1174
  %v1410 = vpack.c.b16 %v1177, %v1176
  %v1411 = vpack.c.b16 %v1179, %v1178
  %v1412 = vpack.c.b16 %v1181, %v1180
  %v1413 = vpack.c.b16 %v1183, %v1182
  %v1414 = vpack.c.b16 %v1185, %v1184
  %v1415 = vpack.c.b16 %v1187, %v1186
  %v1416 = vpack.c.b16 %v1189, %v1188
  %v1417 = vpack.c.b16 %v1191, %v1190
  %v1418 = vpack.c.b16 %v1193, %v1192
  %v1419 = vpack.c.b16 %v1195, %v1194
  %v1420 = vpack.c.b16 %v1197, %v1196
  %v1421 = vpack.c.b16 %v1199, %v1198
  %v1422 = vpack.c.b16 %v1201, %v1200
  %v1423 = vpack.c.b16 %v1203, %v1202
  %v1424 = vpack.c.b16 %v1205, %v1204
  %v1425 = vpack.c.b16 %v1207, %v1206
  %v1426 = vpack.c.b16 %v1209, %v1208
  %v1427 = vpack.c.b16 %v1211, %v1210
  %v1428 = vpack.c.b16 %v1213, %v1212
  %v1429 = vpack.c.b16 %v1215, %v1214
  %v1430 = vpack.c.b16 %v1217, %v1216
  %v1431 = vpack.c.b16 %v1219, %v1218
  %v1432 = vpack.c.b16 %v1221, %v1220
  %v1433 = vpack.c.b16 %v1223, %v1222
  %v1434 = vpack.c.b16 %v1225, %v1224
  %v1435 = vpack.c.b16 %v1227, %v1226
  %v1436 = vpack.c.b16 %v1229, %v1228
  %v1437 = vpack.c.b16 %v1231, %v1230
  %v1438 = vpack.c.b16 %v1233, %v1232
  %v1439 = vpack.c.b16 %v1235, %v1234
  %v1440 = vpack.c.b16 %v1237, %v1236
  %v1441 = vpack.c.b16 %v1239, %v1238
  %v1442 = vpack.c.b16 %v1241, %v1240
  %v1443 = vpack.c.b16 %v1243, %v1242
  %v1444 = vpack.c.b16 %v1245, %v1244
  %v1445 = vpack.c.b16 %v1247, %v1246
  %v1446 = vpack.c.b16 %v1249, %v1248
  %v1447 = vpack.c.b16 %v1251, %v1250
  %v1448 = vpack.c.b16 %v1253, %v1252
  %v1449 = vpack.c.b16 %v1255, %v1254
  %v1450 = vpack.c.b16 %v1257, %v1256
  %v1451 = vpack.c.b16 %v1259, %v1258
  %v1452 = vpack.c.b16 %v1261, %v1260
  %v1453 = vpack.c.b16 %v1263, %v1262
  %v1454 = vpack.c.b16 %v1265, %v1264
  %v1455 = vpack.c.b16 %v1267, %v1266
  %v1456 = vpack.c.b16 %v1269, %v1268
  %v1457 = vpack.c.b16 %v1271, %v1270
  %v1458 = vpack.c.b16 %v1273, %v1272
  %v1459 = vpack.c.b16 %v1275, %v1274
  %v1460 = vpack.c.b16 %v1277, %v1276
  %v1461 = vpack.c.b16 %v1279, %v1278
  %v1462 = vpack.c.b16 %v1281, %v1280
  %v1463 = vpack.c.b16 %v1283, %v1282
  %v1464 = vpack.c.b16 %v1285, %v1284
  %v1465 = vpack.c.b16 %v1287, %v1286
  %v1466 = vpack.c.b16 %v1289, %v1288
  %v1467 = vpack.c.b16 %v1291, %v1290
  %v1468 = vpack.c.b16 %v1293, %v1292
  %v1469 = vpack.c.b16 %v1295, %v1294
  %v1470 = vpack.c.b16 %v1297, %v1296
  %v1471 = vpack.c.b16 %v1299, %v1298
  %v1472 = vpack.c.b16 %v1301, %v1300
  %v1473 = vpack.c.b16 %v1303, %v1302
  %v1474 = vpack.c.b16 %v1305, %v1304
  %v1475 = vpack.c.b16 %v1307, %v1306
  %v1476 = vpack.c.b16 %v1309, %v1308
  %v1477 = vpack.c.b16 %v1311, %v1310
  %v1478 = vpack.c.b16 %v1313, %v1312
  %v1479 = vpack.c.b16 %v1315, %v1314
  %v1480 = vpack.c.b16 %v1317, %v1316
  %v1481 = vpack.c.b16 %v1319, %v1318
  %v1482 = vpack.c.b16 %v1321, %v1320
  %v1483 = vpack.c.b16 %v1323, %v1322
  %v1484 = vpack.c.b16 %v1325, %v1324
  %v1485 = vpack.c.b16 %v1327, %v1326
  %v1486 = vpack.c.b16 %v1329, %v1328
  %v1487 = vpack.c.b16 %v1331, %v1330
  %v1488 = vpack.c.b16 %v1333, %v1332
  %v1489 = vpack.c.b16 %v1335, %v1334
  %v1490 = vpack.c.b16 %v1337, %v1336
  %v1491 = vpack.c.b16 %v1339, %v1338
  %v1492 = vpack.c.b16 %v1341, %v1340
  %v1493 = vpack.c.b16 %v1343, %v1342
  %v1494 = vpack.c.b16 %v1345, %v1344
  %v1495 = vpack.c.b16 %v1347, %v1346
  %v1496 = vpack.c.b16 %v1349, %v1348
  %v1497 = vpack.c.b16 %v1351, %v1350
  %v1498 = vpack.c.b16 %v1353, %v1352
  %v1499 = vpack.c.b16 %v1355, %v1354
  %v1500 = vpack.c.b16 %v1357, %v1356
  %v1501 = vpack.c.b16 %v1359, %v1358
  %v1502 = vpack.c.b16 %v1361, %v1360
  %v1503 = vpack.c.b16 %v1363, %v1362
  %v1504 = vpack.c.b16 %v1365, %v1364
  %v1505 = vpack.c.b16 %v1367, %v1366
  %v1506 = vpack.c.b16 %v1369, %v1368
  %v1507 = vpack.c.b16 %v1371, %v1370
  %v1508 = vpack.c.b16 %v1373, %v1372
  %v1509 = vpack.c.b16 %v1375, %v1374
  %v1510 = vpack.c.b16 %v1377, %v1376
  %v1511 = vpack.c.b16 %v1379, %v1378
  %v1512 = vpack.c.b16 %v1381, %v1380
  %v1513 = vpack.c.b16 %v1383, %v1382
  %v1514 = vpack.c.b16 %v1385, %v1384
  %v1515 = vpack.c.b16 %v1387, %v1386
  %1644 = vmatpush.bf16.msra.mxu0 %v1395
  %1645 = vmatpush.bf16.msra.mxu0 %v1394
  %1646 = vmatpush.bf16.msra.mxu0 %v1393
  %1647 = vmatpush.bf16.msra.mxu0 %v1392
  %1648 = vmatpush.bf16.msra.mxu0 %v1391
  %1649 = vmatpush.bf16.msra.mxu0 %v1390
  %1650 = vmatpush.bf16.msra.mxu0 %v1389
  %1651 = vmatpush.bf16.msra.mxu0 %v1388
  %1652 = vmatmul.bf16.gmra.mxu0 %v857
  %v1653 = vpop.f32.mrf.mxu0
  %v1654 = vadd.f32 %v874, %v1653
  %v1655 = vpop.f32.mrf.mxu0
  %1656 = vdwg.mxu0
  %1657 = vmatpush.bf16.msra.mxu0 %v1403
  %1658 = vmatpush.bf16.msra.mxu0 %v1402
  %1659 = vmatpush.bf16.msra.mxu0 %v1401
  %1660 = vmatpush.bf16.msra.mxu0 %v1400
  %1661 = vmatpush.bf16.msra.mxu0 %v1399
  %1662 = vmatpush.bf16.msra.mxu0 %v1398
  %1663 = vmatpush.bf16.msra.mxu0 %v1397
  %1664 = vmatpush.bf16.msra.mxu0 %v1396
  %1665 = vmatmul.bf16.gmra.mxu0 %v858
  %v1666 = vpop.f32.mrf.mxu0
  %v1667 = vadd.f32 %v1654, %v1666
  %v1668 = vpop.f32.mrf.mxu0
  %1669 = vdwg.mxu0
  %1670 = vmatpush.bf16.msra.mxu0 %v1411
  %1671 = vmatpush.bf16.msra.mxu0 %v1410
  %1672 = vmatpush.bf16.msra.mxu0 %v1409
  %1673 = vmatpush.bf16.msra.mxu0 %v1408
  %1674 = vmatpush.bf16.msra.mxu0 %v1407
  %1675 = vmatpush.bf16.msra.mxu0 %v1406
  %1676 = vmatpush.bf16.msra.mxu0 %v1405
  %1677 = vmatpush.bf16.msra.mxu0 %v1404
  %1678 = vmatmul.bf16.gmra.mxu0 %v859
  %v1679 = vpop.f32.mrf.mxu0
  %v1680 = vadd.f32 %v1667, %v1679
  %v1681 = vpop.f32.mrf.mxu0
  %1682 = vdwg.mxu0
  %1683 = vmatpush.bf16.msra.mxu0 %v1419
  %1684 = vmatpush.bf16.msra.mxu0 %v1418
  %1685 = vmatpush.bf16.msra.mxu0 %v1417
  %1686 = vmatpush.bf16.msra.mxu0 %v1416
  %1687 = vmatpush.bf16.msra.mxu0 %v1415
  %1688 = vmatpush.bf16.msra.mxu0 %v1414
  %1689 = vmatpush.bf16.msra.mxu0 %v1413
  %1690 = vmatpush.bf16.msra.mxu0 %v1412
  %1691 = vmatmul.bf16.gmra.mxu0 %v860
  %v1692 = vpop.f32.mrf.mxu0
  %v1693 = vadd.f32 %v1680, %v1692
  %v1694 = vpop.f32.mrf.mxu0
  %1695 = vdwg.mxu0
  %1696 = vmatpush.bf16.msra.mxu0 %v1427
  %1697 = vmatpush.bf16.msra.mxu0 %v1426
  %1698 = vmatpush.bf16.msra.mxu0 %v1425
  %1699 = vmatpush.bf16.msra.mxu0 %v1424
  %1700 = vmatpush.bf16.msra.mxu0 %v1423
  %1701 = vmatpush.bf16.msra.mxu0 %v1422
  %1702 = vmatpush.bf16.msra.mxu0 %v1421
  %1703 = vmatpush.bf16.msra.mxu0 %v1420
  %1704 = vmatmul.bf16.gmra.mxu0 %v861
  %v1705 = vpop.f32.mrf.mxu0
  %v1706 = vadd.f32 %v1693, %v1705
  %v1707 = vpop.f32.mrf.mxu0
  %1708 = vdwg.mxu0
  %1709 = vmatpush.bf16.msra.mxu0 %v1435
  %1710 = vmatpush.bf16.msra.mxu0 %v1434
  %1711 = vmatpush.bf16.msra.mxu0 %v1433
  %1712 = vmatpush.bf16.msra.mxu0 %v1432
  %1713 = vmatpush.bf16.msra.mxu0 %v1431
  %1714 = vmatpush.bf16.msra.mxu0 %v1430
  %1715 = vmatpush.bf16.msra.mxu0 %v1429
  %1716 = vmatpush.bf16.msra.mxu0 %v1428
  %1717 = vmatmul.bf16.gmra.mxu0 %v862
  %v1718 = vpop.f32.mrf.mxu0
  %v1719 = vadd.f32 %v1706, %v1718
  %v1720 = vpop.f32.mrf.mxu0
  %1721 = vdwg.mxu0
  %1722 = vmatpush.bf16.msra.mxu0 %v1443
  %1723 = vmatpush.bf16.msra.mxu0 %v1442
  %1724 = vmatpush.bf16.msra.mxu0 %v1441
  %1725 = vmatpush.bf16.msra.mxu0 %v1440
  %1726 = vmatpush.bf16.msra.mxu0 %v1439
  %1727 = vmatpush.bf16.msra.mxu0 %v1438
  %1728 = vmatpush.bf16.msra.mxu0 %v1437
  %1729 = vmatpush.bf16.msra.mxu0 %v1436
  %1730 = vmatmul.bf16.gmra.mxu0 %v863
  %v1731 = vpop.f32.mrf.mxu0
  %v1732 = vadd.f32 %v1719, %v1731
  %v1733 = vpop.f32.mrf.mxu0
  %1734 = vdwg.mxu0
  %1735 = vmatpush.bf16.msra.mxu0 %v1451
  %1736 = vmatpush.bf16.msra.mxu0 %v1450
  %1737 = vmatpush.bf16.msra.mxu0 %v1449
  %1738 = vmatpush.bf16.msra.mxu0 %v1448
  %1739 = vmatpush.bf16.msra.mxu0 %v1447
  %1740 = vmatpush.bf16.msra.mxu0 %v1446
  %1741 = vmatpush.bf16.msra.mxu0 %v1445
  %1742 = vmatpush.bf16.msra.mxu0 %v1444
  %1743 = vmatmul.bf16.gmra.mxu0 %v864
  %v1744 = vpop.f32.mrf.mxu0
  %v1745 = vadd.f32 %v1732, %v1744
  %v1746 = vpop.f32.mrf.mxu0
  %1747 = vdwg.mxu0
  %1748 = vmatpush.bf16.msra.mxu0 %v1459
  %1749 = vmatpush.bf16.msra.mxu0 %v1458
  %1750 = vmatpush.bf16.msra.mxu0 %v1457
  %1751 = vmatpush.bf16.msra.mxu0 %v1456
  %1752 = vmatpush.bf16.msra.mxu0 %v1455
  %1753 = vmatpush.bf16.msra.mxu0 %v1454
  %1754 = vmatpush.bf16.msra.mxu0 %v1453
  %1755 = vmatpush.bf16.msra.mxu0 %v1452
  %1756 = vmatmul.bf16.gmra.mxu0 %v865
  %v1757 = vpop.f32.mrf.mxu0
  %v1758 = vadd.f32 %v1745, %v1757
  %v1759 = vpop.f32.mrf.mxu0
  %1760 = vdwg.mxu0
  %1761 = vmatpush.bf16.msra.mxu0 %v1467
  %1762 = vmatpush.bf16.msra.mxu0 %v1466
  %1763 = vmatpush.bf16.msra.mxu0 %v1465
  %1764 = vmatpush.bf16.msra.mxu0 %v1464
  %1765 = vmatpush.bf16.msra.mxu0 %v1463
  %1766 = vmatpush.bf16.msra.mxu0 %v1462
  %1767 = vmatpush.bf16.msra.mxu0 %v1461
  %1768 = vmatpush.bf16.msra.mxu0 %v1460
  %1769 = vmatmul.bf16.gmra.mxu0 %v866
  %v1770 = vpop.f32.mrf.mxu0
  %v1771 = vadd.f32 %v1758, %v1770
  %v1772 = vpop.f32.mrf.mxu0
  %1773 = vdwg.mxu0
  %1774 = vmatpush.bf16.msra.mxu0 %v1475
  %1775 = vmatpush.bf16.msra.mxu0 %v1474
  %1776 = vmatpush.bf16.msra.mxu0 %v1473
  %1777 = vmatpush.bf16.msra.mxu0 %v1472
  %1778 = vmatpush.bf16.msra.mxu0 %v1471
  %1779 = vmatpush.bf16.msra.mxu0 %v1470
  %1780 = vmatpush.bf16.msra.mxu0 %v1469
  %1781 = vmatpush.bf16.msra.mxu0 %v1468
  %1782 = vmatmul.bf16.gmra.mxu0 %v867
  %v1783 = vpop.f32.mrf.mxu0
  %v1784 = vadd.f32 %v1771, %v1783
  %v1785 = vpop.f32.mrf.mxu0
  %1786 = vdwg.mxu0
  %1787 = vmatpush.bf16.msra.mxu0 %v1483
  %1788 = vmatpush.bf16.msra.mxu0 %v1482
  %1789 = vmatpush.bf16.msra.mxu0 %v1481
  %1790 = vmatpush.bf16.msra.mxu0 %v1480
  %1791 = vmatpush.bf16.msra.mxu0 %v1479
  %1792 = vmatpush.bf16.msra.mxu0 %v1478
  %1793 = vmatpush.bf16.msra.mxu0 %v1477
  %1794 = vmatpush.bf16.msra.mxu0 %v1476
  %1795 = vmatmul.bf16.gmra.mxu0 %v868
  %v1796 = vpop.f32.mrf.mxu0
  %v1797 = vadd.f32 %v1784, %v1796
  %v1798 = vpop.f32.mrf.mxu0
  %1799 = vdwg.mxu0
  %1800 = vmatpush.bf16.msra.mxu0 %v1491
  %1801 = vmatpush.bf16.msra.mxu0 %v1490
  %1802 = vmatpush.bf16.msra.mxu0 %v1489
  %1803 = vmatpush.bf16.msra.mxu0 %v1488
  %1804 = vmatpush.bf16.msra.mxu0 %v1487
  %1805 = vmatpush.bf16.msra.mxu0 %v1486
  %1806 = vmatpush.bf16.msra.mxu0 %v1485
  %1807 = vmatpush.bf16.msra.mxu0 %v1484
  %1808 = vmatmul.bf16.gmra.mxu0 %v869
  %v1809 = vpop.f32.mrf.mxu0
  %v1810 = vadd.f32 %v1797, %v1809
  %v1811 = vpop.f32.mrf.mxu0
  %1812 = vdwg.mxu0
  %1813 = vmatpush.bf16.msra.mxu0 %v1499
  %1814 = vmatpush.bf16.msra.mxu0 %v1498
  %1815 = vmatpush.bf16.msra.mxu0 %v1497
  %1816 = vmatpush.bf16.msra.mxu0 %v1496
  %1817 = vmatpush.bf16.msra.mxu0 %v1495
  %1818 = vmatpush.bf16.msra.mxu0 %v1494
  %1819 = vmatpush.bf16.msra.mxu0 %v1493
  %1820 = vmatpush.bf16.msra.mxu0 %v1492
  %1821 = vmatmul.bf16.gmra.mxu0 %v870
  %v1822 = vpop.f32.mrf.mxu0
  %v1823 = vadd.f32 %v1810, %v1822
  %v1824 = vpop.f32.mrf.mxu0
  %1825 = vdwg.mxu0
  %1826 = vmatpush.bf16.msra.mxu0 %v1507
  %1827 = vmatpush.bf16.msra.mxu0 %v1506
  %1828 = vmatpush.bf16.msra.mxu0 %v1505
  %1829 = vmatpush.bf16.msra.mxu0 %v1504
  %1830 = vmatpush.bf16.msra.mxu0 %v1503
  %1831 = vmatpush.bf16.msra.mxu0 %v1502
  %1832 = vmatpush.bf16.msra.mxu0 %v1501
  %1833 = vmatpush.bf16.msra.mxu0 %v1500
  %1834 = vmatmul.bf16.gmra.mxu0 %v871
  %v1835 = vpop.f32.mrf.mxu0
  %v1836 = vadd.f32 %v1823, %v1835
  %v1837 = vpop.f32.mrf.mxu0
  %1838 = vdwg.mxu0
  %1839 = vmatpush.bf16.msra.mxu0 %v1515
  %1840 = vmatpush.bf16.msra.mxu0 %v1514
  %1841 = vmatpush.bf16.msra.mxu0 %v1513
  %1842 = vmatpush.bf16.msra.mxu0 %v1512
  %1843 = vmatpush.bf16.msra.mxu0 %v1511
  %1844 = vmatpush.bf16.msra.mxu0 %v1510
  %1845 = vmatpush.bf16.msra.mxu0 %v1509
  %1846 = vmatpush.bf16.msra.mxu0 %v1508
  %1847 = vmatmul.bf16.gmra.mxu0 %v872
  %v1848 = vpop.f32.mrf.mxu0
  %v1849 = vadd.f32 %v1836, %v1848
  %v1850 = vpop.f32.mrf.mxu0
  %1851 = vdwg.mxu0
  %v1852 = vmax.f32 %v1849, 0.0
  %1853 = vst [vmem:[#allocation4] sm:$0xf] %v1852
  %v1854 = vld [vmem:[#allocation2 + $0xa] sm:$0xf]
  %v1855 = vld [vmem:[#allocation3 + $0xa] sm:$0xf]
  %v1856 = vld [vmem:[#allocation2 + $0xb] sm:$0xf]
  %v1857 = vld [vmem:[#allocation3 + $0xb] sm:$0xf]
  %v1858 = vld [vmem:[#allocation2 + $0xf] sm:$0xf]
  %v1859 = vld [vmem:[#allocation3 + $0xf] sm:$0xf]
  %v1860 = vld [vmem:[#allocation2 + $0x10] sm:$0xf]
  %v1861 = vld [vmem:[#allocation3 + $0x10] sm:$0xf]
  %v1862 = vld [vmem:[#allocation2 + $0x14] sm:$0xf]
  %v1863 = vld [vmem:[#allocation3 + $0x14] sm:$0xf]
  %v1864 = vld [vmem:[#allocation2 + $0x15] sm:$0xf]
  %v1865 = vld [vmem:[#allocation3 + $0x15] sm:$0xf]
  %v1866 = vld [vmem:[#allocation2 + $0x19] sm:$0xf]
  %v1867 = vld [vmem:[#allocation3 + $0x19] sm:$0xf]
  %v1868 = vld [vmem:[#allocation2 + $0x1a] sm:$0xf]
  %v1869 = vld [vmem:[#allocation3 + $0x1a] sm:$0xf]
  %v1870 = vpack.c.bf16 %v1854, %v1854
  %v1871 = vpack.c.bf16 %v1855, %v1855
  %v1872 = vpack.c.bf16 %v1856, %v1856
  %v1873 = vpack.c.bf16 %v1857, %v1857
  %v1874 = vpack.c.bf16 %v1858, %v1858
  %v1875 = vpack.c.bf16 %v1859, %v1859
  %v1876 = vpack.c.bf16 %v1860, %v1860
  %v1877 = vpack.c.bf16 %v1861, %v1861
  %v1878 = vpack.c.bf16 %v1862, %v1862
  %v1879 = vpack.c.bf16 %v1863, %v1863
  %v1880 = vpack.c.bf16 %v1864, %v1864
  %v1881 = vpack.c.bf16 %v1865, %v1865
  %v1882 = vpack.c.bf16 %v1866, %v1866
  %v1883 = vpack.c.bf16 %v1867, %v1867
  %v1884 = vpack.c.bf16 %v1868, %v1868
  %v1885 = vpack.c.bf16 %v1869, %v1869
  %1886 = vmatpush.bf16.msra.mxu0 %v1395
  %1887 = vmatpush.bf16.msra.mxu0 %v1394
  %1888 = vmatpush.bf16.msra.mxu0 %v1393
  %1889 = vmatpush.bf16.msra.mxu0 %v1392
  %1890 = vmatpush.bf16.msra.mxu0 %v1391
  %1891 = vmatpush.bf16.msra.mxu0 %v1390
  %1892 = vmatpush.bf16.msra.mxu0 %v1389
  %1893 = vmatpush.bf16.msra.mxu0 %v1388
  %1894 = vmatmul.bf16.gmra.mxu0 %v1870
  %v1895 = vpop.f32.mrf.mxu0
  %v1896 = vadd.f32 %v874, %v1895
  %v1897 = vpop.f32.mrf.mxu0
  %1898 = vdwg.mxu0
  %1899 = vmatpush.bf16.msra.mxu0 %v1403
  %1900 = vmatpush.bf16.msra.mxu0 %v1402
  %1901 = vmatpush.bf16.msra.mxu0 %v1401
  %1902 = vmatpush.bf16.msra.mxu0 %v1400
  %1903 = vmatpush.bf16.msra.mxu0 %v1399
  %1904 = vmatpush.bf16.msra.mxu0 %v1398
  %1905 = vmatpush.bf16.msra.mxu0 %v1397
  %1906 = vmatpush.bf16.msra.mxu0 %v1396
  %1907 = vmatmul.bf16.gmra.mxu0 %v1871
  %v1908 = vpop.f32.mrf.mxu0
  %v1909 = vadd.f32 %v1896, %v1908
  %v1910 = vpop.f32.mrf.mxu0
  %1911 = vdwg.mxu0
  %1912 = vmatpush.bf16.msra.mxu0 %v1411
  %1913 = vmatpush.bf16.msra.mxu0 %v1410
  %1914 = vmatpush.bf16.msra.mxu0 %v1409
  %1915 = vmatpush.bf16.msra.mxu0 %v1408
  %1916 = vmatpush.bf16.msra.mxu0 %v1407
  %1917 = vmatpush.bf16.msra.mxu0 %v1406
  %1918 = vmatpush.bf16.msra.mxu0 %v1405
  %1919 = vmatpush.bf16.msra.mxu0 %v1404
  %1920 = vmatmul.bf16.gmra.mxu0 %v1872
  %v1921 = vpop.f32.mrf.mxu0
  %v1922 = vadd.f32 %v1909, %v1921
  %v1923 = vpop.f32.mrf.mxu0
  %1924 = vdwg.mxu0
  %1925 = vmatpush.bf16.msra.mxu0 %v1419
  %1926 = vmatpush.bf16.msra.mxu0 %v1418
  %1927 = vmatpush.bf16.msra.mxu0 %v1417
  %1928 = vmatpush.bf16.msra.mxu0 %v1416
  %1929 = vmatpush.bf16.msra.mxu0 %v1415
  %1930 = vmatpush.bf16.msra.mxu0 %v1414
  %1931 = vmatpush.bf16.msra.mxu0 %v1413
  %1932 = vmatpush.bf16.msra.mxu0 %v1412
  %1933 = vmatmul.bf16.gmra.mxu0 %v1873
  %v1934 = vpop.f32.mrf.mxu0
  %v1935 = vadd.f32 %v1922, %v1934
  %v1936 = vpop.f32.mrf.mxu0
  %1937 = vdwg.mxu0
  %1938 = vmatpush.bf16.msra.mxu0 %v1427
  %1939 = vmatpush.bf16.msra.mxu0 %v1426
  %1940 = vmatpush.bf16.msra.mxu0 %v1425
  %1941 = vmatpush.bf16.msra.mxu0 %v1424
  %1942 = vmatpush.bf16.msra.mxu0 %v1423
  %1943 = vmatpush.bf16.msra.mxu0 %v1422
  %1944 = vmatpush.bf16.msra.mxu0 %v1421
  %1945 = vmatpush.bf16.msra.mxu0 %v1420
  %1946 = vmatmul.bf16.gmra.mxu0 %v1874
  %v1947 = vpop.f32.mrf.mxu0
  %v1948 = vadd.f32 %v1935, %v1947
  %v1949 = vpop.f32.mrf.mxu0
  %1950 = vdwg.mxu0
  %1951 = vmatpush.bf16.msra.mxu0 %v1435
  %1952 = vmatpush.bf16.msra.mxu0 %v1434
  %1953 = vmatpush.bf16.msra.mxu0 %v1433
  %1954 = vmatpush.bf16.msra.mxu0 %v1432
  %1955 = vmatpush.bf16.msra.mxu0 %v1431
  %1956 = vmatpush.bf16.msra.mxu0 %v1430
  %1957 = vmatpush.bf16.msra.mxu0 %v1429
  %1958 = vmatpush.bf16.msra.mxu0 %v1428
  %1959 = vmatmul.bf16.gmra.mxu0 %v1875
  %v1960 = vpop.f32.mrf.mxu0
  %v1961 = vadd.f32 %v1948, %v1960
  %v1962 = vpop.f32.mrf.mxu0
  %1963 = vdwg.mxu0
  %1964 = vmatpush.bf16.msra.mxu0 %v1443
  %1965 = vmatpush.bf16.msra.mxu0 %v1442
  %1966 = vmatpush.bf16.msra.mxu0 %v1441
  %1967 = vmatpush.bf16.msra.mxu0 %v1440
  %1968 = vmatpush.bf16.msra.mxu0 %v1439
  %1969 = vmatpush.bf16.msra.mxu0 %v1438
  %1970 = vmatpush.bf16.msra.mxu0 %v1437
  %1971 = vmatpush.bf16.msra.mxu0 %v1436
  %1972 = vmatmul.bf16.gmra.mxu0 %v1876
  %v1973 = vpop.f32.mrf.mxu0
  %v1974 = vadd.f32 %v1961, %v1973
  %v1975 = vpop.f32.mrf.mxu0
  %1976 = vdwg.mxu0
  %1977 = vmatpush.bf16.msra.mxu0 %v1451
  %1978 = vmatpush.bf16.msra.mxu0 %v1450
  %1979 = vmatpush.bf16.msra.mxu0 %v1449
  %1980 = vmatpush.bf16.msra.mxu0 %v1448
  %1981 = vmatpush.bf16.msra.mxu0 %v1447
  %1982 = vmatpush.bf16.msra.mxu0 %v1446
  %1983 = vmatpush.bf16.msra.mxu0 %v1445
  %1984 = vmatpush.bf16.msra.mxu0 %v1444
  %1985 = vmatmul.bf16.gmra.mxu0 %v1877
  %v1986 = vpop.f32.mrf.mxu0
  %v1987 = vadd.f32 %v1974, %v1986
  %v1988 = vpop.f32.mrf.mxu0
  %1989 = vdwg.mxu0
  %1990 = vmatpush.bf16.msra.mxu0 %v1459
  %1991 = vmatpush.bf16.msra.mxu0 %v1458
  %1992 = vmatpush.bf16.msra.mxu0 %v1457
  %1993 = vmatpush.bf16.msra.mxu0 %v1456
  %1994 = vmatpush.bf16.msra.mxu0 %v1455
  %1995 = vmatpush.bf16.msra.mxu0 %v1454
  %1996 = vmatpush.bf16.msra.mxu0 %v1453
  %1997 = vmatpush.bf16.msra.mxu0 %v1452
  %1998 = vmatmul.bf16.gmra.mxu0 %v1878
  %v1999 = vpop.f32.mrf.mxu0
  %v2000 = vadd.f32 %v1987, %v1999
  %v2001 = vpop.f32.mrf.mxu0
  %2002 = vdwg.mxu0
  %2003 = vmatpush.bf16.msra.mxu0 %v1467
  %2004 = vmatpush.bf16.msra.mxu0 %v1466
  %2005 = vmatpush.bf16.msra.mxu0 %v1465
  %2006 = vmatpush.bf16.msra.mxu0 %v1464
  %2007 = vmatpush.bf16.msra.mxu0 %v1463
  %2008 = vmatpush.bf16.msra.mxu0 %v1462
  %2009 = vmatpush.bf16.msra.mxu0 %v1461
  %2010 = vmatpush.bf16.msra.mxu0 %v1460
  %2011 = vmatmul.bf16.gmra.mxu0 %v1879
  %v2012 = vpop.f32.mrf.mxu0
  %v2013 = vadd.f32 %v2000, %v2012
  %v2014 = vpop.f32.mrf.mxu0
  %2015 = vdwg.mxu0
  %2016 = vmatpush.bf16.msra.mxu0 %v1475
  %2017 = vmatpush.bf16.msra.mxu0 %v1474
  %2018 = vmatpush.bf16.msra.mxu0 %v1473
  %2019 = vmatpush.bf16.msra.mxu0 %v1472
  %2020 = vmatpush.bf16.msra.mxu0 %v1471
  %2021 = vmatpush.bf16.msra.mxu0 %v1470
  %2022 = vmatpush.bf16.msra.mxu0 %v1469
  %2023 = vmatpush.bf16.msra.mxu0 %v1468
  %2024 = vmatmul.bf16.gmra.mxu0 %v1880
  %v2025 = vpop.f32.mrf.mxu0
  %v2026 = vadd.f32 %v2013, %v2025
  %v2027 = vpop.f32.mrf.mxu0
  %2028 = vdwg.mxu0
  %2029 = vmatpush.bf16.msra.mxu0 %v1483
  %2030 = vmatpush.bf16.msra.mxu0 %v1482
  %2031 = vmatpush.bf16.msra.mxu0 %v1481
  %2032 = vmatpush.bf16.msra.mxu0 %v1480
  %2033 = vmatpush.bf16.msra.mxu0 %v1479
  %2034 = vmatpush.bf16.msra.mxu0 %v1478
  %2035 = vmatpush.bf16.msra.mxu0 %v1477
  %2036 = vmatpush.bf16.msra.mxu0 %v1476
  %2037 = vmatmul.bf16.gmra.mxu0 %v1881
  %v2038 = vpop.f32.mrf.mxu0
  %v2039 = vadd.f32 %v2026, %v2038
  %v2040 = vpop.f32.mrf.mxu0
  %2041 = vdwg.mxu0
  %2042 = vmatpush.bf16.msra.mxu0 %v1491
  %2043 = vmatpush.bf16.msra.mxu0 %v1490
  %2044 = vmatpush.bf16.msra.mxu0 %v1489
  %2045 = vmatpush.bf16.msra.mxu0 %v1488
  %2046 = vmatpush.bf16.msra.mxu0 %v1487
  %2047 = vmatpush.bf16.msra.mxu0 %v1486
  %2048 = vmatpush.bf16.msra.mxu0 %v1485
  %2049 = vmatpush.bf16.msra.mxu0 %v1484
  %2050 = vmatmul.bf16.gmra.mxu0 %v1882
  %v2051 = vpop.f32.mrf.mxu0
  %v2052 = vadd.f32 %v2039, %v2051
  %v2053 = vpop.f32.mrf.mxu0
  %2054 = vdwg.mxu0
  %2055 = vmatpush.bf16.msra.mxu0 %v1499
  %2056 = vmatpush.bf16.msra.mxu0 %v1498
  %2057 = vmatpush.bf16.msra.mxu0 %v1497
  %2058 = vmatpush.bf16.msra.mxu0 %v1496
  %2059 = vmatpush.bf16.msra.mxu0 %v1495
  %2060 = vmatpush.bf16.msra.mxu0 %v1494
  %2061 = vmatpush.bf16.msra.mxu0 %v1493
  %2062 = vmatpush.bf16.msra.mxu0 %v1492
  %2063 = vmatmul.bf16.gmra.mxu0 %v1883
  %v2064 = vpop.f32.mrf.mxu0
  %v2065 = vadd.f32 %v2052, %v2064
  %v2066 = vpop.f32.mrf.mxu0
  %2067 = vdwg.mxu0
  %2068 = vmatpush.bf16.msra.mxu0 %v1507
  %2069 = vmatpush.bf16.msra.mxu0 %v1506
  %2070 = vmatpush.bf16.msra.mxu0 %v1505
  %2071 = vmatpush.bf16.msra.mxu0 %v1504
  %2072 = vmatpush.bf16.msra.mxu0 %v1503
  %2073 = vmatpush.bf16.msra.mxu0 %v1502
  %2074 = vmatpush.bf16.msra.mxu0 %v1501
  %2075 = vmatpush.bf16.msra.mxu0 %v1500
  %2076 = vmatmul.bf16.gmra.mxu0 %v1884
  %v2077 = vpop.f32.mrf.mxu0
  %v2078 = vadd.f32 %v2065, %v2077
  %v2079 = vpop.f32.mrf.mxu0
  %2080 = vdwg.mxu0
  %2081 = vmatpush.bf16.msra.mxu0 %v1515
  %2082 = vmatpush.bf16.msra.mxu0 %v1514
  %2083 = vmatpush.bf16.msra.mxu0 %v1513
  %2084 = vmatpush.bf16.msra.mxu0 %v1512
  %2085 = vmatpush.bf16.msra.mxu0 %v1511
  %2086 = vmatpush.bf16.msra.mxu0 %v1510
  %2087 = vmatpush.bf16.msra.mxu0 %v1509
  %2088 = vmatpush.bf16.msra.mxu0 %v1508
  %2089 = vmatmul.bf16.gmra.mxu0 %v1885
  %v2090 = vpop.f32.mrf.mxu0
  %v2091 = vadd.f32 %v2078, %v2090
  %v2092 = vpop.f32.mrf.mxu0
  %2093 = vdwg.mxu0
  %v2094 = vmax.f32 %v2091, 0.0
  %s2095 = scalar_lea.vmem [#allocation4], 4
  %2096 = vst [vmem:[%s2095] sm:$0xf] %v2094
  %v2097 = vld [vmem:[#allocation2 + $0x14] sm:$0xf]
  %v2098 = vld [vmem:[#allocation3 + $0x14] sm:$0xf]
  %v2099 = vld [vmem:[#allocation2 + $0x15] sm:$0xf]
  %v2100 = vld [vmem:[#allocation3 + $0x15] sm:$0xf]
  %v2101 = vld [vmem:[#allocation2 + $0x19] sm:$0xf]
  %v2102 = vld [vmem:[#allocation3 + $0x19] sm:$0xf]
  %v2103 = vld [vmem:[#allocation2 + $0x1a] sm:$0xf]
  %v2104 = vld [vmem:[#allocation3 + $0x1a] sm:$0xf]
  %v2105 = vld [vmem:[#allocation2 + $0x1e] sm:$0xf]
  %v2106 = vld [vmem:[#allocation3 + $0x1e] sm:$0xf]
  %v2107 = vld [vmem:[#allocation2 + $0x1f] sm:$0xf]
  %v2108 = vld [vmem:[#allocation3 + $0x1f] sm:$0xf]
  %v2109 = vld [vmem:[#allocation2 + $0x23] sm:$0xf]
  %v2110 = vld [vmem:[#allocation3 + $0x23] sm:$0xf]
  %v2111 = vld [vmem:[#allocation2 + $0x24] sm:$0xf]
  %v2112 = vld [vmem:[#allocation3 + $0x24] sm:$0xf]
  %v2113 = vpack.c.bf16 %v2097, %v2097
  %v2114 = vpack.c.bf16 %v2098, %v2098
  %v2115 = vpack.c.bf16 %v2099, %v2099
  %v2116 = vpack.c.bf16 %v2100, %v2100
  %v2117 = vpack.c.bf16 %v2101, %v2101
  %v2118 = vpack.c.bf16 %v2102, %v2102
  %v2119 = vpack.c.bf16 %v2103, %v2103
  %v2120 = vpack.c.bf16 %v2104, %v2104
  %v2121 = vpack.c.bf16 %v2105, %v2105
  %v2122 = vpack.c.bf16 %v2106, %v2106
  %v2123 = vpack.c.bf16 %v2107, %v2107
  %v2124 = vpack.c.bf16 %v2108, %v2108
  %v2125 = vpack.c.bf16 %v2109, %v2109
  %v2126 = vpack.c.bf16 %v2110, %v2110
  %v2127 = vpack.c.bf16 %v2111, %v2111
  %v2128 = vpack.c.bf16 %v2112, %v2112
  %2129 = vmatpush.bf16.msra.mxu0 %v1395
  %2130 = vmatpush.bf16.msra.mxu0 %v1394
  %2131 = vmatpush.bf16.msra.mxu0 %v1393
  %2132 = vmatpush.bf16.msra.mxu0 %v1392
  %2133 = vmatpush.bf16.msra.mxu0 %v1391
  %2134 = vmatpush.bf16.msra.mxu0 %v1390
  %2135 = vmatpush.bf16.msra.mxu0 %v1389
  %2136 = vmatpush.bf16.msra.mxu0 %v1388
  %2137 = vmatmul.bf16.gmra.mxu0 %v2113
  %v2138 = vpop.f32.mrf.mxu0
  %v2139 = vadd.f32 %v874, %v2138
  %v2140 = vpop.f32.mrf.mxu0
  %2141 = vdwg.mxu0
  %2142 = vmatpush.bf16.msra.mxu0 %v1403
  %2143 = vmatpush.bf16.msra.mxu0 %v1402
  %2144 = vmatpush.bf16.msra.mxu0 %v1401
  %2145 = vmatpush.bf16.msra.mxu0 %v1400
  %2146 = vmatpush.bf16.msra.mxu0 %v1399
  %2147 = vmatpush.bf16.msra.mxu0 %v1398
  %2148 = vmatpush.bf16.msra.mxu0 %v1397
  %2149 = vmatpush.bf16.msra.mxu0 %v1396
  %2150 = vmatmul.bf16.gmra.mxu0 %v2114
  %v2151 = vpop.f32.mrf.mxu0
  %v2152 = vadd.f32 %v2139, %v2151
  %v2153 = vpop.f32.mrf.mxu0
  %2154 = vdwg.mxu0
  %2155 = vmatpush.bf16.msra.mxu0 %v1411
  %2156 = vmatpush.bf16.msra.mxu0 %v1410
  %2157 = vmatpush.bf16.msra.mxu0 %v1409
  %2158 = vmatpush.bf16.msra.mxu0 %v1408
  %2159 = vmatpush.bf16.msra.mxu0 %v1407
  %2160 = vmatpush.bf16.msra.mxu0 %v1406
  %2161 = vmatpush.bf16.msra.mxu0 %v1405
  %2162 = vmatpush.bf16.msra.mxu0 %v1404
  %2163 = vmatmul.bf16.gmra.mxu0 %v2115
  %v2164 = vpop.f32.mrf.mxu0
  %v2165 = vadd.f32 %v2152, %v2164
  %v2166 = vpop.f32.mrf.mxu0
  %2167 = vdwg.mxu0
  %2168 = vmatpush.bf16.msra.mxu0 %v1419
  %2169 = vmatpush.bf16.msra.mxu0 %v1418
  %2170 = vmatpush.bf16.msra.mxu0 %v1417
  %2171 = vmatpush.bf16.msra.mxu0 %v1416
  %2172 = vmatpush.bf16.msra.mxu0 %v1415
  %2173 = vmatpush.bf16.msra.mxu0 %v1414
  %2174 = vmatpush.bf16.msra.mxu0 %v1413
  %2175 = vmatpush.bf16.msra.mxu0 %v1412
  %2176 = vmatmul.bf16.gmra.mxu0 %v2116
  %v2177 = vpop.f32.mrf.mxu0
  %v2178 = vadd.f32 %v2165, %v2177
  %v2179 = vpop.f32.mrf.mxu0
  %2180 = vdwg.mxu0
  %2181 = vmatpush.bf16.msra.mxu0 %v1427
  %2182 = vmatpush.bf16.msra.mxu0 %v1426
  %2183 = vmatpush.bf16.msra.mxu0 %v1425
  %2184 = vmatpush.bf16.msra.mxu0 %v1424
  %2185 = vmatpush.bf16.msra.mxu0 %v1423
  %2186 = vmatpush.bf16.msra.mxu0 %v1422
  %2187 = vmatpush.bf16.msra.mxu0 %v1421
  %2188 = vmatpush.bf16.msra.mxu0 %v1420
  %2189 = vmatmul.bf16.gmra.mxu0 %v2117
  %v2190 = vpop.f32.mrf.mxu0
  %v2191 = vadd.f32 %v2178, %v2190
  %v2192 = vpop.f32.mrf.mxu0
  %2193 = vdwg.mxu0
  %2194 = vmatpush.bf16.msra.mxu0 %v1435
  %2195 = vmatpush.bf16.msra.mxu0 %v1434
  %2196 = vmatpush.bf16.msra.mxu0 %v1433
  %2197 = vmatpush.bf16.msra.mxu0 %v1432
  %2198 = vmatpush.bf16.msra.mxu0 %v1431
  %2199 = vmatpush.bf16.msra.mxu0 %v1430
  %2200 = vmatpush.bf16.msra.mxu0 %v1429
  %2201 = vmatpush.bf16.msra.mxu0 %v1428
  %2202 = vmatmul.bf16.gmra.mxu0 %v2118
  %v2203 = vpop.f32.mrf.mxu0
  %v2204 = vadd.f32 %v2191, %v2203
  %v2205 = vpop.f32.mrf.mxu0
  %2206 = vdwg.mxu0
  %2207 = vmatpush.bf16.msra.mxu0 %v1443
  %2208 = vmatpush.bf16.msra.mxu0 %v1442
  %2209 = vmatpush.bf16.msra.mxu0 %v1441
  %2210 = vmatpush.bf16.msra.mxu0 %v1440
  %2211 = vmatpush.bf16.msra.mxu0 %v1439
  %2212 = vmatpush.bf16.msra.mxu0 %v1438
  %2213 = vmatpush.bf16.msra.mxu0 %v1437
  %2214 = vmatpush.bf16.msra.mxu0 %v1436
  %2215 = vmatmul.bf16.gmra.mxu0 %v2119
  %v2216 = vpop.f32.mrf.mxu0
  %v2217 = vadd.f32 %v2204, %v2216
  %v2218 = vpop.f32.mrf.mxu0
  %2219 = vdwg.mxu0
  %2220 = vmatpush.bf16.msra.mxu0 %v1451
  %2221 = vmatpush.bf16.msra.mxu0 %v1450
  %2222 = vmatpush.bf16.msra.mxu0 %v1449
  %2223 = vmatpush.bf16.msra.mxu0 %v1448
  %2224 = vmatpush.bf16.msra.mxu0 %v1447
  %2225 = vmatpush.bf16.msra.mxu0 %v1446
  %2226 = vmatpush.bf16.msra.mxu0 %v1445
  %2227 = vmatpush.bf16.msra.mxu0 %v1444
  %2228 = vmatmul.bf16.gmra.mxu0 %v2120
  %v2229 = vpop.f32.mrf.mxu0
  %v2230 = vadd.f32 %v2217, %v2229
  %v2231 = vpop.f32.mrf.mxu0
  %2232 = vdwg.mxu0
  %2233 = vmatpush.bf16.msra.mxu0 %v1459
  %2234 = vmatpush.bf16.msra.mxu0 %v1458
  %2235 = vmatpush.bf16.msra.mxu0 %v1457
  %2236 = vmatpush.bf16.msra.mxu0 %v1456
  %2237 = vmatpush.bf16.msra.mxu0 %v1455
  %2238 = vmatpush.bf16.msra.mxu0 %v1454
  %2239 = vmatpush.bf16.msra.mxu0 %v1453
  %2240 = vmatpush.bf16.msra.mxu0 %v1452
  %2241 = vmatmul.bf16.gmra.mxu0 %v2121
  %v2242 = vpop.f32.mrf.mxu0
  %v2243 = vadd.f32 %v2230, %v2242
  %v2244 = vpop.f32.mrf.mxu0
  %2245 = vdwg.mxu0
  %2246 = vmatpush.bf16.msra.mxu0 %v1467
  %2247 = vmatpush.bf16.msra.mxu0 %v1466
  %2248 = vmatpush.bf16.msra.mxu0 %v1465
  %2249 = vmatpush.bf16.msra.mxu0 %v1464
  %2250 = vmatpush.bf16.msra.mxu0 %v1463
  %2251 = vmatpush.bf16.msra.mxu0 %v1462
  %2252 = vmatpush.bf16.msra.mxu0 %v1461
  %2253 = vmatpush.bf16.msra.mxu0 %v1460
  %2254 = vmatmul.bf16.gmra.mxu0 %v2122
  %v2255 = vpop.f32.mrf.mxu0
  %v2256 = vadd.f32 %v2243, %v2255
  %v2257 = vpop.f32.mrf.mxu0
  %2258 = vdwg.mxu0
  %2259 = vmatpush.bf16.msra.mxu0 %v1475
  %2260 = vmatpush.bf16.msra.mxu0 %v1474
  %2261 = vmatpush.bf16.msra.mxu0 %v1473
  %2262 = vmatpush.bf16.msra.mxu0 %v1472
  %2263 = vmatpush.bf16.msra.mxu0 %v1471
  %2264 = vmatpush.bf16.msra.mxu0 %v1470
  %2265 = vmatpush.bf16.msra.mxu0 %v1469
  %2266 = vmatpush.bf16.msra.mxu0 %v1468
  %2267 = vmatmul.bf16.gmra.mxu0 %v2123
  %v2268 = vpop.f32.mrf.mxu0
  %v2269 = vadd.f32 %v2256, %v2268
  %v2270 = vpop.f32.mrf.mxu0
  %2271 = vdwg.mxu0
  %2272 = vmatpush.bf16.msra.mxu0 %v1483
  %2273 = vmatpush.bf16.msra.mxu0 %v1482
  %2274 = vmatpush.bf16.msra.mxu0 %v1481
  %2275 = vmatpush.bf16.msra.mxu0 %v1480
  %2276 = vmatpush.bf16.msra.mxu0 %v1479
  %2277 = vmatpush.bf16.msra.mxu0 %v1478
  %2278 = vmatpush.bf16.msra.mxu0 %v1477
  %2279 = vmatpush.bf16.msra.mxu0 %v1476
  %2280 = vmatmul.bf16.gmra.mxu0 %v2124
  %v2281 = vpop.f32.mrf.mxu0
  %v2282 = vadd.f32 %v2269, %v2281
  %v2283 = vpop.f32.mrf.mxu0
  %2284 = vdwg.mxu0
  %2285 = vmatpush.bf16.msra.mxu0 %v1491
  %2286 = vmatpush.bf16.msra.mxu0 %v1490
  %2287 = vmatpush.bf16.msra.mxu0 %v1489
  %2288 = vmatpush.bf16.msra.mxu0 %v1488
  %2289 = vmatpush.bf16.msra.mxu0 %v1487
  %2290 = vmatpush.bf16.msra.mxu0 %v1486
  %2291 = vmatpush.bf16.msra.mxu0 %v1485
  %2292 = vmatpush.bf16.msra.mxu0 %v1484
  %2293 = vmatmul.bf16.gmra.mxu0 %v2125
  %v2294 = vpop.f32.mrf.mxu0
  %v2295 = vadd.f32 %v2282, %v2294
  %v2296 = vpop.f32.mrf.mxu0
  %2297 = vdwg.mxu0
  %2298 = vmatpush.bf16.msra.mxu0 %v1499
  %2299 = vmatpush.bf16.msra.mxu0 %v1498
  %2300 = vmatpush.bf16.msra.mxu0 %v1497
  %2301 = vmatpush.bf16.msra.mxu0 %v1496
  %2302 = vmatpush.bf16.msra.mxu0 %v1495
  %2303 = vmatpush.bf16.msra.mxu0 %v1494
  %2304 = vmatpush.bf16.msra.mxu0 %v1493
  %2305 = vmatpush.bf16.msra.mxu0 %v1492
  %2306 = vmatmul.bf16.gmra.mxu0 %v2126
  %v2307 = vpop.f32.mrf.mxu0
  %v2308 = vadd.f32 %v2295, %v2307
  %v2309 = vpop.f32.mrf.mxu0
  %2310 = vdwg.mxu0
  %2311 = vmatpush.bf16.msra.mxu0 %v1507
  %2312 = vmatpush.bf16.msra.mxu0 %v1506
  %2313 = vmatpush.bf16.msra.mxu0 %v1505
  %2314 = vmatpush.bf16.msra.mxu0 %v1504
  %2315 = vmatpush.bf16.msra.mxu0 %v1503
  %2316 = vmatpush.bf16.msra.mxu0 %v1502
  %2317 = vmatpush.bf16.msra.mxu0 %v1501
  %2318 = vmatpush.bf16.msra.mxu0 %v1500
  %2319 = vmatmul.bf16.gmra.mxu0 %v2127
  %v2320 = vpop.f32.mrf.mxu0
  %v2321 = vadd.f32 %v2308, %v2320
  %v2322 = vpop.f32.mrf.mxu0
  %2323 = vdwg.mxu0
  %2324 = vmatpush.bf16.msra.mxu0 %v1515
  %2325 = vmatpush.bf16.msra.mxu0 %v1514
  %2326 = vmatpush.bf16.msra.mxu0 %v1513
  %2327 = vmatpush.bf16.msra.mxu0 %v1512
  %2328 = vmatpush.bf16.msra.mxu0 %v1511
  %2329 = vmatpush.bf16.msra.mxu0 %v1510
  %2330 = vmatpush.bf16.msra.mxu0 %v1509
  %2331 = vmatpush.bf16.msra.mxu0 %v1508
  %2332 = vmatmul.bf16.gmra.mxu0 %v2128
  %v2333 = vpop.f32.mrf.mxu0
  %v2334 = vadd.f32 %v2321, %v2333
  %v2335 = vpop.f32.mrf.mxu0
  %2336 = vdwg.mxu0
  %v2337 = vmax.f32 %v2334, 0.0
  %s2338 = scalar_lea.vmem [#allocation4], 8
  %2339 = vst [vmem:[%s2338] sm:$0xf] %v2337
  %v2340 = vld [vmem:[#allocation2 + $0x1e] sm:$0xf]
  %v2341 = vld [vmem:[#allocation3 + $0x1e] sm:$0xf]
  %v2342 = vld [vmem:[#allocation2 + $0x1f] sm:$0xf]
  %v2343 = vld [vmem:[#allocation3 + $0x1f] sm:$0xf]
  %v2344 = vld [vmem:[#allocation2 + $0x23] sm:$0xf]
  %v2345 = vld [vmem:[#allocation3 + $0x23] sm:$0xf]
  %v2346 = vld [vmem:[#allocation2 + $0x24] sm:$0xf]
  %v2347 = vld [vmem:[#allocation3 + $0x24] sm:$0xf]
  %v2348 = vld [vmem:[#allocation2 + $0x28] sm:$0xf]
  %v2349 = vld [vmem:[#allocation3 + $0x28] sm:$0xf]
  %v2350 = vld [vmem:[#allocation2 + $0x29] sm:$0xf]
  %v2351 = vld [vmem:[#allocation3 + $0x29] sm:$0xf]
  %v2352 = vld [vmem:[#allocation2 + $0x2d] sm:$0xf]
  %v2353 = vld [vmem:[#allocation3 + $0x2d] sm:$0xf]
  %v2354 = vld [vmem:[#allocation2 + $0x2e] sm:$0xf]
  %v2355 = vld [vmem:[#allocation3 + $0x2e] sm:$0xf]
  %v2356 = vpack.c.bf16 %v2340, %v2340
  %v2357 = vpack.c.bf16 %v2341, %v2341
  %v2358 = vpack.c.bf16 %v2342, %v2342
  %v2359 = vpack.c.bf16 %v2343, %v2343
  %v2360 = vpack.c.bf16 %v2344, %v2344
  %v2361 = vpack.c.bf16 %v2345, %v2345
  %v2362 = vpack.c.bf16 %v2346, %v2346
  %v2363 = vpack.c.bf16 %v2347, %v2347
  %v2364 = vpack.c.bf16 %v2348, %v2348
  %v2365 = vpack.c.bf16 %v2349, %v2349
  %v2366 = vpack.c.bf16 %v2350, %v2350
  %v2367 = vpack.c.bf16 %v2351, %v2351
  %v2368 = vpack.c.bf16 %v2352, %v2352
  %v2369 = vpack.c.bf16 %v2353, %v2353
  %v2370 = vpack.c.bf16 %v2354, %v2354
  %v2371 = vpack.c.bf16 %v2355, %v2355
  %2372 = vmatpush.bf16.msra.mxu0 %v1395
  %2373 = vmatpush.bf16.msra.mxu0 %v1394
  %2374 = vmatpush.bf16.msra.mxu0 %v1393
  %2375 = vmatpush.bf16.msra.mxu0 %v1392
  %2376 = vmatpush.bf16.msra.mxu0 %v1391
  %2377 = vmatpush.bf16.msra.mxu0 %v1390
  %2378 = vmatpush.bf16.msra.mxu0 %v1389
  %2379 = vmatpush.bf16.msra.mxu0 %v1388
  %2380 = vmatmul.bf16.gmra.mxu0 %v2356
  %v2381 = vpop.f32.mrf.mxu0
  %v2382 = vadd.f32 %v874, %v2381
  %v2383 = vpop.f32.mrf.mxu0
  %2384 = vdwg.mxu0
  %2385 = vmatpush.bf16.msra.mxu0 %v1403
  %2386 = vmatpush.bf16.msra.mxu0 %v1402
  %2387 = vmatpush.bf16.msra.mxu0 %v1401
  %2388 = vmatpush.bf16.msra.mxu0 %v1400
  %2389 = vmatpush.bf16.msra.mxu0 %v1399
  %2390 = vmatpush.bf16.msra.mxu0 %v1398
  %2391 = vmatpush.bf16.msra.mxu0 %v1397
  %2392 = vmatpush.bf16.msra.mxu0 %v1396
  %2393 = vmatmul.bf16.gmra.mxu0 %v2357
  %v2394 = vpop.f32.mrf.mxu0
  %v2395 = vadd.f32 %v2382, %v2394
  %v2396 = vpop.f32.mrf.mxu0
  %2397 = vdwg.mxu0
  %2398 = vmatpush.bf16.msra.mxu0 %v1411
  %2399 = vmatpush.bf16.msra.mxu0 %v1410
  %2400 = vmatpush.bf16.msra.mxu0 %v1409
  %2401 = vmatpush.bf16.msra.mxu0 %v1408
  %2402 = vmatpush.bf16.msra.mxu0 %v1407
  %2403 = vmatpush.bf16.msra.mxu0 %v1406
  %2404 = vmatpush.bf16.msra.mxu0 %v1405
  %2405 = vmatpush.bf16.msra.mxu0 %v1404
  %2406 = vmatmul.bf16.gmra.mxu0 %v2358
  %v2407 = vpop.f32.mrf.mxu0
  %v2408 = vadd.f32 %v2395, %v2407
  %v2409 = vpop.f32.mrf.mxu0
  %2410 = vdwg.mxu0
  %2411 = vmatpush.bf16.msra.mxu0 %v1419
  %2412 = vmatpush.bf16.msra.mxu0 %v1418
  %2413 = vmatpush.bf16.msra.mxu0 %v1417
  %2414 = vmatpush.bf16.msra.mxu0 %v1416
  %2415 = vmatpush.bf16.msra.mxu0 %v1415
  %2416 = vmatpush.bf16.msra.mxu0 %v1414
  %2417 = vmatpush.bf16.msra.mxu0 %v1413
  %2418 = vmatpush.bf16.msra.mxu0 %v1412
  %2419 = vmatmul.bf16.gmra.mxu0 %v2359
  %v2420 = vpop.f32.mrf.mxu0
  %v2421 = vadd.f32 %v2408, %v2420
  %v2422 = vpop.f32.mrf.mxu0
  %2423 = vdwg.mxu0
  %2424 = vmatpush.bf16.msra.mxu0 %v1427
  %2425 = vmatpush.bf16.msra.mxu0 %v1426
  %2426 = vmatpush.bf16.msra.mxu0 %v1425
  %2427 = vmatpush.bf16.msra.mxu0 %v1424
  %2428 = vmatpush.bf16.msra.mxu0 %v1423
  %2429 = vmatpush.bf16.msra.mxu0 %v1422
  %2430 = vmatpush.bf16.msra.mxu0 %v1421
  %2431 = vmatpush.bf16.msra.mxu0 %v1420
  %2432 = vmatmul.bf16.gmra.mxu0 %v2360
  %v2433 = vpop.f32.mrf.mxu0
  %v2434 = vadd.f32 %v2421, %v2433
  %v2435 = vpop.f32.mrf.mxu0
  %2436 = vdwg.mxu0
  %2437 = vmatpush.bf16.msra.mxu0 %v1435
  %2438 = vmatpush.bf16.msra.mxu0 %v1434
  %2439 = vmatpush.bf16.msra.mxu0 %v1433
  %2440 = vmatpush.bf16.msra.mxu0 %v1432
  %2441 = vmatpush.bf16.msra.mxu0 %v1431
  %2442 = vmatpush.bf16.msra.mxu0 %v1430
  %2443 = vmatpush.bf16.msra.mxu0 %v1429
  %2444 = vmatpush.bf16.msra.mxu0 %v1428
  %2445 = vmatmul.bf16.gmra.mxu0 %v2361
  %v2446 = vpop.f32.mrf.mxu0
  %v2447 = vadd.f32 %v2434, %v2446
  %v2448 = vpop.f32.mrf.mxu0
  %2449 = vdwg.mxu0
  %2450 = vmatpush.bf16.msra.mxu0 %v1443
  %2451 = vmatpush.bf16.msra.mxu0 %v1442
  %2452 = vmatpush.bf16.msra.mxu0 %v1441
  %2453 = vmatpush.bf16.msra.mxu0 %v1440
  %2454 = vmatpush.bf16.msra.mxu0 %v1439
  %2455 = vmatpush.bf16.msra.mxu0 %v1438
  %2456 = vmatpush.bf16.msra.mxu0 %v1437
  %2457 = vmatpush.bf16.msra.mxu0 %v1436
  %2458 = vmatmul.bf16.gmra.mxu0 %v2362
  %v2459 = vpop.f32.mrf.mxu0
  %v2460 = vadd.f32 %v2447, %v2459
  %v2461 = vpop.f32.mrf.mxu0
  %2462 = vdwg.mxu0
  %2463 = vmatpush.bf16.msra.mxu0 %v1451
  %2464 = vmatpush.bf16.msra.mxu0 %v1450
  %2465 = vmatpush.bf16.msra.mxu0 %v1449
  %2466 = vmatpush.bf16.msra.mxu0 %v1448
  %2467 = vmatpush.bf16.msra.mxu0 %v1447
  %2468 = vmatpush.bf16.msra.mxu0 %v1446
  %2469 = vmatpush.bf16.msra.mxu0 %v1445
  %2470 = vmatpush.bf16.msra.mxu0 %v1444
  %2471 = vmatmul.bf16.gmra.mxu0 %v2363
  %v2472 = vpop.f32.mrf.mxu0
  %v2473 = vadd.f32 %v2460, %v2472
  %v2474 = vpop.f32.mrf.mxu0
  %2475 = vdwg.mxu0
  %2476 = vmatpush.bf16.msra.mxu0 %v1459
  %2477 = vmatpush.bf16.msra.mxu0 %v1458
  %2478 = vmatpush.bf16.msra.mxu0 %v1457
  %2479 = vmatpush.bf16.msra.mxu0 %v1456
  %2480 = vmatpush.bf16.msra.mxu0 %v1455
  %2481 = vmatpush.bf16.msra.mxu0 %v1454
  %2482 = vmatpush.bf16.msra.mxu0 %v1453
  %2483 = vmatpush.bf16.msra.mxu0 %v1452
  %2484 = vmatmul.bf16.gmra.mxu0 %v2364
  %v2485 = vpop.f32.mrf.mxu0
  %v2486 = vadd.f32 %v2473, %v2485
  %v2487 = vpop.f32.mrf.mxu0
  %2488 = vdwg.mxu0
  %2489 = vmatpush.bf16.msra.mxu0 %v1467
  %2490 = vmatpush.bf16.msra.mxu0 %v1466
  %2491 = vmatpush.bf16.msra.mxu0 %v1465
  %2492 = vmatpush.bf16.msra.mxu0 %v1464
  %2493 = vmatpush.bf16.msra.mxu0 %v1463
  %2494 = vmatpush.bf16.msra.mxu0 %v1462
  %2495 = vmatpush.bf16.msra.mxu0 %v1461
  %2496 = vmatpush.bf16.msra.mxu0 %v1460
  %2497 = vmatmul.bf16.gmra.mxu0 %v2365
  %v2498 = vpop.f32.mrf.mxu0
  %v2499 = vadd.f32 %v2486, %v2498
  %v2500 = vpop.f32.mrf.mxu0
  %2501 = vdwg.mxu0
  %2502 = vmatpush.bf16.msra.mxu0 %v1475
  %2503 = vmatpush.bf16.msra.mxu0 %v1474
  %2504 = vmatpush.bf16.msra.mxu0 %v1473
  %2505 = vmatpush.bf16.msra.mxu0 %v1472
  %2506 = vmatpush.bf16.msra.mxu0 %v1471
  %2507 = vmatpush.bf16.msra.mxu0 %v1470
  %2508 = vmatpush.bf16.msra.mxu0 %v1469
  %2509 = vmatpush.bf16.msra.mxu0 %v1468
  %2510 = vmatmul.bf16.gmra.mxu0 %v2366
  %v2511 = vpop.f32.mrf.mxu0
  %v2512 = vadd.f32 %v2499, %v2511
  %v2513 = vpop.f32.mrf.mxu0
  %2514 = vdwg.mxu0
  %2515 = vmatpush.bf16.msra.mxu0 %v1483
  %2516 = vmatpush.bf16.msra.mxu0 %v1482
  %2517 = vmatpush.bf16.msra.mxu0 %v1481
  %2518 = vmatpush.bf16.msra.mxu0 %v1480
  %2519 = vmatpush.bf16.msra.mxu0 %v1479
  %2520 = vmatpush.bf16.msra.mxu0 %v1478
  %2521 = vmatpush.bf16.msra.mxu0 %v1477
  %2522 = vmatpush.bf16.msra.mxu0 %v1476
  %2523 = vmatmul.bf16.gmra.mxu0 %v2367
  %v2524 = vpop.f32.mrf.mxu0
  %v2525 = vadd.f32 %v2512, %v2524
  %v2526 = vpop.f32.mrf.mxu0
  %2527 = vdwg.mxu0
  %2528 = vmatpush.bf16.msra.mxu0 %v1491
  %2529 = vmatpush.bf16.msra.mxu0 %v1490
  %2530 = vmatpush.bf16.msra.mxu0 %v1489
  %2531 = vmatpush.bf16.msra.mxu0 %v1488
  %2532 = vmatpush.bf16.msra.mxu0 %v1487
  %2533 = vmatpush.bf16.msra.mxu0 %v1486
  %2534 = vmatpush.bf16.msra.mxu0 %v1485
  %2535 = vmatpush.bf16.msra.mxu0 %v1484
  %2536 = vmatmul.bf16.gmra.mxu0 %v2368
  %v2537 = vpop.f32.mrf.mxu0
  %v2538 = vadd.f32 %v2525, %v2537
  %v2539 = vpop.f32.mrf.mxu0
  %2540 = vdwg.mxu0
  %2541 = vmatpush.bf16.msra.mxu0 %v1499
  %2542 = vmatpush.bf16.msra.mxu0 %v1498
  %2543 = vmatpush.bf16.msra.mxu0 %v1497
  %2544 = vmatpush.bf16.msra.mxu0 %v1496
  %2545 = vmatpush.bf16.msra.mxu0 %v1495
  %2546 = vmatpush.bf16.msra.mxu0 %v1494
  %2547 = vmatpush.bf16.msra.mxu0 %v1493
  %2548 = vmatpush.bf16.msra.mxu0 %v1492
  %2549 = vmatmul.bf16.gmra.mxu0 %v2369
  %v2550 = vpop.f32.mrf.mxu0
  %v2551 = vadd.f32 %v2538, %v2550
  %v2552 = vpop.f32.mrf.mxu0
  %2553 = vdwg.mxu0
  %2554 = vmatpush.bf16.msra.mxu0 %v1507
  %2555 = vmatpush.bf16.msra.mxu0 %v1506
  %2556 = vmatpush.bf16.msra.mxu0 %v1505
  %2557 = vmatpush.bf16.msra.mxu0 %v1504
  %2558 = vmatpush.bf16.msra.mxu0 %v1503
  %2559 = vmatpush.bf16.msra.mxu0 %v1502
  %2560 = vmatpush.bf16.msra.mxu0 %v1501
  %2561 = vmatpush.bf16.msra.mxu0 %v1500
  %2562 = vmatmul.bf16.gmra.mxu0 %v2370
  %v2563 = vpop.f32.mrf.mxu0
  %v2564 = vadd.f32 %v2551, %v2563
  %v2565 = vpop.f32.mrf.mxu0
  %2566 = vdwg.mxu0
  %2567 = vmatpush.bf16.msra.mxu0 %v1515
  %2568 = vmatpush.bf16.msra.mxu0 %v1514
  %2569 = vmatpush.bf16.msra.mxu0 %v1513
  %2570 = vmatpush.bf16.msra.mxu0 %v1512
  %2571 = vmatpush.bf16.msra.mxu0 %v1511
  %2572 = vmatpush.bf16.msra.mxu0 %v1510
  %2573 = vmatpush.bf16.msra.mxu0 %v1509
  %2574 = vmatpush.bf16.msra.mxu0 %v1508
  %2575 = vmatmul.bf16.gmra.mxu0 %v2371
  %v2576 = vpop.f32.mrf.mxu0
  %v2577 = vadd.f32 %v2564, %v2576
  %v2578 = vpop.f32.mrf.mxu0
  %2579 = vdwg.mxu0
  %v2580 = vmax.f32 %v2577, 0.0
  %s2581 = scalar_lea.vmem [#allocation4], 12
  %2582 = vst [vmem:[%s2581] sm:$0xf] %v2580
  %v2583 = vld [vmem:[#allocation2 + $0x32] sm:$0xf]
  %v2584 = vld [vmem:[#allocation3 + $0x32] sm:$0xf]
  %v2585 = vld [vmem:[#allocation2 + $0x33] sm:$0xf]
  %v2586 = vld [vmem:[#allocation3 + $0x33] sm:$0xf]
  %v2587 = vld [vmem:[#allocation2 + $0x37] sm:$0xf]
  %v2588 = vld [vmem:[#allocation3 + $0x37] sm:$0xf]
  %v2589 = vld [vmem:[#allocation2 + $0x38] sm:$0xf]
  %v2590 = vld [vmem:[#allocation3 + $0x38] sm:$0xf]
  %v2591 = vld [vmem:[#allocation2 + $0x3c] sm:$0xf]
  %v2592 = vld [vmem:[#allocation3 + $0x3c] sm:$0xf]
  %v2593 = vld [vmem:[#allocation2 + $0x3d] sm:$0xf]
  %v2594 = vld [vmem:[#allocation3 + $0x3d] sm:$0xf]
  %v2595 = vld [vmem:[#allocation2 + $0x41] sm:$0xf]
  %v2596 = vld [vmem:[#allocation3 + $0x41] sm:$0xf]
  %v2597 = vld [vmem:[#allocation2 + $0x42] sm:$0xf]
  %v2598 = vld [vmem:[#allocation3 + $0x42] sm:$0xf]
  %v2599 = vpack.c.bf16 %v2583, %v2583
  %v2600 = vpack.c.bf16 %v2584, %v2584
  %v2601 = vpack.c.bf16 %v2585, %v2585
  %v2602 = vpack.c.bf16 %v2586, %v2586
  %v2603 = vpack.c.bf16 %v2587, %v2587
  %v2604 = vpack.c.bf16 %v2588, %v2588
  %v2605 = vpack.c.bf16 %v2589, %v2589
  %v2606 = vpack.c.bf16 %v2590, %v2590
  %v2607 = vpack.c.bf16 %v2591, %v2591
  %v2608 = vpack.c.bf16 %v2592, %v2592
  %v2609 = vpack.c.bf16 %v2593, %v2593
  %v2610 = vpack.c.bf16 %v2594, %v2594
  %v2611 = vpack.c.bf16 %v2595, %v2595
  %v2612 = vpack.c.bf16 %v2596, %v2596
  %v2613 = vpack.c.bf16 %v2597, %v2597
  %v2614 = vpack.c.bf16 %v2598, %v2598
  %2615 = vmatpush.bf16.msra.mxu0 %v1395
  %2616 = vmatpush.bf16.msra.mxu0 %v1394
  %2617 = vmatpush.bf16.msra.mxu0 %v1393
  %2618 = vmatpush.bf16.msra.mxu0 %v1392
  %2619 = vmatpush.bf16.msra.mxu0 %v1391
  %2620 = vmatpush.bf16.msra.mxu0 %v1390
  %2621 = vmatpush.bf16.msra.mxu0 %v1389
  %2622 = vmatpush.bf16.msra.mxu0 %v1388
  %2623 = vmatmul.bf16.gmra.mxu0 %v2599
  %v2624 = vpop.f32.mrf.mxu0
  %v2625 = vadd.f32 %v874, %v2624
  %v2626 = vpop.f32.mrf.mxu0
  %2627 = vdwg.mxu0
  %2628 = vmatpush.bf16.msra.mxu0 %v1403
  %2629 = vmatpush.bf16.msra.mxu0 %v1402
  %2630 = vmatpush.bf16.msra.mxu0 %v1401
  %2631 = vmatpush.bf16.msra.mxu0 %v1400
  %2632 = vmatpush.bf16.msra.mxu0 %v1399
  %2633 = vmatpush.bf16.msra.mxu0 %v1398
  %2634 = vmatpush.bf16.msra.mxu0 %v1397
  %2635 = vmatpush.bf16.msra.mxu0 %v1396
  %2636 = vmatmul.bf16.gmra.mxu0 %v2600
  %v2637 = vpop.f32.mrf.mxu0
  %v2638 = vadd.f32 %v2625, %v2637
  %v2639 = vpop.f32.mrf.mxu0
  %2640 = vdwg.mxu0
  %2641 = vmatpush.bf16.msra.mxu0 %v1411
  %2642 = vmatpush.bf16.msra.mxu0 %v1410
  %2643 = vmatpush.bf16.msra.mxu0 %v1409
  %2644 = vmatpush.bf16.msra.mxu0 %v1408
  %2645 = vmatpush.bf16.msra.mxu0 %v1407
  %2646 = vmatpush.bf16.msra.mxu0 %v1406
  %2647 = vmatpush.bf16.msra.mxu0 %v1405
  %2648 = vmatpush.bf16.msra.mxu0 %v1404
  %2649 = vmatmul.bf16.gmra.mxu0 %v2601
  %v2650 = vpop.f32.mrf.mxu0
  %v2651 = vadd.f32 %v2638, %v2650
  %v2652 = vpop.f32.mrf.mxu0
  %2653 = vdwg.mxu0
  %2654 = vmatpush.bf16.msra.mxu0 %v1419
  %2655 = vmatpush.bf16.msra.mxu0 %v1418
  %2656 = vmatpush.bf16.msra.mxu0 %v1417
  %2657 = vmatpush.bf16.msra.mxu0 %v1416
  %2658 = vmatpush.bf16.msra.mxu0 %v1415
  %2659 = vmatpush.bf16.msra.mxu0 %v1414
  %2660 = vmatpush.bf16.msra.mxu0 %v1413
  %2661 = vmatpush.bf16.msra.mxu0 %v1412
  %2662 = vmatmul.bf16.gmra.mxu0 %v2602
  %v2663 = vpop.f32.mrf.mxu0
  %v2664 = vadd.f32 %v2651, %v2663
  %v2665 = vpop.f32.mrf.mxu0
  %2666 = vdwg.mxu0
  %2667 = vmatpush.bf16.msra.mxu0 %v1427
  %2668 = vmatpush.bf16.msra.mxu0 %v1426
  %2669 = vmatpush.bf16.msra.mxu0 %v1425
  %2670 = vmatpush.bf16.msra.mxu0 %v1424
  %2671 = vmatpush.bf16.msra.mxu0 %v1423
  %2672 = vmatpush.bf16.msra.mxu0 %v1422
  %2673 = vmatpush.bf16.msra.mxu0 %v1421
  %2674 = vmatpush.bf16.msra.mxu0 %v1420
  %2675 = vmatmul.bf16.gmra.mxu0 %v2603
  %v2676 = vpop.f32.mrf.mxu0
  %v2677 = vadd.f32 %v2664, %v2676
  %v2678 = vpop.f32.mrf.mxu0
  %2679 = vdwg.mxu0
  %2680 = vmatpush.bf16.msra.mxu0 %v1435
  %2681 = vmatpush.bf16.msra.mxu0 %v1434
  %2682 = vmatpush.bf16.msra.mxu0 %v1433
  %2683 = vmatpush.bf16.msra.mxu0 %v1432
  %2684 = vmatpush.bf16.msra.mxu0 %v1431
  %2685 = vmatpush.bf16.msra.mxu0 %v1430
  %2686 = vmatpush.bf16.msra.mxu0 %v1429
  %2687 = vmatpush.bf16.msra.mxu0 %v1428
  %2688 = vmatmul.bf16.gmra.mxu0 %v2604
  %v2689 = vpop.f32.mrf.mxu0
  %v2690 = vadd.f32 %v2677, %v2689
  %v2691 = vpop.f32.mrf.mxu0
  %2692 = vdwg.mxu0
  %2693 = vmatpush.bf16.msra.mxu0 %v1443
  %2694 = vmatpush.bf16.msra.mxu0 %v1442
  %2695 = vmatpush.bf16.msra.mxu0 %v1441
  %2696 = vmatpush.bf16.msra.mxu0 %v1440
  %2697 = vmatpush.bf16.msra.mxu0 %v1439
  %2698 = vmatpush.bf16.msra.mxu0 %v1438
  %2699 = vmatpush.bf16.msra.mxu0 %v1437
  %2700 = vmatpush.bf16.msra.mxu0 %v1436
  %2701 = vmatmul.bf16.gmra.mxu0 %v2605
  %v2702 = vpop.f32.mrf.mxu0
  %v2703 = vadd.f32 %v2690, %v2702
  %v2704 = vpop.f32.mrf.mxu0
  %2705 = vdwg.mxu0
  %2706 = vmatpush.bf16.msra.mxu0 %v1451
  %2707 = vmatpush.bf16.msra.mxu0 %v1450
  %2708 = vmatpush.bf16.msra.mxu0 %v1449
  %2709 = vmatpush.bf16.msra.mxu0 %v1448
  %2710 = vmatpush.bf16.msra.mxu0 %v1447
  %2711 = vmatpush.bf16.msra.mxu0 %v1446
  %2712 = vmatpush.bf16.msra.mxu0 %v1445
  %2713 = vmatpush.bf16.msra.mxu0 %v1444
  %2714 = vmatmul.bf16.gmra.mxu0 %v2606
  %v2715 = vpop.f32.mrf.mxu0
  %v2716 = vadd.f32 %v2703, %v2715
  %v2717 = vpop.f32.mrf.mxu0
  %2718 = vdwg.mxu0
  %2719 = vmatpush.bf16.msra.mxu0 %v1459
  %2720 = vmatpush.bf16.msra.mxu0 %v1458
  %2721 = vmatpush.bf16.msra.mxu0 %v1457
  %2722 = vmatpush.bf16.msra.mxu0 %v1456
  %2723 = vmatpush.bf16.msra.mxu0 %v1455
  %2724 = vmatpush.bf16.msra.mxu0 %v1454
  %2725 = vmatpush.bf16.msra.mxu0 %v1453
  %2726 = vmatpush.bf16.msra.mxu0 %v1452
  %2727 = vmatmul.bf16.gmra.mxu0 %v2607
  %v2728 = vpop.f32.mrf.mxu0
  %v2729 = vadd.f32 %v2716, %v2728
  %v2730 = vpop.f32.mrf.mxu0
  %2731 = vdwg.mxu0
  %2732 = vmatpush.bf16.msra.mxu0 %v1467
  %2733 = vmatpush.bf16.msra.mxu0 %v1466
  %2734 = vmatpush.bf16.msra.mxu0 %v1465
  %2735 = vmatpush.bf16.msra.mxu0 %v1464
  %2736 = vmatpush.bf16.msra.mxu0 %v1463
  %2737 = vmatpush.bf16.msra.mxu0 %v1462
  %2738 = vmatpush.bf16.msra.mxu0 %v1461
  %2739 = vmatpush.bf16.msra.mxu0 %v1460
  %2740 = vmatmul.bf16.gmra.mxu0 %v2608
  %v2741 = vpop.f32.mrf.mxu0
  %v2742 = vadd.f32 %v2729, %v2741
  %v2743 = vpop.f32.mrf.mxu0
  %2744 = vdwg.mxu0
  %2745 = vmatpush.bf16.msra.mxu0 %v1475
  %2746 = vmatpush.bf16.msra.mxu0 %v1474
  %2747 = vmatpush.bf16.msra.mxu0 %v1473
  %2748 = vmatpush.bf16.msra.mxu0 %v1472
  %2749 = vmatpush.bf16.msra.mxu0 %v1471
  %2750 = vmatpush.bf16.msra.mxu0 %v1470
  %2751 = vmatpush.bf16.msra.mxu0 %v1469
  %2752 = vmatpush.bf16.msra.mxu0 %v1468
  %2753 = vmatmul.bf16.gmra.mxu0 %v2609
  %v2754 = vpop.f32.mrf.mxu0
  %v2755 = vadd.f32 %v2742, %v2754
  %v2756 = vpop.f32.mrf.mxu0
  %2757 = vdwg.mxu0
  %2758 = vmatpush.bf16.msra.mxu0 %v1483
  %2759 = vmatpush.bf16.msra.mxu0 %v1482
  %2760 = vmatpush.bf16.msra.mxu0 %v1481
  %2761 = vmatpush.bf16.msra.mxu0 %v1480
  %2762 = vmatpush.bf16.msra.mxu0 %v1479
  %2763 = vmatpush.bf16.msra.mxu0 %v1478
  %2764 = vmatpush.bf16.msra.mxu0 %v1477
  %2765 = vmatpush.bf16.msra.mxu0 %v1476
  %2766 = vmatmul.bf16.gmra.mxu0 %v2610
  %v2767 = vpop.f32.mrf.mxu0
  %v2768 = vadd.f32 %v2755, %v2767
  %v2769 = vpop.f32.mrf.mxu0
  %2770 = vdwg.mxu0
  %2771 = vmatpush.bf16.msra.mxu0 %v1491
  %2772 = vmatpush.bf16.msra.mxu0 %v1490
  %2773 = vmatpush.bf16.msra.mxu0 %v1489
  %2774 = vmatpush.bf16.msra.mxu0 %v1488
  %2775 = vmatpush.bf16.msra.mxu0 %v1487
  %2776 = vmatpush.bf16.msra.mxu0 %v1486
  %2777 = vmatpush.bf16.msra.mxu0 %v1485
  %2778 = vmatpush.bf16.msra.mxu0 %v1484
  %2779 = vmatmul.bf16.gmra.mxu0 %v2611
  %v2780 = vpop.f32.mrf.mxu0
  %v2781 = vadd.f32 %v2768, %v2780
  %v2782 = vpop.f32.mrf.mxu0
  %2783 = vdwg.mxu0
  %2784 = vmatpush.bf16.msra.mxu0 %v1499
  %2785 = vmatpush.bf16.msra.mxu0 %v1498
  %2786 = vmatpush.bf16.msra.mxu0 %v1497
  %2787 = vmatpush.bf16.msra.mxu0 %v1496
  %2788 = vmatpush.bf16.msra.mxu0 %v1495
  %2789 = vmatpush.bf16.msra.mxu0 %v1494
  %2790 = vmatpush.bf16.msra.mxu0 %v1493
  %2791 = vmatpush.bf16.msra.mxu0 %v1492
  %2792 = vmatmul.bf16.gmra.mxu0 %v2612
  %v2793 = vpop.f32.mrf.mxu0
  %v2794 = vadd.f32 %v2781, %v2793
  %v2795 = vpop.f32.mrf.mxu0
  %2796 = vdwg.mxu0
  %2797 = vmatpush.bf16.msra.mxu0 %v1507
  %2798 = vmatpush.bf16.msra.mxu0 %v1506
  %2799 = vmatpush.bf16.msra.mxu0 %v1505
  %2800 = vmatpush.bf16.msra.mxu0 %v1504
  %2801 = vmatpush.bf16.msra.mxu0 %v1503
  %2802 = vmatpush.bf16.msra.mxu0 %v1502
  %2803 = vmatpush.bf16.msra.mxu0 %v1501
  %2804 = vmatpush.bf16.msra.mxu0 %v1500
  %2805 = vmatmul.bf16.gmra.mxu0 %v2613
  %v2806 = vpop.f32.mrf.mxu0
  %v2807 = vadd.f32 %v2794, %v2806
  %v2808 = vpop.f32.mrf.mxu0
  %2809 = vdwg.mxu0
  %2810 = vmatpush.bf16.msra.mxu0 %v1515
  %2811 = vmatpush.bf16.msra.mxu0 %v1514
  %2812 = vmatpush.bf16.msra.mxu0 %v1513
  %2813 = vmatpush.bf16.msra.mxu0 %v1512
  %2814 = vmatpush.bf16.msra.mxu0 %v1511
  %2815 = vmatpush.bf16.msra.mxu0 %v1510
  %2816 = vmatpush.bf16.msra.mxu0 %v1509
  %2817 = vmatpush.bf16.msra.mxu0 %v1508
  %2818 = vmatmul.bf16.gmra.mxu0 %v2614
  %v2819 = vpop.f32.mrf.mxu0
  %v2820 = vadd.f32 %v2807, %v2819
  %v2821 = vpop.f32.mrf.mxu0
  %2822 = vdwg.mxu0
  %v2823 = vmax.f32 %v2820, 0.0
  %s2824 = scalar_lea.vmem [#allocation4], 16
  %2825 = vst [vmem:[%s2824] sm:$0xf] %v2823
  %v2826 = vld [vmem:[#allocation2 + $0x3c] sm:$0xf]
  %v2827 = vld [vmem:[#allocation3 + $0x3c] sm:$0xf]
  %v2828 = vld [vmem:[#allocation2 + $0x3d] sm:$0xf]
  %v2829 = vld [vmem:[#allocation3 + $0x3d] sm:$0xf]
  %v2830 = vld [vmem:[#allocation2 + $0x41] sm:$0xf]
  %v2831 = vld [vmem:[#allocation3 + $0x41] sm:$0xf]
  %v2832 = vld [vmem:[#allocation2 + $0x42] sm:$0xf]
  %v2833 = vld [vmem:[#allocation3 + $0x42] sm:$0xf]
  %v2834 = vld [vmem:[#allocation2 + $0x46] sm:$0xf]
  %v2835 = vld [vmem:[#allocation3 + $0x46] sm:$0xf]
  %v2836 = vld [vmem:[#allocation2 + $0x47] sm:$0xf]
  %v2837 = vld [vmem:[#allocation3 + $0x47] sm:$0xf]
  %v2838 = vld [vmem:[#allocation2 + $0x4b] sm:$0xf]
  %v2839 = vld [vmem:[#allocation3 + $0x4b] sm:$0xf]
  %v2840 = vld [vmem:[#allocation2 + $0x4c] sm:$0xf]
  %v2841 = vld [vmem:[#allocation3 + $0x4c] sm:$0xf]
  %v2842 = vpack.c.bf16 %v2826, %v2826
  %v2843 = vpack.c.bf16 %v2827, %v2827
  %v2844 = vpack.c.bf16 %v2828, %v2828
  %v2845 = vpack.c.bf16 %v2829, %v2829
  %v2846 = vpack.c.bf16 %v2830, %v2830
  %v2847 = vpack.c.bf16 %v2831, %v2831
  %v2848 = vpack.c.bf16 %v2832, %v2832
  %v2849 = vpack.c.bf16 %v2833, %v2833
  %v2850 = vpack.c.bf16 %v2834, %v2834
  %v2851 = vpack.c.bf16 %v2835, %v2835
  %v2852 = vpack.c.bf16 %v2836, %v2836
  %v2853 = vpack.c.bf16 %v2837, %v2837
  %v2854 = vpack.c.bf16 %v2838, %v2838
  %v2855 = vpack.c.bf16 %v2839, %v2839
  %v2856 = vpack.c.bf16 %v2840, %v2840
  %v2857 = vpack.c.bf16 %v2841, %v2841
  %2858 = vmatpush.bf16.msra.mxu0 %v1395
  %2859 = vmatpush.bf16.msra.mxu0 %v1394
  %2860 = vmatpush.bf16.msra.mxu0 %v1393
  %2861 = vmatpush.bf16.msra.mxu0 %v1392
  %2862 = vmatpush.bf16.msra.mxu0 %v1391
  %2863 = vmatpush.bf16.msra.mxu0 %v1390
  %2864 = vmatpush.bf16.msra.mxu0 %v1389
  %2865 = vmatpush.bf16.msra.mxu0 %v1388
  %2866 = vmatmul.bf16.gmra.mxu0 %v2842
  %v2867 = vpop.f32.mrf.mxu0
  %v2868 = vadd.f32 %v874, %v2867
  %v2869 = vpop.f32.mrf.mxu0
  %2870 = vdwg.mxu0
  %2871 = vmatpush.bf16.msra.mxu0 %v1403
  %2872 = vmatpush.bf16.msra.mxu0 %v1402
  %2873 = vmatpush.bf16.msra.mxu0 %v1401
  %2874 = vmatpush.bf16.msra.mxu0 %v1400
  %2875 = vmatpush.bf16.msra.mxu0 %v1399
  %2876 = vmatpush.bf16.msra.mxu0 %v1398
  %2877 = vmatpush.bf16.msra.mxu0 %v1397
  %2878 = vmatpush.bf16.msra.mxu0 %v1396
  %2879 = vmatmul.bf16.gmra.mxu0 %v2843
  %v2880 = vpop.f32.mrf.mxu0
  %v2881 = vadd.f32 %v2868, %v2880
  %v2882 = vpop.f32.mrf.mxu0
  %2883 = vdwg.mxu0
  %2884 = vmatpush.bf16.msra.mxu0 %v1411
  %2885 = vmatpush.bf16.msra.mxu0 %v1410
  %2886 = vmatpush.bf16.msra.mxu0 %v1409
  %2887 = vmatpush.bf16.msra.mxu0 %v1408
  %2888 = vmatpush.bf16.msra.mxu0 %v1407
  %2889 = vmatpush.bf16.msra.mxu0 %v1406
  %2890 = vmatpush.bf16.msra.mxu0 %v1405
  %2891 = vmatpush.bf16.msra.mxu0 %v1404
  %2892 = vmatmul.bf16.gmra.mxu0 %v2844
  %v2893 = vpop.f32.mrf.mxu0
  %v2894 = vadd.f32 %v2881, %v2893
  %v2895 = vpop.f32.mrf.mxu0
  %2896 = vdwg.mxu0
  %2897 = vmatpush.bf16.msra.mxu0 %v1419
  %2898 = vmatpush.bf16.msra.mxu0 %v1418
  %2899 = vmatpush.bf16.msra.mxu0 %v1417
  %2900 = vmatpush.bf16.msra.mxu0 %v1416
  %2901 = vmatpush.bf16.msra.mxu0 %v1415
  %2902 = vmatpush.bf16.msra.mxu0 %v1414
  %2903 = vmatpush.bf16.msra.mxu0 %v1413
  %2904 = vmatpush.bf16.msra.mxu0 %v1412
  %2905 = vmatmul.bf16.gmra.mxu0 %v2845
  %v2906 = vpop.f32.mrf.mxu0
  %v2907 = vadd.f32 %v2894, %v2906
  %v2908 = vpop.f32.mrf.mxu0
  %2909 = vdwg.mxu0
  %2910 = vmatpush.bf16.msra.mxu0 %v1427
  %2911 = vmatpush.bf16.msra.mxu0 %v1426
  %2912 = vmatpush.bf16.msra.mxu0 %v1425
  %2913 = vmatpush.bf16.msra.mxu0 %v1424
  %2914 = vmatpush.bf16.msra.mxu0 %v1423
  %2915 = vmatpush.bf16.msra.mxu0 %v1422
  %2916 = vmatpush.bf16.msra.mxu0 %v1421
  %2917 = vmatpush.bf16.msra.mxu0 %v1420
  %2918 = vmatmul.bf16.gmra.mxu0 %v2846
  %v2919 = vpop.f32.mrf.mxu0
  %v2920 = vadd.f32 %v2907, %v2919
  %v2921 = vpop.f32.mrf.mxu0
  %2922 = vdwg.mxu0
  %2923 = vmatpush.bf16.msra.mxu0 %v1435
  %2924 = vmatpush.bf16.msra.mxu0 %v1434
  %2925 = vmatpush.bf16.msra.mxu0 %v1433
  %2926 = vmatpush.bf16.msra.mxu0 %v1432
  %2927 = vmatpush.bf16.msra.mxu0 %v1431
  %2928 = vmatpush.bf16.msra.mxu0 %v1430
  %2929 = vmatpush.bf16.msra.mxu0 %v1429
  %2930 = vmatpush.bf16.msra.mxu0 %v1428
  %2931 = vmatmul.bf16.gmra.mxu0 %v2847
  %v2932 = vpop.f32.mrf.mxu0
  %v2933 = vadd.f32 %v2920, %v2932
  %v2934 = vpop.f32.mrf.mxu0
  %2935 = vdwg.mxu0
  %2936 = vmatpush.bf16.msra.mxu0 %v1443
  %2937 = vmatpush.bf16.msra.mxu0 %v1442
  %2938 = vmatpush.bf16.msra.mxu0 %v1441
  %2939 = vmatpush.bf16.msra.mxu0 %v1440
  %2940 = vmatpush.bf16.msra.mxu0 %v1439
  %2941 = vmatpush.bf16.msra.mxu0 %v1438
  %2942 = vmatpush.bf16.msra.mxu0 %v1437
  %2943 = vmatpush.bf16.msra.mxu0 %v1436
  %2944 = vmatmul.bf16.gmra.mxu0 %v2848
  %v2945 = vpop.f32.mrf.mxu0
  %v2946 = vadd.f32 %v2933, %v2945
  %v2947 = vpop.f32.mrf.mxu0
  %2948 = vdwg.mxu0
  %2949 = vmatpush.bf16.msra.mxu0 %v1451
  %2950 = vmatpush.bf16.msra.mxu0 %v1450
  %2951 = vmatpush.bf16.msra.mxu0 %v1449
  %2952 = vmatpush.bf16.msra.mxu0 %v1448
  %2953 = vmatpush.bf16.msra.mxu0 %v1447
  %2954 = vmatpush.bf16.msra.mxu0 %v1446
  %2955 = vmatpush.bf16.msra.mxu0 %v1445
  %2956 = vmatpush.bf16.msra.mxu0 %v1444
  %2957 = vmatmul.bf16.gmra.mxu0 %v2849
  %v2958 = vpop.f32.mrf.mxu0
  %v2959 = vadd.f32 %v2946, %v2958
  %v2960 = vpop.f32.mrf.mxu0
  %2961 = vdwg.mxu0
  %2962 = vmatpush.bf16.msra.mxu0 %v1459
  %2963 = vmatpush.bf16.msra.mxu0 %v1458
  %2964 = vmatpush.bf16.msra.mxu0 %v1457
  %2965 = vmatpush.bf16.msra.mxu0 %v1456
  %2966 = vmatpush.bf16.msra.mxu0 %v1455
  %2967 = vmatpush.bf16.msra.mxu0 %v1454
  %2968 = vmatpush.bf16.msra.mxu0 %v1453
  %2969 = vmatpush.bf16.msra.mxu0 %v1452
  %2970 = vmatmul.bf16.gmra.mxu0 %v2850
  %v2971 = vpop.f32.mrf.mxu0
  %v2972 = vadd.f32 %v2959, %v2971
  %v2973 = vpop.f32.mrf.mxu0
  %2974 = vdwg.mxu0
  %2975 = vmatpush.bf16.msra.mxu0 %v1467
  %2976 = vmatpush.bf16.msra.mxu0 %v1466
  %2977 = vmatpush.bf16.msra.mxu0 %v1465
  %2978 = vmatpush.bf16.msra.mxu0 %v1464
  %2979 = vmatpush.bf16.msra.mxu0 %v1463
  %2980 = vmatpush.bf16.msra.mxu0 %v1462
  %2981 = vmatpush.bf16.msra.mxu0 %v1461
  %2982 = vmatpush.bf16.msra.mxu0 %v1460
  %2983 = vmatmul.bf16.gmra.mxu0 %v2851
  %v2984 = vpop.f32.mrf.mxu0
  %v2985 = vadd.f32 %v2972, %v2984
  %v2986 = vpop.f32.mrf.mxu0
  %2987 = vdwg.mxu0
  %2988 = vmatpush.bf16.msra.mxu0 %v1475
  %2989 = vmatpush.bf16.msra.mxu0 %v1474
  %2990 = vmatpush.bf16.msra.mxu0 %v1473
  %2991 = vmatpush.bf16.msra.mxu0 %v1472
  %2992 = vmatpush.bf16.msra.mxu0 %v1471
  %2993 = vmatpush.bf16.msra.mxu0 %v1470
  %2994 = vmatpush.bf16.msra.mxu0 %v1469
  %2995 = vmatpush.bf16.msra.mxu0 %v1468
  %2996 = vmatmul.bf16.gmra.mxu0 %v2852
  %v2997 = vpop.f32.mrf.mxu0
  %v2998 = vadd.f32 %v2985, %v2997
  %v2999 = vpop.f32.mrf.mxu0
  %3000 = vdwg.mxu0
  %3001 = vmatpush.bf16.msra.mxu0 %v1483
  %3002 = vmatpush.bf16.msra.mxu0 %v1482
  %3003 = vmatpush.bf16.msra.mxu0 %v1481
  %3004 = vmatpush.bf16.msra.mxu0 %v1480
  %3005 = vmatpush.bf16.msra.mxu0 %v1479
  %3006 = vmatpush.bf16.msra.mxu0 %v1478
  %3007 = vmatpush.bf16.msra.mxu0 %v1477
  %3008 = vmatpush.bf16.msra.mxu0 %v1476
  %3009 = vmatmul.bf16.gmra.mxu0 %v2853
  %v3010 = vpop.f32.mrf.mxu0
  %v3011 = vadd.f32 %v2998, %v3010
  %v3012 = vpop.f32.mrf.mxu0
  %3013 = vdwg.mxu0
  %3014 = vmatpush.bf16.msra.mxu0 %v1491
  %3015 = vmatpush.bf16.msra.mxu0 %v1490
  %3016 = vmatpush.bf16.msra.mxu0 %v1489
  %3017 = vmatpush.bf16.msra.mxu0 %v1488
  %3018 = vmatpush.bf16.msra.mxu0 %v1487
  %3019 = vmatpush.bf16.msra.mxu0 %v1486
  %3020 = vmatpush.bf16.msra.mxu0 %v1485
  %3021 = vmatpush.bf16.msra.mxu0 %v1484
  %3022 = vmatmul.bf16.gmra.mxu0 %v2854
  %v3023 = vpop.f32.mrf.mxu0
  %v3024 = vadd.f32 %v3011, %v3023
  %v3025 = vpop.f32.mrf.mxu0
  %3026 = vdwg.mxu0
  %3027 = vmatpush.bf16.msra.mxu0 %v1499
  %3028 = vmatpush.bf16.msra.mxu0 %v1498
  %3029 = vmatpush.bf16.msra.mxu0 %v1497
  %3030 = vmatpush.bf16.msra.mxu0 %v1496
  %3031 = vmatpush.bf16.msra.mxu0 %v1495
  %3032 = vmatpush.bf16.msra.mxu0 %v1494
  %3033 = vmatpush.bf16.msra.mxu0 %v1493
  %3034 = vmatpush.bf16.msra.mxu0 %v1492
  %3035 = vmatmul.bf16.gmra.mxu0 %v2855
  %v3036 = vpop.f32.mrf.mxu0
  %v3037 = vadd.f32 %v3024, %v3036
  %v3038 = vpop.f32.mrf.mxu0
  %3039 = vdwg.mxu0
  %3040 = vmatpush.bf16.msra.mxu0 %v1507
  %3041 = vmatpush.bf16.msra.mxu0 %v1506
  %3042 = vmatpush.bf16.msra.mxu0 %v1505
  %3043 = vmatpush.bf16.msra.mxu0 %v1504
  %3044 = vmatpush.bf16.msra.mxu0 %v1503
  %3045 = vmatpush.bf16.msra.mxu0 %v1502
  %3046 = vmatpush.bf16.msra.mxu0 %v1501
  %3047 = vmatpush.bf16.msra.mxu0 %v1500
  %3048 = vmatmul.bf16.gmra.mxu0 %v2856
  %v3049 = vpop.f32.mrf.mxu0
  %v3050 = vadd.f32 %v3037, %v3049
  %v3051 = vpop.f32.mrf.mxu0
  %3052 = vdwg.mxu0
  %3053 = vmatpush.bf16.msra.mxu0 %v1515
  %3054 = vmatpush.bf16.msra.mxu0 %v1514
  %3055 = vmatpush.bf16.msra.mxu0 %v1513
  %3056 = vmatpush.bf16.msra.mxu0 %v1512
  %3057 = vmatpush.bf16.msra.mxu0 %v1511
  %3058 = vmatpush.bf16.msra.mxu0 %v1510
  %3059 = vmatpush.bf16.msra.mxu0 %v1509
  %3060 = vmatpush.bf16.msra.mxu0 %v1508
  %3061 = vmatmul.bf16.gmra.mxu0 %v2857
  %v3062 = vpop.f32.mrf.mxu0
  %v3063 = vadd.f32 %v3050, %v3062
  %v3064 = vpop.f32.mrf.mxu0
  %3065 = vdwg.mxu0
  %v3066 = vmax.f32 %v3063, 0.0
  %s3067 = scalar_lea.vmem [#allocation4], 20
  %3068 = vst [vmem:[%s3067] sm:$0xf] %v3066
  %v3069 = vld [vmem:[#allocation2 + $0x46] sm:$0xf]
  %v3070 = vld [vmem:[#allocation3 + $0x46] sm:$0xf]
  %v3071 = vld [vmem:[#allocation2 + $0x47] sm:$0xf]
  %v3072 = vld [vmem:[#allocation3 + $0x47] sm:$0xf]
  %v3073 = vld [vmem:[#allocation2 + $0x4b] sm:$0xf]
  %v3074 = vld [vmem:[#allocation3 + $0x4b] sm:$0xf]
  %v3075 = vld [vmem:[#allocation2 + $0x4c] sm:$0xf]
  %v3076 = vld [vmem:[#allocation3 + $0x4c] sm:$0xf]
  %v3077 = vld [vmem:[#allocation2 + $0x50] sm:$0xf]
  %v3078 = vld [vmem:[#allocation3 + $0x50] sm:$0xf]
  %v3079 = vld [vmem:[#allocation2 + $0x51] sm:$0xf]
  %v3080 = vld [vmem:[#allocation3 + $0x51] sm:$0xf]
  %v3081 = vld [vmem:[#allocation2 + $0x55] sm:$0xf]
  %v3082 = vld [vmem:[#allocation3 + $0x55] sm:$0xf]
  %v3083 = vld [vmem:[#allocation2 + $0x56] sm:$0xf]
  %v3084 = vld [vmem:[#allocation3 + $0x56] sm:$0xf]
  %v3085 = vpack.c.bf16 %v3069, %v3069
  %v3086 = vpack.c.bf16 %v3070, %v3070
  %v3087 = vpack.c.bf16 %v3071, %v3071
  %v3088 = vpack.c.bf16 %v3072, %v3072
  %v3089 = vpack.c.bf16 %v3073, %v3073
  %v3090 = vpack.c.bf16 %v3074, %v3074
  %v3091 = vpack.c.bf16 %v3075, %v3075
  %v3092 = vpack.c.bf16 %v3076, %v3076
  %v3093 = vpack.c.bf16 %v3077, %v3077
  %v3094 = vpack.c.bf16 %v3078, %v3078
  %v3095 = vpack.c.bf16 %v3079, %v3079
  %v3096 = vpack.c.bf16 %v3080, %v3080
  %v3097 = vpack.c.bf16 %v3081, %v3081
  %v3098 = vpack.c.bf16 %v3082, %v3082
  %v3099 = vpack.c.bf16 %v3083, %v3083
  %v3100 = vpack.c.bf16 %v3084, %v3084
  %3101 = vmatpush.bf16.msra.mxu0 %v1395
  %3102 = vmatpush.bf16.msra.mxu0 %v1394
  %3103 = vmatpush.bf16.msra.mxu0 %v1393
  %3104 = vmatpush.bf16.msra.mxu0 %v1392
  %3105 = vmatpush.bf16.msra.mxu0 %v1391
  %3106 = vmatpush.bf16.msra.mxu0 %v1390
  %3107 = vmatpush.bf16.msra.mxu0 %v1389
  %3108 = vmatpush.bf16.msra.mxu0 %v1388
  %3109 = vmatmul.bf16.gmra.mxu0 %v3085
  %v3110 = vpop.f32.mrf.mxu0
  %v3111 = vadd.f32 %v874, %v3110
  %v3112 = vpop.f32.mrf.mxu0
  %3113 = vdwg.mxu0
  %3114 = vmatpush.bf16.msra.mxu0 %v1403
  %3115 = vmatpush.bf16.msra.mxu0 %v1402
  %3116 = vmatpush.bf16.msra.mxu0 %v1401
  %3117 = vmatpush.bf16.msra.mxu0 %v1400
  %3118 = vmatpush.bf16.msra.mxu0 %v1399
  %3119 = vmatpush.bf16.msra.mxu0 %v1398
  %3120 = vmatpush.bf16.msra.mxu0 %v1397
  %3121 = vmatpush.bf16.msra.mxu0 %v1396
  %3122 = vmatmul.bf16.gmra.mxu0 %v3086
  %v3123 = vpop.f32.mrf.mxu0
  %v3124 = vadd.f32 %v3111, %v3123
  %v3125 = vpop.f32.mrf.mxu0
  %3126 = vdwg.mxu0
  %3127 = vmatpush.bf16.msra.mxu0 %v1411
  %3128 = vmatpush.bf16.msra.mxu0 %v1410
  %3129 = vmatpush.bf16.msra.mxu0 %v1409
  %3130 = vmatpush.bf16.msra.mxu0 %v1408
  %3131 = vmatpush.bf16.msra.mxu0 %v1407
  %3132 = vmatpush.bf16.msra.mxu0 %v1406
  %3133 = vmatpush.bf16.msra.mxu0 %v1405
  %3134 = vmatpush.bf16.msra.mxu0 %v1404
  %3135 = vmatmul.bf16.gmra.mxu0 %v3087
  %v3136 = vpop.f32.mrf.mxu0
  %v3137 = vadd.f32 %v3124, %v3136
  %v3138 = vpop.f32.mrf.mxu0
  %3139 = vdwg.mxu0
  %3140 = vmatpush.bf16.msra.mxu0 %v1419
  %3141 = vmatpush.bf16.msra.mxu0 %v1418
  %3142 = vmatpush.bf16.msra.mxu0 %v1417
  %3143 = vmatpush.bf16.msra.mxu0 %v1416
  %3144 = vmatpush.bf16.msra.mxu0 %v1415
  %3145 = vmatpush.bf16.msra.mxu0 %v1414
  %3146 = vmatpush.bf16.msra.mxu0 %v1413
  %3147 = vmatpush.bf16.msra.mxu0 %v1412
  %3148 = vmatmul.bf16.gmra.mxu0 %v3088
  %v3149 = vpop.f32.mrf.mxu0
  %v3150 = vadd.f32 %v3137, %v3149
  %v3151 = vpop.f32.mrf.mxu0
  %3152 = vdwg.mxu0
  %3153 = vmatpush.bf16.msra.mxu0 %v1427
  %3154 = vmatpush.bf16.msra.mxu0 %v1426
  %3155 = vmatpush.bf16.msra.mxu0 %v1425
  %3156 = vmatpush.bf16.msra.mxu0 %v1424
  %3157 = vmatpush.bf16.msra.mxu0 %v1423
  %3158 = vmatpush.bf16.msra.mxu0 %v1422
  %3159 = vmatpush.bf16.msra.mxu0 %v1421
  %3160 = vmatpush.bf16.msra.mxu0 %v1420
  %3161 = vmatmul.bf16.gmra.mxu0 %v3089
  %v3162 = vpop.f32.mrf.mxu0
  %v3163 = vadd.f32 %v3150, %v3162
  %v3164 = vpop.f32.mrf.mxu0
  %3165 = vdwg.mxu0
  %3166 = vmatpush.bf16.msra.mxu0 %v1435
  %3167 = vmatpush.bf16.msra.mxu0 %v1434
  %3168 = vmatpush.bf16.msra.mxu0 %v1433
  %3169 = vmatpush.bf16.msra.mxu0 %v1432
  %3170 = vmatpush.bf16.msra.mxu0 %v1431
  %3171 = vmatpush.bf16.msra.mxu0 %v1430
  %3172 = vmatpush.bf16.msra.mxu0 %v1429
  %3173 = vmatpush.bf16.msra.mxu0 %v1428
  %3174 = vmatmul.bf16.gmra.mxu0 %v3090
  %v3175 = vpop.f32.mrf.mxu0
  %v3176 = vadd.f32 %v3163, %v3175
  %v3177 = vpop.f32.mrf.mxu0
  %3178 = vdwg.mxu0
  %3179 = vmatpush.bf16.msra.mxu0 %v1443
  %3180 = vmatpush.bf16.msra.mxu0 %v1442
  %3181 = vmatpush.bf16.msra.mxu0 %v1441
  %3182 = vmatpush.bf16.msra.mxu0 %v1440
  %3183 = vmatpush.bf16.msra.mxu0 %v1439
  %3184 = vmatpush.bf16.msra.mxu0 %v1438
  %3185 = vmatpush.bf16.msra.mxu0 %v1437
  %3186 = vmatpush.bf16.msra.mxu0 %v1436
  %3187 = vmatmul.bf16.gmra.mxu0 %v3091
  %v3188 = vpop.f32.mrf.mxu0
  %v3189 = vadd.f32 %v3176, %v3188
  %v3190 = vpop.f32.mrf.mxu0
  %3191 = vdwg.mxu0
  %3192 = vmatpush.bf16.msra.mxu0 %v1451
  %3193 = vmatpush.bf16.msra.mxu0 %v1450
  %3194 = vmatpush.bf16.msra.mxu0 %v1449
  %3195 = vmatpush.bf16.msra.mxu0 %v1448
  %3196 = vmatpush.bf16.msra.mxu0 %v1447
  %3197 = vmatpush.bf16.msra.mxu0 %v1446
  %3198 = vmatpush.bf16.msra.mxu0 %v1445
  %3199 = vmatpush.bf16.msra.mxu0 %v1444
  %3200 = vmatmul.bf16.gmra.mxu0 %v3092
  %v3201 = vpop.f32.mrf.mxu0
  %v3202 = vadd.f32 %v3189, %v3201
  %v3203 = vpop.f32.mrf.mxu0
  %3204 = vdwg.mxu0
  %3205 = vmatpush.bf16.msra.mxu0 %v1459
  %3206 = vmatpush.bf16.msra.mxu0 %v1458
  %3207 = vmatpush.bf16.msra.mxu0 %v1457
  %3208 = vmatpush.bf16.msra.mxu0 %v1456
  %3209 = vmatpush.bf16.msra.mxu0 %v1455
  %3210 = vmatpush.bf16.msra.mxu0 %v1454
  %3211 = vmatpush.bf16.msra.mxu0 %v1453
  %3212 = vmatpush.bf16.msra.mxu0 %v1452
  %3213 = vmatmul.bf16.gmra.mxu0 %v3093
  %v3214 = vpop.f32.mrf.mxu0
  %v3215 = vadd.f32 %v3202, %v3214
  %v3216 = vpop.f32.mrf.mxu0
  %3217 = vdwg.mxu0
  %3218 = vmatpush.bf16.msra.mxu0 %v1467
  %3219 = vmatpush.bf16.msra.mxu0 %v1466
  %3220 = vmatpush.bf16.msra.mxu0 %v1465
  %3221 = vmatpush.bf16.msra.mxu0 %v1464
  %3222 = vmatpush.bf16.msra.mxu0 %v1463
  %3223 = vmatpush.bf16.msra.mxu0 %v1462
  %3224 = vmatpush.bf16.msra.mxu0 %v1461
  %3225 = vmatpush.bf16.msra.mxu0 %v1460
  %3226 = vmatmul.bf16.gmra.mxu0 %v3094
  %v3227 = vpop.f32.mrf.mxu0
  %v3228 = vadd.f32 %v3215, %v3227
  %v3229 = vpop.f32.mrf.mxu0
  %3230 = vdwg.mxu0
  %3231 = vmatpush.bf16.msra.mxu0 %v1475
  %3232 = vmatpush.bf16.msra.mxu0 %v1474
  %3233 = vmatpush.bf16.msra.mxu0 %v1473
  %3234 = vmatpush.bf16.msra.mxu0 %v1472
  %3235 = vmatpush.bf16.msra.mxu0 %v1471
  %3236 = vmatpush.bf16.msra.mxu0 %v1470
  %3237 = vmatpush.bf16.msra.mxu0 %v1469
  %3238 = vmatpush.bf16.msra.mxu0 %v1468
  %3239 = vmatmul.bf16.gmra.mxu0 %v3095
  %v3240 = vpop.f32.mrf.mxu0
  %v3241 = vadd.f32 %v3228, %v3240
  %v3242 = vpop.f32.mrf.mxu0
  %3243 = vdwg.mxu0
  %3244 = vmatpush.bf16.msra.mxu0 %v1483
  %3245 = vmatpush.bf16.msra.mxu0 %v1482
  %3246 = vmatpush.bf16.msra.mxu0 %v1481
  %3247 = vmatpush.bf16.msra.mxu0 %v1480
  %3248 = vmatpush.bf16.msra.mxu0 %v1479
  %3249 = vmatpush.bf16.msra.mxu0 %v1478
  %3250 = vmatpush.bf16.msra.mxu0 %v1477
  %3251 = vmatpush.bf16.msra.mxu0 %v1476
  %3252 = vmatmul.bf16.gmra.mxu0 %v3096
  %v3253 = vpop.f32.mrf.mxu0
  %v3254 = vadd.f32 %v3241, %v3253
  %v3255 = vpop.f32.mrf.mxu0
  %3256 = vdwg.mxu0
  %3257 = vmatpush.bf16.msra.mxu0 %v1491
  %3258 = vmatpush.bf16.msra.mxu0 %v1490
  %3259 = vmatpush.bf16.msra.mxu0 %v1489
  %3260 = vmatpush.bf16.msra.mxu0 %v1488
  %3261 = vmatpush.bf16.msra.mxu0 %v1487
  %3262 = vmatpush.bf16.msra.mxu0 %v1486
  %3263 = vmatpush.bf16.msra.mxu0 %v1485
  %3264 = vmatpush.bf16.msra.mxu0 %v1484
  %3265 = vmatmul.bf16.gmra.mxu0 %v3097
  %v3266 = vpop.f32.mrf.mxu0
  %v3267 = vadd.f32 %v3254, %v3266
  %v3268 = vpop.f32.mrf.mxu0
  %3269 = vdwg.mxu0
  %3270 = vmatpush.bf16.msra.mxu0 %v1499
  %3271 = vmatpush.bf16.msra.mxu0 %v1498
  %3272 = vmatpush.bf16.msra.mxu0 %v1497
  %3273 = vmatpush.bf16.msra.mxu0 %v1496
  %3274 = vmatpush.bf16.msra.mxu0 %v1495
  %3275 = vmatpush.bf16.msra.mxu0 %v1494
  %3276 = vmatpush.bf16.msra.mxu0 %v1493
  %3277 = vmatpush.bf16.msra.mxu0 %v1492
  %3278 = vmatmul.bf16.gmra.mxu0 %v3098
  %v3279 = vpop.f32.mrf.mxu0
  %v3280 = vadd.f32 %v3267, %v3279
  %v3281 = vpop.f32.mrf.mxu0
  %3282 = vdwg.mxu0
  %3283 = vmatpush.bf16.msra.mxu0 %v1507
  %3284 = vmatpush.bf16.msra.mxu0 %v1506
  %3285 = vmatpush.bf16.msra.mxu0 %v1505
  %3286 = vmatpush.bf16.msra.mxu0 %v1504
  %3287 = vmatpush.bf16.msra.mxu0 %v1503
  %3288 = vmatpush.bf16.msra.mxu0 %v1502
  %3289 = vmatpush.bf16.msra.mxu0 %v1501
  %3290 = vmatpush.bf16.msra.mxu0 %v1500
  %3291 = vmatmul.bf16.gmra.mxu0 %v3099
  %v3292 = vpop.f32.mrf.mxu0
  %v3293 = vadd.f32 %v3280, %v3292
  %v3294 = vpop.f32.mrf.mxu0
  %3295 = vdwg.mxu0
  %3296 = vmatpush.bf16.msra.mxu0 %v1515
  %3297 = vmatpush.bf16.msra.mxu0 %v1514
  %3298 = vmatpush.bf16.msra.mxu0 %v1513
  %3299 = vmatpush.bf16.msra.mxu0 %v1512
  %3300 = vmatpush.bf16.msra.mxu0 %v1511
  %3301 = vmatpush.bf16.msra.mxu0 %v1510
  %3302 = vmatpush.bf16.msra.mxu0 %v1509
  %3303 = vmatpush.bf16.msra.mxu0 %v1508
  %3304 = vmatmul.bf16.gmra.mxu0 %v3100
  %v3305 = vpop.f32.mrf.mxu0
  %v3306 = vadd.f32 %v3293, %v3305
  %v3307 = vpop.f32.mrf.mxu0
  %3308 = vdwg.mxu0
  %v3309 = vmax.f32 %v3306, 0.0
  %s3310 = scalar_lea.vmem [#allocation4], 24
  %3311 = vst [vmem:[%s3310] sm:$0xf] %v3309
  %v3312 = vld [vmem:[#allocation2 + $0x50] sm:$0xf]
  %v3313 = vld [vmem:[#allocation3 + $0x50] sm:$0xf]
  %v3314 = vld [vmem:[#allocation2 + $0x51] sm:$0xf]
  %v3315 = vld [vmem:[#allocation3 + $0x51] sm:$0xf]
  %v3316 = vld [vmem:[#allocation2 + $0x55] sm:$0xf]
  %v3317 = vld [vmem:[#allocation3 + $0x55] sm:$0xf]
  %v3318 = vld [vmem:[#allocation2 + $0x56] sm:$0xf]
  %v3319 = vld [vmem:[#allocation3 + $0x56] sm:$0xf]
  %v3320 = vld [vmem:[#allocation2 + $0x5a] sm:$0xf]
  %v3321 = vld [vmem:[#allocation3 + $0x5a] sm:$0xf]
  %v3322 = vld [vmem:[#allocation2 + $0x5b] sm:$0xf]
  %v3323 = vld [vmem:[#allocation3 + $0x5b] sm:$0xf]
  %v3324 = vld [vmem:[#allocation2 + $0x5f] sm:$0xf]
  %v3325 = vld [vmem:[#allocation3 + $0x5f] sm:$0xf]
  %v3326 = vld [vmem:[#allocation2 + $0x60] sm:$0xf]
  %v3327 = vld [vmem:[#allocation3 + $0x60] sm:$0xf]
  %v3328 = vpack.c.bf16 %v3312, %v3312
  %v3329 = vpack.c.bf16 %v3313, %v3313
  %v3330 = vpack.c.bf16 %v3314, %v3314
  %v3331 = vpack.c.bf16 %v3315, %v3315
  %v3332 = vpack.c.bf16 %v3316, %v3316
  %v3333 = vpack.c.bf16 %v3317, %v3317
  %v3334 = vpack.c.bf16 %v3318, %v3318
  %v3335 = vpack.c.bf16 %v3319, %v3319
  %v3336 = vpack.c.bf16 %v3320, %v3320
  %v3337 = vpack.c.bf16 %v3321, %v3321
  %v3338 = vpack.c.bf16 %v3322, %v3322
  %v3339 = vpack.c.bf16 %v3323, %v3323
  %v3340 = vpack.c.bf16 %v3324, %v3324
  %v3341 = vpack.c.bf16 %v3325, %v3325
  %v3342 = vpack.c.bf16 %v3326, %v3326
  %v3343 = vpack.c.bf16 %v3327, %v3327
  %3344 = vmatpush.bf16.msra.mxu0 %v1395
  %3345 = vmatpush.bf16.msra.mxu0 %v1394
  %3346 = vmatpush.bf16.msra.mxu0 %v1393
  %3347 = vmatpush.bf16.msra.mxu0 %v1392
  %3348 = vmatpush.bf16.msra.mxu0 %v1391
  %3349 = vmatpush.bf16.msra.mxu0 %v1390
  %3350 = vmatpush.bf16.msra.mxu0 %v1389
  %3351 = vmatpush.bf16.msra.mxu0 %v1388
  %3352 = vmatmul.bf16.gmra.mxu0 %v3328
  %v3353 = vpop.f32.mrf.mxu0
  %v3354 = vadd.f32 %v874, %v3353
  %v3355 = vpop.f32.mrf.mxu0
  %3356 = vdwg.mxu0
  %3357 = vmatpush.bf16.msra.mxu0 %v1403
  %3358 = vmatpush.bf16.msra.mxu0 %v1402
  %3359 = vmatpush.bf16.msra.mxu0 %v1401
  %3360 = vmatpush.bf16.msra.mxu0 %v1400
  %3361 = vmatpush.bf16.msra.mxu0 %v1399
  %3362 = vmatpush.bf16.msra.mxu0 %v1398
  %3363 = vmatpush.bf16.msra.mxu0 %v1397
  %3364 = vmatpush.bf16.msra.mxu0 %v1396
  %3365 = vmatmul.bf16.gmra.mxu0 %v3329
  %v3366 = vpop.f32.mrf.mxu0
  %v3367 = vadd.f32 %v3354, %v3366
  %v3368 = vpop.f32.mrf.mxu0
  %3369 = vdwg.mxu0
  %3370 = vmatpush.bf16.msra.mxu0 %v1411
  %3371 = vmatpush.bf16.msra.mxu0 %v1410
  %3372 = vmatpush.bf16.msra.mxu0 %v1409
  %3373 = vmatpush.bf16.msra.mxu0 %v1408
  %3374 = vmatpush.bf16.msra.mxu0 %v1407
  %3375 = vmatpush.bf16.msra.mxu0 %v1406
  %3376 = vmatpush.bf16.msra.mxu0 %v1405
  %3377 = vmatpush.bf16.msra.mxu0 %v1404
  %3378 = vmatmul.bf16.gmra.mxu0 %v3330
  %v3379 = vpop.f32.mrf.mxu0
  %v3380 = vadd.f32 %v3367, %v3379
  %v3381 = vpop.f32.mrf.mxu0
  %3382 = vdwg.mxu0
  %3383 = vmatpush.bf16.msra.mxu0 %v1419
  %3384 = vmatpush.bf16.msra.mxu0 %v1418
  %3385 = vmatpush.bf16.msra.mxu0 %v1417
  %3386 = vmatpush.bf16.msra.mxu0 %v1416
  %3387 = vmatpush.bf16.msra.mxu0 %v1415
  %3388 = vmatpush.bf16.msra.mxu0 %v1414
  %3389 = vmatpush.bf16.msra.mxu0 %v1413
  %3390 = vmatpush.bf16.msra.mxu0 %v1412
  %3391 = vmatmul.bf16.gmra.mxu0 %v3331
  %v3392 = vpop.f32.mrf.mxu0
  %v3393 = vadd.f32 %v3380, %v3392
  %v3394 = vpop.f32.mrf.mxu0
  %3395 = vdwg.mxu0
  %3396 = vmatpush.bf16.msra.mxu0 %v1427
  %3397 = vmatpush.bf16.msra.mxu0 %v1426
  %3398 = vmatpush.bf16.msra.mxu0 %v1425
  %3399 = vmatpush.bf16.msra.mxu0 %v1424
  %3400 = vmatpush.bf16.msra.mxu0 %v1423
  %3401 = vmatpush.bf16.msra.mxu0 %v1422
  %3402 = vmatpush.bf16.msra.mxu0 %v1421
  %3403 = vmatpush.bf16.msra.mxu0 %v1420
  %3404 = vmatmul.bf16.gmra.mxu0 %v3332
  %v3405 = vpop.f32.mrf.mxu0
  %v3406 = vadd.f32 %v3393, %v3405
  %v3407 = vpop.f32.mrf.mxu0
  %3408 = vdwg.mxu0
  %3409 = vmatpush.bf16.msra.mxu0 %v1435
  %3410 = vmatpush.bf16.msra.mxu0 %v1434
  %3411 = vmatpush.bf16.msra.mxu0 %v1433
  %3412 = vmatpush.bf16.msra.mxu0 %v1432
  %3413 = vmatpush.bf16.msra.mxu0 %v1431
  %3414 = vmatpush.bf16.msra.mxu0 %v1430
  %3415 = vmatpush.bf16.msra.mxu0 %v1429
  %3416 = vmatpush.bf16.msra.mxu0 %v1428
  %3417 = vmatmul.bf16.gmra.mxu0 %v3333
  %v3418 = vpop.f32.mrf.mxu0
  %v3419 = vadd.f32 %v3406, %v3418
  %v3420 = vpop.f32.mrf.mxu0
  %3421 = vdwg.mxu0
  %3422 = vmatpush.bf16.msra.mxu0 %v1443
  %3423 = vmatpush.bf16.msra.mxu0 %v1442
  %3424 = vmatpush.bf16.msra.mxu0 %v1441
  %3425 = vmatpush.bf16.msra.mxu0 %v1440
  %3426 = vmatpush.bf16.msra.mxu0 %v1439
  %3427 = vmatpush.bf16.msra.mxu0 %v1438
  %3428 = vmatpush.bf16.msra.mxu0 %v1437
  %3429 = vmatpush.bf16.msra.mxu0 %v1436
  %3430 = vmatmul.bf16.gmra.mxu0 %v3334
  %v3431 = vpop.f32.mrf.mxu0
  %v3432 = vadd.f32 %v3419, %v3431
  %v3433 = vpop.f32.mrf.mxu0
  %3434 = vdwg.mxu0
  %3435 = vmatpush.bf16.msra.mxu0 %v1451
  %3436 = vmatpush.bf16.msra.mxu0 %v1450
  %3437 = vmatpush.bf16.msra.mxu0 %v1449
  %3438 = vmatpush.bf16.msra.mxu0 %v1448
  %3439 = vmatpush.bf16.msra.mxu0 %v1447
  %3440 = vmatpush.bf16.msra.mxu0 %v1446
  %3441 = vmatpush.bf16.msra.mxu0 %v1445
  %3442 = vmatpush.bf16.msra.mxu0 %v1444
  %3443 = vmatmul.bf16.gmra.mxu0 %v3335
  %v3444 = vpop.f32.mrf.mxu0
  %v3445 = vadd.f32 %v3432, %v3444
  %v3446 = vpop.f32.mrf.mxu0
  %3447 = vdwg.mxu0
  %3448 = vmatpush.bf16.msra.mxu0 %v1459
  %3449 = vmatpush.bf16.msra.mxu0 %v1458
  %3450 = vmatpush.bf16.msra.mxu0 %v1457
  %3451 = vmatpush.bf16.msra.mxu0 %v1456
  %3452 = vmatpush.bf16.msra.mxu0 %v1455
  %3453 = vmatpush.bf16.msra.mxu0 %v1454
  %3454 = vmatpush.bf16.msra.mxu0 %v1453
  %3455 = vmatpush.bf16.msra.mxu0 %v1452
  %3456 = vmatmul.bf16.gmra.mxu0 %v3336
  %v3457 = vpop.f32.mrf.mxu0
  %v3458 = vadd.f32 %v3445, %v3457
  %v3459 = vpop.f32.mrf.mxu0
  %3460 = vdwg.mxu0
  %3461 = vmatpush.bf16.msra.mxu0 %v1467
  %3462 = vmatpush.bf16.msra.mxu0 %v1466
  %3463 = vmatpush.bf16.msra.mxu0 %v1465
  %3464 = vmatpush.bf16.msra.mxu0 %v1464
  %3465 = vmatpush.bf16.msra.mxu0 %v1463
  %3466 = vmatpush.bf16.msra.mxu0 %v1462
  %3467 = vmatpush.bf16.msra.mxu0 %v1461
  %3468 = vmatpush.bf16.msra.mxu0 %v1460
  %3469 = vmatmul.bf16.gmra.mxu0 %v3337
  %v3470 = vpop.f32.mrf.mxu0
  %v3471 = vadd.f32 %v3458, %v3470
  %v3472 = vpop.f32.mrf.mxu0
  %3473 = vdwg.mxu0
  %3474 = vmatpush.bf16.msra.mxu0 %v1475
  %3475 = vmatpush.bf16.msra.mxu0 %v1474
  %3476 = vmatpush.bf16.msra.mxu0 %v1473
  %3477 = vmatpush.bf16.msra.mxu0 %v1472
  %3478 = vmatpush.bf16.msra.mxu0 %v1471
  %3479 = vmatpush.bf16.msra.mxu0 %v1470
  %3480 = vmatpush.bf16.msra.mxu0 %v1469
  %3481 = vmatpush.bf16.msra.mxu0 %v1468
  %3482 = vmatmul.bf16.gmra.mxu0 %v3338
  %v3483 = vpop.f32.mrf.mxu0
  %v3484 = vadd.f32 %v3471, %v3483
  %v3485 = vpop.f32.mrf.mxu0
  %3486 = vdwg.mxu0
  %3487 = vmatpush.bf16.msra.mxu0 %v1483
  %3488 = vmatpush.bf16.msra.mxu0 %v1482
  %3489 = vmatpush.bf16.msra.mxu0 %v1481
  %3490 = vmatpush.bf16.msra.mxu0 %v1480
  %3491 = vmatpush.bf16.msra.mxu0 %v1479
  %3492 = vmatpush.bf16.msra.mxu0 %v1478
  %3493 = vmatpush.bf16.msra.mxu0 %v1477
  %3494 = vmatpush.bf16.msra.mxu0 %v1476
  %3495 = vmatmul.bf16.gmra.mxu0 %v3339
  %v3496 = vpop.f32.mrf.mxu0
  %v3497 = vadd.f32 %v3484, %v3496
  %v3498 = vpop.f32.mrf.mxu0
  %3499 = vdwg.mxu0
  %3500 = vmatpush.bf16.msra.mxu0 %v1491
  %3501 = vmatpush.bf16.msra.mxu0 %v1490
  %3502 = vmatpush.bf16.msra.mxu0 %v1489
  %3503 = vmatpush.bf16.msra.mxu0 %v1488
  %3504 = vmatpush.bf16.msra.mxu0 %v1487
  %3505 = vmatpush.bf16.msra.mxu0 %v1486
  %3506 = vmatpush.bf16.msra.mxu0 %v1485
  %3507 = vmatpush.bf16.msra.mxu0 %v1484
  %3508 = vmatmul.bf16.gmra.mxu0 %v3340
  %v3509 = vpop.f32.mrf.mxu0
  %v3510 = vadd.f32 %v3497, %v3509
  %v3511 = vpop.f32.mrf.mxu0
  %3512 = vdwg.mxu0
  %3513 = vmatpush.bf16.msra.mxu0 %v1499
  %3514 = vmatpush.bf16.msra.mxu0 %v1498
  %3515 = vmatpush.bf16.msra.mxu0 %v1497
  %3516 = vmatpush.bf16.msra.mxu0 %v1496
  %3517 = vmatpush.bf16.msra.mxu0 %v1495
  %3518 = vmatpush.bf16.msra.mxu0 %v1494
  %3519 = vmatpush.bf16.msra.mxu0 %v1493
  %3520 = vmatpush.bf16.msra.mxu0 %v1492
  %3521 = vmatmul.bf16.gmra.mxu0 %v3341
  %v3522 = vpop.f32.mrf.mxu0
  %v3523 = vadd.f32 %v3510, %v3522
  %v3524 = vpop.f32.mrf.mxu0
  %3525 = vdwg.mxu0
  %3526 = vmatpush.bf16.msra.mxu0 %v1507
  %3527 = vmatpush.bf16.msra.mxu0 %v1506
  %3528 = vmatpush.bf16.msra.mxu0 %v1505
  %3529 = vmatpush.bf16.msra.mxu0 %v1504
  %3530 = vmatpush.bf16.msra.mxu0 %v1503
  %3531 = vmatpush.bf16.msra.mxu0 %v1502
  %3532 = vmatpush.bf16.msra.mxu0 %v1501
  %3533 = vmatpush.bf16.msra.mxu0 %v1500
  %3534 = vmatmul.bf16.gmra.mxu0 %v3342
  %v3535 = vpop.f32.mrf.mxu0
  %v3536 = vadd.f32 %v3523, %v3535
  %v3537 = vpop.f32.mrf.mxu0
  %3538 = vdwg.mxu0
  %3539 = vmatpush.bf16.msra.mxu0 %v1515
  %3540 = vmatpush.bf16.msra.mxu0 %v1514
  %3541 = vmatpush.bf16.msra.mxu0 %v1513
  %3542 = vmatpush.bf16.msra.mxu0 %v1512
  %3543 = vmatpush.bf16.msra.mxu0 %v1511
  %3544 = vmatpush.bf16.msra.mxu0 %v1510
  %3545 = vmatpush.bf16.msra.mxu0 %v1509
  %3546 = vmatpush.bf16.msra.mxu0 %v1508
  %3547 = vmatmul.bf16.gmra.mxu0 %v3343
  %v3548 = vpop.f32.mrf.mxu0
  %v3549 = vadd.f32 %v3536, %v3548
  %v3550 = vpop.f32.mrf.mxu0
  %3551 = vdwg.mxu0
  %v3552 = vmax.f32 %v3549, 0.0
  %s3553 = scalar_lea.vmem [#allocation4], 28
  %3554 = vst [vmem:[%s3553] sm:$0xf] %v3552
  %v3555 = vld [vmem:[%s5] sm:$0xf]
  %v3556 = vld [vmem:[%s5 + $0x4] sm:$0xf]
  %v3557 = vld [vmem:[%s5 + $0x8] sm:$0xf]
  %v3558 = vld [vmem:[%s5 + $0xc] sm:$0xf]
  %v3559 = vld [vmem:[%s5 + $0x10] sm:$0xf]
  %v3560 = vld [vmem:[%s5 + $0x14] sm:$0xf]
  %v3561 = vld [vmem:[%s5 + $0x18] sm:$0xf]
  %v3562 = vld [vmem:[%s5 + $0x1c] sm:$0xf]
  %v3563 = vld [vmem:[%s5 + $0x20] sm:$0xf]
  %v3564 = vld [vmem:[%s5 + $0x24] sm:$0xf]
  %v3565 = vld [vmem:[%s5 + $0x28] sm:$0xf]
  %v3566 = vld [vmem:[%s5 + $0x2c] sm:$0xf]
  %v3567 = vld [vmem:[%s5 + $0x30] sm:$0xf]
  %v3568 = vld [vmem:[%s5 + $0x34] sm:$0xf]
  %v3569 = vld [vmem:[%s5 + $0x38] sm:$0xf]
  %v3570 = vld [vmem:[%s5 + $0x3c] sm:$0xf]
  %v3571 = vld [vmem:[%s5 + $0x40] sm:$0xf]
  %v3572 = vld [vmem:[%s5 + $0x44] sm:$0xf]
  %v3573 = vld [vmem:[%s5 + $0x48] sm:$0xf]
  %v3574 = vld [vmem:[%s5 + $0x4c] sm:$0xf]
  %v3575 = vld [vmem:[%s5 + $0x50] sm:$0xf]
  %v3576 = vld [vmem:[%s5 + $0x54] sm:$0xf]
  %v3577 = vld [vmem:[%s5 + $0x58] sm:$0xf]
  %v3578 = vld [vmem:[%s5 + $0x5c] sm:$0xf]
  %v3579 = vld [vmem:[%s5 + $0x60] sm:$0xf]
  %v3580 = vld [vmem:[%s5 + $0x64] sm:$0xf]
  %v3581 = vld [vmem:[%s5 + $0x68] sm:$0xf]
  %v3582 = vld [vmem:[%s5 + $0x6c] sm:$0xf]
  %v3583 = vld [vmem:[%s5 + $0x70] sm:$0xf]
  %v3584 = vld [vmem:[%s5 + $0x74] sm:$0xf]
  %v3585 = vld [vmem:[%s5 + $0x78] sm:$0xf]
  %v3586 = vld [vmem:[%s5 + $0x7c] sm:$0xf]
  %v3587 = vld [vmem:[%s5 + $0x80] sm:$0xf]
  %v3588 = vld [vmem:[%s5 + $0x84] sm:$0xf]
  %v3589 = vld [vmem:[%s5 + $0x88] sm:$0xf]
  %v3590 = vld [vmem:[%s5 + $0x8c] sm:$0xf]
  %v3591 = vld [vmem:[%s5 + $0x90] sm:$0xf]
  %v3592 = vld [vmem:[%s5 + $0x94] sm:$0xf]
  %v3593 = vld [vmem:[%s5 + $0x98] sm:$0xf]
  %v3594 = vld [vmem:[%s5 + $0x9c] sm:$0xf]
  %v3595 = vld [vmem:[%s5 + $0xa0] sm:$0xf]
  %v3596 = vld [vmem:[%s5 + $0xa4] sm:$0xf]
  %v3597 = vld [vmem:[%s5 + $0xa8] sm:$0xf]
  %v3598 = vld [vmem:[%s5 + $0xac] sm:$0xf]
  %v3599 = vld [vmem:[%s5 + $0xb0] sm:$0xf]
  %v3600 = vld [vmem:[%s5 + $0xb4] sm:$0xf]
  %v3601 = vld [vmem:[%s5 + $0xb8] sm:$0xf]
  %v3602 = vld [vmem:[%s5 + $0xbc] sm:$0xf]
  %v3603 = vld [vmem:[%s5 + $0xc0] sm:$0xf]
  %v3604 = vld [vmem:[%s5 + $0xc4] sm:$0xf]
  %v3605 = vld [vmem:[%s5 + $0xc8] sm:$0xf]
  %v3606 = vld [vmem:[%s5 + $0xcc] sm:$0xf]
  %v3607 = vld [vmem:[%s5 + $0xd0] sm:$0xf]
  %v3608 = vld [vmem:[%s5 + $0xd4] sm:$0xf]
  %v3609 = vld [vmem:[%s5 + $0xd8] sm:$0xf]
  %v3610 = vld [vmem:[%s5 + $0xdc] sm:$0xf]
  %v3611 = vld [vmem:[%s5 + $0xe0] sm:$0xf]
  %v3612 = vld [vmem:[%s5 + $0xe4] sm:$0xf]
  %v3613 = vld [vmem:[%s5 + $0xe8] sm:$0xf]
  %v3614 = vld [vmem:[%s5 + $0xec] sm:$0xf]
  %v3615 = vld [vmem:[%s5 + $0xf0] sm:$0xf]
  %v3616 = vld [vmem:[%s5 + $0xf4] sm:$0xf]
  %v3617 = vld [vmem:[%s5 + $0xf8] sm:$0xf]
  %v3618 = vld [vmem:[%s5 + $0xfc] sm:$0xf]
  %v3619 = vld [vmem:[%s5 + $0x100] sm:$0xf]
  %v3620 = vld [vmem:[%s5 + $0x104] sm:$0xf]
  %v3621 = vld [vmem:[%s5 + $0x108] sm:$0xf]
  %v3622 = vld [vmem:[%s5 + $0x10c] sm:$0xf]
  %v3623 = vld [vmem:[%s5 + $0x110] sm:$0xf]
  %v3624 = vld [vmem:[%s5 + $0x114] sm:$0xf]
  %v3625 = vld [vmem:[%s5 + $0x118] sm:$0xf]
  %v3626 = vld [vmem:[%s5 + $0x11c] sm:$0xf]
  %v3627 = vld [vmem:[%s5 + $0x120] sm:$0xf]
  %v3628 = vld [vmem:[%s5 + $0x124] sm:$0xf]
  %v3629 = vld [vmem:[%s5 + $0x128] sm:$0xf]
  %v3630 = vld [vmem:[%s5 + $0x12c] sm:$0xf]
  %v3631 = vld [vmem:[%s5 + $0x130] sm:$0xf]
  %v3632 = vld [vmem:[%s5 + $0x134] sm:$0xf]
  %v3633 = vld [vmem:[%s5 + $0x138] sm:$0xf]
  %v3634 = vld [vmem:[%s5 + $0x13c] sm:$0xf]
  %v3635 = vld [vmem:[%s5 + $0x140] sm:$0xf]
  %v3636 = vld [vmem:[%s5 + $0x144] sm:$0xf]
  %v3637 = vld [vmem:[%s5 + $0x148] sm:$0xf]
  %v3638 = vld [vmem:[%s5 + $0x14c] sm:$0xf]
  %v3639 = vld [vmem:[%s5 + $0x150] sm:$0xf]
  %v3640 = vld [vmem:[%s5 + $0x154] sm:$0xf]
  %v3641 = vld [vmem:[%s5 + $0x158] sm:$0xf]
  %v3642 = vld [vmem:[%s5 + $0x15c] sm:$0xf]
  %v3643 = vld [vmem:[%s5 + $0x160] sm:$0xf]
  %v3644 = vld [vmem:[%s5 + $0x164] sm:$0xf]
  %v3645 = vld [vmem:[%s5 + $0x168] sm:$0xf]
  %v3646 = vld [vmem:[%s5 + $0x16c] sm:$0xf]
  %v3647 = vld [vmem:[%s5 + $0x170] sm:$0xf]
  %v3648 = vld [vmem:[%s5 + $0x174] sm:$0xf]
  %v3649 = vld [vmem:[%s5 + $0x178] sm:$0xf]
  %v3650 = vld [vmem:[%s5 + $0x17c] sm:$0xf]
  %v3651 = vld [vmem:[%s5 + $0x180] sm:$0xf]
  %v3652 = vld [vmem:[%s5 + $0x184] sm:$0xf]
  %v3653 = vld [vmem:[%s5 + $0x188] sm:$0xf]
  %v3654 = vld [vmem:[%s5 + $0x18c] sm:$0xf]
  %v3655 = vld [vmem:[%s5 + $0x190] sm:$0xf]
  %v3656 = vld [vmem:[%s5 + $0x194] sm:$0xf]
  %v3657 = vld [vmem:[%s5 + $0x198] sm:$0xf]
  %v3658 = vld [vmem:[%s5 + $0x19c] sm:$0xf]
  %v3659 = vld [vmem:[%s5 + $0x1a0] sm:$0xf]
  %v3660 = vld [vmem:[%s5 + $0x1a4] sm:$0xf]
  %v3661 = vld [vmem:[%s5 + $0x1a8] sm:$0xf]
  %v3662 = vld [vmem:[%s5 + $0x1ac] sm:$0xf]
  %v3663 = vld [vmem:[%s5 + $0x1b0] sm:$0xf]
  %v3664 = vld [vmem:[%s5 + $0x1b4] sm:$0xf]
  %v3665 = vld [vmem:[%s5 + $0x1b8] sm:$0xf]
  %v3666 = vld [vmem:[%s5 + $0x1bc] sm:$0xf]
  %v3667 = vld [vmem:[%s5 + $0x1c0] sm:$0xf]
  %v3668 = vld [vmem:[%s5 + $0x1c4] sm:$0xf]
  %v3669 = vld [vmem:[%s5 + $0x1c8] sm:$0xf]
  %v3670 = vld [vmem:[%s5 + $0x1cc] sm:$0xf]
  %v3671 = vld [vmem:[%s5 + $0x1d0] sm:$0xf]
  %v3672 = vld [vmem:[%s5 + $0x1d4] sm:$0xf]
  %v3673 = vld [vmem:[%s5 + $0x1d8] sm:$0xf]
  %v3674 = vld [vmem:[%s5 + $0x1dc] sm:$0xf]
  %v3675 = vld [vmem:[%s5 + $0x1e0] sm:$0xf]
  %v3676 = vld [vmem:[%s5 + $0x1e4] sm:$0xf]
  %v3677 = vld [vmem:[%s5 + $0x1e8] sm:$0xf]
  %v3678 = vld [vmem:[%s5 + $0x1ec] sm:$0xf]
  %v3679 = vld [vmem:[%s5 + $0x1f0] sm:$0xf]
  %v3680 = vld [vmem:[%s5 + $0x1f4] sm:$0xf]
  %v3681 = vld [vmem:[%s5 + $0x1f8] sm:$0xf]
  %v3682 = vld [vmem:[%s5 + $0x1fc] sm:$0xf]
  %v3683 = vld [vmem:[%s5 + $0x200] sm:$0xf]
  %v3684 = vld [vmem:[%s5 + $0x204] sm:$0xf]
  %v3685 = vld [vmem:[%s5 + $0x208] sm:$0xf]
  %v3686 = vld [vmem:[%s5 + $0x20c] sm:$0xf]
  %v3687 = vld [vmem:[%s5 + $0x210] sm:$0xf]
  %v3688 = vld [vmem:[%s5 + $0x214] sm:$0xf]
  %v3689 = vld [vmem:[%s5 + $0x218] sm:$0xf]
  %v3690 = vld [vmem:[%s5 + $0x21c] sm:$0xf]
  %v3691 = vld [vmem:[%s5 + $0x220] sm:$0xf]
  %v3692 = vld [vmem:[%s5 + $0x224] sm:$0xf]
  %v3693 = vld [vmem:[%s5 + $0x228] sm:$0xf]
  %v3694 = vld [vmem:[%s5 + $0x22c] sm:$0xf]
  %v3695 = vld [vmem:[%s5 + $0x230] sm:$0xf]
  %v3696 = vld [vmem:[%s5 + $0x234] sm:$0xf]
  %v3697 = vld [vmem:[%s5 + $0x238] sm:$0xf]
  %v3698 = vld [vmem:[%s5 + $0x23c] sm:$0xf]
  %v3699 = vld [vmem:[%s6] sm:$0x1]
  %v3700 = vld [vmem:[%s7] sm:$0xff]
  %v3701 = vld [vmem:[%s7 + $0x8] sm:$0xff]
  %v3702 = vld [vmem:[%s7 + $0x10] sm:$0xff]
  %v3703 = vld [vmem:[%s7 + $0x18] sm:$0xff]
  %v3704 = vld [vmem:[%s7 + $0x20] sm:$0xff]
  %v3705 = vld [vmem:[%s7 + $0x28] sm:$0xff]
  %v3706 = vld [vmem:[%s7 + $0x30] sm:$0xff]
  %v3707 = vld [vmem:[%s7 + $0x38] sm:$0xff]
  %v3708 = vld [vmem:[%s7 + $0x40] sm:$0xff]
  %v3709 = vld [vmem:[%s7 + $0x48] sm:$0xff]
  %v3710 = vld [vmem:[%s7 + $0x50] sm:$0xff]
  %v3711 = vld [vmem:[%s7 + $0x58] sm:$0xff]
  %v3712 = vld [vmem:[%s7 + $0x60] sm:$0xff]
  %v3713 = vld [vmem:[%s7 + $0x68] sm:$0xff]
  %v3714 = vld [vmem:[%s7 + $0x70] sm:$0xff]
  %v3715 = vld [vmem:[%s7 + $0x78] sm:$0xff]
  %v3716 = vld [vmem:[%s7 + $0x80] sm:$0xff]
  %v3717 = vld [vmem:[%s7 + $0x88] sm:$0xff]
  %v3718 = vld [vmem:[%s7 + $0x90] sm:$0xff]
  %v3719 = vld [vmem:[%s7 + $0x98] sm:$0xff]
  %v3720 = vld [vmem:[%s7 + $0xa0] sm:$0xff]
  %v3721 = vld [vmem:[%s7 + $0xa8] sm:$0xff]
  %v3722 = vld [vmem:[%s7 + $0xb0] sm:$0xff]
  %v3723 = vld [vmem:[%s7 + $0xb8] sm:$0xff]
  %v3724 = vld [vmem:[%s7 + $0xc0] sm:$0xff]
  %v3725 = vld [vmem:[%s7 + $0xc8] sm:$0xff]
  %v3726 = vld [vmem:[%s7 + $0xd0] sm:$0xff]
  %v3727 = vld [vmem:[%s7 + $0xd8] sm:$0xff]
  %v3728 = vld [vmem:[%s7 + $0xe0] sm:$0xff]
  %v3729 = vld [vmem:[%s7 + $0xe8] sm:$0xff]
  %v3730 = vld [vmem:[%s7 + $0xf0] sm:$0xff]
  %v3731 = vld [vmem:[%s7 + $0xf8] sm:$0xff]
  %v3732 = vld [vmem:[%s7 + $0x100] sm:$0xff]
  %v3733 = vld [vmem:[%s7 + $0x108] sm:$0xff]
  %v3734 = vld [vmem:[%s7 + $0x110] sm:$0xff]
  %v3735 = vld [vmem:[%s7 + $0x118] sm:$0xff]
  %v3736 = vld [vmem:[%s7 + $0x120] sm:$0xff]
  %v3737 = vld [vmem:[%s7 + $0x128] sm:$0xff]
  %v3738 = vld [vmem:[%s7 + $0x130] sm:$0xff]
  %v3739 = vld [vmem:[%s7 + $0x138] sm:$0xff]
  %v3740 = vld [vmem:[%s7 + $0x140] sm:$0xff]
  %v3741 = vld [vmem:[%s7 + $0x148] sm:$0xff]
  %v3742 = vld [vmem:[%s7 + $0x150] sm:$0xff]
  %v3743 = vld [vmem:[%s7 + $0x158] sm:$0xff]
  %v3744 = vld [vmem:[%s7 + $0x160] sm:$0xff]
  %v3745 = vld [vmem:[%s7 + $0x168] sm:$0xff]
  %v3746 = vld [vmem:[%s7 + $0x170] sm:$0xff]
  %v3747 = vld [vmem:[%s7 + $0x178] sm:$0xff]
  %v3748 = vld [vmem:[%s7 + $0x180] sm:$0xff]
  %v3749 = vld [vmem:[%s7 + $0x188] sm:$0xff]
  %v3750 = vld [vmem:[%s7 + $0x190] sm:$0xff]
  %v3751 = vld [vmem:[%s7 + $0x198] sm:$0xff]
  %v3752 = vld [vmem:[%s7 + $0x1a0] sm:$0xff]
  %v3753 = vld [vmem:[%s7 + $0x1a8] sm:$0xff]
  %v3754 = vld [vmem:[%s7 + $0x1b0] sm:$0xff]
  %v3755 = vld [vmem:[%s7 + $0x1b8] sm:$0xff]
  %v3756 = vld [vmem:[%s7 + $0x1c0] sm:$0xff]
  %v3757 = vld [vmem:[%s7 + $0x1c8] sm:$0xff]
  %v3758 = vld [vmem:[%s7 + $0x1d0] sm:$0xff]
  %v3759 = vld [vmem:[%s7 + $0x1d8] sm:$0xff]
  %v3760 = vld [vmem:[%s7 + $0x1e0] sm:$0xff]
  %v3761 = vld [vmem:[%s7 + $0x1e8] sm:$0xff]
  %v3762 = vld [vmem:[%s7 + $0x1f0] sm:$0xff]
  %v3763 = vld [vmem:[%s7 + $0x1f8] sm:$0xff]
  %v3764 = vld [vmem:[%s8] sm:$0x3]
  %v3765 = vld [vmem:[%s9] sm:$0x3]
  %v3766 = vld [vmem:[%s10] sm:$0xf]
  %v3767 = vld [vmem:[%s10 + $0x4] sm:$0xf]
  %v3768 = vld [vmem:[%s10 + $0x8] sm:$0xf]
  %v3769 = vld [vmem:[%s10 + $0xc] sm:$0xf]
  %v3770 = vld [vmem:[%s10 + $0x10] sm:$0xf]
  %v3771 = vld [vmem:[%s10 + $0x14] sm:$0xf]
  %v3772 = vld [vmem:[%s10 + $0x18] sm:$0xf]
  %v3773 = vld [vmem:[%s10 + $0x1c] sm:$0xf]
  %v3774 = vld [vmem:[%s10 + $0x20] sm:$0xf]
  %v3775 = vld [vmem:[%s10 + $0x24] sm:$0xf]
  %v3776 = vld [vmem:[%s10 + $0x28] sm:$0xf]
  %v3777 = vld [vmem:[%s10 + $0x2c] sm:$0xf]
  %v3778 = vld [vmem:[%s10 + $0x30] sm:$0xf]
  %v3779 = vld [vmem:[%s10 + $0x34] sm:$0xf]
  %v3780 = vld [vmem:[%s10 + $0x38] sm:$0xf]
  %v3781 = vld [vmem:[%s10 + $0x3c] sm:$0xf]
  %v3782 = vld [vmem:[%s10 + $0x40] sm:$0xf]
  %v3783 = vld [vmem:[%s10 + $0x44] sm:$0xf]
  %v3784 = vld [vmem:[%s10 + $0x48] sm:$0xf]
  %v3785 = vld [vmem:[%s10 + $0x4c] sm:$0xf]
  %v3786 = vld [vmem:[%s10 + $0x50] sm:$0xf]
  %v3787 = vld [vmem:[%s10 + $0x54] sm:$0xf]
  %v3788 = vld [vmem:[%s10 + $0x58] sm:$0xf]
  %v3789 = vld [vmem:[%s10 + $0x5c] sm:$0xf]
  %v3790 = vld [vmem:[%s10 + $0x60] sm:$0xf]
  %v3791 = vld [vmem:[%s10 + $0x64] sm:$0xf]
  %v3792 = vld [vmem:[%s10 + $0x68] sm:$0xf]
  %v3793 = vld [vmem:[%s10 + $0x6c] sm:$0xf]
  %v3794 = vld [vmem:[%s10 + $0x70] sm:$0xf]
  %v3795 = vld [vmem:[%s10 + $0x74] sm:$0xf]
  %v3796 = vld [vmem:[%s10 + $0x78] sm:$0xf]
  %v3797 = vld [vmem:[%s10 + $0x7c] sm:$0xf]
  %v3798 = vld [vmem:[%s11] sm:$0x1]
  %v3799 = vld [vmem:[#allocation4] sm:$0x3]
  %v3800 = vld [vmem:[#allocation4 + $0x1] sm:$0x3]
  %v3801 = vld [vmem:[#allocation4 + $0x2] sm:$0x3]
  %v3802 = vld [vmem:[%s2095] sm:$0x3]
  %v3803 = vld [vmem:[%s2095 + $0x1] sm:$0x3]
  %v3804 = vld [vmem:[%s2095 + $0x2] sm:$0x3]
  %v3805 = vld [vmem:[%s2338] sm:$0x3]
  %v3806 = vld [vmem:[%s2338 + $0x1] sm:$0x3]
  %v3807 = vld [vmem:[%s2338 + $0x2] sm:$0x3]
  %v3808 = vpack.c.bf16 %v3799, %v3799
  %v3809 = vpack.c.bf16 %v3800, %v3800
  %v3810 = vpack.c.bf16 %v3801, %v3801
  %v3811 = vpack.c.bf16 %v3802, %v3802
  %v3812 = vpack.c.bf16 %v3803, %v3803
  %v3813 = vpack.c.bf16 %v3804, %v3804
  %v3814 = vpack.c.bf16 %v3805, %v3805
  %v3815 = vpack.c.bf16 %v3806, %v3806
  %v3816 = vpack.c.bf16 %v3807, %v3807
  %v3818 = vperm.slane %v3699, 0
  %v3964 = vunpack.c.l.b16 %v3555
  %v3965 = vunpack.c.l.b16 %v3556
  %v3966 = vunpack.c.l.b16 %v3557
  %v3967 = vunpack.c.l.b16 %v3558
  %v3968 = vunpack.c.l.b16 %v3559
  %v3969 = vunpack.c.l.b16 %v3560
  %v3970 = vunpack.c.l.b16 %v3561
  %v3971 = vunpack.c.l.b16 %v3562
  %v3972 = vunpack.c.l.b16 %v3563
  %v3973 = vunpack.c.l.b16 %v3564
  %v3974 = vunpack.c.l.b16 %v3565
  %v3975 = vunpack.c.l.b16 %v3566
  %v3976 = vunpack.c.l.b16 %v3567
  %v3977 = vunpack.c.l.b16 %v3568
  %v3978 = vunpack.c.l.b16 %v3569
  %v3979 = vunpack.c.l.b16 %v3570
  %v3980 = vunpack.c.l.b16 %v3571
  %v3981 = vunpack.c.l.b16 %v3572
  %v3982 = vunpack.c.l.b16 %v3573
  %v3983 = vunpack.c.l.b16 %v3574
  %v3984 = vunpack.c.l.b16 %v3575
  %v3985 = vunpack.c.l.b16 %v3576
  %v3986 = vunpack.c.l.b16 %v3577
  %v3987 = vunpack.c.l.b16 %v3578
  %v3988 = vunpack.c.l.b16 %v3579
  %v3989 = vunpack.c.l.b16 %v3580
  %v3990 = vunpack.c.l.b16 %v3581
  %v3991 = vunpack.c.l.b16 %v3582
  %v3992 = vunpack.c.l.b16 %v3583
  %v3993 = vunpack.c.l.b16 %v3584
  %v3994 = vunpack.c.l.b16 %v3585
  %v3995 = vunpack.c.l.b16 %v3586
  %v3996 = vunpack.c.l.b16 %v3587
  %v3997 = vunpack.c.l.b16 %v3588
  %v3998 = vunpack.c.l.b16 %v3589
  %v3999 = vunpack.c.l.b16 %v3590
  %v4000 = vunpack.c.l.b16 %v3591
  %v4001 = vunpack.c.l.b16 %v3592
  %v4002 = vunpack.c.l.b16 %v3593
  %v4003 = vunpack.c.l.b16 %v3594
  %v4004 = vunpack.c.l.b16 %v3595
  %v4005 = vunpack.c.l.b16 %v3596
  %v4006 = vunpack.c.l.b16 %v3597
  %v4007 = vunpack.c.l.b16 %v3598
  %v4008 = vunpack.c.l.b16 %v3599
  %v4009 = vunpack.c.l.b16 %v3600
  %v4010 = vunpack.c.l.b16 %v3601
  %v4011 = vunpack.c.l.b16 %v3602
  %v4012 = vunpack.c.l.b16 %v3603
  %v4013 = vunpack.c.l.b16 %v3604
  %v4014 = vunpack.c.l.b16 %v3605
  %v4015 = vunpack.c.l.b16 %v3606
  %v4016 = vunpack.c.l.b16 %v3607
  %v4017 = vunpack.c.l.b16 %v3608
  %v4018 = vunpack.c.l.b16 %v3609
  %v4019 = vunpack.c.l.b16 %v3610
  %v4020 = vunpack.c.l.b16 %v3611
  %v4021 = vunpack.c.l.b16 %v3612
  %v4022 = vunpack.c.l.b16 %v3613
  %v4023 = vunpack.c.l.b16 %v3614
  %v4024 = vunpack.c.l.b16 %v3615
  %v4025 = vunpack.c.l.b16 %v3616
  %v4026 = vunpack.c.l.b16 %v3617
  %v4027 = vunpack.c.l.b16 %v3618
  %v4028 = vunpack.c.l.b16 %v3619
  %v4029 = vunpack.c.l.b16 %v3620
  %v4030 = vunpack.c.l.b16 %v3621
  %v4031 = vunpack.c.l.b16 %v3622
  %v4032 = vunpack.c.l.b16 %v3623
  %v4033 = vunpack.c.l.b16 %v3624
  %v4034 = vunpack.c.l.b16 %v3625
  %v4035 = vunpack.c.l.b16 %v3626
  %v4036 = vunpack.c.l.b16 %v3627
  %v4037 = vunpack.c.l.b16 %v3628
  %v4038 = vunpack.c.l.b16 %v3629
  %v4039 = vunpack.c.l.b16 %v3630
  %v4040 = vunpack.c.l.b16 %v3631
  %v4041 = vunpack.c.l.b16 %v3632
  %v4042 = vunpack.c.l.b16 %v3633
  %v4043 = vunpack.c.l.b16 %v3634
  %v4044 = vunpack.c.l.b16 %v3635
  %v4045 = vunpack.c.l.b16 %v3636
  %v4046 = vunpack.c.l.b16 %v3637
  %v4047 = vunpack.c.l.b16 %v3638
  %v4048 = vunpack.c.l.b16 %v3639
  %v4049 = vunpack.c.l.b16 %v3640
  %v4050 = vunpack.c.l.b16 %v3641
  %v4051 = vunpack.c.l.b16 %v3642
  %v4052 = vunpack.c.l.b16 %v3643
  %v4053 = vunpack.c.l.b16 %v3644
  %v4054 = vunpack.c.l.b16 %v3645
  %v4055 = vunpack.c.l.b16 %v3646
  %v4056 = vunpack.c.l.b16 %v3647
  %v4057 = vunpack.c.l.b16 %v3648
  %v4058 = vunpack.c.l.b16 %v3649
  %v4059 = vunpack.c.l.b16 %v3650
  %v4060 = vunpack.c.l.b16 %v3651
  %v4061 = vunpack.c.l.b16 %v3652
  %v4062 = vunpack.c.l.b16 %v3653
  %v4063 = vunpack.c.l.b16 %v3654
  %v4064 = vunpack.c.l.b16 %v3655
  %v4065 = vunpack.c.l.b16 %v3656
  %v4066 = vunpack.c.l.b16 %v3657
  %v4067 = vunpack.c.l.b16 %v3658
  %v4068 = vunpack.c.l.b16 %v3659
  %v4069 = vunpack.c.l.b16 %v3660
  %v4070 = vunpack.c.l.b16 %v3661
  %v4071 = vunpack.c.l.b16 %v3662
  %v4072 = vunpack.c.l.b16 %v3663
  %v4073 = vunpack.c.l.b16 %v3664
  %v4074 = vunpack.c.l.b16 %v3665
  %v4075 = vunpack.c.l.b16 %v3666
  %v4076 = vunpack.c.l.b16 %v3667
  %v4077 = vunpack.c.l.b16 %v3668
  %v4078 = vunpack.c.l.b16 %v3669
  %v4079 = vunpack.c.l.b16 %v3670
  %v4080 = vunpack.c.l.b16 %v3671
  %v4081 = vunpack.c.l.b16 %v3672
  %v4082 = vunpack.c.l.b16 %v3673
  %v4083 = vunpack.c.l.b16 %v3674
  %v4084 = vunpack.c.l.b16 %v3675
  %v4085 = vunpack.c.l.b16 %v3676
  %v4086 = vunpack.c.l.b16 %v3677
  %v4087 = vunpack.c.l.b16 %v3678
  %v4088 = vunpack.c.l.b16 %v3679
  %v4089 = vunpack.c.l.b16 %v3680
  %v4090 = vunpack.c.l.b16 %v3681
  %v4091 = vunpack.c.l.b16 %v3682
  %v4092 = vunpack.c.l.b16 %v3683
  %v4093 = vunpack.c.l.b16 %v3684
  %v4094 = vunpack.c.l.b16 %v3685
  %v4095 = vunpack.c.l.b16 %v3686
  %v4096 = vunpack.c.l.b16 %v3687
  %v4097 = vunpack.c.l.b16 %v3688
  %v4098 = vunpack.c.l.b16 %v3689
  %v4099 = vunpack.c.l.b16 %v3690
  %v4100 = vunpack.c.l.b16 %v3691
  %v4101 = vunpack.c.l.b16 %v3692
  %v4102 = vunpack.c.l.b16 %v3693
  %v4103 = vunpack.c.l.b16 %v3694
  %v4104 = vunpack.c.l.b16 %v3695
  %v4105 = vunpack.c.l.b16 %v3696
  %v4106 = vunpack.c.l.b16 %v3697
  %v4107 = vunpack.c.l.b16 %v3698
  %v4108 = vpack.c.b16 %v3965, %v3964
  %v4109 = vpack.c.b16 %v3967, %v3966
  %v4110 = vpack.c.b16 %v3969, %v3968
  %v4111 = vpack.c.b16 %v3971, %v3970
  %v4112 = vpack.c.b16 %v3973, %v3972
  %v4113 = vpack.c.b16 %v3975, %v3974
  %v4114 = vpack.c.b16 %v3977, %v3976
  %v4115 = vpack.c.b16 %v3979, %v3978
  %v4116 = vpack.c.b16 %v3981, %v3980
  %v4117 = vpack.c.b16 %v3983, %v3982
  %v4118 = vpack.c.b16 %v3985, %v3984
  %v4119 = vpack.c.b16 %v3987, %v3986
  %v4120 = vpack.c.b16 %v3989, %v3988
  %v4121 = vpack.c.b16 %v3991, %v3990
  %v4122 = vpack.c.b16 %v3993, %v3992
  %v4123 = vpack.c.b16 %v3995, %v3994
  %v4124 = vpack.c.b16 %v3997, %v3996
  %v4125 = vpack.c.b16 %v3999, %v3998
  %v4126 = vpack.c.b16 %v4001, %v4000
  %v4127 = vpack.c.b16 %v4003, %v4002
  %v4128 = vpack.c.b16 %v4005, %v4004
  %v4129 = vpack.c.b16 %v4007, %v4006
  %v4130 = vpack.c.b16 %v4009, %v4008
  %v4131 = vpack.c.b16 %v4011, %v4010
  %v4132 = vpack.c.b16 %v4013, %v4012
  %v4133 = vpack.c.b16 %v4015, %v4014
  %v4134 = vpack.c.b16 %v4017, %v4016
  %v4135 = vpack.c.b16 %v4019, %v4018
  %v4136 = vpack.c.b16 %v4021, %v4020
  %v4137 = vpack.c.b16 %v4023, %v4022
  %v4138 = vpack.c.b16 %v4025, %v4024
  %v4139 = vpack.c.b16 %v4027, %v4026
  %v4140 = vpack.c.b16 %v4029, %v4028
  %v4141 = vpack.c.b16 %v4031, %v4030
  %v4142 = vpack.c.b16 %v4033, %v4032
  %v4143 = vpack.c.b16 %v4035, %v4034
  %v4144 = vpack.c.b16 %v4037, %v4036
  %v4145 = vpack.c.b16 %v4039, %v4038
  %v4146 = vpack.c.b16 %v4041, %v4040
  %v4147 = vpack.c.b16 %v4043, %v4042
  %v4148 = vpack.c.b16 %v4045, %v4044
  %v4149 = vpack.c.b16 %v4047, %v4046
  %v4150 = vpack.c.b16 %v4049, %v4048
  %v4151 = vpack.c.b16 %v4051, %v4050
  %v4152 = vpack.c.b16 %v4053, %v4052
  %v4153 = vpack.c.b16 %v4055, %v4054
  %v4154 = vpack.c.b16 %v4057, %v4056
  %v4155 = vpack.c.b16 %v4059, %v4058
  %v4156 = vpack.c.b16 %v4061, %v4060
  %v4157 = vpack.c.b16 %v4063, %v4062
  %v4158 = vpack.c.b16 %v4065, %v4064
  %v4159 = vpack.c.b16 %v4067, %v4066
  %v4160 = vpack.c.b16 %v4069, %v4068
  %v4161 = vpack.c.b16 %v4071, %v4070
  %v4162 = vpack.c.b16 %v4073, %v4072
  %v4163 = vpack.c.b16 %v4075, %v4074
  %v4164 = vpack.c.b16 %v4077, %v4076
  %v4165 = vpack.c.b16 %v4079, %v4078
  %v4166 = vpack.c.b16 %v4081, %v4080
  %v4167 = vpack.c.b16 %v4083, %v4082
  %v4168 = vpack.c.b16 %v4085, %v4084
  %v4169 = vpack.c.b16 %v4087, %v4086
  %v4170 = vpack.c.b16 %v4089, %v4088
  %v4171 = vpack.c.b16 %v4091, %v4090
  %v4172 = vpack.c.b16 %v4093, %v4092
  %v4173 = vpack.c.b16 %v4095, %v4094
  %v4174 = vpack.c.b16 %v4097, %v4096
  %v4175 = vpack.c.b16 %v4099, %v4098
  %v4176 = vpack.c.b16 %v4101, %v4100
  %v4177 = vpack.c.b16 %v4103, %v4102
  %v4178 = vpack.c.b16 %v4105, %v4104
  %v4179 = vpack.c.b16 %v4107, %v4106
  %4252 = vmatpush.bf16.msra.mxu0 %v4115
  %4253 = vmatpush.bf16.msra.mxu0 %v4114
  %4254 = vmatpush.bf16.msra.mxu0 %v4113
  %4255 = vmatpush.bf16.msra.mxu0 %v4112
  %4256 = vmatpush.bf16.msra.mxu0 %v4111
  %4257 = vmatpush.bf16.msra.mxu0 %v4110
  %4258 = vmatpush.bf16.msra.mxu0 %v4109
  %4259 = vmatpush.bf16.msra.mxu0 %v4108
  %4260 = vmatmul.bf16.gmra.mxu0 %v3808
  %v4261 = vpop.f32.mrf.mxu0
  %v4262 = vadd.f32 %v3818, %v4261
  %v4263 = vpop.f32.mrf.mxu0
  %4264 = vdwg.mxu0
  %4265 = vmatpush.bf16.msra.mxu0 %v4123
  %4266 = vmatpush.bf16.msra.mxu0 %v4122
  %4267 = vmatpush.bf16.msra.mxu0 %v4121
  %4268 = vmatpush.bf16.msra.mxu0 %v4120
  %4269 = vmatpush.bf16.msra.mxu0 %v4119
  %4270 = vmatpush.bf16.msra.mxu0 %v4118
  %4271 = vmatpush.bf16.msra.mxu0 %v4117
  %4272 = vmatpush.bf16.msra.mxu0 %v4116
  %4273 = vmatmul.bf16.gmra.mxu0 %v3809
  %v4274 = vpop.f32.mrf.mxu0
  %v4275 = vadd.f32 %v4262, %v4274
  %v4276 = vpop.f32.mrf.mxu0
  %4277 = vdwg.mxu0
  %4278 = vmatpush.bf16.msra.mxu0 %v4131
  %4279 = vmatpush.bf16.msra.mxu0 %v4130
  %4280 = vmatpush.bf16.msra.mxu0 %v4129
  %4281 = vmatpush.bf16.msra.mxu0 %v4128
  %4282 = vmatpush.bf16.msra.mxu0 %v4127
  %4283 = vmatpush.bf16.msra.mxu0 %v4126
  %4284 = vmatpush.bf16.msra.mxu0 %v4125
  %4285 = vmatpush.bf16.msra.mxu0 %v4124
  %4286 = vmatmul.bf16.gmra.mxu0 %v3810
  %v4287 = vpop.f32.mrf.mxu0
  %v4288 = vadd.f32 %v4275, %v4287
  %v4289 = vpop.f32.mrf.mxu0
  %4290 = vdwg.mxu0
  %4291 = vmatpush.bf16.msra.mxu0 %v4139
  %4292 = vmatpush.bf16.msra.mxu0 %v4138
  %4293 = vmatpush.bf16.msra.mxu0 %v4137
  %4294 = vmatpush.bf16.msra.mxu0 %v4136
  %4295 = vmatpush.bf16.msra.mxu0 %v4135
  %4296 = vmatpush.bf16.msra.mxu0 %v4134
  %4297 = vmatpush.bf16.msra.mxu0 %v4133
  %4298 = vmatpush.bf16.msra.mxu0 %v4132
  %4299 = vmatmul.bf16.gmra.mxu0 %v3811
  %v4300 = vpop.f32.mrf.mxu0
  %v4301 = vadd.f32 %v4288, %v4300
  %v4302 = vpop.f32.mrf.mxu0
  %4303 = vdwg.mxu0
  %4304 = vmatpush.bf16.msra.mxu0 %v4147
  %4305 = vmatpush.bf16.msra.mxu0 %v4146
  %4306 = vmatpush.bf16.msra.mxu0 %v4145
  %4307 = vmatpush.bf16.msra.mxu0 %v4144
  %4308 = vmatpush.bf16.msra.mxu0 %v4143
  %4309 = vmatpush.bf16.msra.mxu0 %v4142
  %4310 = vmatpush.bf16.msra.mxu0 %v4141
  %4311 = vmatpush.bf16.msra.mxu0 %v4140
  %4312 = vmatmul.bf16.gmra.mxu0 %v3812
  %v4313 = vpop.f32.mrf.mxu0
  %v4314 = vadd.f32 %v4301, %v4313
  %v4315 = vpop.f32.mrf.mxu0
  %4316 = vdwg.mxu0
  %4317 = vmatpush.bf16.msra.mxu0 %v4155
  %4318 = vmatpush.bf16.msra.mxu0 %v4154
  %4319 = vmatpush.bf16.msra.mxu0 %v4153
  %4320 = vmatpush.bf16.msra.mxu0 %v4152
  %4321 = vmatpush.bf16.msra.mxu0 %v4151
  %4322 = vmatpush.bf16.msra.mxu0 %v4150
  %4323 = vmatpush.bf16.msra.mxu0 %v4149
  %4324 = vmatpush.bf16.msra.mxu0 %v4148
  %4325 = vmatmul.bf16.gmra.mxu0 %v3813
  %v4326 = vpop.f32.mrf.mxu0
  %v4327 = vadd.f32 %v4314, %v4326
  %v4328 = vpop.f32.mrf.mxu0
  %4329 = vdwg.mxu0
  %4330 = vmatpush.bf16.msra.mxu0 %v4163
  %4331 = vmatpush.bf16.msra.mxu0 %v4162
  %4332 = vmatpush.bf16.msra.mxu0 %v4161
  %4333 = vmatpush.bf16.msra.mxu0 %v4160
  %4334 = vmatpush.bf16.msra.mxu0 %v4159
  %4335 = vmatpush.bf16.msra.mxu0 %v4158
  %4336 = vmatpush.bf16.msra.mxu0 %v4157
  %4337 = vmatpush.bf16.msra.mxu0 %v4156
  %4338 = vmatmul.bf16.gmra.mxu0 %v3814
  %v4339 = vpop.f32.mrf.mxu0
  %v4340 = vadd.f32 %v4327, %v4339
  %v4341 = vpop.f32.mrf.mxu0
  %4342 = vdwg.mxu0
  %4343 = vmatpush.bf16.msra.mxu0 %v4171
  %4344 = vmatpush.bf16.msra.mxu0 %v4170
  %4345 = vmatpush.bf16.msra.mxu0 %v4169
  %4346 = vmatpush.bf16.msra.mxu0 %v4168
  %4347 = vmatpush.bf16.msra.mxu0 %v4167
  %4348 = vmatpush.bf16.msra.mxu0 %v4166
  %4349 = vmatpush.bf16.msra.mxu0 %v4165
  %4350 = vmatpush.bf16.msra.mxu0 %v4164
  %4351 = vmatmul.bf16.gmra.mxu0 %v3815
  %v4352 = vpop.f32.mrf.mxu0
  %v4353 = vadd.f32 %v4340, %v4352
  %v4354 = vpop.f32.mrf.mxu0
  %4355 = vdwg.mxu0
  %4356 = vmatpush.bf16.msra.mxu0 %v4179
  %4357 = vmatpush.bf16.msra.mxu0 %v4178
  %4358 = vmatpush.bf16.msra.mxu0 %v4177
  %4359 = vmatpush.bf16.msra.mxu0 %v4176
  %4360 = vmatpush.bf16.msra.mxu0 %v4175
  %4361 = vmatpush.bf16.msra.mxu0 %v4174
  %4362 = vmatpush.bf16.msra.mxu0 %v4173
  %4363 = vmatpush.bf16.msra.mxu0 %v4172
  %4364 = vmatmul.bf16.gmra.mxu0 %v3816
  %v4365 = vpop.f32.mrf.mxu0
  %v4366 = vadd.f32 %v4353, %v4365
  %v4367 = vpop.f32.mrf.mxu0
  %4368 = vdwg.mxu0
  %v4369 = vmax.f32 %v4366, 0.0
  %v4370 = vld [vmem:[%s2581] sm:$0x3]
  %v4371 = vld [vmem:[%s2581 + $0x1] sm:$0x3]
  %v4372 = vld [vmem:[%s2581 + $0x2] sm:$0x3]
  %v4373 = vpack.c.bf16 %v4370, %v4370
  %v4374 = vpack.c.bf16 %v4371, %v4371
  %v4375 = vpack.c.bf16 %v4372, %v4372
  %4376 = vmatpush.bf16.msra.mxu0 %v4115
  %4377 = vmatpush.bf16.msra.mxu0 %v4114
  %4378 = vmatpush.bf16.msra.mxu0 %v4113
  %4379 = vmatpush.bf16.msra.mxu0 %v4112
  %4380 = vmatpush.bf16.msra.mxu0 %v4111
  %4381 = vmatpush.bf16.msra.mxu0 %v4110
  %4382 = vmatpush.bf16.msra.mxu0 %v4109
  %4383 = vmatpush.bf16.msra.mxu0 %v4108
  %4384 = vmatmul.bf16.gmra.mxu0 %v3811
  %v4385 = vpop.f32.mrf.mxu0
  %v4386 = vadd.f32 %v3818, %v4385
  %v4387 = vpop.f32.mrf.mxu0
  %4388 = vdwg.mxu0
  %4389 = vmatpush.bf16.msra.mxu0 %v4123
  %4390 = vmatpush.bf16.msra.mxu0 %v4122
  %4391 = vmatpush.bf16.msra.mxu0 %v4121
  %4392 = vmatpush.bf16.msra.mxu0 %v4120
  %4393 = vmatpush.bf16.msra.mxu0 %v4119
  %4394 = vmatpush.bf16.msra.mxu0 %v4118
  %4395 = vmatpush.bf16.msra.mxu0 %v4117
  %4396 = vmatpush.bf16.msra.mxu0 %v4116
  %4397 = vmatmul.bf16.gmra.mxu0 %v3812
  %v4398 = vpop.f32.mrf.mxu0
  %v4399 = vadd.f32 %v4386, %v4398
  %v4400 = vpop.f32.mrf.mxu0
  %4401 = vdwg.mxu0
  %4402 = vmatpush.bf16.msra.mxu0 %v4131
  %4403 = vmatpush.bf16.msra.mxu0 %v4130
  %4404 = vmatpush.bf16.msra.mxu0 %v4129
  %4405 = vmatpush.bf16.msra.mxu0 %v4128
  %4406 = vmatpush.bf16.msra.mxu0 %v4127
  %4407 = vmatpush.bf16.msra.mxu0 %v4126
  %4408 = vmatpush.bf16.msra.mxu0 %v4125
  %4409 = vmatpush.bf16.msra.mxu0 %v4124
  %4410 = vmatmul.bf16.gmra.mxu0 %v3813
  %v4411 = vpop.f32.mrf.mxu0
  %v4412 = vadd.f32 %v4399, %v4411
  %v4413 = vpop.f32.mrf.mxu0
  %4414 = vdwg.mxu0
  %4415 = vmatpush.bf16.msra.mxu0 %v4139
  %4416 = vmatpush.bf16.msra.mxu0 %v4138
  %4417 = vmatpush.bf16.msra.mxu0 %v4137
  %4418 = vmatpush.bf16.msra.mxu0 %v4136
  %4419 = vmatpush.bf16.msra.mxu0 %v4135
  %4420 = vmatpush.bf16.msra.mxu0 %v4134
  %4421 = vmatpush.bf16.msra.mxu0 %v4133
  %4422 = vmatpush.bf16.msra.mxu0 %v4132
  %4423 = vmatmul.bf16.gmra.mxu0 %v3814
  %v4424 = vpop.f32.mrf.mxu0
  %v4425 = vadd.f32 %v4412, %v4424
  %v4426 = vpop.f32.mrf.mxu0
  %4427 = vdwg.mxu0
  %4428 = vmatpush.bf16.msra.mxu0 %v4147
  %4429 = vmatpush.bf16.msra.mxu0 %v4146
  %4430 = vmatpush.bf16.msra.mxu0 %v4145
  %4431 = vmatpush.bf16.msra.mxu0 %v4144
  %4432 = vmatpush.bf16.msra.mxu0 %v4143
  %4433 = vmatpush.bf16.msra.mxu0 %v4142
  %4434 = vmatpush.bf16.msra.mxu0 %v4141
  %4435 = vmatpush.bf16.msra.mxu0 %v4140
  %4436 = vmatmul.bf16.gmra.mxu0 %v3815
  %v4437 = vpop.f32.mrf.mxu0
  %v4438 = vadd.f32 %v4425, %v4437
  %v4439 = vpop.f32.mrf.mxu0
  %4440 = vdwg.mxu0
  %4441 = vmatpush.bf16.msra.mxu0 %v4155
  %4442 = vmatpush.bf16.msra.mxu0 %v4154
  %4443 = vmatpush.bf16.msra.mxu0 %v4153
  %4444 = vmatpush.bf16.msra.mxu0 %v4152
  %4445 = vmatpush.bf16.msra.mxu0 %v4151
  %4446 = vmatpush.bf16.msra.mxu0 %v4150
  %4447 = vmatpush.bf16.msra.mxu0 %v4149
  %4448 = vmatpush.bf16.msra.mxu0 %v4148
  %4449 = vmatmul.bf16.gmra.mxu0 %v3816
  %v4450 = vpop.f32.mrf.mxu0
  %v4451 = vadd.f32 %v4438, %v4450
  %v4452 = vpop.f32.mrf.mxu0
  %4453 = vdwg.mxu0
  %4454 = vmatpush.bf16.msra.mxu0 %v4163
  %4455 = vmatpush.bf16.msra.mxu0 %v4162
  %4456 = vmatpush.bf16.msra.mxu0 %v4161
  %4457 = vmatpush.bf16.msra.mxu0 %v4160
  %4458 = vmatpush.bf16.msra.mxu0 %v4159
  %4459 = vmatpush.bf16.msra.mxu0 %v4158
  %4460 = vmatpush.bf16.msra.mxu0 %v4157
  %4461 = vmatpush.bf16.msra.mxu0 %v4156
  %4462 = vmatmul.bf16.gmra.mxu0 %v4373
  %v4463 = vpop.f32.mrf.mxu0
  %v4464 = vadd.f32 %v4451, %v4463
  %v4465 = vpop.f32.mrf.mxu0
  %4466 = vdwg.mxu0
  %4467 = vmatpush.bf16.msra.mxu0 %v4171
  %4468 = vmatpush.bf16.msra.mxu0 %v4170
  %4469 = vmatpush.bf16.msra.mxu0 %v4169
  %4470 = vmatpush.bf16.msra.mxu0 %v4168
  %4471 = vmatpush.bf16.msra.mxu0 %v4167
  %4472 = vmatpush.bf16.msra.mxu0 %v4166
  %4473 = vmatpush.bf16.msra.mxu0 %v4165
  %4474 = vmatpush.bf16.msra.mxu0 %v4164
  %4475 = vmatmul.bf16.gmra.mxu0 %v4374
  %v4476 = vpop.f32.mrf.mxu0
  %v4477 = vadd.f32 %v4464, %v4476
  %v4478 = vpop.f32.mrf.mxu0
  %4479 = vdwg.mxu0
  %4480 = vmatpush.bf16.msra.mxu0 %v4179
  %4481 = vmatpush.bf16.msra.mxu0 %v4178
  %4482 = vmatpush.bf16.msra.mxu0 %v4177
  %4483 = vmatpush.bf16.msra.mxu0 %v4176
  %4484 = vmatpush.bf16.msra.mxu0 %v4175
  %4485 = vmatpush.bf16.msra.mxu0 %v4174
  %4486 = vmatpush.bf16.msra.mxu0 %v4173
  %4487 = vmatpush.bf16.msra.mxu0 %v4172
  %4488 = vmatmul.bf16.gmra.mxu0 %v4375
  %v4489 = vpop.f32.mrf.mxu0
  %v4490 = vadd.f32 %v4477, %v4489
  %v4491 = vpop.f32.mrf.mxu0
  %4492 = vdwg.mxu0
  %v4493 = vmax.f32 %v4490, 0.0
  %v4495 = vrot.slane %v4369, 1
  %v4498 = vrot.slane %v4493, 1
  %v4500 = vpack.c.bf16 %v4369, %v4369
  %v4501 = vpack.c.bf16 %v4495, %v4495
  %v4502 = vpack.c.bf16 %v4493, %v4493
  %v4503 = vpack.c.bf16 %v4498, %v4498
  %v4568 = vunpack.c.l.b16 %v3700
  %v4569 = vunpack.c.h.b16 %v3700
  %v4570 = vunpack.c.l.b16 %v3701
  %v4571 = vunpack.c.h.b16 %v3701
  %v4572 = vunpack.c.l.b16 %v3702
  %v4573 = vunpack.c.h.b16 %v3702
  %v4574 = vunpack.c.l.b16 %v3703
  %v4575 = vunpack.c.h.b16 %v3703
  %v4576 = vunpack.c.l.b16 %v3704
  %v4577 = vunpack.c.h.b16 %v3704
  %v4578 = vunpack.c.l.b16 %v3705
  %v4579 = vunpack.c.h.b16 %v3705
  %v4580 = vunpack.c.l.b16 %v3706
  %v4581 = vunpack.c.h.b16 %v3706
  %v4582 = vunpack.c.l.b16 %v3707
  %v4583 = vunpack.c.h.b16 %v3707
  %v4584 = vunpack.c.l.b16 %v3708
  %v4585 = vunpack.c.h.b16 %v3708
  %v4586 = vunpack.c.l.b16 %v3709
  %v4587 = vunpack.c.h.b16 %v3709
  %v4588 = vunpack.c.l.b16 %v3710
  %v4589 = vunpack.c.h.b16 %v3710
  %v4590 = vunpack.c.l.b16 %v3711
  %v4591 = vunpack.c.h.b16 %v3711
  %v4592 = vunpack.c.l.b16 %v3712
  %v4593 = vunpack.c.h.b16 %v3712
  %v4594 = vunpack.c.l.b16 %v3713
  %v4595 = vunpack.c.h.b16 %v3713
  %v4596 = vunpack.c.l.b16 %v3714
  %v4597 = vunpack.c.h.b16 %v3714
  %v4598 = vunpack.c.l.b16 %v3715
  %v4599 = vunpack.c.h.b16 %v3715
  %v4600 = vunpack.c.l.b16 %v3716
  %v4601 = vunpack.c.h.b16 %v3716
  %v4602 = vunpack.c.l.b16 %v3717
  %v4603 = vunpack.c.h.b16 %v3717
  %v4604 = vunpack.c.l.b16 %v3718
  %v4605 = vunpack.c.h.b16 %v3718
  %v4606 = vunpack.c.l.b16 %v3719
  %v4607 = vunpack.c.h.b16 %v3719
  %v4608 = vunpack.c.l.b16 %v3720
  %v4609 = vunpack.c.h.b16 %v3720
  %v4610 = vunpack.c.l.b16 %v3721
  %v4611 = vunpack.c.h.b16 %v3721
  %v4612 = vunpack.c.l.b16 %v3722
  %v4613 = vunpack.c.h.b16 %v3722
  %v4614 = vunpack.c.l.b16 %v3723
  %v4615 = vunpack.c.h.b16 %v3723
  %v4616 = vunpack.c.l.b16 %v3724
  %v4617 = vunpack.c.h.b16 %v3724
  %v4618 = vunpack.c.l.b16 %v3725
  %v4619 = vunpack.c.h.b16 %v3725
  %v4620 = vunpack.c.l.b16 %v3726
  %v4621 = vunpack.c.h.b16 %v3726
  %v4622 = vunpack.c.l.b16 %v3727
  %v4623 = vunpack.c.h.b16 %v3727
  %v4624 = vunpack.c.l.b16 %v3728
  %v4625 = vunpack.c.h.b16 %v3728
  %v4626 = vunpack.c.l.b16 %v3729
  %v4627 = vunpack.c.h.b16 %v3729
  %v4628 = vunpack.c.l.b16 %v3730
  %v4629 = vunpack.c.h.b16 %v3730
  %v4630 = vunpack.c.l.b16 %v3731
  %v4631 = vunpack.c.h.b16 %v3731
  %v4632 = vunpack.c.l.b16 %v3732
  %v4633 = vunpack.c.h.b16 %v3732
  %v4634 = vunpack.c.l.b16 %v3733
  %v4635 = vunpack.c.h.b16 %v3733
  %v4636 = vunpack.c.l.b16 %v3734
  %v4637 = vunpack.c.h.b16 %v3734
  %v4638 = vunpack.c.l.b16 %v3735
  %v4639 = vunpack.c.h.b16 %v3735
  %v4640 = vunpack.c.l.b16 %v3736
  %v4641 = vunpack.c.h.b16 %v3736
  %v4642 = vunpack.c.l.b16 %v3737
  %v4643 = vunpack.c.h.b16 %v3737
  %v4644 = vunpack.c.l.b16 %v3738
  %v4645 = vunpack.c.h.b16 %v3738
  %v4646 = vunpack.c.l.b16 %v3739
  %v4647 = vunpack.c.h.b16 %v3739
  %v4648 = vunpack.c.l.b16 %v3740
  %v4649 = vunpack.c.h.b16 %v3740
  %v4650 = vunpack.c.l.b16 %v3741
  %v4651 = vunpack.c.h.b16 %v3741
  %v4652 = vunpack.c.l.b16 %v3742
  %v4653 = vunpack.c.h.b16 %v3742
  %v4654 = vunpack.c.l.b16 %v3743
  %v4655 = vunpack.c.h.b16 %v3743
  %v4656 = vunpack.c.l.b16 %v3744
  %v4657 = vunpack.c.h.b16 %v3744
  %v4658 = vunpack.c.l.b16 %v3745
  %v4659 = vunpack.c.h.b16 %v3745
  %v4660 = vunpack.c.l.b16 %v3746
  %v4661 = vunpack.c.h.b16 %v3746
  %v4662 = vunpack.c.l.b16 %v3747
  %v4663 = vunpack.c.h.b16 %v3747
  %v4664 = vunpack.c.l.b16 %v3748
  %v4665 = vunpack.c.h.b16 %v3748
  %v4666 = vunpack.c.l.b16 %v3749
  %v4667 = vunpack.c.h.b16 %v3749
  %v4668 = vunpack.c.l.b16 %v3750
  %v4669 = vunpack.c.h.b16 %v3750
  %v4670 = vunpack.c.l.b16 %v3751
  %v4671 = vunpack.c.h.b16 %v3751
  %v4672 = vunpack.c.l.b16 %v3752
  %v4673 = vunpack.c.h.b16 %v3752
  %v4674 = vunpack.c.l.b16 %v3753
  %v4675 = vunpack.c.h.b16 %v3753
  %v4676 = vunpack.c.l.b16 %v3754
  %v4677 = vunpack.c.h.b16 %v3754
  %v4678 = vunpack.c.l.b16 %v3755
  %v4679 = vunpack.c.h.b16 %v3755
  %v4680 = vunpack.c.l.b16 %v3756
  %v4681 = vunpack.c.h.b16 %v3756
  %v4682 = vunpack.c.l.b16 %v3757
  %v4683 = vunpack.c.h.b16 %v3757
  %v4684 = vunpack.c.l.b16 %v3758
  %v4685 = vunpack.c.h.b16 %v3758
  %v4686 = vunpack.c.l.b16 %v3759
  %v4687 = vunpack.c.h.b16 %v3759
  %v4688 = vunpack.c.l.b16 %v3760
  %v4689 = vunpack.c.h.b16 %v3760
  %v4690 = vunpack.c.l.b16 %v3761
  %v4691 = vunpack.c.h.b16 %v3761
  %v4692 = vunpack.c.l.b16 %v3762
  %v4693 = vunpack.c.h.b16 %v3762
  %v4694 = vunpack.c.l.b16 %v3763
  %v4695 = vunpack.c.h.b16 %v3763
  %v4696 = vpack.c.b16 %v4570, %v4568
  %v4697 = vpack.c.b16 %v4571, %v4569
  %v4698 = vpack.c.b16 %v4574, %v4572
  %v4699 = vpack.c.b16 %v4575, %v4573
  %v4700 = vpack.c.b16 %v4578, %v4576
  %v4701 = vpack.c.b16 %v4579, %v4577
  %v4702 = vpack.c.b16 %v4582, %v4580
  %v4703 = vpack.c.b16 %v4583, %v4581
  %v4704 = vpack.c.b16 %v4586, %v4584
  %v4705 = vpack.c.b16 %v4587, %v4585
  %v4706 = vpack.c.b16 %v4590, %v4588
  %v4707 = vpack.c.b16 %v4591, %v4589
  %v4708 = vpack.c.b16 %v4594, %v4592
  %v4709 = vpack.c.b16 %v4595, %v4593
  %v4710 = vpack.c.b16 %v4598, %v4596
  %v4711 = vpack.c.b16 %v4599, %v4597
  %v4712 = vpack.c.b16 %v4602, %v4600
  %v4713 = vpack.c.b16 %v4603, %v4601
  %v4714 = vpack.c.b16 %v4606, %v4604
  %v4715 = vpack.c.b16 %v4607, %v4605
  %v4716 = vpack.c.b16 %v4610, %v4608
  %v4717 = vpack.c.b16 %v4611, %v4609
  %v4718 = vpack.c.b16 %v4614, %v4612
  %v4719 = vpack.c.b16 %v4615, %v4613
  %v4720 = vpack.c.b16 %v4618, %v4616
  %v4721 = vpack.c.b16 %v4619, %v4617
  %v4722 = vpack.c.b16 %v4622, %v4620
  %v4723 = vpack.c.b16 %v4623, %v4621
  %v4724 = vpack.c.b16 %v4626, %v4624
  %v4725 = vpack.c.b16 %v4627, %v4625
  %v4726 = vpack.c.b16 %v4630, %v4628
  %v4727 = vpack.c.b16 %v4631, %v4629
  %v4728 = vpack.c.b16 %v4634, %v4632
  %v4729 = vpack.c.b16 %v4635, %v4633
  %v4730 = vpack.c.b16 %v4638, %v4636
  %v4731 = vpack.c.b16 %v4639, %v4637
  %v4732 = vpack.c.b16 %v4642, %v4640
  %v4733 = vpack.c.b16 %v4643, %v4641
  %v4734 = vpack.c.b16 %v4646, %v4644
  %v4735 = vpack.c.b16 %v4647, %v4645
  %v4736 = vpack.c.b16 %v4650, %v4648
  %v4737 = vpack.c.b16 %v4651, %v4649
  %v4738 = vpack.c.b16 %v4654, %v4652
  %v4739 = vpack.c.b16 %v4655, %v4653
  %v4740 = vpack.c.b16 %v4658, %v4656
  %v4741 = vpack.c.b16 %v4659, %v4657
  %v4742 = vpack.c.b16 %v4662, %v4660
  %v4743 = vpack.c.b16 %v4663, %v4661
  %v4744 = vpack.c.b16 %v4666, %v4664
  %v4745 = vpack.c.b16 %v4667, %v4665
  %v4746 = vpack.c.b16 %v4670, %v4668
  %v4747 = vpack.c.b16 %v4671, %v4669
  %v4748 = vpack.c.b16 %v4674, %v4672
  %v4749 = vpack.c.b16 %v4675, %v4673
  %v4750 = vpack.c.b16 %v4678, %v4676
  %v4751 = vpack.c.b16 %v4679, %v4677
  %v4752 = vpack.c.b16 %v4682, %v4680
  %v4753 = vpack.c.b16 %v4683, %v4681
  %v4754 = vpack.c.b16 %v4686, %v4684
  %v4755 = vpack.c.b16 %v4687, %v4685
  %v4756 = vpack.c.b16 %v4690, %v4688
  %v4757 = vpack.c.b16 %v4691, %v4689
  %v4758 = vpack.c.b16 %v4694, %v4692
  %v4759 = vpack.c.b16 %v4695, %v4693
  %v4825 = vperm.slane %v3764, 0
  %v4826 = vperm.slane %v3764, 1
  %4829 = vmatpush.bf16.msra.mxu0 %v4710
  %4830 = vmatpush.bf16.msra.mxu0 %v4708
  %4831 = vmatpush.bf16.msra.mxu0 %v4706
  %4832 = vmatpush.bf16.msra.mxu0 %v4704
  %4833 = vmatpush.bf16.msra.mxu0 %v4702
  %4834 = vmatpush.bf16.msra.mxu0 %v4700
  %4835 = vmatpush.bf16.msra.mxu0 %v4698
  %4836 = vmatpush.bf16.msra.mxu0 %v4696
  %4837 = vmatmul.bf16.gmra.mxu0 %v4500
  %v4838 = vpop.f32.mrf.mxu0
  %v4839 = vadd.f32 %v4825, %v4838
  %v4840 = vpop.f32.mrf.mxu0
  %4841 = vdwg.mxu0
  %4842 = vmatpush.bf16.msra.mxu0 %v4726
  %4843 = vmatpush.bf16.msra.mxu0 %v4724
  %4844 = vmatpush.bf16.msra.mxu0 %v4722
  %4845 = vmatpush.bf16.msra.mxu0 %v4720
  %4846 = vmatpush.bf16.msra.mxu0 %v4718
  %4847 = vmatpush.bf16.msra.mxu0 %v4716
  %4848 = vmatpush.bf16.msra.mxu0 %v4714
  %4849 = vmatpush.bf16.msra.mxu0 %v4712
  %4850 = vmatmul.bf16.gmra.mxu0 %v4501
  %v4851 = vpop.f32.mrf.mxu0
  %v4852 = vadd.f32 %v4839, %v4851
  %v4853 = vpop.f32.mrf.mxu0
  %4854 = vdwg.mxu0
  %4855 = vmatpush.bf16.msra.mxu0 %v4742
  %4856 = vmatpush.bf16.msra.mxu0 %v4740
  %4857 = vmatpush.bf16.msra.mxu0 %v4738
  %4858 = vmatpush.bf16.msra.mxu0 %v4736
  %4859 = vmatpush.bf16.msra.mxu0 %v4734
  %4860 = vmatpush.bf16.msra.mxu0 %v4732
  %4861 = vmatpush.bf16.msra.mxu0 %v4730
  %4862 = vmatpush.bf16.msra.mxu0 %v4728
  %4863 = vmatmul.bf16.gmra.mxu0 %v4502
  %v4864 = vpop.f32.mrf.mxu0
  %v4865 = vadd.f32 %v4852, %v4864
  %v4866 = vpop.f32.mrf.mxu0
  %4867 = vdwg.mxu0
  %4868 = vmatpush.bf16.msra.mxu0 %v4758
  %4869 = vmatpush.bf16.msra.mxu0 %v4756
  %4870 = vmatpush.bf16.msra.mxu0 %v4754
  %4871 = vmatpush.bf16.msra.mxu0 %v4752
  %4872 = vmatpush.bf16.msra.mxu0 %v4750
  %4873 = vmatpush.bf16.msra.mxu0 %v4748
  %4874 = vmatpush.bf16.msra.mxu0 %v4746
  %4875 = vmatpush.bf16.msra.mxu0 %v4744
  %4876 = vmatmul.bf16.gmra.mxu0 %v4503
  %v4877 = vpop.f32.mrf.mxu0
  %v4878 = vadd.f32 %v4865, %v4877
  %v4879 = vpop.f32.mrf.mxu0
  %4880 = vdwg.mxu0
  %4881 = vmatpush.bf16.msra.mxu0 %v4711
  %4882 = vmatpush.bf16.msra.mxu0 %v4709
  %4883 = vmatpush.bf16.msra.mxu0 %v4707
  %4884 = vmatpush.bf16.msra.mxu0 %v4705
  %4885 = vmatpush.bf16.msra.mxu0 %v4703
  %4886 = vmatpush.bf16.msra.mxu0 %v4701
  %4887 = vmatpush.bf16.msra.mxu0 %v4699
  %4888 = vmatpush.bf16.msra.mxu0 %v4697
  %4889 = vmatmul.bf16.gmra.mxu0 %v4500
  %v4890 = vpop.f32.mrf.mxu0
  %v4891 = vadd.f32 %v4826, %v4890
  %v4892 = vpop.f32.mrf.mxu0
  %4893 = vdwg.mxu0
  %4894 = vmatpush.bf16.msra.mxu0 %v4727
  %4895 = vmatpush.bf16.msra.mxu0 %v4725
  %4896 = vmatpush.bf16.msra.mxu0 %v4723
  %4897 = vmatpush.bf16.msra.mxu0 %v4721
  %4898 = vmatpush.bf16.msra.mxu0 %v4719
  %4899 = vmatpush.bf16.msra.mxu0 %v4717
  %4900 = vmatpush.bf16.msra.mxu0 %v4715
  %4901 = vmatpush.bf16.msra.mxu0 %v4713
  %4902 = vmatmul.bf16.gmra.mxu0 %v4501
  %v4903 = vpop.f32.mrf.mxu0
  %v4904 = vadd.f32 %v4891, %v4903
  %v4905 = vpop.f32.mrf.mxu0
  %4906 = vdwg.mxu0
  %4907 = vmatpush.bf16.msra.mxu0 %v4743
  %4908 = vmatpush.bf16.msra.mxu0 %v4741
  %4909 = vmatpush.bf16.msra.mxu0 %v4739
  %4910 = vmatpush.bf16.msra.mxu0 %v4737
  %4911 = vmatpush.bf16.msra.mxu0 %v4735
  %4912 = vmatpush.bf16.msra.mxu0 %v4733
  %4913 = vmatpush.bf16.msra.mxu0 %v4731
  %4914 = vmatpush.bf16.msra.mxu0 %v4729
  %4915 = vmatmul.bf16.gmra.mxu0 %v4502
  %v4916 = vpop.f32.mrf.mxu0
  %v4917 = vadd.f32 %v4904, %v4916
  %v4918 = vpop.f32.mrf.mxu0
  %4919 = vdwg.mxu0
  %4920 = vmatpush.bf16.msra.mxu0 %v4759
  %4921 = vmatpush.bf16.msra.mxu0 %v4757
  %4922 = vmatpush.bf16.msra.mxu0 %v4755
  %4923 = vmatpush.bf16.msra.mxu0 %v4753
  %4924 = vmatpush.bf16.msra.mxu0 %v4751
  %4925 = vmatpush.bf16.msra.mxu0 %v4749
  %4926 = vmatpush.bf16.msra.mxu0 %v4747
  %4927 = vmatpush.bf16.msra.mxu0 %v4745
  %4928 = vmatmul.bf16.gmra.mxu0 %v4503
  %v4929 = vpop.f32.mrf.mxu0
  %v4930 = vadd.f32 %v4917, %v4929
  %v4931 = vpop.f32.mrf.mxu0
  %4932 = vdwg.mxu0
  %vm4933 = vcmp.ge.f32.partialorder %v4878, 0.0
  %vm4934 = vcmp.ge.f32.partialorder %v4930, 0.0
  %v4937 = vrot.slane %v4930, 7
  %vm4938 = vcmask 1040384
  %v4939 = vsel %vm4938, %v4878, %v4937
  %v4941 = vmul.f32 %v3765, %v4939
  %v4943 = vperm.slane %v4941, 0
  %v4944 = vperm.slane %v4941, 1
  %v4947 = vsel %vm4933, %v4878, %v4943
  %v4948 = vsel %vm4934, %v4930, %v4944
  %v4949 = vpack.c.bf16 %v4947, %v4947
  %v4950 = vpack.c.bf16 %v4948, %v4948
  %v4983 = vunpack.c.l.b16 %v3766
  %v4984 = vunpack.c.l.b16 %v3767
  %v4985 = vunpack.c.l.b16 %v3768
  %v4986 = vunpack.c.l.b16 %v3769
  %v4987 = vunpack.c.l.b16 %v3770
  %v4988 = vunpack.c.l.b16 %v3771
  %v4989 = vunpack.c.l.b16 %v3772
  %v4990 = vunpack.c.l.b16 %v3773
  %v4991 = vunpack.c.l.b16 %v3774
  %v4992 = vunpack.c.l.b16 %v3775
  %v4993 = vunpack.c.l.b16 %v3776
  %v4994 = vunpack.c.l.b16 %v3777
  %v4995 = vunpack.c.l.b16 %v3778
  %v4996 = vunpack.c.l.b16 %v3779
  %v4997 = vunpack.c.l.b16 %v3780
  %v4998 = vunpack.c.l.b16 %v3781
  %v4999 = vunpack.c.l.b16 %v3782
  %v5000 = vunpack.c.l.b16 %v3783
  %v5001 = vunpack.c.l.b16 %v3784
  %v5002 = vunpack.c.l.b16 %v3785
  %v5003 = vunpack.c.l.b16 %v3786
  %v5004 = vunpack.c.l.b16 %v3787
  %v5005 = vunpack.c.l.b16 %v3788
  %v5006 = vunpack.c.l.b16 %v3789
  %v5007 = vunpack.c.l.b16 %v3790
  %v5008 = vunpack.c.l.b16 %v3791
  %v5009 = vunpack.c.l.b16 %v3792
  %v5010 = vunpack.c.l.b16 %v3793
  %v5011 = vunpack.c.l.b16 %v3794
  %v5012 = vunpack.c.l.b16 %v3795
  %v5013 = vunpack.c.l.b16 %v3796
  %v5014 = vunpack.c.l.b16 %v3797
  %v5015 = vpack.c.b16 %v4984, %v4983
  %v5016 = vpack.c.b16 %v4986, %v4985
  %v5017 = vpack.c.b16 %v4988, %v4987
  %v5018 = vpack.c.b16 %v4990, %v4989
  %v5019 = vpack.c.b16 %v4992, %v4991
  %v5020 = vpack.c.b16 %v4994, %v4993
  %v5021 = vpack.c.b16 %v4996, %v4995
  %v5022 = vpack.c.b16 %v4998, %v4997
  %v5023 = vpack.c.b16 %v5000, %v4999
  %v5024 = vpack.c.b16 %v5002, %v5001
  %v5025 = vpack.c.b16 %v5004, %v5003
  %v5026 = vpack.c.b16 %v5006, %v5005
  %v5027 = vpack.c.b16 %v5008, %v5007
  %v5028 = vpack.c.b16 %v5010, %v5009
  %v5029 = vpack.c.b16 %v5012, %v5011
  %v5030 = vpack.c.b16 %v5014, %v5013
  %5047 = vmatpush.bf16.msra.mxu0 %v5022
  %5048 = vmatpush.bf16.msra.mxu0 %v5021
  %5049 = vmatpush.bf16.msra.mxu0 %v5020
  %5050 = vmatpush.bf16.msra.mxu0 %v5019
  %5051 = vmatpush.bf16.msra.mxu0 %v5018
  %5052 = vmatpush.bf16.msra.mxu0 %v5017
  %5053 = vmatpush.bf16.msra.mxu0 %v5016
  %5054 = vmatpush.bf16.msra.mxu0 %v5015
  %5055 = vmatmul.bf16.gmra.mxu0 %v4949
  %v5056 = vpop.f32.mrf.mxu0
  %v5057 = vadd.f32 %v3798, %v5056
  %v5058 = vpop.f32.mrf.mxu0
  %5059 = vdwg.mxu0
  %5060 = vmatpush.bf16.msra.mxu0 %v5030
  %5061 = vmatpush.bf16.msra.mxu0 %v5029
  %5062 = vmatpush.bf16.msra.mxu0 %v5028
  %5063 = vmatpush.bf16.msra.mxu0 %v5027
  %5064 = vmatpush.bf16.msra.mxu0 %v5026
  %5065 = vmatpush.bf16.msra.mxu0 %v5025
  %5066 = vmatpush.bf16.msra.mxu0 %v5024
  %5067 = vmatpush.bf16.msra.mxu0 %v5023
  %5068 = vmatmul.bf16.gmra.mxu0 %v4950
  %v5069 = vpop.f32.mrf.mxu0
  %v5070 = vadd.f32 %v5057, %v5069
  %v5071 = vpop.f32.mrf.mxu0
  %5072 = vdwg.mxu0
  %vm5073 = vcmask 57344
  %5074 = vst.msk [vmem:[%s12] sm:$0x1] %vm5073, %v5070
  %v5075 = vld [vmem:[%s2824] sm:$0x3]
  %v5076 = vld [vmem:[%s2824 + $0x1] sm:$0x3]
  %v5077 = vld [vmem:[%s2824 + $0x2] sm:$0x3]
  %v5078 = vld [vmem:[%s3067] sm:$0x3]
  %v5079 = vld [vmem:[%s3067 + $0x1] sm:$0x3]
  %v5080 = vld [vmem:[%s3067 + $0x2] sm:$0x3]
  %v5081 = vld [vmem:[%s3310] sm:$0x3]
  %v5082 = vld [vmem:[%s3310 + $0x1] sm:$0x3]
  %v5083 = vld [vmem:[%s3310 + $0x2] sm:$0x3]
  %v5084 = vpack.c.bf16 %v5075, %v5075
  %v5085 = vpack.c.bf16 %v5076, %v5076
  %v5086 = vpack.c.bf16 %v5077, %v5077
  %v5087 = vpack.c.bf16 %v5078, %v5078
  %v5088 = vpack.c.bf16 %v5079, %v5079
  %v5089 = vpack.c.bf16 %v5080, %v5080
  %v5090 = vpack.c.bf16 %v5081, %v5081
  %v5091 = vpack.c.bf16 %v5082, %v5082
  %v5092 = vpack.c.bf16 %v5083, %v5083
  %5093 = vmatpush.bf16.msra.mxu0 %v4115
  %5094 = vmatpush.bf16.msra.mxu0 %v4114
  %5095 = vmatpush.bf16.msra.mxu0 %v4113
  %5096 = vmatpush.bf16.msra.mxu0 %v4112
  %5097 = vmatpush.bf16.msra.mxu0 %v4111
  %5098 = vmatpush.bf16.msra.mxu0 %v4110
  %5099 = vmatpush.bf16.msra.mxu0 %v4109
  %5100 = vmatpush.bf16.msra.mxu0 %v4108
  %5101 = vmatmul.bf16.gmra.mxu0 %v5084
  %v5102 = vpop.f32.mrf.mxu0
  %v5103 = vadd.f32 %v3818, %v5102
  %v5104 = vpop.f32.mrf.mxu0
  %5105 = vdwg.mxu0
  %5106 = vmatpush.bf16.msra.mxu0 %v4123
  %5107 = vmatpush.bf16.msra.mxu0 %v4122
  %5108 = vmatpush.bf16.msra.mxu0 %v4121
  %5109 = vmatpush.bf16.msra.mxu0 %v4120
  %5110 = vmatpush.bf16.msra.mxu0 %v4119
  %5111 = vmatpush.bf16.msra.mxu0 %v4118
  %5112 = vmatpush.bf16.msra.mxu0 %v4117
  %5113 = vmatpush.bf16.msra.mxu0 %v4116
  %5114 = vmatmul.bf16.gmra.mxu0 %v5085
  %v5115 = vpop.f32.mrf.mxu0
  %v5116 = vadd.f32 %v5103, %v5115
  %v5117 = vpop.f32.mrf.mxu0
  %5118 = vdwg.mxu0
  %5119 = vmatpush.bf16.msra.mxu0 %v4131
  %5120 = vmatpush.bf16.msra.mxu0 %v4130
  %5121 = vmatpush.bf16.msra.mxu0 %v4129
  %5122 = vmatpush.bf16.msra.mxu0 %v4128
  %5123 = vmatpush.bf16.msra.mxu0 %v4127
  %5124 = vmatpush.bf16.msra.mxu0 %v4126
  %5125 = vmatpush.bf16.msra.mxu0 %v4125
  %5126 = vmatpush.bf16.msra.mxu0 %v4124
  %5127 = vmatmul.bf16.gmra.mxu0 %v5086
  %v5128 = vpop.f32.mrf.mxu0
  %v5129 = vadd.f32 %v5116, %v5128
  %v5130 = vpop.f32.mrf.mxu0
  %5131 = vdwg.mxu0
  %5132 = vmatpush.bf16.msra.mxu0 %v4139
  %5133 = vmatpush.bf16.msra.mxu0 %v4138
  %5134 = vmatpush.bf16.msra.mxu0 %v4137
  %5135 = vmatpush.bf16.msra.mxu0 %v4136
  %5136 = vmatpush.bf16.msra.mxu0 %v4135
  %5137 = vmatpush.bf16.msra.mxu0 %v4134
  %5138 = vmatpush.bf16.msra.mxu0 %v4133
  %5139 = vmatpush.bf16.msra.mxu0 %v4132
  %5140 = vmatmul.bf16.gmra.mxu0 %v5087
  %v5141 = vpop.f32.mrf.mxu0
  %v5142 = vadd.f32 %v5129, %v5141
  %v5143 = vpop.f32.mrf.mxu0
  %5144 = vdwg.mxu0
  %5145 = vmatpush.bf16.msra.mxu0 %v4147
  %5146 = vmatpush.bf16.msra.mxu0 %v4146
  %5147 = vmatpush.bf16.msra.mxu0 %v4145
  %5148 = vmatpush.bf16.msra.mxu0 %v4144
  %5149 = vmatpush.bf16.msra.mxu0 %v4143
  %5150 = vmatpush.bf16.msra.mxu0 %v4142
  %5151 = vmatpush.bf16.msra.mxu0 %v4141
  %5152 = vmatpush.bf16.msra.mxu0 %v4140
  %5153 = vmatmul.bf16.gmra.mxu0 %v5088
  %v5154 = vpop.f32.mrf.mxu0
  %v5155 = vadd.f32 %v5142, %v5154
  %v5156 = vpop.f32.mrf.mxu0
  %5157 = vdwg.mxu0
  %5158 = vmatpush.bf16.msra.mxu0 %v4155
  %5159 = vmatpush.bf16.msra.mxu0 %v4154
  %5160 = vmatpush.bf16.msra.mxu0 %v4153
  %5161 = vmatpush.bf16.msra.mxu0 %v4152
  %5162 = vmatpush.bf16.msra.mxu0 %v4151
  %5163 = vmatpush.bf16.msra.mxu0 %v4150
  %5164 = vmatpush.bf16.msra.mxu0 %v4149
  %5165 = vmatpush.bf16.msra.mxu0 %v4148
  %5166 = vmatmul.bf16.gmra.mxu0 %v5089
  %v5167 = vpop.f32.mrf.mxu0
  %v5168 = vadd.f32 %v5155, %v5167
  %v5169 = vpop.f32.mrf.mxu0
  %5170 = vdwg.mxu0
  %5171 = vmatpush.bf16.msra.mxu0 %v4163
  %5172 = vmatpush.bf16.msra.mxu0 %v4162
  %5173 = vmatpush.bf16.msra.mxu0 %v4161
  %5174 = vmatpush.bf16.msra.mxu0 %v4160
  %5175 = vmatpush.bf16.msra.mxu0 %v4159
  %5176 = vmatpush.bf16.msra.mxu0 %v4158
  %5177 = vmatpush.bf16.msra.mxu0 %v4157
  %5178 = vmatpush.bf16.msra.mxu0 %v4156
  %5179 = vmatmul.bf16.gmra.mxu0 %v5090
  %v5180 = vpop.f32.mrf.mxu0
  %v5181 = vadd.f32 %v5168, %v5180
  %v5182 = vpop.f32.mrf.mxu0
  %5183 = vdwg.mxu0
  %5184 = vmatpush.bf16.msra.mxu0 %v4171
  %5185 = vmatpush.bf16.msra.mxu0 %v4170
  %5186 = vmatpush.bf16.msra.mxu0 %v4169
  %5187 = vmatpush.bf16.msra.mxu0 %v4168
  %5188 = vmatpush.bf16.msra.mxu0 %v4167
  %5189 = vmatpush.bf16.msra.mxu0 %v4166
  %5190 = vmatpush.bf16.msra.mxu0 %v4165
  %5191 = vmatpush.bf16.msra.mxu0 %v4164
  %5192 = vmatmul.bf16.gmra.mxu0 %v5091
  %v5193 = vpop.f32.mrf.mxu0
  %v5194 = vadd.f32 %v5181, %v5193
  %v5195 = vpop.f32.mrf.mxu0
  %5196 = vdwg.mxu0
  %5197 = vmatpush.bf16.msra.mxu0 %v4179
  %5198 = vmatpush.bf16.msra.mxu0 %v4178
  %5199 = vmatpush.bf16.msra.mxu0 %v4177
  %5200 = vmatpush.bf16.msra.mxu0 %v4176
  %5201 = vmatpush.bf16.msra.mxu0 %v4175
  %5202 = vmatpush.bf16.msra.mxu0 %v4174
  %5203 = vmatpush.bf16.msra.mxu0 %v4173
  %5204 = vmatpush.bf16.msra.mxu0 %v4172
  %5205 = vmatmul.bf16.gmra.mxu0 %v5092
  %v5206 = vpop.f32.mrf.mxu0
  %v5207 = vadd.f32 %v5194, %v5206
  %v5208 = vpop.f32.mrf.mxu0
  %5209 = vdwg.mxu0
  %v5210 = vmax.f32 %v5207, 0.0
  %v5211 = vld [vmem:[%s3553] sm:$0x3]
  %v5212 = vld [vmem:[%s3553 + $0x1] sm:$0x3]
  %v5213 = vld [vmem:[%s3553 + $0x2] sm:$0x3]
  %v5214 = vpack.c.bf16 %v5211, %v5211
  %v5215 = vpack.c.bf16 %v5212, %v5212
  %v5216 = vpack.c.bf16 %v5213, %v5213
  %5217 = vmatpush.bf16.msra.mxu0 %v4115
  %5218 = vmatpush.bf16.msra.mxu0 %v4114
  %5219 = vmatpush.bf16.msra.mxu0 %v4113
  %5220 = vmatpush.bf16.msra.mxu0 %v4112
  %5221 = vmatpush.bf16.msra.mxu0 %v4111
  %5222 = vmatpush.bf16.msra.mxu0 %v4110
  %5223 = vmatpush.bf16.msra.mxu0 %v4109
  %5224 = vmatpush.bf16.msra.mxu0 %v4108
  %5225 = vmatmul.bf16.gmra.mxu0 %v5087
  %v5226 = vpop.f32.mrf.mxu0
  %v5227 = vadd.f32 %v3818, %v5226
  %v5228 = vpop.f32.mrf.mxu0
  %5229 = vdwg.mxu0
  %5230 = vmatpush.bf16.msra.mxu0 %v4123
  %5231 = vmatpush.bf16.msra.mxu0 %v4122
  %5232 = vmatpush.bf16.msra.mxu0 %v4121
  %5233 = vmatpush.bf16.msra.mxu0 %v4120
  %5234 = vmatpush.bf16.msra.mxu0 %v4119
  %5235 = vmatpush.bf16.msra.mxu0 %v4118
  %5236 = vmatpush.bf16.msra.mxu0 %v4117
  %5237 = vmatpush.bf16.msra.mxu0 %v4116
  %5238 = vmatmul.bf16.gmra.mxu0 %v5088
  %v5239 = vpop.f32.mrf.mxu0
  %v5240 = vadd.f32 %v5227, %v5239
  %v5241 = vpop.f32.mrf.mxu0
  %5242 = vdwg.mxu0
  %5243 = vmatpush.bf16.msra.mxu0 %v4131
  %5244 = vmatpush.bf16.msra.mxu0 %v4130
  %5245 = vmatpush.bf16.msra.mxu0 %v4129
  %5246 = vmatpush.bf16.msra.mxu0 %v4128
  %5247 = vmatpush.bf16.msra.mxu0 %v4127
  %5248 = vmatpush.bf16.msra.mxu0 %v4126
  %5249 = vmatpush.bf16.msra.mxu0 %v4125
  %5250 = vmatpush.bf16.msra.mxu0 %v4124
  %5251 = vmatmul.bf16.gmra.mxu0 %v5089
  %v5252 = vpop.f32.mrf.mxu0
  %v5253 = vadd.f32 %v5240, %v5252
  %v5254 = vpop.f32.mrf.mxu0
  %5255 = vdwg.mxu0
  %5256 = vmatpush.bf16.msra.mxu0 %v4139
  %5257 = vmatpush.bf16.msra.mxu0 %v4138
  %5258 = vmatpush.bf16.msra.mxu0 %v4137
  %5259 = vmatpush.bf16.msra.mxu0 %v4136
  %5260 = vmatpush.bf16.msra.mxu0 %v4135
  %5261 = vmatpush.bf16.msra.mxu0 %v4134
  %5262 = vmatpush.bf16.msra.mxu0 %v4133
  %5263 = vmatpush.bf16.msra.mxu0 %v4132
  %5264 = vmatmul.bf16.gmra.mxu0 %v5090
  %v5265 = vpop.f32.mrf.mxu0
  %v5266 = vadd.f32 %v5253, %v5265
  %v5267 = vpop.f32.mrf.mxu0
  %5268 = vdwg.mxu0
  %5269 = vmatpush.bf16.msra.mxu0 %v4147
  %5270 = vmatpush.bf16.msra.mxu0 %v4146
  %5271 = vmatpush.bf16.msra.mxu0 %v4145
  %5272 = vmatpush.bf16.msra.mxu0 %v4144
  %5273 = vmatpush.bf16.msra.mxu0 %v4143
  %5274 = vmatpush.bf16.msra.mxu0 %v4142
  %5275 = vmatpush.bf16.msra.mxu0 %v4141
  %5276 = vmatpush.bf16.msra.mxu0 %v4140
  %5277 = vmatmul.bf16.gmra.mxu0 %v5091
  %v5278 = vpop.f32.mrf.mxu0
  %v5279 = vadd.f32 %v5266, %v5278
  %v5280 = vpop.f32.mrf.mxu0
  %5281 = vdwg.mxu0
  %5282 = vmatpush.bf16.msra.mxu0 %v4155
  %5283 = vmatpush.bf16.msra.mxu0 %v4154
  %5284 = vmatpush.bf16.msra.mxu0 %v4153
  %5285 = vmatpush.bf16.msra.mxu0 %v4152
  %5286 = vmatpush.bf16.msra.mxu0 %v4151
  %5287 = vmatpush.bf16.msra.mxu0 %v4150
  %5288 = vmatpush.bf16.msra.mxu0 %v4149
  %5289 = vmatpush.bf16.msra.mxu0 %v4148
  %5290 = vmatmul.bf16.gmra.mxu0 %v5092
  %v5291 = vpop.f32.mrf.mxu0
  %v5292 = vadd.f32 %v5279, %v5291
  %v5293 = vpop.f32.mrf.mxu0
  %5294 = vdwg.mxu0
  %5295 = vmatpush.bf16.msra.mxu0 %v4163
  %5296 = vmatpush.bf16.msra.mxu0 %v4162
  %5297 = vmatpush.bf16.msra.mxu0 %v4161
  %5298 = vmatpush.bf16.msra.mxu0 %v4160
  %5299 = vmatpush.bf16.msra.mxu0 %v4159
  %5300 = vmatpush.bf16.msra.mxu0 %v4158
  %5301 = vmatpush.bf16.msra.mxu0 %v4157
  %5302 = vmatpush.bf16.msra.mxu0 %v4156
  %5303 = vmatmul.bf16.gmra.mxu0 %v5214
  %v5304 = vpop.f32.mrf.mxu0
  %v5305 = vadd.f32 %v5292, %v5304
  %v5306 = vpop.f32.mrf.mxu0
  %5307 = vdwg.mxu0
  %5308 = vmatpush.bf16.msra.mxu0 %v4171
  %5309 = vmatpush.bf16.msra.mxu0 %v4170
  %5310 = vmatpush.bf16.msra.mxu0 %v4169
  %5311 = vmatpush.bf16.msra.mxu0 %v4168
  %5312 = vmatpush.bf16.msra.mxu0 %v4167
  %5313 = vmatpush.bf16.msra.mxu0 %v4166
  %5314 = vmatpush.bf16.msra.mxu0 %v4165
  %5315 = vmatpush.bf16.msra.mxu0 %v4164
  %5316 = vmatmul.bf16.gmra.mxu0 %v5215
  %v5317 = vpop.f32.mrf.mxu0
  %v5318 = vadd.f32 %v5305, %v5317
  %v5319 = vpop.f32.mrf.mxu0
  %5320 = vdwg.mxu0
  %5321 = vmatpush.bf16.msra.mxu0 %v4179
  %5322 = vmatpush.bf16.msra.mxu0 %v4178
  %5323 = vmatpush.bf16.msra.mxu0 %v4177
  %5324 = vmatpush.bf16.msra.mxu0 %v4176
  %5325 = vmatpush.bf16.msra.mxu0 %v4175
  %5326 = vmatpush.bf16.msra.mxu0 %v4174
  %5327 = vmatpush.bf16.msra.mxu0 %v4173
  %5328 = vmatpush.bf16.msra.mxu0 %v4172
  %5329 = vmatmul.bf16.gmra.mxu0 %v5216
  %v5330 = vpop.f32.mrf.mxu0
  %v5331 = vadd.f32 %v5318, %v5330
  %v5332 = vpop.f32.mrf.mxu0
  %5333 = vdwg.mxu0
  %v5334 = vmax.f32 %v5331, 0.0
  %v5336 = vrot.slane %v5210, 1
  %v5339 = vrot.slane %v5334, 1
  %v5341 = vpack.c.bf16 %v5210, %v5210
  %v5342 = vpack.c.bf16 %v5336, %v5336
  %v5343 = vpack.c.bf16 %v5334, %v5334
  %v5344 = vpack.c.bf16 %v5339, %v5339
  %5345 = vmatpush.bf16.msra.mxu0 %v4710
  %5346 = vmatpush.bf16.msra.mxu0 %v4708
  %5347 = vmatpush.bf16.msra.mxu0 %v4706
  %5348 = vmatpush.bf16.msra.mxu0 %v4704
  %5349 = vmatpush.bf16.msra.mxu0 %v4702
  %5350 = vmatpush.bf16.msra.mxu0 %v4700
  %5351 = vmatpush.bf16.msra.mxu0 %v4698
  %5352 = vmatpush.bf16.msra.mxu0 %v4696
  %5353 = vmatmul.bf16.gmra.mxu0 %v5341
  %v5354 = vpop.f32.mrf.mxu0
  %v5355 = vadd.f32 %v4825, %v5354
  %v5356 = vpop.f32.mrf.mxu0
  %5357 = vdwg.mxu0
  %5358 = vmatpush.bf16.msra.mxu0 %v4726
  %5359 = vmatpush.bf16.msra.mxu0 %v4724
  %5360 = vmatpush.bf16.msra.mxu0 %v4722
  %5361 = vmatpush.bf16.msra.mxu0 %v4720
  %5362 = vmatpush.bf16.msra.mxu0 %v4718
  %5363 = vmatpush.bf16.msra.mxu0 %v4716
  %5364 = vmatpush.bf16.msra.mxu0 %v4714
  %5365 = vmatpush.bf16.msra.mxu0 %v4712
  %5366 = vmatmul.bf16.gmra.mxu0 %v5342
  %v5367 = vpop.f32.mrf.mxu0
  %v5368 = vadd.f32 %v5355, %v5367
  %v5369 = vpop.f32.mrf.mxu0
  %5370 = vdwg.mxu0
  %5371 = vmatpush.bf16.msra.mxu0 %v4742
  %5372 = vmatpush.bf16.msra.mxu0 %v4740
  %5373 = vmatpush.bf16.msra.mxu0 %v4738
  %5374 = vmatpush.bf16.msra.mxu0 %v4736
  %5375 = vmatpush.bf16.msra.mxu0 %v4734
  %5376 = vmatpush.bf16.msra.mxu0 %v4732
  %5377 = vmatpush.bf16.msra.mxu0 %v4730
  %5378 = vmatpush.bf16.msra.mxu0 %v4728
  %5379 = vmatmul.bf16.gmra.mxu0 %v5343
  %v5380 = vpop.f32.mrf.mxu0
  %v5381 = vadd.f32 %v5368, %v5380
  %v5382 = vpop.f32.mrf.mxu0
  %5383 = vdwg.mxu0
  %5384 = vmatpush.bf16.msra.mxu0 %v4758
  %5385 = vmatpush.bf16.msra.mxu0 %v4756
  %5386 = vmatpush.bf16.msra.mxu0 %v4754
  %5387 = vmatpush.bf16.msra.mxu0 %v4752
  %5388 = vmatpush.bf16.msra.mxu0 %v4750
  %5389 = vmatpush.bf16.msra.mxu0 %v4748
  %5390 = vmatpush.bf16.msra.mxu0 %v4746
  %5391 = vmatpush.bf16.msra.mxu0 %v4744
  %5392 = vmatmul.bf16.gmra.mxu0 %v5344
  %v5393 = vpop.f32.mrf.mxu0
  %v5394 = vadd.f32 %v5381, %v5393
  %v5395 = vpop.f32.mrf.mxu0
  %5396 = vdwg.mxu0
  %5397 = vmatpush.bf16.msra.mxu0 %v4711
  %5398 = vmatpush.bf16.msra.mxu0 %v4709
  %5399 = vmatpush.bf16.msra.mxu0 %v4707
  %5400 = vmatpush.bf16.msra.mxu0 %v4705
  %5401 = vmatpush.bf16.msra.mxu0 %v4703
  %5402 = vmatpush.bf16.msra.mxu0 %v4701
  %5403 = vmatpush.bf16.msra.mxu0 %v4699
  %5404 = vmatpush.bf16.msra.mxu0 %v4697
  %5405 = vmatmul.bf16.gmra.mxu0 %v5341
  %v5406 = vpop.f32.mrf.mxu0
  %v5407 = vadd.f32 %v4826, %v5406
  %v5408 = vpop.f32.mrf.mxu0
  %5409 = vdwg.mxu0
  %5410 = vmatpush.bf16.msra.mxu0 %v4727
  %5411 = vmatpush.bf16.msra.mxu0 %v4725
  %5412 = vmatpush.bf16.msra.mxu0 %v4723
  %5413 = vmatpush.bf16.msra.mxu0 %v4721
  %5414 = vmatpush.bf16.msra.mxu0 %v4719
  %5415 = vmatpush.bf16.msra.mxu0 %v4717
  %5416 = vmatpush.bf16.msra.mxu0 %v4715
  %5417 = vmatpush.bf16.msra.mxu0 %v4713
  %5418 = vmatmul.bf16.gmra.mxu0 %v5342
  %v5419 = vpop.f32.mrf.mxu0
  %v5420 = vadd.f32 %v5407, %v5419
  %v5421 = vpop.f32.mrf.mxu0
  %5422 = vdwg.mxu0
  %5423 = vmatpush.bf16.msra.mxu0 %v4743
  %5424 = vmatpush.bf16.msra.mxu0 %v4741
  %5425 = vmatpush.bf16.msra.mxu0 %v4739
  %5426 = vmatpush.bf16.msra.mxu0 %v4737
  %5427 = vmatpush.bf16.msra.mxu0 %v4735
  %5428 = vmatpush.bf16.msra.mxu0 %v4733
  %5429 = vmatpush.bf16.msra.mxu0 %v4731
  %5430 = vmatpush.bf16.msra.mxu0 %v4729
  %5431 = vmatmul.bf16.gmra.mxu0 %v5343
  %v5432 = vpop.f32.mrf.mxu0
  %v5433 = vadd.f32 %v5420, %v5432
  %v5434 = vpop.f32.mrf.mxu0
  %5435 = vdwg.mxu0
  %5436 = vmatpush.bf16.msra.mxu0 %v4759
  %5437 = vmatpush.bf16.msra.mxu0 %v4757
  %5438 = vmatpush.bf16.msra.mxu0 %v4755
  %5439 = vmatpush.bf16.msra.mxu0 %v4753
  %5440 = vmatpush.bf16.msra.mxu0 %v4751
  %5441 = vmatpush.bf16.msra.mxu0 %v4749
  %5442 = vmatpush.bf16.msra.mxu0 %v4747
  %5443 = vmatpush.bf16.msra.mxu0 %v4745
  %5444 = vmatmul.bf16.gmra.mxu0 %v5344
  %v5445 = vpop.f32.mrf.mxu0
  %v5446 = vadd.f32 %v5433, %v5445
  %v5447 = vpop.f32.mrf.mxu0
  %5448 = vdwg.mxu0
  %vm5449 = vcmp.ge.f32.partialorder %v5394, 0.0
  %vm5450 = vcmp.ge.f32.partialorder %v5446, 0.0
  %v5453 = vrot.slane %v5446, 7
  %v5454 = vsel %vm4938, %v5394, %v5453
  %v5456 = vmul.f32 %v3765, %v5454
  %v5458 = vperm.slane %v5456, 0
  %v5459 = vperm.slane %v5456, 1
  %v5462 = vsel %vm5449, %v5394, %v5458
  %v5463 = vsel %vm5450, %v5446, %v5459
  %v5464 = vpack.c.bf16 %v5462, %v5462
  %v5465 = vpack.c.bf16 %v5463, %v5463
  %5466 = vmatpush.bf16.msra.mxu0 %v5022
  %5467 = vmatpush.bf16.msra.mxu0 %v5021
  %5468 = vmatpush.bf16.msra.mxu0 %v5020
  %5469 = vmatpush.bf16.msra.mxu0 %v5019
  %5470 = vmatpush.bf16.msra.mxu0 %v5018
  %5471 = vmatpush.bf16.msra.mxu0 %v5017
  %5472 = vmatpush.bf16.msra.mxu0 %v5016
  %5473 = vmatpush.bf16.msra.mxu0 %v5015
  %5474 = vmatmul.bf16.gmra.mxu0 %v5464
  %v5475 = vpop.f32.mrf.mxu0
  %v5476 = vadd.f32 %v3798, %v5475
  %v5477 = vpop.f32.mrf.mxu0
  %5478 = vdwg.mxu0
  %5479 = vmatpush.bf16.msra.mxu0 %v5030
  %5480 = vmatpush.bf16.msra.mxu0 %v5029
  %5481 = vmatpush.bf16.msra.mxu0 %v5028
  %5482 = vmatpush.bf16.msra.mxu0 %v5027
  %5483 = vmatpush.bf16.msra.mxu0 %v5026
  %5484 = vmatpush.bf16.msra.mxu0 %v5025
  %5485 = vmatpush.bf16.msra.mxu0 %v5024
  %5486 = vmatpush.bf16.msra.mxu0 %v5023
  %5487 = vmatmul.bf16.gmra.mxu0 %v5465
  %v5488 = vpop.f32.mrf.mxu0
  %v5489 = vadd.f32 %v5476, %v5488
  %v5490 = vpop.f32.mrf.mxu0
  %5491 = vdwg.mxu0
  %5492 = vst.msk [vmem:[%s12 + $0x1] sm:$0x1] %vm5073, %v5489
  // Predicated region
  $region50: #{actor_critic_forward.1} parent=0 // pred_check
    _
  $region51: #{actor_critic_forward.1} parent=0 // pred_check_branch
    %5494 = sbr.rel (0) target = $region53
  $region52: #{actor_critic_forward.1} parent=0 // pred_region
    _
  $region53: #{actor_critic_forward.1} parent=0 // pred_fallthru
    _
  // Predicated region
  $region54: #{actor_critic_forward.1} parent=0 // pred_check
    _
  $region55: #{actor_critic_forward.1} parent=0 // pred_check_branch
    %5496 = sbr.rel (0) target = $region57
  $region56: #{actor_critic_forward.1} parent=0 // pred_region
    _
  $region57: #{actor_critic_forward.1} parent=0 // pred_fallthru
    _

</llo_original>
